<compile_context>
chip_gen: v7x
topology: tpu7x:2x2x1
jax: 0.10.0
libtpu: 0.0.40
codegen_flags: <defaults>
</compile_context>

<pallas_src>
import math

import jax
import jax.numpy as jnp
from jax.experimental import pallas as pl
from jax.experimental.pallas import tpu as pltpu


# ---------------------------------------------------------------------------
# small math helpers
# ---------------------------------------------------------------------------
def _gelu_tanh(x):
    # tanh-approx GELU: tanh runs on the EUP slot instead of ~20 VPU ops/elem.
    c = math.sqrt(2.0 / math.pi)
    return 0.5 * x * (1.0 + jnp.tanh(c * (x + 0.044715 * (x * x * x))))


def _gelu_exact(x):
    # exact erf GELU (torch F.gelu default) -- used only in the XLA reference.
    return 0.5 * x * (1.0 + jax.lax.erf(x * (1.0 / math.sqrt(2.0))))


def _layer_norm(x, gamma, beta, eps=1e-6):
    # eps matches nn.LayerNorm(input_size, eps=1e-06) in the PyTorch module.
    mu = jnp.mean(x, axis=-1, keepdims=True)
    xc = x - mu
    var = jnp.mean(xc * xc, axis=-1, keepdims=True)
    return xc * jax.lax.rsqrt(var + eps) * gamma + beta


# ---------------------------------------------------------------------------
# Pallas kernel: one (batch, query-tile) step
# ---------------------------------------------------------------------------
def _make_kernel(compute_dtype):
    cdt = compute_dtype

    def kernel(hid_ref, mask_ref, pos_ref, qu_ref, g_ref, k_ref, v_ref,
               ln1g_ref, ln1b_ref, w1_ref, b1_ref, w2_ref, b2_ref,
               ln2g_ref, ln2b_ref, out_ref):
        H, TQ, dh = qu_ref.shape[1], qu_ref.shape[2], qu_ref.shape[3]
        D = hid_ref.shape[2]
        scale = 1.0 / math.sqrt(dh)

        x_q = hid_ref[0]          # (TQ, D)  f32 residual input (this query tile)
        qu = qu_ref[0]            # (H, TQ, dh) cdt : q + u, head-major
        g = g_ref[0]              # (TQ, H, D)  cdt : (q + v) @ Wr_h^T, query-major
        kh = k_ref[0]             # (H, S, dh)  cdt : K heads (precomputed per batch)
        vh = v_ref[0]             # (H, S, dh)  cdt : V heads (precomputed per batch)
        pos = pos_ref[0]          # (TQ, S, D)  cdt : relative-position tile

        # --- A + C term: (q + u) @ K^T, batched over heads (MXU) -------------
        a_c = jnp.einsum('hqd,hkd->hqk', qu, kh,
                         preferred_element_type=jnp.float32)        # (H, TQ, S)

        # --- B + D term: pos contracted against G, batched over queries ------
        # (Wr bias is constant along keys -> cancels in softmax, dropped.)
        b_d = jnp.einsum('qhD,qkD->qhk', g, pos,
                         preferred_element_type=jnp.float32)        # (TQ, H, S)
        b_d = jnp.transpose(b_d, (1, 0, 2))                         # (H, TQ, S)
        # TODO(synk): per-q matmuls here have only M=H rows; if the pos DMA
        # ever stops being the bottleneck (v7x HBM), pack several queries' G
        # into a block-diagonal LHS to fill the MXU.

        # --- masked softmax over keys (all in f32) ----------------------------
        neg = (1.0 - mask_ref[0]) * 1e15                            # (1, S)
        score = (a_c + b_d) * scale - neg[None, :, :]               # (H, TQ, S)
        score = score - jnp.max(score, axis=-1, keepdims=True)
        p = jnp.exp(score)
        p = p * pl.reciprocal(jnp.sum(p, axis=-1, keepdims=True), approx=True)

        # --- weighted value sum, merge heads ----------------------------------
        ctx = jnp.einsum('hqk,hkd->hqd', p.astype(cdt), vh,
                         preferred_element_type=jnp.float32)        # (H, TQ, dh)
        attn = jnp.transpose(ctx, (1, 0, 2)).reshape(TQ, D)         # (TQ, D)

        # --- residual + LayerNorm1 (dropout1 = identity at inference) ---------
        out1 = _layer_norm(x_q + attn, ln1g_ref[...], ln1b_ref[...])

        # --- FeedForward: Dense(intermediate, gelu) -> Dense(D) ----------------
        h1 = jnp.dot(out1.astype(cdt), w1_ref[...],
                     preferred_element_type=jnp.float32) + b1_ref[...]
        h1 = _gelu_tanh(h1)
        ff = jnp.dot(h1.astype(cdt), w2_ref[...],
                     preferred_element_type=jnp.float32) + b2_ref[...]

        # --- residual + LayerNorm2 (dropout2 = identity at inference) ---------
        out2 = _layer_norm(out1 + ff, ln2g_ref[...], ln2b_ref[...])
        out_ref[0] = out2.astype(out_ref.dtype)

    return kernel


# ---------------------------------------------------------------------------
# VMEM-budget-aware tiling
# ---------------------------------------------------------------------------
def _vmem_capacity_bytes():
    try:
        cap = getattr(pltpu.get_tpu_info(), 'vmem_capacity_bytes', None)
        if cap:
            return int(cap)
    except Exception:
        pass
    return 64 << 20   # conservative default: v7x has the smallest physical VMEM


def _step_vmem_bytes(TQ, S, D, H, inter, cdt_bytes, weight_bytes, single_buf_w):
    # double-buffered streamed blocks
    streamed = 2 * (TQ * S * D * cdt_bytes        # pos tile
                    + 2 * S * D * cdt_bytes       # K + V heads (per batch elem)
                    + TQ * D * cdt_bytes          # (q + u) heads
                    + TQ * H * D * cdt_bytes      # G
                    + 2 * TQ * D * 4              # hidden tile + output tile
                    + S * 4)                      # key mask
    weights = (1 if single_buf_w else 2) * weight_bytes
    temps = (6 * H * TQ * S * 4 + H * TQ * S * cdt_bytes      # score/prob temps
             + 2 * TQ * inter * 4 + TQ * inter * cdt_bytes    # FFN activations
             + 8 * TQ * D * 4)                                # ctx / residual / LN
    return streamed + weights + temps + (2 << 20)


def _choose_q_tile(B, S, D, H, inter, cdt_bytes, weight_bytes, budget):
    cands = [t for t in (512, 256, 128, 64, 32, 16, 8) if t <= S and S % t == 0]
    if not cands:
        cands = [S]
    TQ = cands[-1]
    for t in cands:  # descending: first fit is the largest that fits the budget
        if _step_vmem_bytes(t, S, D, H, inter, cdt_bytes, weight_bytes, True) <= budget:
            TQ = t
            break
    # v7x megacore balance: make sure there are >= 2 grid steps to shard
    # across the two TensorCores.
    while B * (S // TQ) < 2 and TQ > 8 and TQ % 2 == 0 and S % (TQ // 2) == 0:
        TQ //= 2
    return TQ


# ---------------------------------------------------------------------------
# wrapper
# ---------------------------------------------------------------------------
def rel_transformer_encoder_layer(hidden, mask, pos, params, num_heads, *,
                                  q_tile=None, compute_dtype=jnp.bfloat16):
    B, S, D = hidden.shape
    assert pos.shape == (B, S, S, D)
    H = num_heads
    assert D % H == 0
    dh = D // H
    cdt = jnp.dtype(compute_dtype)
    cdt_bytes = cdt.itemsize
    f32 = jnp.float32
    hp = jax.lax.Precision.HIGHEST
    inter = params['w1'].shape[1]

    hidden = hidden.astype(f32)
    mask3 = mask.reshape(B, 1, S).astype(f32)
    pos_c = pos.astype(cdt)

    # ---- once-per-token projections hoisted out of the grid (plain XLA) -----
    q = jnp.dot(hidden, params['wq'].astype(f32), precision=hp) + params['bq']
    k = jnp.dot(hidden, params['wk'].astype(f32), precision=hp) + params['bk']
    v = jnp.dot(hidden, params['wv'].astype(f32), precision=hp) + params['bv']

    u_flat = params['u'].astype(f32).reshape(1, 1, D)   # lane-dense u/v adds
    v_flat = params['v'].astype(f32).reshape(1, 1, D)

    def split_heads(t):                      # (B, S, D) -> (B, H, S, dh)
        return t.reshape(B, S, H, dh).transpose(0, 2, 1, 3)

    q_u_h = split_heads(q + u_flat).astype(cdt)          # (B, H, S, dh)
    k_h = split_heads(k).astype(cdt)                     # (B, H, S, dh)
    v_h = split_heads(v).astype(cdt)                     # (B, H, S, dh)

    # g[b,q,h,i] = sum_d (q + v)[b, q, h*dh + d] * Wr[i, h*dh + d]
    # (query-major layout so the in-kernel pos contraction needs no relayout;
    #  the Wr bias contributes a per-(b,h,q) constant over keys -> cancels).
    wr3 = params['wr'].astype(f32).reshape(D, H, dh)
    g = jnp.einsum('bqhd,ihd->bqhi', (q + v_flat).reshape(B, S, H, dh), wr3,
                   precision=hp).astype(cdt)             # (B, S, H, D)

    wlist = [
        params['ln1_g'].astype(f32), params['ln1_b'].astype(f32),
        params['w1'].astype(cdt), params['b1'].astype(f32),
        params['w2'].astype(cdt), params['b2'].astype(f32),
        params['ln2_g'].astype(f32), params['ln2_b'].astype(f32),
    ]
    weight_bytes = sum(int(p.size) * p.dtype.itemsize for p in wlist)

    cap = _vmem_capacity_bytes()
    budget = max(cap - (8 << 20), 16 << 20)
    TQ = (q_tile if q_tile is not None
          else _choose_q_tile(B, S, D, H, inter, cdt_bytes, weight_bytes, budget))
    assert S % TQ == 0, "q_tile must divide the sequence length"

    need = _step_vmem_bytes(TQ, S, D, H, inter, cdt_bytes, weight_bytes, True)
    limit = None
    if need > (16 << 20):
        limit = int(min(max(int(need * 1.25), 32 << 20), cap - (4 << 20)))

    stream_specs = [
        pl.BlockSpec((1, TQ, D), lambda b, qi: (b, qi, 0)),         # hidden (query tile)
        pl.BlockSpec((1, 1, S), lambda b, qi: (b, 0, 0)),           # key mask
        pl.BlockSpec((1, TQ, S, D), lambda b, qi: (b, qi, 0, 0)),   # pos (query tile)
        pl.BlockSpec((1, H, TQ, dh), lambda b, qi: (b, 0, qi, 0)),  # q + u heads
        pl.BlockSpec((1, TQ, H, D), lambda b, qi: (b, qi, 0, 0)),   # G
        pl.BlockSpec((1, H, S, dh), lambda b, qi: (b, 0, 0, 0)),    # K heads
        pl.BlockSpec((1, H, S, dh), lambda b, qi: (b, 0, 0, 0)),    # V heads
    ]
    out_spec = pl.BlockSpec((1, TQ, D), lambda b, qi: (b, qi, 0))

    flops = int(2 * B * H * S * S * (2 * dh + D) + 4 * B * S * D * inter)
    transcendentals = int(B * H * S * S + B * S * inter)
    bytes_accessed = int(pos_c.size * cdt_bytes
                         + (q_u_h.size + k_h.size + v_h.size + g.size) * cdt_bytes
                         + 2 * B * S * D * 4 + weight_bytes)
    cost = pl.CostEstimate(flops=flops, transcendentals=transcendentals,
                           bytes_accessed=bytes_accessed)

    def build(single_buffer_weights):
        def const_spec(p):
            idx = lambda b, qi, _nd=p.ndim: (0,) * _nd
            if single_buffer_weights:
                # weights never change across grid steps: single-buffer them
                return pl.BlockSpec(p.shape, idx, pipeline_mode=pl.Buffered(1))
            return pl.BlockSpec(p.shape, idx)

        grid_spec = pltpu.PrefetchScalarGridSpec(
            num_scalar_prefetch=0, grid=(B, S // TQ),
            in_specs=stream_specs + [const_spec(p) for p in wlist],
            out_specs=out_spec)
        return pl.pallas_call(
            _make_kernel(cdt),
            out_shape=jax.ShapeDtypeStruct((B, S, D), jnp.float32),
            grid_spec=grid_spec,
            compiler_params=pltpu.CompilerParams(
                dimension_semantics=("parallel", "parallel"),
                vmem_limit_bytes=limit),
            cost_estimate=cost)

    args = (hidden, mask3, pos_c, q_u_h, g, k_h, v_h, *wlist)
    try:
        return build(True)(*args)
    except Exception:
        # TODO(synk): this jax build rejected pipeline_mode=pl.Buffered(1);
        # fall back to default (double-buffered) constant-weight blocks.
        return build(False)(*args)


# ---------------------------------------------------------------------------
# deterministic parameter init (synthetic; shapes from the module's __init__)
# ---------------------------------------------------------------------------
def init_params(key, D, num_heads, intermediate=1024):
    d = D // num_heads
    ks = jax.random.split(key, 12)
    n = lambda k, shape, s=0.05: jax.random.normal(k, shape, jnp.float32) * s
    return dict(
        wq=n(ks[0], (D, D)), bq=n(ks[1], (1, D), 0.01),
        wk=n(ks[2], (D, D)), bk=n(ks[3], (1, D), 0.01),
        wv=n(ks[4], (D, D)), bv=n(ks[5], (1, D), 0.01),
        wr=n(ks[6], (D, D)), br=n(ks[7], (1, D), 0.01),
        u=n(ks[8], (num_heads, d), 0.1), v=n(ks[9], (num_heads, d), 0.1),
        ln1_g=jnp.ones((1, D), jnp.float32), ln1_b=jnp.zeros((1, D), jnp.float32),
        w1=n(ks[10], (D, intermediate)), b1=jnp.zeros((1, intermediate), jnp.float32),
        w2=n(ks[11], (intermediate, D)), b2=jnp.zeros((1, D), jnp.float32),
        ln2_g=jnp.ones((1, D), jnp.float32), ln2_b=jnp.zeros((1, D), jnp.float32),
    )


# ---------------------------------------------------------------------------
# pure-JAX reference (mirrors the PyTorch forward, exact erf GELU)
# ---------------------------------------------------------------------------
def reference(hidden, mask, pos, p, num_heads):
    B, S, D = hidden.shape
    d = D // num_heads
    q = hidden @ p['wq'] + p['bq']
    k = hidden @ p['wk'] + p['bk']
    v = hidden @ p['wv'] + p['bv']
    r = pos @ p['wr'] + p['br']
    split = lambda t: t.reshape(B, S, num_heads, d).transpose(0, 2, 1, 3)
    qh, kh, vh = split(q), split(k), split(v)
    rh = r.reshape(B, S, S, num_heads, d)
    a_c = jnp.einsum('bhqd,bhkd->bhqk', qh + p['u'][None, :, None, :], kh)
    b_d = jnp.einsum('bhqd,bqkhd->bhqk', qh + p['v'][None, :, None, :], rh)
    score = (a_c + b_d) / math.sqrt(d)
    score = score - (1.0 - mask)[:, None, None, :] * 1e15
    attn = jax.nn.softmax(score, axis=-1)
    ctx = jnp.einsum('bhqk,bhkd->bhqd', attn, vh).transpose(0, 2, 1, 3).reshape(B, S, D)
    out1 = _layer_norm(hidden + ctx, p['ln1_g'], p['ln1_b'])
    h1 = _gelu_exact(out1 @ p['w1'] + p['b1'])
    ff = h1 @ p['w2'] + p['b2']
    return _layer_norm(out1 + ff, p['ln2_g'], p['ln2_b'])


if __name__ == "__main__":
    key = jax.random.PRNGKey(0)
    B, S, D, H = 2, 16, 128, 4
    k1, k2, k3, kp = jax.random.split(key, 4)
    hidden = jax.random.normal(k1, (B, S, D), jnp.float32)
    pos = jax.random.normal(k2, (B, S, S, D), jnp.float32)
    mask = (jax.random.uniform(k3, (B, S)) > 0.2).astype(jnp.float32)
    mask = mask.at[:, 0].set(1.0)  # guarantee at least one valid key per row

    params = init_params(kp, D, H, intermediate=1024)

    with jax.default_matmul_precision("highest"):
        ref = reference(hidden, mask, pos, params, H)

    # f32 compute path with a forced small tile (exercises 2 query tiles)
    out_f32 = rel_transformer_encoder_layer(hidden, mask, pos, params, H,
                                            q_tile=8, compute_dtype=jnp.float32)
    out_f32 = jax.block_until_ready(out_f32)
    assert out_f32.shape == (B, S, D)
    err32 = float(jnp.max(jnp.abs(out_f32 - ref)))
    assert jnp.allclose(out_f32, ref, atol=2e-2, rtol=2e-2), err32

    # bf16 matmul path with the auto-chosen tile (the performance configuration)
    out_bf16 = rel_transformer_encoder_layer(hidden, mask, pos, params, H,
                                             compute_dtype=jnp.bfloat16)
    out_bf16 = jax.block_until_ready(out_bf16)
    assert out_bf16.shape == (B, S, D)
    err16 = float(jnp.max(jnp.abs(out_bf16 - ref)))
    assert jnp.allclose(out_bf16, ref, atol=5e-2, rtol=5e-2), err16

    print("KERNEL_OK")
</pallas_src>

<mosaic_0001>
module attributes {stable_mosaic.version = 11 : i64} {
  func.func @kernel(%arg0: i32, %arg1: i32, %arg2: memref<1x8x128xf32, #tpu.memory_space<vmem>>, %arg3: memref<1x1x16xf32, #tpu.memory_space<vmem>>, %arg4: memref<1x8x16x128xf32, #tpu.memory_space<vmem>>, %arg5: memref<1x4x8x32xf32, #tpu.memory_space<vmem>>, %arg6: memref<1x8x4x128xf32, #tpu.memory_space<vmem>>, %arg7: memref<1x4x16x32xf32, #tpu.memory_space<vmem>>, %arg8: memref<1x4x16x32xf32, #tpu.memory_space<vmem>>, %arg9: memref<1x128xf32, #tpu.memory_space<vmem>>, %arg10: memref<1x128xf32, #tpu.memory_space<vmem>>, %arg11: memref<128x1024xf32, #tpu.memory_space<vmem>>, %arg12: memref<1x1024xf32, #tpu.memory_space<vmem>>, %arg13: memref<1024x128xf32, #tpu.memory_space<vmem>>, %arg14: memref<1x128xf32, #tpu.memory_space<vmem>>, %arg15: memref<1x128xf32, #tpu.memory_space<vmem>>, %arg16: memref<1x128xf32, #tpu.memory_space<vmem>>, %arg17: memref<1x8x128xf32, #tpu.memory_space<vmem>>) attributes {dimension_semantics = [#tpu.dimension_semantics<parallel>, #tpu.dimension_semantics<parallel>], iteration_bounds = array<i64: 2, 2>, scalar_prefetch = 0 : i64, scratch_operands = 0 : i64, tpu.core_type = #tpu.core_type<tc>, window_params = [{transform_indices = @transform_0, window_bounds = array<i64: 1, 8, 128>}, {transform_indices = @transform_1, window_bounds = array<i64: 1, 1, 16>}, {transform_indices = @transform_2, window_bounds = array<i64: 1, 8, 16, 128>}, {transform_indices = @transform_3, window_bounds = array<i64: 1, 4, 8, 32>}, {transform_indices = @transform_4, window_bounds = array<i64: 1, 8, 4, 128>}, {transform_indices = @transform_5, window_bounds = array<i64: 1, 4, 16, 32>}, {transform_indices = @transform_6, window_bounds = array<i64: 1, 4, 16, 32>}, {pipeline_mode = #tpu.pipeline_mode<synchronous>, transform_indices = @transform_7, window_bounds = array<i64: 1, 128>}, {pipeline_mode = #tpu.pipeline_mode<synchronous>, transform_indices = @transform_8, window_bounds = array<i64: 1, 128>}, {pipeline_mode = #tpu.pipeline_mode<synchronous>, transform_indices = @transform_9, window_bounds = array<i64: 128, 1024>}, {pipeline_mode = #tpu.pipeline_mode<synchronous>, transform_indices = @transform_10, window_bounds = array<i64: 1, 1024>}, {pipeline_mode = #tpu.pipeline_mode<synchronous>, transform_indices = @transform_11, window_bounds = array<i64: 1024, 128>}, {pipeline_mode = #tpu.pipeline_mode<synchronous>, transform_indices = @transform_12, window_bounds = array<i64: 1, 128>}, {pipeline_mode = #tpu.pipeline_mode<synchronous>, transform_indices = @transform_13, window_bounds = array<i64: 1, 128>}, {pipeline_mode = #tpu.pipeline_mode<synchronous>, transform_indices = @transform_14, window_bounds = array<i64: 1, 128>}, {transform_indices = @transform_15, window_bounds = array<i64: 1, 8, 128>}]} {
    %c0 = arith.constant 0 : index
    %c0_0 = arith.constant 0 : index
    %c0_1 = arith.constant 0 : index
    %0 = vector.load %arg2[%c0, %c0_0, %c0_1] : memref<1x8x128xf32, #tpu.memory_space<vmem>>, vector<1x8x128xf32>
    %1 = vector.shape_cast %0 : vector<1x8x128xf32> to vector<8x128xf32>
    %c0_2 = arith.constant 0 : index
    %c0_3 = arith.constant 0 : index
    %c0_4 = arith.constant 0 : index
    %c0_5 = arith.constant 0 : index
    %2 = vector.load %arg5[%c0_2, %c0_3, %c0_4, %c0_5] : memref<1x4x8x32xf32, #tpu.memory_space<vmem>>, vector<1x4x8x32xf32>
    %3 = vector.shape_cast %2 : vector<1x4x8x32xf32> to vector<4x8x32xf32>
    %c0_6 = arith.constant 0 : index
    %c0_7 = arith.constant 0 : index
    %c0_8 = arith.constant 0 : index
    %c0_9 = arith.constant 0 : index
    %4 = vector.load %arg6[%c0_6, %c0_7, %c0_8, %c0_9] : memref<1x8x4x128xf32, #tpu.memory_space<vmem>>, vector<1x8x4x128xf32>
    %5 = vector.shape_cast %4 : vector<1x8x4x128xf32> to vector<8x4x128xf32>
    %c0_10 = arith.constant 0 : index
    %c0_11 = arith.constant 0 : index
    %c0_12 = arith.constant 0 : index
    %c0_13 = arith.constant 0 : index
    %6 = vector.load %arg7[%c0_10, %c0_11, %c0_12, %c0_13] : memref<1x4x16x32xf32, #tpu.memory_space<vmem>>, vector<1x4x16x32xf32>
    %7 = vector.shape_cast %6 : vector<1x4x16x32xf32> to vector<4x16x32xf32>
    %c0_14 = arith.constant 0 : index
    %c0_15 = arith.constant 0 : index
    %c0_16 = arith.constant 0 : index
    %c0_17 = arith.constant 0 : index
    %8 = vector.load %arg8[%c0_14, %c0_15, %c0_16, %c0_17] : memref<1x4x16x32xf32, #tpu.memory_space<vmem>>, vector<1x4x16x32xf32>
    %9 = vector.shape_cast %8 : vector<1x4x16x32xf32> to vector<4x16x32xf32>
    %c0_18 = arith.constant 0 : index
    %c0_19 = arith.constant 0 : index
    %c0_20 = arith.constant 0 : index
    %c0_21 = arith.constant 0 : index
    %10 = vector.load %arg4[%c0_18, %c0_19, %c0_20, %c0_21] : memref<1x8x16x128xf32, #tpu.memory_space<vmem>>, vector<1x8x16x128xf32>
    %11 = vector.shape_cast %10 : vector<1x8x16x128xf32> to vector<8x16x128xf32>
    "tpu.trace_start"() <{level = 10 : i32, message = "hqd,hkd->hqk"}> : () -> ()
    %cst = arith.constant dense<0.000000e+00> : vector<4x8x16xf32>
    %12 = tpu.matmul %3, %7, %cst {dimension_numbers = #tpu.dot_dimension_numbers<[2], [2], [1], [1], [0, 0, 0, 1, 1, 1], [0], [0]>} : vector<4x8x32xf32>, vector<4x16x32xf32>, vector<4x8x16xf32> -> vector<4x8x16xf32>
    "tpu.trace_stop"() : () -> ()
    "tpu.trace_start"() <{level = 10 : i32, message = "qhD,qkD->qhk"}> : () -> ()
    %cst_22 = arith.constant dense<0.000000e+00> : vector<8x4x16xf32>
    %13 = tpu.matmul %5, %11, %cst_22 {dimension_numbers = #tpu.dot_dimension_numbers<[2], [2], [1], [1], [0, 0, 0, 1, 1, 1], [0], [0]>} : vector<8x4x128xf32>, vector<8x16x128xf32>, vector<8x4x16xf32> -> vector<8x4x16xf32>
    "tpu.trace_stop"() : () -> ()
    %14 = tpu.transpose %13, [1, 0, 2] : vector<8x4x16xf32> -> vector<4x8x16xf32>
    %c0_23 = arith.constant 0 : index
    %c0_24 = arith.constant 0 : index
    %c0_25 = arith.constant 0 : index
    %15 = vector.load %arg3[%c0_23, %c0_24, %c0_25] : memref<1x1x16xf32, #tpu.memory_space<vmem>>, vector<1x1x16xf32>
    %16 = vector.shape_cast %15 : vector<1x1x16xf32> to vector<1x16xf32>
    %cst_26 = arith.constant 1.000000e+00 : f32
    %17 = vector.broadcast %cst_26 : f32 to vector<1x16xf32>
    %18 = arith.subf %17, %16 : vector<1x16xf32>
    %cst_27 = arith.constant 9.99999986E+14 : f32
    %19 = vector.broadcast %cst_27 : f32 to vector<1x16xf32>
    %20 = arith.mulf %18, %19 : vector<1x16xf32>
    %21 = arith.addf %12, %14 : vector<4x8x16xf32>
    %cst_28 = arith.constant 0.176776692 : f32
    %22 = vector.broadcast %cst_28 : f32 to vector<4x8x16xf32>
    %23 = arith.mulf %21, %22 : vector<4x8x16xf32>
    %24 = vector.shape_cast %20 : vector<1x16xf32> to vector<1x1x16xf32>
    %25 = vector.broadcast %24 : vector<1x1x16xf32> to vector<4x8x16xf32>
    %26 = arith.subf %23, %25 : vector<4x8x16xf32>
    %cst_29 = arith.constant dense<0xFF800000> : vector<4x8xf32>
    %27 = vector.multi_reduction <maximumf>, %26, %cst_29 [2] : vector<4x8x16xf32> to vector<4x8xf32>
    %28 = vector.shape_cast %27 : vector<4x8xf32> to vector<4x8x1xf32>
    %29 = vector.broadcast %28 : vector<4x8x1xf32> to vector<4x8x16xf32>
    %30 = arith.subf %26, %29 : vector<4x8x16xf32>
    %31 = math.exp %30 : vector<4x8x16xf32>
    %cst_30 = arith.constant dense<0.000000e+00> : vector<4x8xf32>
    %32 = vector.multi_reduction <add>, %31, %cst_30 [2] : vector<4x8x16xf32> to vector<4x8xf32>
    %33 = vector.shape_cast %32 : vector<4x8xf32> to vector<4x8x1xf32>
    %34 = tpu.reciprocal %33 {approx = true} : vector<4x8x1xf32> -> vector<4x8x1xf32>
    %35 = vector.broadcast %34 : vector<4x8x1xf32> to vector<4x8x16xf32>
    %36 = arith.mulf %31, %35 : vector<4x8x16xf32>
    "tpu.trace_start"() <{level = 10 : i32, message = "hqk,hkd->hqd"}> : () -> ()
    %cst_31 = arith.constant dense<0.000000e+00> : vector<4x8x32xf32>
    %37 = tpu.matmul %36, %9, %cst_31 {dimension_numbers = #tpu.dot_dimension_numbers<[2], [1], [1], [2], [0, 0, 0, 1, 1, 2], [0], [0]>} : vector<4x8x16xf32>, vector<4x16x32xf32>, vector<4x8x32xf32> -> vector<4x8x32xf32>
    "tpu.trace_stop"() : () -> ()
    %38 = tpu.transpose %37, [1, 0, 2] : vector<4x8x32xf32> -> vector<8x4x32xf32>
    %39 = vector.shape_cast %38 : vector<8x4x32xf32> to vector<8x128xf32>
    %40 = arith.addf %1, %39 : vector<8x128xf32>
    %c0_32 = arith.constant 0 : index
    %c0_33 = arith.constant 0 : index
    %41 = vector.load %arg9[%c0_32, %c0_33] : memref<1x128xf32, #tpu.memory_space<vmem>>, vector<1x128xf32>
    %c0_34 = arith.constant 0 : index
    %c0_35 = arith.constant 0 : index
    %42 = vector.load %arg10[%c0_34, %c0_35] : memref<1x128xf32, #tpu.memory_space<vmem>>, vector<1x128xf32>
    %cst_36 = arith.constant dense<0.000000e+00> : vector<8xf32>
    %43 = vector.multi_reduction <add>, %40, %cst_36 [1] : vector<8x128xf32> to vector<8xf32>
    %44 = vector.shape_cast %43 : vector<8xf32> to vector<8x1xf32>
    %cst_37 = arith.constant 1.280000e+02 : f32
    %45 = vector.broadcast %cst_37 : f32 to vector<8x1xf32>
    %46 = arith.divf %44, %45 : vector<8x1xf32>
    %47 = vector.broadcast %46 : vector<8x1xf32> to vector<8x128xf32>
    %48 = arith.subf %40, %47 : vector<8x128xf32>
    %49 = arith.mulf %48, %48 : vector<8x128xf32>
    %cst_38 = arith.constant dense<0.000000e+00> : vector<8xf32>
    %50 = vector.multi_reduction <add>, %49, %cst_38 [1] : vector<8x128xf32> to vector<8xf32>
    %51 = vector.shape_cast %50 : vector<8xf32> to vector<8x1xf32>
    %cst_39 = arith.constant 1.280000e+02 : f32
    %52 = vector.broadcast %cst_39 : f32 to vector<8x1xf32>
    %53 = arith.divf %51, %52 : vector<8x1xf32>
    %cst_40 = arith.constant 9.99999997E-7 : f32
    %54 = vector.broadcast %cst_40 : f32 to vector<8x1xf32>
    %55 = arith.addf %53, %54 : vector<8x1xf32>
    %56 = math.rsqrt %55 : vector<8x1xf32>
    %57 = vector.broadcast %56 : vector<8x1xf32> to vector<8x128xf32>
    %58 = arith.mulf %48, %57 : vector<8x128xf32>
    %59 = vector.broadcast %41 : vector<1x128xf32> to vector<8x128xf32>
    %60 = arith.mulf %58, %59 : vector<8x128xf32>
    %61 = vector.broadcast %42 : vector<1x128xf32> to vector<8x128xf32>
    %62 = arith.addf %60, %61 : vector<8x128xf32>
    %c0_41 = arith.constant 0 : index
    %c0_42 = arith.constant 0 : index
    %63 = vector.load %arg11[%c0_41, %c0_42] : memref<128x1024xf32, #tpu.memory_space<vmem>>, vector<128x1024xf32>
    %cst_43 = arith.constant dense<0.000000e+00> : vector<8x1024xf32>
    %64 = tpu.matmul %62, %63, %cst_43 {dimension_numbers = #tpu.dot_dimension_numbers<[1], [0], [0], [1], [0, 0, 1, 1], [], []>} : vector<8x128xf32>, vector<128x1024xf32>, vector<8x1024xf32> -> vector<8x1024xf32>
    %c0_44 = arith.constant 0 : index
    %c0_45 = arith.constant 0 : index
    %65 = vector.load %arg12[%c0_44, %c0_45] : memref<1x1024xf32, #tpu.memory_space<vmem>>, vector<1x1024xf32>
    %66 = vector.broadcast %65 : vector<1x1024xf32> to vector<8x1024xf32>
    %67 = arith.addf %64, %66 : vector<8x1024xf32>
    %cst_46 = arith.constant 5.000000e-01 : f32
    %68 = vector.broadcast %cst_46 : f32 to vector<8x1024xf32>
    %69 = arith.mulf %68, %67 : vector<8x1024xf32>
    %70 = arith.mulf %67, %67 : vector<8x1024xf32>
    %71 = arith.mulf %70, %67 : vector<8x1024xf32>
    %cst_47 = arith.constant 4.471500e-02 : f32
    %72 = vector.broadcast %cst_47 : f32 to vector<8x1024xf32>
    %73 = arith.mulf %72, %71 : vector<8x1024xf32>
    %74 = arith.addf %67, %73 : vector<8x1024xf32>
    %cst_48 = arith.constant 0.797884583 : f32
    %75 = vector.broadcast %cst_48 : f32 to vector<8x1024xf32>
    %76 = arith.mulf %75, %74 : vector<8x1024xf32>
    %77 = math.tanh %76 : vector<8x1024xf32>
    %cst_49 = arith.constant 1.000000e+00 : f32
    %78 = vector.broadcast %cst_49 : f32 to vector<8x1024xf32>
    %79 = arith.addf %78, %77 : vector<8x1024xf32>
    %80 = arith.mulf %69, %79 : vector<8x1024xf32>
    %c0_50 = arith.constant 0 : index
    %c0_51 = arith.constant 0 : index
    %81 = vector.load %arg13[%c0_50, %c0_51] : memref<1024x128xf32, #tpu.memory_space<vmem>>, vector<1024x128xf32>
    %cst_52 = arith.constant dense<0.000000e+00> : vector<8x128xf32>
    %82 = tpu.matmul %80, %81, %cst_52 {dimension_numbers = #tpu.dot_dimension_numbers<[1], [0], [0], [1], [0, 0, 1, 1], [], []>} : vector<8x1024xf32>, vector<1024x128xf32>, vector<8x128xf32> -> vector<8x128xf32>
    %c0_53 = arith.constant 0 : index
    %c0_54 = arith.constant 0 : index
    %83 = vector.load %arg14[%c0_53, %c0_54] : memref<1x128xf32, #tpu.memory_space<vmem>>, vector<1x128xf32>
    %84 = vector.broadcast %83 : vector<1x128xf32> to vector<8x128xf32>
    %85 = arith.addf %82, %84 : vector<8x128xf32>
    %86 = arith.addf %62, %85 : vector<8x128xf32>
    %c0_55 = arith.constant 0 : index
    %c0_56 = arith.constant 0 : index
    %87 = vector.load %arg15[%c0_55, %c0_56] : memref<1x128xf32, #tpu.memory_space<vmem>>, vector<1x128xf32>
    %c0_57 = arith.constant 0 : index
    %c0_58 = arith.constant 0 : index
    %88 = vector.load %arg16[%c0_57, %c0_58] : memref<1x128xf32, #tpu.memory_space<vmem>>, vector<1x128xf32>
    %cst_59 = arith.constant dense<0.000000e+00> : vector<8xf32>
    %89 = vector.multi_reduction <add>, %86, %cst_59 [1] : vector<8x128xf32> to vector<8xf32>
    %90 = vector.shape_cast %89 : vector<8xf32> to vector<8x1xf32>
    %cst_60 = arith.constant 1.280000e+02 : f32
    %91 = vector.broadcast %cst_60 : f32 to vector<8x1xf32>
    %92 = arith.divf %90, %91 : vector<8x1xf32>
    %93 = vector.broadcast %92 : vector<8x1xf32> to vector<8x128xf32>
    %94 = arith.subf %86, %93 : vector<8x128xf32>
    %95 = arith.mulf %94, %94 : vector<8x128xf32>
    %cst_61 = arith.constant dense<0.000000e+00> : vector<8xf32>
    %96 = vector.multi_reduction <add>, %95, %cst_61 [1] : vector<8x128xf32> to vector<8xf32>
    %97 = vector.shape_cast %96 : vector<8xf32> to vector<8x1xf32>
    %cst_62 = arith.constant 1.280000e+02 : f32
    %98 = vector.broadcast %cst_62 : f32 to vector<8x1xf32>
    %99 = arith.divf %97, %98 : vector<8x1xf32>
    %cst_63 = arith.constant 9.99999997E-7 : f32
    %100 = vector.broadcast %cst_63 : f32 to vector<8x1xf32>
    %101 = arith.addf %99, %100 : vector<8x1xf32>
    %102 = math.rsqrt %101 : vector<8x1xf32>
    %103 = vector.broadcast %102 : vector<8x1xf32> to vector<8x128xf32>
    %104 = arith.mulf %94, %103 : vector<8x128xf32>
    %105 = vector.broadcast %87 : vector<1x128xf32> to vector<8x128xf32>
    %106 = arith.mulf %104, %105 : vector<8x128xf32>
    %107 = vector.broadcast %88 : vector<1x128xf32> to vector<8x128xf32>
    %108 = arith.addf %106, %107 : vector<8x128xf32>
    %c0_64 = arith.constant 0 : index
    %c0_65 = arith.constant 0 : index
    %c0_66 = arith.constant 0 : index
    %109 = vector.load %arg17[%c0_64, %c0_65, %c0_66] : memref<1x8x128xf32, #tpu.memory_space<vmem>>, vector<1x8x128xf32>
    %110 = vector.shape_cast %109 : vector<1x8x128xf32> to vector<8x128xf32>
    %111 = vector.shape_cast %108 : vector<8x128xf32> to vector<1x8x128xf32>
    tpu.vector_store %arg17[%c0_64, %c0_65, %c0_66], %111 {strides = array<i32>} : memref<1x8x128xf32, #tpu.memory_space<vmem>>, vector<1x8x128xf32>,
    return
  }
  func.func @transform_0(%arg0: i32, %arg1: i32) -> (i32, i32, i32) {
    %c0_i32 = arith.constant 0 : i32
    %c0_i32_0 = arith.constant 0 : i32
    return %arg0, %arg1, %c0_i32 : i32, i32, i32
  }
  func.func @transform_1(%arg0: i32, %arg1: i32) -> (i32, i32, i32) {
    %c0_i32 = arith.constant 0 : i32
    %c0_i32_0 = arith.constant 0 : i32
    %c0_i32_1 = arith.constant 0 : i32
    return %arg0, %c0_i32, %c0_i32_0 : i32, i32, i32
  }
  func.func @transform_2(%arg0: i32, %arg1: i32) -> (i32, i32, i32, i32) {
    %c0_i32 = arith.constant 0 : i32
    %c0_i32_0 = arith.constant 0 : i32
    %c0_i32_1 = arith.constant 0 : i32
    return %arg0, %arg1, %c0_i32, %c0_i32_0 : i32, i32, i32, i32
  }
  func.func @transform_3(%arg0: i32, %arg1: i32) -> (i32, i32, i32, i32) {
    %c0_i32 = arith.constant 0 : i32
    %c0_i32_0 = arith.constant 0 : i32
    %c0_i32_1 = arith.constant 0 : i32
    return %arg0, %c0_i32, %arg1, %c0_i32_0 : i32, i32, i32, i32
  }
  func.func @transform_4(%arg0: i32, %arg1: i32) -> (i32, i32, i32, i32) {
    %c0_i32 = arith.constant 0 : i32
    %c0_i32_0 = arith.constant 0 : i32
    %c0_i32_1 = arith.constant 0 : i32
    return %arg0, %arg1, %c0_i32, %c0_i32_0 : i32, i32, i32, i32
  }
  func.func @transform_5(%arg0: i32, %arg1: i32) -> (i32, i32, i32, i32) {
    %c0_i32 = arith.constant 0 : i32
    %c0_i32_0 = arith.constant 0 : i32
    %c0_i32_1 = arith.constant 0 : i32
    %c0_i32_2 = arith.constant 0 : i32
    return %arg0, %c0_i32, %c0_i32_0, %c0_i32_1 : i32, i32, i32, i32
  }
  func.func @transform_6(%arg0: i32, %arg1: i32) -> (i32, i32, i32, i32) {
    %c0_i32 = arith.constant 0 : i32
    %c0_i32_0 = arith.constant 0 : i32
    %c0_i32_1 = arith.constant 0 : i32
    %c0_i32_2 = arith.constant 0 : i32
    return %arg0, %c0_i32, %c0_i32_0, %c0_i32_1 : i32, i32, i32, i32
  }
  func.func @transform_7(%arg0: i32, %arg1: i32) -> (i32, i32) {
    %c0_i32 = arith.constant 0 : i32
    %c0_i32_0 = arith.constant 0 : i32
    %c0_i32_1 = arith.constant 0 : i32
    return %c0_i32, %c0_i32_0 : i32, i32
  }
  func.func @transform_8(%arg0: i32, %arg1: i32) -> (i32, i32) {
    %c0_i32 = arith.constant 0 : i32
    %c0_i32_0 = arith.constant 0 : i32
    %c0_i32_1 = arith.constant 0 : i32
    return %c0_i32, %c0_i32_0 : i32, i32
  }
  func.func @transform_9(%arg0: i32, %arg1: i32) -> (i32, i32) {
    %c0_i32 = arith.constant 0 : i32
    %c0_i32_0 = arith.constant 0 : i32
    %c0_i32_1 = arith.constant 0 : i32
    return %c0_i32, %c0_i32_0 : i32, i32
  }
  func.func @transform_10(%arg0: i32, %arg1: i32) -> (i32, i32) {
    %c0_i32 = arith.constant 0 : i32
    %c0_i32_0 = arith.constant 0 : i32
    %c0_i32_1 = arith.constant 0 : i32
    return %c0_i32, %c0_i32_0 : i32, i32
  }
  func.func @transform_11(%arg0: i32, %arg1: i32) -> (i32, i32) {
    %c0_i32 = arith.constant 0 : i32
    %c0_i32_0 = arith.constant 0 : i32
    %c0_i32_1 = arith.constant 0 : i32
    return %c0_i32, %c0_i32_0 : i32, i32
  }
  func.func @transform_12(%arg0: i32, %arg1: i32) -> (i32, i32) {
    %c0_i32 = arith.constant 0 : i32
    %c0_i32_0 = arith.constant 0 : i32
    %c0_i32_1 = arith.constant 0 : i32
    return %c0_i32, %c0_i32_0 : i32, i32
  }
  func.func @transform_13(%arg0: i32, %arg1: i32) -> (i32, i32) {
    %c0_i32 = arith.constant 0 : i32
    %c0_i32_0 = arith.constant 0 : i32
    %c0_i32_1 = arith.constant 0 : i32
    return %c0_i32, %c0_i32_0 : i32, i32
  }
  func.func @transform_14(%arg0: i32, %arg1: i32) -> (i32, i32) {
    %c0_i32 = arith.constant 0 : i32
    %c0_i32_0 = arith.constant 0 : i32
    %c0_i32_1 = arith.constant 0 : i32
    return %c0_i32, %c0_i32_0 : i32, i32
  }
  func.func @transform_15(%arg0: i32, %arg1: i32) -> (i32, i32, i32) {
    %c0_i32 = arith.constant 0 : i32
    %c0_i32_0 = arith.constant 0 : i32
    return %arg0, %arg1, %c0_i32 : i32, i32, i32
  }
}

module attributes {stable_mosaic.version = 11 : i64} {
  func.func @kernel(%arg0: i32, %arg1: i32, %arg2: memref<1x8x128xf32, #tpu.memory_space<vmem>>, %arg3: memref<1x1x16xf32, #tpu.memory_space<vmem>>, %arg4: memref<1x8x16x128xf32, #tpu.memory_space<vmem>>, %arg5: memref<1x4x8x32xf32, #tpu.memory_space<vmem>>, %arg6: memref<1x8x4x128xf32, #tpu.memory_space<vmem>>, %arg7: memref<1x4x16x32xf32, #tpu.memory_space<vmem>>, %arg8: memref<1x4x16x32xf32, #tpu.memory_space<vmem>>, %arg9: memref<1x128xf32, #tpu.memory_space<vmem>>, %arg10: memref<1x128xf32, #tpu.memory_space<vmem>>, %arg11: memref<128x1024xf32, #tpu.memory_space<vmem>>, %arg12: memref<1x1024xf32, #tpu.memory_space<vmem>>, %arg13: memref<1024x128xf32, #tpu.memory_space<vmem>>, %arg14: memref<1x128xf32, #tpu.memory_space<vmem>>, %arg15: memref<1x128xf32, #tpu.memory_space<vmem>>, %arg16: memref<1x128xf32, #tpu.memory_space<vmem>>, %arg17: memref<1x8x128xf32, #tpu.memory_space<vmem>>) attributes {dimension_semantics = [#tpu.dimension_semantics<parallel>, #tpu.dimension_semantics<parallel>], iteration_bounds = array<i64: 2, 2>, scalar_prefetch = 0 : i64, scratch_operands = 0 : i64, tpu.core_type = #tpu.core_type<tc>, window_params = [{transform_indices = @transform_0, window_bounds = array<i64: 1, 8, 128>}, {transform_indices = @transform_1, window_bounds = array<i64: 1, 1, 16>}, {transform_indices = @transform_2, window_bounds = array<i64: 1, 8, 16, 128>}, {transform_indices = @transform_3, window_bounds = array<i64: 1, 4, 8, 32>}, {transform_indices = @transform_4, window_bounds = array<i64: 1, 8, 4, 128>}, {transform_indices = @transform_5, window_bounds = array<i64: 1, 4, 16, 32>}, {transform_indices = @transform_6, window_bounds = array<i64: 1, 4, 16, 32>}, {pipeline_mode = #tpu.pipeline_mode<synchronous>, transform_indices = @transform_7, window_bounds = array<i64: 1, 128>}, {pipeline_mode = #tpu.pipeline_mode<synchronous>, transform_indices = @transform_8, window_bounds = array<i64: 1, 128>}, {pipeline_mode = #tpu.pipeline_mode<synchronous>, transform_indices = @transform_9, window_bounds = array<i64: 128, 1024>}, {pipeline_mode = #tpu.pipeline_mode<synchronous>, transform_indices = @transform_10, window_bounds = array<i64: 1, 1024>}, {pipeline_mode = #tpu.pipeline_mode<synchronous>, transform_indices = @transform_11, window_bounds = array<i64: 1024, 128>}, {pipeline_mode = #tpu.pipeline_mode<synchronous>, transform_indices = @transform_12, window_bounds = array<i64: 1, 128>}, {pipeline_mode = #tpu.pipeline_mode<synchronous>, transform_indices = @transform_13, window_bounds = array<i64: 1, 128>}, {pipeline_mode = #tpu.pipeline_mode<synchronous>, transform_indices = @transform_14, window_bounds = array<i64: 1, 128>}, {transform_indices = @transform_15, window_bounds = array<i64: 1, 8, 128>}]} {
    %c0 = arith.constant 0 : index
    %c0_0 = arith.constant 0 : index
    %c0_1 = arith.constant 0 : index
    %0 = vector.load %arg2[%c0, %c0_0, %c0_1] : memref<1x8x128xf32, #tpu.memory_space<vmem>>, vector<1x8x128xf32>
    %1 = vector.shape_cast %0 : vector<1x8x128xf32> to vector<8x128xf32>
    %c0_2 = arith.constant 0 : index
    %c0_3 = arith.constant 0 : index
    %c0_4 = arith.constant 0 : index
    %c0_5 = arith.constant 0 : index
    %2 = vector.load %arg5[%c0_2, %c0_3, %c0_4, %c0_5] : memref<1x4x8x32xf32, #tpu.memory_space<vmem>>, vector<1x4x8x32xf32>
    %3 = vector.shape_cast %2 : vector<1x4x8x32xf32> to vector<4x8x32xf32>
    %c0_6 = arith.constant 0 : index
    %c0_7 = arith.constant 0 : index
    %c0_8 = arith.constant 0 : index
    %c0_9 = arith.constant 0 : index
    %4 = vector.load %arg6[%c0_6, %c0_7, %c0_8, %c0_9] : memref<1x8x4x128xf32, #tpu.memory_space<vmem>>, vector<1x8x4x128xf32>
    %5 = vector.shape_cast %4 : vector<1x8x4x128xf32> to vector<8x4x128xf32>
    %c0_10 = arith.constant 0 : index
    %c0_11 = arith.constant 0 : index
    %c0_12 = arith.constant 0 : index
    %c0_13 = arith.constant 0 : index
    %6 = vector.load %arg7[%c0_10, %c0_11, %c0_12, %c0_13] : memref<1x4x16x32xf32, #tpu.memory_space<vmem>>, vector<1x4x16x32xf32>
    %7 = vector.shape_cast %6 : vector<1x4x16x32xf32> to vector<4x16x32xf32>
    %c0_14 = arith.constant 0 : index
    %c0_15 = arith.constant 0 : index
    %c0_16 = arith.constant 0 : index
    %c0_17 = arith.constant 0 : index
    %8 = vector.load %arg8[%c0_14, %c0_15, %c0_16, %c0_17] : memref<1x4x16x32xf32, #tpu.memory_space<vmem>>, vector<1x4x16x32xf32>
    %9 = vector.shape_cast %8 : vector<1x4x16x32xf32> to vector<4x16x32xf32>
    %c0_18 = arith.constant 0 : index
    %c0_19 = arith.constant 0 : index
    %c0_20 = arith.constant 0 : index
    %c0_21 = arith.constant 0 : index
    %10 = vector.load %arg4[%c0_18, %c0_19, %c0_20, %c0_21] : memref<1x8x16x128xf32, #tpu.memory_space<vmem>>, vector<1x8x16x128xf32>
    %11 = vector.shape_cast %10 : vector<1x8x16x128xf32> to vector<8x16x128xf32>
    "tpu.trace_start"() <{level = 10 : i32, message = "hqd,hkd->hqk"}> : () -> ()
    %cst = arith.constant dense<0.000000e+00> : vector<4x8x16xf32>
    %12 = tpu.matmul %3, %7, %cst {dimension_numbers = #tpu.dot_dimension_numbers<[2], [2], [1], [1], [0, 0, 0, 1, 1, 1], [0], [0]>} : vector<4x8x32xf32>, vector<4x16x32xf32>, vector<4x8x16xf32> -> vector<4x8x16xf32>
    "tpu.trace_stop"() : () -> ()
    "tpu.trace_start"() <{level = 10 : i32, message = "qhD,qkD->qhk"}> : () -> ()
    %cst_22 = arith.constant dense<0.000000e+00> : vector<8x4x16xf32>
    %13 = tpu.matmul %5, %11, %cst_22 {dimension_numbers = #tpu.dot_dimension_numbers<[2], [2], [1], [1], [0, 0, 0, 1, 1, 1], [0], [0]>} : vector<8x4x128xf32>, vector<8x16x128xf32>, vector<8x4x16xf32> -> vector<8x4x16xf32>
    "tpu.trace_stop"() : () -> ()
    %14 = tpu.transpose %13, [1, 0, 2] : vector<8x4x16xf32> -> vector<4x8x16xf32>
    %c0_23 = arith.constant 0 : index
    %c0_24 = arith.constant 0 : index
    %c0_25 = arith.constant 0 : index
    %15 = vector.load %arg3[%c0_23, %c0_24, %c0_25] : memref<1x1x16xf32, #tpu.memory_space<vmem>>, vector<1x1x16xf32>
    %16 = vector.shape_cast %15 : vector<1x1x16xf32> to vector<1x16xf32>
    %cst_26 = arith.constant 1.000000e+00 : f32
    %17 = vector.broadcast %cst_26 : f32 to vector<1x16xf32>
    %18 = arith.subf %17, %16 : vector<1x16xf32>
    %cst_27 = arith.constant 9.99999986E+14 : f32
    %19 = vector.broadcast %cst_27 : f32 to vector<1x16xf32>
    %20 = arith.mulf %18, %19 : vector<1x16xf32>
    %21 = arith.addf %12, %14 : vector<4x8x16xf32>
    %cst_28 = arith.constant 0.176776692 : f32
    %22 = vector.broadcast %cst_28 : f32 to vector<4x8x16xf32>
    %23 = arith.mulf %21, %22 : vector<4x8x16xf32>
    %24 = vector.shape_cast %20 : vector<1x16xf32> to vector<1x1x16xf32>
    %25 = vector.broadcast %24 : vector<1x1x16xf32> to vector<4x8x16xf32>
    %26 = arith.subf %23, %25 : vector<4x8x16xf32>
    %cst_29 = arith.constant dense<0xFF800000> : vector<4x8xf32>
    %27 = vector.multi_reduction <maximumf>, %26, %cst_29 [2] : vector<4x8x16xf32> to vector<4x8xf32>
    %28 = vector.shape_cast %27 : vector<4x8xf32> to vector<4x8x1xf32>
    %29 = vector.broadcast %28 : vector<4x8x1xf32> to vector<4x8x16xf32>
    %30 = arith.subf %26, %29 : vector<4x8x16xf32>
    %31 = math.exp %30 : vector<4x8x16xf32>
    %cst_30 = arith.constant dense<0.000000e+00> : vector<4x8xf32>
    %32 = vector.multi_reduction <add>, %31, %cst_30 [2] : vector<4x8x16xf32> to vector<4x8xf32>
    %33 = vector.shape_cast %32 : vector<4x8xf32> to vector<4x8x1xf32>
    %34 = tpu.reciprocal %33 {approx = true} : vector<4x8x1xf32> -> vector<4x8x1xf32>
    %35 = vector.broadcast %34 : vector<4x8x1xf32> to vector<4x8x16xf32>
    %36 = arith.mulf %31, %35 : vector<4x8x16xf32>
    "tpu.trace_start"() <{level = 10 : i32, message = "hqk,hkd->hqd"}> : () -> ()
    %cst_31 = arith.constant dense<0.000000e+00> : vector<4x8x32xf32>
    %37 = tpu.matmul %36, %9, %cst_31 {dimension_numbers = #tpu.dot_dimension_numbers<[2], [1], [1], [2], [0, 0, 0, 1, 1, 2], [0], [0]>} : vector<4x8x16xf32>, vector<4x16x32xf32>, vector<4x8x32xf32> -> vector<4x8x32xf32>
    "tpu.trace_stop"() : () -> ()
    %38 = tpu.transpose %37, [1, 0, 2] : vector<4x8x32xf32> -> vector<8x4x32xf32>
    %39 = vector.shape_cast %38 : vector<8x4x32xf32> to vector<8x128xf32>
    %40 = arith.addf %1, %39 : vector<8x128xf32>
    %c0_32 = arith.constant 0 : index
    %c0_33 = arith.constant 0 : index
    %41 = vector.load %arg9[%c0_32, %c0_33] : memref<1x128xf32, #tpu.memory_space<vmem>>, vector<1x128xf32>
    %c0_34 = arith.constant 0 : index
    %c0_35 = arith.constant 0 : index
    %42 = vector.load %arg10[%c0_34, %c0_35] : memref<1x128xf32, #tpu.memory_space<vmem>>, vector<1x128xf32>
    %cst_36 = arith.constant dense<0.000000e+00> : vector<8xf32>
    %43 = vector.multi_reduction <add>, %40, %cst_36 [1] : vector<8x128xf32> to vector<8xf32>
    %44 = vector.shape_cast %43 : vector<8xf32> to vector<8x1xf32>
    %cst_37 = arith.constant 1.280000e+02 : f32
    %45 = vector.broadcast %cst_37 : f32 to vector<8x1xf32>
    %46 = arith.divf %44, %45 : vector<8x1xf32>
    %47 = vector.broadcast %46 : vector<8x1xf32> to vector<8x128xf32>
    %48 = arith.subf %40, %47 : vector<8x128xf32>
    %49 = arith.mulf %48, %48 : vector<8x128xf32>
    %cst_38 = arith.constant dense<0.000000e+00> : vector<8xf32>
    %50 = vector.multi_reduction <add>, %49, %cst_38 [1] : vector<8x128xf32> to vector<8xf32>
    %51 = vector.shape_cast %50 : vector<8xf32> to vector<8x1xf32>
    %cst_39 = arith.constant 1.280000e+02 : f32
    %52 = vector.broadcast %cst_39 : f32 to vector<8x1xf32>
    %53 = arith.divf %51, %52 : vector<8x1xf32>
    %cst_40 = arith.constant 9.99999997E-7 : f32
    %54 = vector.broadcast %cst_40 : f32 to vector<8x1xf32>
    %55 = arith.addf %53, %54 : vector<8x1xf32>
    %56 = math.rsqrt %55 : vector<8x1xf32>
    %57 = vector.broadcast %56 : vector<8x1xf32> to vector<8x128xf32>
    %58 = arith.mulf %48, %57 : vector<8x128xf32>
    %59 = vector.broadcast %41 : vector<1x128xf32> to vector<8x128xf32>
    %60 = arith.mulf %58, %59 : vector<8x128xf32>
    %61 = vector.broadcast %42 : vector<1x128xf32> to vector<8x128xf32>
    %62 = arith.addf %60, %61 : vector<8x128xf32>
    %c0_41 = arith.constant 0 : index
    %c0_42 = arith.constant 0 : index
    %63 = vector.load %arg11[%c0_41, %c0_42] : memref<128x1024xf32, #tpu.memory_space<vmem>>, vector<128x1024xf32>
    %cst_43 = arith.constant dense<0.000000e+00> : vector<8x1024xf32>
    %64 = tpu.matmul %62, %63, %cst_43 {dimension_numbers = #tpu.dot_dimension_numbers<[1], [0], [0], [1], [0, 0, 1, 1], [], []>} : vector<8x128xf32>, vector<128x1024xf32>, vector<8x1024xf32> -> vector<8x1024xf32>
    %c0_44 = arith.constant 0 : index
    %c0_45 = arith.constant 0 : index
    %65 = vector.load %arg12[%c0_44, %c0_45] : memref<1x1024xf32, #tpu.memory_space<vmem>>, vector<1x1024xf32>
    %66 = vector.broadcast %65 : vector<1x1024xf32> to vector<8x1024xf32>
    %67 = arith.addf %64, %66 : vector<8x1024xf32>
    %cst_46 = arith.constant 5.000000e-01 : f32
    %68 = vector.broadcast %cst_46 : f32 to vector<8x1024xf32>
    %69 = arith.mulf %68, %67 : vector<8x1024xf32>
    %70 = arith.mulf %67, %67 : vector<8x1024xf32>
    %71 = arith.mulf %70, %67 : vector<8x1024xf32>
    %cst_47 = arith.constant 4.471500e-02 : f32
    %72 = vector.broadcast %cst_47 : f32 to vector<8x1024xf32>
    %73 = arith.mulf %72, %71 : vector<8x1024xf32>
    %74 = arith.addf %67, %73 : vector<8x1024xf32>
    %cst_48 = arith.constant 0.797884583 : f32
    %75 = vector.broadcast %cst_48 : f32 to vector<8x1024xf32>
    %76 = arith.mulf %75, %74 : vector<8x1024xf32>
    %77 = math.tanh %76 : vector<8x1024xf32>
    %cst_49 = arith.constant 1.000000e+00 : f32
    %78 = vector.broadcast %cst_49 : f32 to vector<8x1024xf32>
    %79 = arith.addf %78, %77 : vector<8x1024xf32>
    %80 = arith.mulf %69, %79 : vector<8x1024xf32>
    %c0_50 = arith.constant 0 : index
    %c0_51 = arith.constant 0 : index
    %81 = vector.load %arg13[%c0_50, %c0_51] : memref<1024x128xf32, #tpu.memory_space<vmem>>, vector<1024x128xf32>
    %cst_52 = arith.constant dense<0.000000e+00> : vector<8x128xf32>
    %82 = tpu.matmul %80, %81, %cst_52 {dimension_numbers = #tpu.dot_dimension_numbers<[1], [0], [0], [1], [0, 0, 1, 1], [], []>} : vector<8x1024xf32>, vector<1024x128xf32>, vector<8x128xf32> -> vector<8x128xf32>
    %c0_53 = arith.constant 0 : index
    %c0_54 = arith.constant 0 : index
    %83 = vector.load %arg14[%c0_53, %c0_54] : memref<1x128xf32, #tpu.memory_space<vmem>>, vector<1x128xf32>
    %84 = vector.broadcast %83 : vector<1x128xf32> to vector<8x128xf32>
    %85 = arith.addf %82, %84 : vector<8x128xf32>
    %86 = arith.addf %62, %85 : vector<8x128xf32>
    %c0_55 = arith.constant 0 : index
    %c0_56 = arith.constant 0 : index
    %87 = vector.load %arg15[%c0_55, %c0_56] : memref<1x128xf32, #tpu.memory_space<vmem>>, vector<1x128xf32>
    %c0_57 = arith.constant 0 : index
    %c0_58 = arith.constant 0 : index
    %88 = vector.load %arg16[%c0_57, %c0_58] : memref<1x128xf32, #tpu.memory_space<vmem>>, vector<1x128xf32>
    %cst_59 = arith.constant dense<0.000000e+00> : vector<8xf32>
    %89 = vector.multi_reduction <add>, %86, %cst_59 [1] : vector<8x128xf32> to vector<8xf32>
    %90 = vector.shape_cast %89 : vector<8xf32> to vector<8x1xf32>
    %cst_60 = arith.constant 1.280000e+02 : f32
    %91 = vector.broadcast %cst_60 : f32 to vector<8x1xf32>
    %92 = arith.divf %90, %91 : vector<8x1xf32>
    %93 = vector.broadcast %92 : vector<8x1xf32> to vector<8x128xf32>
    %94 = arith.subf %86, %93 : vector<8x128xf32>
    %95 = arith.mulf %94, %94 : vector<8x128xf32>
    %cst_61 = arith.constant dense<0.000000e+00> : vector<8xf32>
    %96 = vector.multi_reduction <add>, %95, %cst_61 [1] : vector<8x128xf32> to vector<8xf32>
    %97 = vector.shape_cast %96 : vector<8xf32> to vector<8x1xf32>
    %cst_62 = arith.constant 1.280000e+02 : f32
    %98 = vector.broadcast %cst_62 : f32 to vector<8x1xf32>
    %99 = arith.divf %97, %98 : vector<8x1xf32>
    %cst_63 = arith.constant 9.99999997E-7 : f32
    %100 = vector.broadcast %cst_63 : f32 to vector<8x1xf32>
    %101 = arith.addf %99, %100 : vector<8x1xf32>
    %102 = math.rsqrt %101 : vector<8x1xf32>
    %103 = vector.broadcast %102 : vector<8x1xf32> to vector<8x128xf32>
    %104 = arith.mulf %94, %103 : vector<8x128xf32>
    %105 = vector.broadcast %87 : vector<1x128xf32> to vector<8x128xf32>
    %106 = arith.mulf %104, %105 : vector<8x128xf32>
    %107 = vector.broadcast %88 : vector<1x128xf32> to vector<8x128xf32>
    %108 = arith.addf %106, %107 : vector<8x128xf32>
    %c0_64 = arith.constant 0 : index
    %c0_65 = arith.constant 0 : index
    %c0_66 = arith.constant 0 : index
    %109 = vector.load %arg17[%c0_64, %c0_65, %c0_66] : memref<1x8x128xf32, #tpu.memory_space<vmem>>, vector<1x8x128xf32>
    %110 = vector.shape_cast %109 : vector<1x8x128xf32> to vector<8x128xf32>
    %111 = vector.shape_cast %108 : vector<8x128xf32> to vector<1x8x128xf32>
    tpu.vector_store %arg17[%c0_64, %c0_65, %c0_66], %111 {strides = array<i32>} : memref<1x8x128xf32, #tpu.memory_space<vmem>>, vector<1x8x128xf32>,
    return
  }
  func.func @transform_0(%arg0: i32, %arg1: i32) -> (i32, i32, i32) {
    %c0_i32 = arith.constant 0 : i32
    %c0_i32_0 = arith.constant 0 : i32
    return %arg0, %arg1, %c0_i32 : i32, i32, i32
  }
  func.func @transform_1(%arg0: i32, %arg1: i32) -> (i32, i32, i32) {
    %c0_i32 = arith.constant 0 : i32
    %c0_i32_0 = arith.constant 0 : i32
    %c0_i32_1 = arith.constant 0 : i32
    return %arg0, %c0_i32, %c0_i32_0 : i32, i32, i32
  }
  func.func @transform_2(%arg0: i32, %arg1: i32) -> (i32, i32, i32, i32) {
    %c0_i32 = arith.constant 0 : i32
    %c0_i32_0 = arith.constant 0 : i32
    %c0_i32_1 = arith.constant 0 : i32
    return %arg0, %arg1, %c0_i32, %c0_i32_0 : i32, i32, i32, i32
  }
  func.func @transform_3(%arg0: i32, %arg1: i32) -> (i32, i32, i32, i32) {
    %c0_i32 = arith.constant 0 : i32
    %c0_i32_0 = arith.constant 0 : i32
    %c0_i32_1 = arith.constant 0 : i32
    return %arg0, %c0_i32, %arg1, %c0_i32_0 : i32, i32, i32, i32
  }
  func.func @transform_4(%arg0: i32, %arg1: i32) -> (i32, i32, i32, i32) {
    %c0_i32 = arith.constant 0 : i32
    %c0_i32_0 = arith.constant 0 : i32
    %c0_i32_1 = arith.constant 0 : i32
    return %arg0, %arg1, %c0_i32, %c0_i32_0 : i32, i32, i32, i32
  }
  func.func @transform_5(%arg0: i32, %arg1: i32) -> (i32, i32, i32, i32) {
    %c0_i32 = arith.constant 0 : i32
    %c0_i32_0 = arith.constant 0 : i32
    %c0_i32_1 = arith.constant 0 : i32
    %c0_i32_2 = arith.constant 0 : i32
    return %arg0, %c0_i32, %c0_i32_0, %c0_i32_1 : i32, i32, i32, i32
  }
  func.func @transform_6(%arg0: i32, %arg1: i32) -> (i32, i32, i32, i32) {
    %c0_i32 = arith.constant 0 : i32
    %c0_i32_0 = arith.constant 0 : i32
    %c0_i32_1 = arith.constant 0 : i32
    %c0_i32_2 = arith.constant 0 : i32
    return %arg0, %c0_i32, %c0_i32_0, %c0_i32_1 : i32, i32, i32, i32
  }
  func.func @transform_7(%arg0: i32, %arg1: i32) -> (i32, i32) {
    %c0_i32 = arith.constant 0 : i32
    %c0_i32_0 = arith.constant 0 : i32
    %c0_i32_1 = arith.constant 0 : i32
    return %c0_i32, %c0_i32_0 : i32, i32
  }
  func.func @transform_8(%arg0: i32, %arg1: i32) -> (i32, i32) {
    %c0_i32 = arith.constant 0 : i32
    %c0_i32_0 = arith.constant 0 : i32
    %c0_i32_1 = arith.constant 0 : i32
    return %c0_i32, %c0_i32_0 : i32, i32
  }
  func.func @transform_9(%arg0: i32, %arg1: i32) -> (i32, i32) {
    %c0_i32 = arith.constant 0 : i32
    %c0_i32_0 = arith.constant 0 : i32
    %c0_i32_1 = arith.constant 0 : i32
    return %c0_i32, %c0_i32_0 : i32, i32
  }
  func.func @transform_10(%arg0: i32, %arg1: i32) -> (i32, i32) {
    %c0_i32 = arith.constant 0 : i32
    %c0_i32_0 = arith.constant 0 : i32
    %c0_i32_1 = arith.constant 0 : i32
    return %c0_i32, %c0_i32_0 : i32, i32
  }
  func.func @transform_11(%arg0: i32, %arg1: i32) -> (i32, i32) {
    %c0_i32 = arith.constant 0 : i32
    %c0_i32_0 = arith.constant 0 : i32
    %c0_i32_1 = arith.constant 0 : i32
    return %c0_i32, %c0_i32_0 : i32, i32
  }
  func.func @transform_12(%arg0: i32, %arg1: i32) -> (i32, i32) {
    %c0_i32 = arith.constant 0 : i32
    %c0_i32_0 = arith.constant 0 : i32
    %c0_i32_1 = arith.constant 0 : i32
    return %c0_i32, %c0_i32_0 : i32, i32
  }
  func.func @transform_13(%arg0: i32, %arg1: i32) -> (i32, i32) {
    %c0_i32 = arith.constant 0 : i32
    %c0_i32_0 = arith.constant 0 : i32
    %c0_i32_1 = arith.constant 0 : i32
    return %c0_i32, %c0_i32_0 : i32, i32
  }
  func.func @transform_14(%arg0: i32, %arg1: i32) -> (i32, i32) {
    %c0_i32 = arith.constant 0 : i32
    %c0_i32_0 = arith.constant 0 : i32
    %c0_i32_1 = arith.constant 0 : i32
    return %c0_i32, %c0_i32_0 : i32, i32
  }
  func.func @transform_15(%arg0: i32, %arg1: i32) -> (i32, i32, i32) {
    %c0_i32 = arith.constant 0 : i32
    %c0_i32_0 = arith.constant 0 : i32
    return %arg0, %arg1, %c0_i32 : i32, i32, i32
  }
}

</mosaic_0001>

<llo_original>
// kernel: tpu_custom_call.1
$region0: #{tpu_custom_call.1}
  #allocation0 [shape = 'u32[]', space=smem, size = 0x4, offset = 0x4, fixed_abs, tag = 'smem constant byte address 0x4 - core index']
  #allocation1 [shape = 'u32[144,128]{1,0:T(1,128)}', space=vmem, size = 0x12000, scoped, tag = 'internal scratch']
  %s0 = inlined_call_operand.hbm [shape: f32[2,16,128], index: 0, kind: input, shape index: {}]
  %s1 = inlined_call_operand.vmem [shape: f32[2,1,16], index: 1, kind: input, shape index: {}]
  %s2 = inlined_call_operand.hbm [shape: f32[2,16,16,128], index: 2, kind: input, shape index: {}]
  %s3 = inlined_call_operand.hbm [shape: f32[2,4,16,32], index: 3, kind: input, shape index: {}]
  %s4 = inlined_call_operand.hbm [shape: f32[2,16,4,128], index: 4, kind: input, shape index: {}]
  %s5 = inlined_call_operand.hbm [shape: f32[2,4,16,32], index: 5, kind: input, shape index: {}]
  %s6 = inlined_call_operand.hbm [shape: f32[2,4,16,32], index: 6, kind: input, shape index: {}]
  %s7 = inlined_call_operand.vmem [shape: f32[1,128], index: 7, kind: input, shape index: {}]
  %s8 = inlined_call_operand.vmem [shape: f32[1,128], index: 8, kind: input, shape index: {}]
  %s9 = inlined_call_operand.hbm [shape: f32[128,1024], index: 9, kind: input, shape index: {}]
  %s10 = inlined_call_operand.vmem [shape: f32[1,1024], index: 10, kind: input, shape index: {}]
  %s11 = inlined_call_operand.hbm [shape: f32[1024,128], index: 11, kind: input, shape index: {}]
  %s12 = inlined_call_operand.vmem [shape: f32[1,128], index: 12, kind: input, shape index: {}]
  %s13 = inlined_call_operand.vmem [shape: f32[1,128], index: 13, kind: input, shape index: {}]
  %s14 = inlined_call_operand.vmem [shape: f32[1,128], index: 14, kind: input, shape index: {}]
  %s15 = inlined_call_operand.hbm [shape: f32[2,16,128], index: 15, kind: output, shape index: {}]
  %s16 = sld [smem:[#allocation0]]
  $region125: #{tpu_custom_call.1} parent=0
    _
  %s18 = ssub.s32 1, %s16
  %s19 = scalar_select 0, %s18, %s16
  $region1: #{tpu_custom_call.1} parent=0
    #allocation2 [shape = 'u8[8192]{0}', space=vmem, size = 0x2000, scoped, tag = 'input window, operand 0']
    #allocation3 [shape = 's32[2]{0}', space=sflag, size = 0x8, scoped, tag = 'scoped memory for tpu_custom_call.1']
    #allocation4 [shape = 's32[2]{0}', space=sflag, size = 0x8, scoped, tag = 'scoped memory for tpu_custom_call.1']
    #allocation5 [shape = 'u8[131072]{0}', space=vmem, size = 0x20000, scoped, tag = 'input window, operand 2']
    #allocation6 [shape = 's32[2]{0}', space=sflag, size = 0x8, scoped, tag = 'scoped memory for tpu_custom_call.1']
    #allocation7 [shape = 'u8[32768]{0}', space=vmem, size = 0x8000, scoped, tag = 'input window, operand 3']
    #allocation8 [shape = 'u8[32768]{0}', space=vmem, size = 0x8000, scoped, tag = 'input window, operand 4']
    #allocation9 [shape = 's32[2]{0}', space=sflag, size = 0x8, scoped, tag = 'scoped memory for tpu_custom_call.1']
    #allocation10 [shape = 'u8[65536]{0}', space=vmem, size = 0x10000, scoped, tag = 'input window, operand 5']
    #allocation11 [shape = 'u8[65536]{0}', space=vmem, size = 0x10000, scoped, tag = 'input window, operand 6']
    #allocation12 [shape = 's32[2]{0}', space=sflag, size = 0x8, scoped, tag = 'scoped memory for tpu_custom_call.1']
    #allocation13 [shape = 'u8[524288]{0}', space=vmem, size = 0x80000, scoped, tag = 'input window, operand 9, single buffered']
    #allocation14 [shape = 'u8[524288]{0}', space=vmem, size = 0x80000, scoped, tag = 'input window, operand 11, single buffered']
    #allocation15 [shape = 's32[1]{0}', space=sflag, size = 0x4, scoped, tag = 'scoped memory for tpu_custom_call.1']
    #allocation16 [shape = 'u8[8192]{0}', space=vmem, size = 0x2000, scoped, tag = 'output window, operand 0']
    %20 = vsyncpa [#allocation3], 0
    %s21 = scalar_lea.sflag [#allocation3], 1
    %22 = vsyncpa %s21, 0
    %23 = vsyncpa [#allocation6], 0
    %s24 = scalar_lea.sflag [#allocation6], 1
    %25 = vsyncpa %s24, 0
    %26 = vsyncpa [#allocation9], 0
    %s27 = scalar_lea.sflag [#allocation9], 1
    %28 = vsyncpa %s27, 0
    %29 = vsyncpa [#allocation12], 0
    %s30 = scalar_lea.sflag [#allocation12], 1
    %31 = vsyncpa %s30, 0
    %32 = vsyncpa [#allocation15], 0
    %33 = vsyncpa [#allocation4], 0
    %s34 = scalar_lea.sflag [#allocation4], 1
    %35 = vsyncpa %s34, 0
    loop: start=0, step=1, limit=6
    $region2: #{tpu_custom_call.1} parent=1 // loop_pre_header
      _
    $region3: #{tpu_custom_call.1} parent=1 // loop_header
      %s37 = sphi 0, %s41
      %p38 = scmp.ge.s32.totalorder %s37, 6
      %s44 = sphi 0, %s56
      %s45 = sphi 0, %s52
      %s46 = sphi 0, %s44
      %s47 = sphi 0, %s45
      %s48 = sphi 0, %s46
      %s49 = sphi 0, %s47
      %s61 = sphi 0, %s63
      %s64 = sphi 0, %s61
      %s65 = sphi 0, %s64
      %s81 = sphi 0, %s65
      %s87 = sphi 0, %s89
      %s90 = sphi 0, %s87
      %s91 = sphi 0, %s90
      %s107 = sphi 0, %s91
      %s115 = sphi 0, %s117
      %s118 = sphi 0, %s115
      %s119 = sphi 0, %s118
      %s135 = sphi 0, %s119
      %s143 = sphi 0, %s145
      %s146 = sphi 0, %s143
      %s147 = sphi 0, %s146
      %s163 = sphi 0, %s147
      %s171 = sphi 0, %s173
      %s174 = sphi 0, %s171
      %s175 = sphi 0, %s174
      %s191 = sphi 0, %s175
      %s197 = sphi 0, %s199
      %s200 = sphi 0, %s197
      %s201 = sphi 0, %s200
      %s217 = sphi 0, %s201
      %s223 = sphi 0, %s225
      %s226 = sphi 0, %s223
      %s227 = sphi 0, %s226
      %s243 = sphi 0, %s227
      %s247 = sphi 0, %s247
      %s249 = sphi 0, %s247
      %s250 = sphi 0, %s249
      %s264 = sphi 0, %s250
      %s268 = sphi 0, %s268
      %s270 = sphi 0, %s268
      %s271 = sphi 0, %s270
      %s285 = sphi 0, %s271
      %s289 = sphi 0, %s289
      %s291 = sphi 0, %s289
      %s292 = sphi 0, %s291
      %s306 = sphi 0, %s292
      %s310 = sphi 0, %s310
      %s312 = sphi 0, %s310
      %s313 = sphi 0, %s312
      %s327 = sphi 0, %s313
      %s331 = sphi 0, %s331
      %s333 = sphi 0, %s331
      %s334 = sphi 0, %s333
      %s348 = sphi 0, %s334
      %s352 = sphi 0, %s352
      %s354 = sphi 0, %s352
      %s355 = sphi 0, %s354
      %s369 = sphi 0, %s355
      %s373 = sphi 0, %s373
      %s375 = sphi 0, %s373
      %s376 = sphi 0, %s375
      %s390 = sphi 0, %s376
      %s394 = sphi 0, %s394
      %s396 = sphi 0, %s394
      %s397 = sphi 0, %s396
      %s411 = sphi 0, %s397
      %s419 = sphi 0, %s421
      %s422 = sphi 0, %s419
      %s423 = sphi 0, %s422
      %s439 = sphi 0, %s423
    $region4: #{tpu_custom_call.1} parent=1 // loop_header_branch
      %40 = sbr.rel (%p38) target = $region8
    $region5: #{tpu_custom_call.1} parent=1 // loop_body
      %s42 = ssub.s32 %s37, 1
      %s43 = ssub.s32 %s37, 2
      %s50 = sadd.s32 1, %s45
      %p51 = scmp.ge.s32.totalorder %s50, 2
      %s52 = scalar_select %p51, 0, %s50
      %s53 = sadd.s32 1, %s44
      %s54 = scalar_select %p51, %s53, %s44
      %p55 = scmp.ge.s32.totalorder %s54, 2
      %s56 = scalar_select %p55, 0, %s54
      %s57 = ssub.s32 %s44, %s56
      %s58 = ssub.s32 %s45, %s52
      %s59 = sor.u32 %s57, %s58
      %p60 = scmp.eq.s32.totalorder %s59, 0
      %s62 = sadd.s32 %s61, 1
      %s63 = scalar_select %p60, %s61, %s62
      %p66 = pneg %p60
      %p67 = scmp.eq.s32.totalorder %s37, 3
      %p68 = por %p66, %p67
      %p69 = scmp.ne.s32.totalorder %s61, %s64
      %p70 = scmp.eq.s32.totalorder %s37, 0
      %p71 = por %p69, %p70
      %p72 = scmp.ne.s32.totalorder %s61, %s64
      %p73 = scmp.eq.s32.totalorder %s42, 3
      %p74 = por %p72, %p73
      %p75 = scmp.ne.s32.totalorder %s64, %s65
      %p76 = scmp.eq.s32.totalorder %s42, 0
      %p77 = por %p75, %p76
      %p78 = scmp.ne.s32.totalorder %s64, %s65
      %p79 = scmp.eq.s32.totalorder %s43, 3
      %p80 = por %p78, %p79
      %p82 = scmp.ne.s32.totalorder %s65, %s81
      %p83 = scmp.eq.s32.totalorder %s43, 0
      %p84 = por %p82, %p83
      %s85 = ssub.s32 %s44, %s56
      %p86 = scmp.eq.s32.totalorder %s85, 0
      %s88 = sadd.s32 %s87, 1
      %s89 = scalar_select %p86, %s87, %s88
      %p92 = pneg %p86
      %p93 = scmp.eq.s32.totalorder %s37, 3
      %p94 = por %p92, %p93
      %p95 = scmp.ne.s32.totalorder %s87, %s90
      %p96 = scmp.eq.s32.totalorder %s37, 0
      %p97 = por %p95, %p96
      %p98 = scmp.ne.s32.totalorder %s87, %s90
      %p99 = scmp.eq.s32.totalorder %s42, 3
      %p100 = por %p98, %p99
      %p101 = scmp.ne.s32.totalorder %s90, %s91
      %p102 = scmp.eq.s32.totalorder %s42, 0
      %p103 = por %p101, %p102
      %p104 = scmp.ne.s32.totalorder %s90, %s91
      %p105 = scmp.eq.s32.totalorder %s43, 3
      %p106 = por %p104, %p105
      %p108 = scmp.ne.s32.totalorder %s91, %s107
      %p109 = scmp.eq.s32.totalorder %s43, 0
      %p110 = por %p108, %p109
      %s111 = ssub.s32 %s44, %s56
      %s112 = ssub.s32 %s45, %s52
      %s113 = sor.u32 %s111, %s112
      %p114 = scmp.eq.s32.totalorder %s113, 0
      %s116 = sadd.s32 %s115, 1
      %s117 = scalar_select %p114, %s115, %s116
      %p120 = pneg %p114
      %p121 = scmp.eq.s32.totalorder %s37, 3
      %p122 = por %p120, %p121
      %p123 = scmp.ne.s32.totalorder %s115, %s118
      %p124 = scmp.eq.s32.totalorder %s37, 0
      %p125 = por %p123, %p124
      %p126 = scmp.ne.s32.totalorder %s115, %s118
      %p127 = scmp.eq.s32.totalorder %s42, 3
      %p128 = por %p126, %p127
      %p129 = scmp.ne.s32.totalorder %s118, %s119
      %p130 = scmp.eq.s32.totalorder %s42, 0
      %p131 = por %p129, %p130
      %p132 = scmp.ne.s32.totalorder %s118, %s119
      %p133 = scmp.eq.s32.totalorder %s43, 3
      %p134 = por %p132, %p133
      %p136 = scmp.ne.s32.totalorder %s119, %s135
      %p137 = scmp.eq.s32.totalorder %s43, 0
      %p138 = por %p136, %p137
      %s139 = ssub.s32 %s44, %s56
      %s140 = ssub.s32 %s45, %s52
      %s141 = sor.u32 %s139, %s140
      %p142 = scmp.eq.s32.totalorder %s141, 0
      %s144 = sadd.s32 %s143, 1
      %s145 = scalar_select %p142, %s143, %s144
      %p148 = pneg %p142
      %p149 = scmp.eq.s32.totalorder %s37, 3
      %p150 = por %p148, %p149
      %p151 = scmp.ne.s32.totalorder %s143, %s146
      %p152 = scmp.eq.s32.totalorder %s37, 0
      %p153 = por %p151, %p152
      %p154 = scmp.ne.s32.totalorder %s143, %s146
      %p155 = scmp.eq.s32.totalorder %s42, 3
      %p156 = por %p154, %p155
      %p157 = scmp.ne.s32.totalorder %s146, %s147
      %p158 = scmp.eq.s32.totalorder %s42, 0
      %p159 = por %p157, %p158
      %p160 = scmp.ne.s32.totalorder %s146, %s147
      %p161 = scmp.eq.s32.totalorder %s43, 3
      %p162 = por %p160, %p161
      %p164 = scmp.ne.s32.totalorder %s147, %s163
      %p165 = scmp.eq.s32.totalorder %s43, 0
      %p166 = por %p164, %p165
      %s167 = ssub.s32 %s44, %s56
      %s168 = ssub.s32 %s45, %s52
      %s169 = sor.u32 %s167, %s168
      %p170 = scmp.eq.s32.totalorder %s169, 0
      %s172 = sadd.s32 %s171, 1
      %s173 = scalar_select %p170, %s171, %s172
      %p176 = pneg %p170
      %p177 = scmp.eq.s32.totalorder %s37, 3
      %p178 = por %p176, %p177
      %p179 = scmp.ne.s32.totalorder %s171, %s174
      %p180 = scmp.eq.s32.totalorder %s37, 0
      %p181 = por %p179, %p180
      %p182 = scmp.ne.s32.totalorder %s171, %s174
      %p183 = scmp.eq.s32.totalorder %s42, 3
      %p184 = por %p182, %p183
      %p185 = scmp.ne.s32.totalorder %s174, %s175
      %p186 = scmp.eq.s32.totalorder %s42, 0
      %p187 = por %p185, %p186
      %p188 = scmp.ne.s32.totalorder %s174, %s175
      %p189 = scmp.eq.s32.totalorder %s43, 3
      %p190 = por %p188, %p189
      %p192 = scmp.ne.s32.totalorder %s175, %s191
      %p193 = scmp.eq.s32.totalorder %s43, 0
      %p194 = por %p192, %p193
      %s195 = ssub.s32 %s44, %s56
      %p196 = scmp.eq.s32.totalorder %s195, 0
      %s198 = sadd.s32 %s197, 1
      %s199 = scalar_select %p196, %s197, %s198
      %p202 = pneg %p196
      %p203 = scmp.eq.s32.totalorder %s37, 3
      %p204 = por %p202, %p203
      %p205 = scmp.ne.s32.totalorder %s197, %s200
      %p206 = scmp.eq.s32.totalorder %s37, 0
      %p207 = por %p205, %p206
      %p208 = scmp.ne.s32.totalorder %s197, %s200
      %p209 = scmp.eq.s32.totalorder %s42, 3
      %p210 = por %p208, %p209
      %p211 = scmp.ne.s32.totalorder %s200, %s201
      %p212 = scmp.eq.s32.totalorder %s42, 0
      %p213 = por %p211, %p212
      %p214 = scmp.ne.s32.totalorder %s200, %s201
      %p215 = scmp.eq.s32.totalorder %s43, 3
      %p216 = por %p214, %p215
      %p218 = scmp.ne.s32.totalorder %s201, %s217
      %p219 = scmp.eq.s32.totalorder %s43, 0
      %p220 = por %p218, %p219
      %s221 = ssub.s32 %s44, %s56
      %p222 = scmp.eq.s32.totalorder %s221, 0
      %s224 = sadd.s32 %s223, 1
      %s225 = scalar_select %p222, %s223, %s224
      %p228 = pneg %p222
      %p229 = scmp.eq.s32.totalorder %s37, 3
      %p230 = por %p228, %p229
      %p231 = scmp.ne.s32.totalorder %s223, %s226
      %p232 = scmp.eq.s32.totalorder %s37, 0
      %p233 = por %p231, %p232
      %p234 = scmp.ne.s32.totalorder %s223, %s226
      %p235 = scmp.eq.s32.totalorder %s42, 3
      %p236 = por %p234, %p235
      %p237 = scmp.ne.s32.totalorder %s226, %s227
      %p238 = scmp.eq.s32.totalorder %s42, 0
      %p239 = por %p237, %p238
      %p240 = scmp.ne.s32.totalorder %s226, %s227
      %p241 = scmp.eq.s32.totalorder %s43, 3
      %p242 = por %p240, %p241
      %p244 = scmp.ne.s32.totalorder %s227, %s243
      %p245 = scmp.eq.s32.totalorder %s43, 0
      %p246 = por %p244, %p245
      %s248 = sadd.s32 %s247, 1
      %p251 = scmp.eq.s32.totalorder %s37, 3
      %p252 = scmp.ne.s32.totalorder %s247, %s249
      %p253 = scmp.eq.s32.totalorder %s37, 0
      %p254 = por %p252, %p253
      %p255 = scmp.ne.s32.totalorder %s247, %s249
      %p256 = scmp.eq.s32.totalorder %s42, 3
      %p257 = por %p255, %p256
      %p258 = scmp.ne.s32.totalorder %s249, %s250
      %p259 = scmp.eq.s32.totalorder %s42, 0
      %p260 = por %p258, %p259
      %p261 = scmp.ne.s32.totalorder %s249, %s250
      %p262 = scmp.eq.s32.totalorder %s43, 3
      %p263 = por %p261, %p262
      %p265 = scmp.ne.s32.totalorder %s250, %s264
      %p266 = scmp.eq.s32.totalorder %s43, 0
      %p267 = por %p265, %p266
      %s269 = sadd.s32 %s268, 1
      %p272 = scmp.eq.s32.totalorder %s37, 3
      %p273 = scmp.ne.s32.totalorder %s268, %s270
      %p274 = scmp.eq.s32.totalorder %s37, 0
      %p275 = por %p273, %p274
      %p276 = scmp.ne.s32.totalorder %s268, %s270
      %p277 = scmp.eq.s32.totalorder %s42, 3
      %p278 = por %p276, %p277
      %p279 = scmp.ne.s32.totalorder %s270, %s271
      %p280 = scmp.eq.s32.totalorder %s42, 0
      %p281 = por %p279, %p280
      %p282 = scmp.ne.s32.totalorder %s270, %s271
      %p283 = scmp.eq.s32.totalorder %s43, 3
      %p284 = por %p282, %p283
      %p286 = scmp.ne.s32.totalorder %s271, %s285
      %p287 = scmp.eq.s32.totalorder %s43, 0
      %p288 = por %p286, %p287
      %s290 = sadd.s32 %s289, 1
      %p293 = scmp.eq.s32.totalorder %s37, 3
      %p294 = scmp.ne.s32.totalorder %s289, %s291
      %p295 = scmp.eq.s32.totalorder %s37, 0
      %p296 = por %p294, %p295
      %p297 = scmp.ne.s32.totalorder %s289, %s291
      %p298 = scmp.eq.s32.totalorder %s42, 3
      %p299 = por %p297, %p298
      %p300 = scmp.ne.s32.totalorder %s291, %s292
      %p301 = scmp.eq.s32.totalorder %s42, 0
      %p302 = por %p300, %p301
      %p303 = scmp.ne.s32.totalorder %s291, %s292
      %p304 = scmp.eq.s32.totalorder %s43, 3
      %p305 = por %p303, %p304
      %p307 = scmp.ne.s32.totalorder %s292, %s306
      %p308 = scmp.eq.s32.totalorder %s43, 0
      %p309 = por %p307, %p308
      %s311 = sadd.s32 %s310, 1
      %p314 = scmp.eq.s32.totalorder %s37, 3
      %p315 = scmp.ne.s32.totalorder %s310, %s312
      %p316 = scmp.eq.s32.totalorder %s37, 0
      %p317 = por %p315, %p316
      %p318 = scmp.ne.s32.totalorder %s310, %s312
      %p319 = scmp.eq.s32.totalorder %s42, 3
      %p320 = por %p318, %p319
      %p321 = scmp.ne.s32.totalorder %s312, %s313
      %p322 = scmp.eq.s32.totalorder %s42, 0
      %p323 = por %p321, %p322
      %p324 = scmp.ne.s32.totalorder %s312, %s313
      %p325 = scmp.eq.s32.totalorder %s43, 3
      %p326 = por %p324, %p325
      %p328 = scmp.ne.s32.totalorder %s313, %s327
      %p329 = scmp.eq.s32.totalorder %s43, 0
      %p330 = por %p328, %p329
      %s332 = sadd.s32 %s331, 1
      %p335 = scmp.eq.s32.totalorder %s37, 3
      %p336 = scmp.ne.s32.totalorder %s331, %s333
      %p337 = scmp.eq.s32.totalorder %s37, 0
      %p338 = por %p336, %p337
      %p339 = scmp.ne.s32.totalorder %s331, %s333
      %p340 = scmp.eq.s32.totalorder %s42, 3
      %p341 = por %p339, %p340
      %p342 = scmp.ne.s32.totalorder %s333, %s334
      %p343 = scmp.eq.s32.totalorder %s42, 0
      %p344 = por %p342, %p343
      %p345 = scmp.ne.s32.totalorder %s333, %s334
      %p346 = scmp.eq.s32.totalorder %s43, 3
      %p347 = por %p345, %p346
      %p349 = scmp.ne.s32.totalorder %s334, %s348
      %p350 = scmp.eq.s32.totalorder %s43, 0
      %p351 = por %p349, %p350
      %s353 = sadd.s32 %s352, 1
      %p356 = scmp.eq.s32.totalorder %s37, 3
      %p357 = scmp.ne.s32.totalorder %s352, %s354
      %p358 = scmp.eq.s32.totalorder %s37, 0
      %p359 = por %p357, %p358
      %p360 = scmp.ne.s32.totalorder %s352, %s354
      %p361 = scmp.eq.s32.totalorder %s42, 3
      %p362 = por %p360, %p361
      %p363 = scmp.ne.s32.totalorder %s354, %s355
      %p364 = scmp.eq.s32.totalorder %s42, 0
      %p365 = por %p363, %p364
      %p366 = scmp.ne.s32.totalorder %s354, %s355
      %p367 = scmp.eq.s32.totalorder %s43, 3
      %p368 = por %p366, %p367
      %p370 = scmp.ne.s32.totalorder %s355, %s369
      %p371 = scmp.eq.s32.totalorder %s43, 0
      %p372 = por %p370, %p371
      %s374 = sadd.s32 %s373, 1
      %p377 = scmp.eq.s32.totalorder %s37, 3
      %p378 = scmp.ne.s32.totalorder %s373, %s375
      %p379 = scmp.eq.s32.totalorder %s37, 0
      %p380 = por %p378, %p379
      %p381 = scmp.ne.s32.totalorder %s373, %s375
      %p382 = scmp.eq.s32.totalorder %s42, 3
      %p383 = por %p381, %p382
      %p384 = scmp.ne.s32.totalorder %s375, %s376
      %p385 = scmp.eq.s32.totalorder %s42, 0
      %p386 = por %p384, %p385
      %p387 = scmp.ne.s32.totalorder %s375, %s376
      %p388 = scmp.eq.s32.totalorder %s43, 3
      %p389 = por %p387, %p388
      %p391 = scmp.ne.s32.totalorder %s376, %s390
      %p392 = scmp.eq.s32.totalorder %s43, 0
      %p393 = por %p391, %p392
      %s395 = sadd.s32 %s394, 1
      %p398 = scmp.eq.s32.totalorder %s37, 3
      %p399 = scmp.ne.s32.totalorder %s394, %s396
      %p400 = scmp.eq.s32.totalorder %s37, 0
      %p401 = por %p399, %p400
      %p402 = scmp.ne.s32.totalorder %s394, %s396
      %p403 = scmp.eq.s32.totalorder %s42, 3
      %p404 = por %p402, %p403
      %p405 = scmp.ne.s32.totalorder %s396, %s397
      %p406 = scmp.eq.s32.totalorder %s42, 0
      %p407 = por %p405, %p406
      %p408 = scmp.ne.s32.totalorder %s396, %s397
      %p409 = scmp.eq.s32.totalorder %s43, 3
      %p410 = por %p408, %p409
      %p412 = scmp.ne.s32.totalorder %s397, %s411
      %p413 = scmp.eq.s32.totalorder %s43, 0
      %p414 = por %p412, %p413
      %s415 = ssub.s32 %s44, %s56
      %s416 = ssub.s32 %s45, %s52
      %s417 = sor.u32 %s415, %s416
      %p418 = scmp.eq.s32.totalorder %s417, 0
      %s420 = sadd.s32 %s419, 1
      %s421 = scalar_select %p418, %s419, %s420
      %p424 = pneg %p418
      %p425 = scmp.eq.s32.totalorder %s37, 3
      %p426 = por %p424, %p425
      %p427 = scmp.ne.s32.totalorder %s419, %s422
      %p428 = scmp.eq.s32.totalorder %s37, 0
      %p429 = por %p427, %p428
      %p430 = scmp.ne.s32.totalorder %s419, %s422
      %p431 = scmp.eq.s32.totalorder %s42, 3
      %p432 = por %p430, %p431
      %p433 = scmp.ne.s32.totalorder %s422, %s423
      %p434 = scmp.eq.s32.totalorder %s42, 0
      %p435 = por %p433, %p434
      %p436 = scmp.ne.s32.totalorder %s422, %s423
      %p437 = scmp.eq.s32.totalorder %s43, 3
      %p438 = por %p436, %p437
      %p440 = scmp.ne.s32.totalorder %s423, %s439
      %p441 = scmp.eq.s32.totalorder %s43, 0
      %p442 = por %p440, %p441
      %p443 = scmp.le.s32.totalorder 1, %s37
      %p444 = scmp.lt.s32.totalorder %s37, 5
      %p445 = pnand %p443, %p444
      %p446 = pneg %p445
      // Predicated region
      $region9: #{tpu_custom_call.1} parent=5 // pred_check
        _
      $region10: #{tpu_custom_call.1} parent=5 // pred_check_branch
        %448 = sbr.rel (%p445) target = $region12
      $region11: #{tpu_custom_call.1} parent=5 // pred_region
        %s449 = ssub.s32 %s37, 1
        // Predicated region
        $region13: #{tpu_custom_call.1} parent=11 // pred_check
          %p450 = pneg %p260
        $region14: #{tpu_custom_call.1} parent=11 // pred_check_branch
          %452 = sbr.rel (%p450) target = $region16
        $region15: #{tpu_custom_call.1} parent=11 // pred_region
          _
        $region16: #{tpu_custom_call.1} parent=11 // pred_fallthru
          _
        // Predicated region
        $region17: #{tpu_custom_call.1} parent=11 // pred_check
          %p453 = pneg %p281
        $region18: #{tpu_custom_call.1} parent=11 // pred_check_branch
          %455 = sbr.rel (%p453) target = $region20
        $region19: #{tpu_custom_call.1} parent=11 // pred_region
          _
        $region20: #{tpu_custom_call.1} parent=11 // pred_fallthru
          _
        // Predicated region
        $region21: #{tpu_custom_call.1} parent=11 // pred_check
          %p456 = pneg %p302
        $region22: #{tpu_custom_call.1} parent=11 // pred_check_branch
          %458 = sbr.rel (%p456) target = $region24
        $region23: #{tpu_custom_call.1} parent=11 // pred_region
          %s460 = ssub.s32 16384, 16384
          %461 = vsyncadd [#allocation12], %s460
          %s462 = sshll.u32 [#allocation13], 4
          %s463 = int_to_ptr.vmem [resolvable:$true] %s462
          %468 = dma.hbm_to_vmem [thread:$0]  %s9, 16384, %s463, [#allocation12], 1024, 1024, 64
        $region24: #{tpu_custom_call.1} parent=11 // pred_fallthru
          _
        // Predicated region
        $region25: #{tpu_custom_call.1} parent=11 // pred_check
          %p469 = pneg %p323
        $region26: #{tpu_custom_call.1} parent=11 // pred_check_branch
          %471 = sbr.rel (%p469) target = $region28
        $region27: #{tpu_custom_call.1} parent=11 // pred_region
          _
        $region28: #{tpu_custom_call.1} parent=11 // pred_fallthru
          _
        // Predicated region
        $region29: #{tpu_custom_call.1} parent=11 // pred_check
          %p472 = pneg %p344
        $region30: #{tpu_custom_call.1} parent=11 // pred_check_branch
          %474 = sbr.rel (%p472) target = $region32
        $region31: #{tpu_custom_call.1} parent=11 // pred_region
          %s476 = ssub.s32 16384, 16384
          %477 = vsyncadd [#allocation15], %s476
          %s478 = sshll.u32 [#allocation14], 4
          %s479 = int_to_ptr.vmem [resolvable:$true] %s478
          %484 = dma.hbm_to_vmem [thread:$0]  %s11, 16384, %s479, [#allocation15], 128, 128, 8
        $region32: #{tpu_custom_call.1} parent=11 // pred_fallthru
          _
        // Predicated region
        $region33: #{tpu_custom_call.1} parent=11 // pred_check
          %p485 = pneg %p365
        $region34: #{tpu_custom_call.1} parent=11 // pred_check_branch
          %487 = sbr.rel (%p485) target = $region36
        $region35: #{tpu_custom_call.1} parent=11 // pred_region
          _
        $region36: #{tpu_custom_call.1} parent=11 // pred_fallthru
          _
        // Predicated region
        $region37: #{tpu_custom_call.1} parent=11 // pred_check
          %p488 = pneg %p386
        $region38: #{tpu_custom_call.1} parent=11 // pred_check_branch
          %490 = sbr.rel (%p488) target = $region40
        $region39: #{tpu_custom_call.1} parent=11 // pred_region
          _
        $region40: #{tpu_custom_call.1} parent=11 // pred_fallthru
          _
        // Predicated region
        $region41: #{tpu_custom_call.1} parent=11 // pred_check
          %p491 = pneg %p407
        $region42: #{tpu_custom_call.1} parent=11 // pred_check_branch
          %493 = sbr.rel (%p491) target = $region44
        $region43: #{tpu_custom_call.1} parent=11 // pred_region
          _
        $region44: #{tpu_custom_call.1} parent=11 // pred_fallthru
          _
      $region12: #{tpu_custom_call.1} parent=5 // pred_fallthru
        _
      %p494 = scmp.lt.s32.totalorder %s37, 4
      // Predicated region
      $region45: #{tpu_custom_call.1} parent=5 // pred_check
        %p495 = pneg %p494
      $region46: #{tpu_custom_call.1} parent=5 // pred_check_branch
        %497 = sbr.rel (%p495) target = $region48
      $region47: #{tpu_custom_call.1} parent=5 // pred_region
        // Predicated region
        $region49: #{tpu_custom_call.1} parent=47 // pred_check
          %p498 = pneg %p71
        $region50: #{tpu_custom_call.1} parent=47 // pred_check_branch
          %500 = sbr.rel (%p498) target = $region52
        $region51: #{tpu_custom_call.1} parent=47 // pred_region
          %s501 = sand.u32 %s61, 1
          %s502 = scalar_lea.sflag [#allocation3], %s501
          %s503 = sand.u32 %s61, 1
          %s504 = smul.addr %s503, 8
          %s505 = scalar_lea.vmem [#allocation2], %s504
          %s507 = ssub.s32 128, 128
          %508 = vsyncadd %s502, %s507
          %s509 = smul.addr %s44, 2
          %s510 = sadd.s32 %s45, %s509
          %s511 = smul.addr %s510, 128
          %s512 = scalar_lea.hbm %s0, %s511
          %s514 = sshll.u32 %s505, 4
          %s515 = int_to_ptr.vmem [resolvable:$true] %s514
          %517 = dma.hbm_to_vmem [thread:$0]  %s512, 128, %s515, %s502
        $region52: #{tpu_custom_call.1} parent=47 // pred_fallthru
          _
        // Predicated region
        $region53: #{tpu_custom_call.1} parent=47 // pred_check
          %p518 = pneg %p97
        $region54: #{tpu_custom_call.1} parent=47 // pred_check_branch
          %520 = sbr.rel (%p518) target = $region56
        $region55: #{tpu_custom_call.1} parent=47 // pred_region
          %p521 = scmp.lt.s32.totalorder %s44, 1
          %s522 = scalar_select %p521, %s44, 1
          %s523 = scalar_lea.vmem %s1, %s522
        $region56: #{tpu_custom_call.1} parent=47 // pred_fallthru
          _
        // Predicated region
        $region57: #{tpu_custom_call.1} parent=47 // pred_check
          %p524 = pneg %p125
        $region58: #{tpu_custom_call.1} parent=47 // pred_check_branch
          %526 = sbr.rel (%p524) target = $region60
        $region59: #{tpu_custom_call.1} parent=47 // pred_region
          %s527 = sand.u32 %s37, 1
          %s528 = scalar_lea.sflag [#allocation6], %s527
          %s529 = sand.u32 %s115, 1
          %s530 = smul.addr %s529, 128
          %s531 = scalar_lea.vmem [#allocation5], %s530
          %s532 = smul.u32 8, %s45
          %s534 = ssub.s32 2048, 2048
          %535 = vsyncadd %s528, %s534
          %s536 = smul.addr %s532, 2
          %s537 = smul.addr %s44, 32
          %s538 = sadd.s32 %s536, %s537
          %s539 = smul.addr %s538, 128
          %s540 = scalar_lea.hbm %s2, %s539
          %s541 = sshll.u32 %s531, 4
          %s542 = int_to_ptr.vmem [resolvable:$true] %s541
          %547 = dma.hbm_to_vmem [thread:$0]  %s540, 2048, %s542, %s528, 128, 128, 8
        $region60: #{tpu_custom_call.1} parent=47 // pred_fallthru
          _
        // Predicated region
        $region61: #{tpu_custom_call.1} parent=47 // pred_check
          %p548 = pneg %p153
        $region62: #{tpu_custom_call.1} parent=47 // pred_check_branch
          %550 = sbr.rel (%p548) target = $region64
        $region63: #{tpu_custom_call.1} parent=47 // pred_region
          %s551 = sand.u32 %s37, 1
          %s552 = scalar_lea.sflag [#allocation6], %s551
          %s553 = sand.u32 %s143, 1
          %s554 = smul.addr %s553, 32
          %s555 = scalar_lea.vmem [#allocation7], %s554
          %s557 = ssub.s32 512, 512
          %558 = vsyncadd %s552, %s557
          %s559 = smul.addr %s44, 8
          %s560 = sadd.s32 %s45, %s559
          %s561 = smul.addr %s560, 128
          %s562 = scalar_lea.hbm %s3, %s561
          %s563 = sshll.u32 %s555, 4
          %s564 = int_to_ptr.vmem [resolvable:$true] %s563
          %569 = dma.hbm_to_vmem [thread:$0]  %s562, 512, %s564, %s552, 256, 128, 8
        $region64: #{tpu_custom_call.1} parent=47 // pred_fallthru
          _
        // Predicated region
        $region65: #{tpu_custom_call.1} parent=47 // pred_check
          %p570 = pneg %p181
        $region66: #{tpu_custom_call.1} parent=47 // pred_check_branch
          %572 = sbr.rel (%p570) target = $region68
        $region67: #{tpu_custom_call.1} parent=47 // pred_region
          %s573 = sand.u32 %s37, 1
          %s574 = scalar_lea.sflag [#allocation9], %s573
          %s575 = sand.u32 %s171, 1
          %s576 = smul.addr %s575, 32
          %s577 = scalar_lea.vmem [#allocation8], %s576
          %s578 = smul.u32 8, %s45
          %s580 = ssub.s32 512, 512
          %581 = vsyncadd %s574, %s580
          %s582 = smul.addr %s44, 16
          %s583 = sadd.s32 %s578, %s582
          %s584 = smul.addr %s583, 64
          %s585 = scalar_lea.hbm %s4, %s584
          %s586 = sshll.u32 %s577, 4
          %s587 = int_to_ptr.vmem [resolvable:$true] %s586
          %592 = dma.hbm_to_vmem [thread:$0]  %s585, 512, %s587, %s574, 64, 64, 4
        $region68: #{tpu_custom_call.1} parent=47 // pred_fallthru
          _
        // Predicated region
        $region69: #{tpu_custom_call.1} parent=47 // pred_check
          %p593 = pneg %p207
        $region70: #{tpu_custom_call.1} parent=47 // pred_check_branch
          %595 = sbr.rel (%p593) target = $region72
        $region71: #{tpu_custom_call.1} parent=47 // pred_region
          %s596 = sand.u32 %s37, 1
          %s597 = scalar_lea.sflag [#allocation9], %s596
          %s598 = sand.u32 %s197, 1
          %s599 = smul.addr %s598, 64
          %s600 = scalar_lea.vmem [#allocation10], %s599
          %s602 = ssub.s32 1024, 1024
          %603 = vsyncadd %s597, %s602
          %s604 = smul.addr %s44, 8
          %s605 = smul.addr %s604, 128
          %s606 = scalar_lea.hbm %s5, %s605
          %s607 = sshll.u32 %s600, 4
          %s608 = int_to_ptr.vmem [resolvable:$true] %s607
          %613 = dma.hbm_to_vmem [thread:$0]  %s606, 1024, %s608, %s597, 128, 128, 8
        $region72: #{tpu_custom_call.1} parent=47 // pred_fallthru
          _
        // Predicated region
        $region73: #{tpu_custom_call.1} parent=47 // pred_check
          %p614 = pneg %p233
        $region74: #{tpu_custom_call.1} parent=47 // pred_check_branch
          %616 = sbr.rel (%p614) target = $region76
        $region75: #{tpu_custom_call.1} parent=47 // pred_region
          %s617 = sand.u32 %s37, 1
          %s618 = scalar_lea.sflag [#allocation12], %s617
          %s619 = sand.u32 %s223, 1
          %s620 = smul.addr %s619, 64
          %s621 = scalar_lea.vmem [#allocation11], %s620
          %s623 = ssub.s32 1024, 1024
          %624 = vsyncadd %s618, %s623
          %s625 = smul.addr %s44, 8
          %s626 = smul.addr %s625, 128
          %s627 = scalar_lea.hbm %s6, %s626
          %s628 = sshll.u32 %s621, 4
          %s629 = int_to_ptr.vmem [resolvable:$true] %s628
          %634 = dma.hbm_to_vmem [thread:$0]  %s627, 1024, %s629, %s618, 128, 128, 8
        $region76: #{tpu_custom_call.1} parent=47 // pred_fallthru
          _
      $region48: #{tpu_custom_call.1} parent=5 // pred_fallthru
        _
      %p635 = scmp.le.s32.totalorder 1, %s37
      %p636 = scmp.lt.s32.totalorder %s37, 5
      %p637 = pnand %p635, %p636
      %p638 = pneg %p637
      // Predicated region
      $region77: #{tpu_custom_call.1} parent=5 // pred_check
        _
      $region78: #{tpu_custom_call.1} parent=5 // pred_check_branch
        %640 = sbr.rel (%p637) target = $region80
      $region79: #{tpu_custom_call.1} parent=5 // pred_region
        %s641 = ssub.s32 %s37, 1
        %s642 = sand.u32 %s64, 1
        %s643 = scalar_lea.sflag [#allocation3], %s642
        %s644 = sand.u32 %s64, 1
        %s645 = smul.addr %s644, 8
        %s646 = scalar_lea.vmem [#allocation2], %s645
        // Predicated region
        $region81: #{tpu_custom_call.1} parent=79 // pred_check
          %p647 = pneg %p77
        $region82: #{tpu_custom_call.1} parent=79 // pred_check_branch
          %649 = sbr.rel (%p647) target = $region84
        $region83: #{tpu_custom_call.1} parent=79 // pred_region
          %650 = dma.done %s643, 128
        $region84: #{tpu_custom_call.1} parent=79 // pred_fallthru
          _
        %s651 = sand.u32 %s42, 1
        %s652 = scalar_lea.sflag [#allocation6], %s651
        %s653 = sand.u32 %s118, 1
        %s654 = smul.addr %s653, 128
        %s655 = scalar_lea.vmem [#allocation5], %s654
        // Predicated region
        $region85: #{tpu_custom_call.1} parent=79 // pred_check
          %p656 = pneg %p131
        $region86: #{tpu_custom_call.1} parent=79 // pred_check_branch
          %658 = sbr.rel (%p656) target = $region88
        $region87: #{tpu_custom_call.1} parent=79 // pred_region
          %659 = dma.done %s652, 2048
        $region88: #{tpu_custom_call.1} parent=79 // pred_fallthru
          _
        %s660 = sand.u32 %s42, 1
        %s661 = scalar_lea.sflag [#allocation6], %s660
        %s662 = sand.u32 %s146, 1
        %s663 = smul.addr %s662, 32
        %s664 = scalar_lea.vmem [#allocation7], %s663
        // Predicated region
        $region89: #{tpu_custom_call.1} parent=79 // pred_check
          %p665 = pneg %p159
        $region90: #{tpu_custom_call.1} parent=79 // pred_check_branch
          %667 = sbr.rel (%p665) target = $region92
        $region91: #{tpu_custom_call.1} parent=79 // pred_region
          %668 = dma.done %s661, 512
        $region92: #{tpu_custom_call.1} parent=79 // pred_fallthru
          _
        %s669 = sand.u32 %s42, 1
        %s670 = scalar_lea.sflag [#allocation9], %s669
        %s671 = sand.u32 %s174, 1
        %s672 = smul.addr %s671, 32
        %s673 = scalar_lea.vmem [#allocation8], %s672
        // Predicated region
        $region93: #{tpu_custom_call.1} parent=79 // pred_check
          %p674 = pneg %p187
        $region94: #{tpu_custom_call.1} parent=79 // pred_check_branch
          %676 = sbr.rel (%p674) target = $region96
        $region95: #{tpu_custom_call.1} parent=79 // pred_region
          %677 = dma.done %s670, 512
        $region96: #{tpu_custom_call.1} parent=79 // pred_fallthru
          _
        %s678 = sand.u32 %s42, 1
        %s679 = scalar_lea.sflag [#allocation9], %s678
        %s680 = sand.u32 %s200, 1
        %s681 = smul.addr %s680, 64
        %s682 = scalar_lea.vmem [#allocation10], %s681
        // Predicated region
        $region97: #{tpu_custom_call.1} parent=79 // pred_check
          %p683 = pneg %p213
        $region98: #{tpu_custom_call.1} parent=79 // pred_check_branch
          %685 = sbr.rel (%p683) target = $region100
        $region99: #{tpu_custom_call.1} parent=79 // pred_region
          %686 = dma.done %s679, 1024
        $region100: #{tpu_custom_call.1} parent=79 // pred_fallthru
          _
        %s687 = sand.u32 %s42, 1
        %s688 = scalar_lea.sflag [#allocation12], %s687
        %s689 = sand.u32 %s226, 1
        %s690 = smul.addr %s689, 64
        %s691 = scalar_lea.vmem [#allocation11], %s690
        // Predicated region
        $region101: #{tpu_custom_call.1} parent=79 // pred_check
          %p692 = pneg %p239
        $region102: #{tpu_custom_call.1} parent=79 // pred_check_branch
          %694 = sbr.rel (%p692) target = $region104
        $region103: #{tpu_custom_call.1} parent=79 // pred_region
          %695 = dma.done %s688, 1024
        $region104: #{tpu_custom_call.1} parent=79 // pred_fallthru
          _
        // Predicated region
        $region105: #{tpu_custom_call.1} parent=79 // pred_check
          %p696 = pneg %p302
        $region106: #{tpu_custom_call.1} parent=79 // pred_check_branch
          %698 = sbr.rel (%p696) target = $region108
        $region107: #{tpu_custom_call.1} parent=79 // pred_region
          %699 = dma.done [#allocation12], 16384
        $region108: #{tpu_custom_call.1} parent=79 // pred_fallthru
          _
        // Predicated region
        $region109: #{tpu_custom_call.1} parent=79 // pred_check
          %p700 = pneg %p344
        $region110: #{tpu_custom_call.1} parent=79 // pred_check_branch
          %702 = sbr.rel (%p700) target = $region112
        $region111: #{tpu_custom_call.1} parent=79 // pred_region
          %703 = dma.done [#allocation15], 16384
        $region112: #{tpu_custom_call.1} parent=79 // pred_fallthru
          _
        %s704 = sand.u32 %s64, 1
        %s705 = scalar_lea.sflag [#allocation3], %s704
        %s706 = sand.u32 %s64, 1
        %s707 = smul.addr %s706, 8
        %s708 = scalar_lea.vmem [#allocation2], %s707
        %p709 = pneg %p77
        %p710 = pneg %p74
        %p711 = scmp.lt.s32.totalorder %s46, 1
        %s712 = scalar_select %p711, %s46, 1
        %s713 = scalar_lea.vmem %s1, %s712
        %p714 = pneg %p103
        %p715 = pneg %p100
        %s716 = sand.u32 %s42, 1
        %s717 = scalar_lea.sflag [#allocation6], %s716
        %s718 = sand.u32 %s118, 1
        %s719 = smul.addr %s718, 128
        %s720 = scalar_lea.vmem [#allocation5], %s719
        %p721 = pneg %p131
        %p722 = pneg %p128
        %s723 = sand.u32 %s42, 1
        %s724 = scalar_lea.sflag [#allocation6], %s723
        %s725 = sand.u32 %s146, 1
        %s726 = smul.addr %s725, 32
        %s727 = scalar_lea.vmem [#allocation7], %s726
        %p728 = pneg %p159
        %p729 = pneg %p156
        %s730 = sand.u32 %s42, 1
        %s731 = scalar_lea.sflag [#allocation9], %s730
        %s732 = sand.u32 %s174, 1
        %s733 = smul.addr %s732, 32
        %s734 = scalar_lea.vmem [#allocation8], %s733
        %p735 = pneg %p187
        %p736 = pneg %p184
        %s737 = sand.u32 %s42, 1
        %s738 = scalar_lea.sflag [#allocation9], %s737
        %s739 = sand.u32 %s200, 1
        %s740 = smul.addr %s739, 64
        %s741 = scalar_lea.vmem [#allocation10], %s740
        %p742 = pneg %p213
        %p743 = pneg %p210
        %s744 = sand.u32 %s42, 1
        %s745 = scalar_lea.sflag [#allocation12], %s744
        %s746 = sand.u32 %s226, 1
        %s747 = smul.addr %s746, 64
        %s748 = scalar_lea.vmem [#allocation11], %s747
        %p749 = pneg %p239
        %p750 = pneg %p236
        %p751 = pneg %p260
        %p752 = pneg %p257
        %p753 = pneg %p281
        %p754 = pneg %p278
        %p755 = pneg %p302
        %p756 = pneg %p299
        %p757 = pneg %p323
        %p758 = pneg %p320
        %p759 = pneg %p344
        %p760 = pneg %p341
        %p761 = pneg %p365
        %p762 = pneg %p362
        %p763 = pneg %p386
        %p764 = pneg %p383
        %p765 = pneg %p407
        %p766 = pneg %p404
        %p767 = pneg %p435
        %p768 = pneg %p432
        %s769 = sand.u32 %s422, 1
        %s770 = scalar_lea.sflag [#allocation4], %s769
        %s771 = sand.u32 %s422, 1
        %s772 = smul.addr %s771, 8
        %s773 = scalar_lea.vmem [#allocation16], %s772
        %p774 = scmp.lt.s32.totalorder %s46, 1
        %s775 = scalar_select %p774, %s46, 1
        %s776 = scalar_lea.vmem %s1, %s775
        %s777 = smul.u32 8, %s47
        %s778 = smul.u32 8, %s47
        %v779 = vld [vmem:[%s646] sm:$0xff]
        %v780 = vld [vmem:[%s664] sm:$0xff]
        %v781 = vld [vmem:[%s664 + $0x8] sm:$0xff]
        %v782 = vld [vmem:[%s664 + $0x10] sm:$0xff]
        %v783 = vld [vmem:[%s664 + $0x18] sm:$0xff]
        %v784 = vld [vmem:[%s673] sm:$0xf]
        %v785 = vld [vmem:[%s673 + $0x4] sm:$0xf]
        %v786 = vld [vmem:[%s673 + $0x8] sm:$0xf]
        %v787 = vld [vmem:[%s673 + $0xc] sm:$0xf]
        %v788 = vld [vmem:[%s673 + $0x10] sm:$0xf]
        %v789 = vld [vmem:[%s673 + $0x14] sm:$0xf]
        %v790 = vld [vmem:[%s673 + $0x18] sm:$0xf]
        %v791 = vld [vmem:[%s673 + $0x1c] sm:$0xf]
        %v792 = vld [vmem:[%s682] sm:$0xff]
        %v793 = vld [vmem:[%s682 + $0x8] sm:$0xff]
        %v794 = vld [vmem:[%s682 + $0x10] sm:$0xff]
        %v795 = vld [vmem:[%s682 + $0x18] sm:$0xff]
        %v796 = vld [vmem:[%s682 + $0x20] sm:$0xff]
        %v797 = vld [vmem:[%s682 + $0x28] sm:$0xff]
        %v798 = vld [vmem:[%s682 + $0x30] sm:$0xff]
        %v799 = vld [vmem:[%s682 + $0x38] sm:$0xff]
        %v800 = vld [vmem:[%s691] sm:$0xff]
        %v801 = vld [vmem:[%s691 + $0x8] sm:$0xff]
        %v802 = vld [vmem:[%s691 + $0x10] sm:$0xff]
        %v803 = vld [vmem:[%s691 + $0x18] sm:$0xff]
        %v804 = vld [vmem:[%s691 + $0x20] sm:$0xff]
        %v805 = vld [vmem:[%s691 + $0x28] sm:$0xff]
        %v806 = vld [vmem:[%s691 + $0x30] sm:$0xff]
        %v807 = vld [vmem:[%s691 + $0x38] sm:$0xff]
        %v808 = vld [vmem:[%s655] sm:$0xff]
        %v809 = vld [vmem:[%s655 + $0x8] sm:$0xff]
        %v810 = vld [vmem:[%s655 + $0x10] sm:$0xff]
        %v811 = vld [vmem:[%s655 + $0x18] sm:$0xff]
        %v812 = vld [vmem:[%s655 + $0x20] sm:$0xff]
        %v813 = vld [vmem:[%s655 + $0x28] sm:$0xff]
        %v814 = vld [vmem:[%s655 + $0x30] sm:$0xff]
        %v815 = vld [vmem:[%s655 + $0x38] sm:$0xff]
        %v816 = vld [vmem:[%s655 + $0x40] sm:$0xff]
        %v817 = vld [vmem:[%s655 + $0x48] sm:$0xff]
        %v818 = vld [vmem:[%s655 + $0x50] sm:$0xff]
        %v819 = vld [vmem:[%s655 + $0x58] sm:$0xff]
        %v820 = vld [vmem:[%s655 + $0x60] sm:$0xff]
        %v821 = vld [vmem:[%s655 + $0x68] sm:$0xff]
        %v822 = vld [vmem:[%s655 + $0x70] sm:$0xff]
        %v823 = vld [vmem:[%s655 + $0x78] sm:$0xff]
        %824 = vmatprep.subr.mxu0 0.0
        %825 = vmatpush1.xpose.msra.mxu0 %v808
        %826 = vmatprep.subr.mxu0 0.0
        %827 = vmatpush1.xpose.msra.mxu0 %v809
        %828 = vmatprep.subr.mxu0 0.0
        %829 = vmatpush1.xpose.msra.mxu0 0.0
        %830 = vmatprep.subr.mxu0 0.0
        %831 = vmatpush1.xpose.msra.mxu0 0.0
        %832 = vmatprep.subr.mxu0 0.0
        %833 = vmatpush1.xpose.msra.mxu0 0.0
        %834 = vmatprep.subr.mxu0 0.0
        %835 = vmatpush1.xpose.msra.mxu0 0.0
        %836 = vmatprep.subr.mxu0 0.0
        %837 = vmatpush1.xpose.msra.mxu0 0.0
        %838 = vmatprep.subr.mxu0 0.0
        %839 = vmatpush1.xpose.msra.mxu0 0.0
        %840 = vmatprep.subr.mxu0 0.0
        %841 = vmatpush1.xpose.msra.mxu0 0.0
        %842 = vmatprep.subr.mxu0 0.0
        %843 = vmatpush1.xpose.msra.mxu0 0.0
        %844 = vmatprep.subr.mxu0 0.0
        %845 = vmatpush1.xpose.msra.mxu0 0.0
        %846 = vmatprep.subr.mxu0 0.0
        %847 = vmatpush1.xpose.msra.mxu0 0.0
        %848 = vmatprep.subr.mxu0 0.0
        %849 = vmatpush1.xpose.msra.mxu0 0.0
        %850 = vmatprep.subr.mxu0 0.0
        %851 = vmatpush1.xpose.msra.mxu0 0.0
        %852 = vmatprep.subr.mxu0 0.0
        %853 = vmatpush1.xpose.msra.mxu0 0.0
        %854 = vmatprep.subr.mxu0 0.0
        %855 = vmatpush1.xpose.msra.mxu0 0.0
        %856 = vmatprep.subr.mxu0 0.0
        %857 = vmatpush1.xpose.msra.mxu0 0.0
        %858 = vmatprep.subr.mxu0 0.0
        %859 = vmatpush1.xpose.msra.mxu0 0.0
        %860 = vmatprep.subr.mxu0 0.0
        %861 = vmatpush1.xpose.msra.mxu0 0.0
        %862 = vmatprep.subr.mxu0 0.0
        %863 = vmatpush1.xpose.msra.mxu0 0.0
        %864 = vmatprep.subr.mxu0 0.0
        %865 = vmatpush1.xpose.msra.mxu0 0.0
        %866 = vmatprep.subr.mxu0 0.0
        %867 = vmatpush1.xpose.msra.mxu0 0.0
        %868 = vmatprep.subr.mxu0 0.0
        %869 = vmatpush1.xpose.msra.mxu0 0.0
        %870 = vmatprep.subr.mxu0 0.0
        %871 = vmatpush1.xpose.msra.mxu0 0.0
        %872 = vmatprep.subr.mxu0 0.0
        %873 = vmatpush1.xpose.msra.mxu0 0.0
        %874 = vmatprep.subr.mxu0 0.0
        %875 = vmatpush1.xpose.msra.mxu0 0.0
        %876 = vmatprep.subr.mxu0 0.0
        %877 = vmatpush1.xpose.msra.mxu0 0.0
        %878 = vmatprep.subr.mxu0 0.0
        %879 = vmatpush1.xpose.msra.mxu0 0.0
        %880 = vmatprep.subr.mxu0 0.0
        %881 = vmatpush1.xpose.msra.mxu0 0.0
        %882 = vmatprep.subr.mxu0 0.0
        %883 = vmatpush1.xpose.msra.mxu0 0.0
        %884 = vmatprep.subr.mxu0 0.0
        %885 = vmatpush1.xpose.msra.mxu0 0.0
        %886 = vmatprep.subr.mxu0 0.0
        %887 = vmatpush1.xpose.msra.mxu0 0.0
        %888 = vmatprep.mubr.f32.mxu0 0.0
        %889 = vmatmul.mubr.f32.gmra.mrb[0].mxu0 %v784
        %v890 = vpop.f32.mrb[0].mxu0
        %v891 = vadd.f32 0.0, %v890
        %v892 = vpop.f32.mrb[0].mxu0
        %893 = vdwg.mxu0
        %894 = vmatprep.subr.mxu0 0.0
        %895 = vmatpush1.xpose.msra.mxu0 %v810
        %896 = vmatprep.subr.mxu0 0.0
        %897 = vmatpush1.xpose.msra.mxu0 %v811
        %898 = vmatprep.subr.mxu0 0.0
        %899 = vmatpush1.xpose.msra.mxu0 0.0
        %900 = vmatprep.subr.mxu0 0.0
        %901 = vmatpush1.xpose.msra.mxu0 0.0
        %902 = vmatprep.subr.mxu0 0.0
        %903 = vmatpush1.xpose.msra.mxu0 0.0
        %904 = vmatprep.subr.mxu0 0.0
        %905 = vmatpush1.xpose.msra.mxu0 0.0
        %906 = vmatprep.subr.mxu0 0.0
        %907 = vmatpush1.xpose.msra.mxu0 0.0
        %908 = vmatprep.subr.mxu0 0.0
        %909 = vmatpush1.xpose.msra.mxu0 0.0
        %910 = vmatprep.subr.mxu0 0.0
        %911 = vmatpush1.xpose.msra.mxu0 0.0
        %912 = vmatprep.subr.mxu0 0.0
        %913 = vmatpush1.xpose.msra.mxu0 0.0
        %914 = vmatprep.subr.mxu0 0.0
        %915 = vmatpush1.xpose.msra.mxu0 0.0
        %916 = vmatprep.subr.mxu0 0.0
        %917 = vmatpush1.xpose.msra.mxu0 0.0
        %918 = vmatprep.subr.mxu0 0.0
        %919 = vmatpush1.xpose.msra.mxu0 0.0
        %920 = vmatprep.subr.mxu0 0.0
        %921 = vmatpush1.xpose.msra.mxu0 0.0
        %922 = vmatprep.subr.mxu0 0.0
        %923 = vmatpush1.xpose.msra.mxu0 0.0
        %924 = vmatprep.subr.mxu0 0.0
        %925 = vmatpush1.xpose.msra.mxu0 0.0
        %926 = vmatprep.subr.mxu0 0.0
        %927 = vmatpush1.xpose.msra.mxu0 0.0
        %928 = vmatprep.subr.mxu0 0.0
        %929 = vmatpush1.xpose.msra.mxu0 0.0
        %930 = vmatprep.subr.mxu0 0.0
        %931 = vmatpush1.xpose.msra.mxu0 0.0
        %932 = vmatprep.subr.mxu0 0.0
        %933 = vmatpush1.xpose.msra.mxu0 0.0
        %934 = vmatprep.subr.mxu0 0.0
        %935 = vmatpush1.xpose.msra.mxu0 0.0
        %936 = vmatprep.subr.mxu0 0.0
        %937 = vmatpush1.xpose.msra.mxu0 0.0
        %938 = vmatprep.subr.mxu0 0.0
        %939 = vmatpush1.xpose.msra.mxu0 0.0
        %940 = vmatprep.subr.mxu0 0.0
        %941 = vmatpush1.xpose.msra.mxu0 0.0
        %942 = vmatprep.subr.mxu0 0.0
        %943 = vmatpush1.xpose.msra.mxu0 0.0
        %944 = vmatprep.subr.mxu0 0.0
        %945 = vmatpush1.xpose.msra.mxu0 0.0
        %946 = vmatprep.subr.mxu0 0.0
        %947 = vmatpush1.xpose.msra.mxu0 0.0
        %948 = vmatprep.subr.mxu0 0.0
        %949 = vmatpush1.xpose.msra.mxu0 0.0
        %950 = vmatprep.subr.mxu0 0.0
        %951 = vmatpush1.xpose.msra.mxu0 0.0
        %952 = vmatprep.subr.mxu0 0.0
        %953 = vmatpush1.xpose.msra.mxu0 0.0
        %954 = vmatprep.subr.mxu0 0.0
        %955 = vmatpush1.xpose.msra.mxu0 0.0
        %956 = vmatprep.subr.mxu0 0.0
        %957 = vmatpush1.xpose.msra.mxu0 0.0
        %958 = vmatprep.mubr.f32.mxu0 0.0
        %959 = vmatmul.mubr.f32.gmra.mrb[0].mxu0 %v785
        %v960 = vpop.f32.mrb[0].mxu0
        %v961 = vadd.f32 0.0, %v960
        %v962 = vpop.f32.mrb[0].mxu0
        %963 = vdwg.mxu0
        %964 = vmatprep.subr.mxu0 0.0
        %965 = vmatpush1.xpose.msra.mxu0 %v812
        %966 = vmatprep.subr.mxu0 0.0
        %967 = vmatpush1.xpose.msra.mxu0 %v813
        %968 = vmatprep.subr.mxu0 0.0
        %969 = vmatpush1.xpose.msra.mxu0 0.0
        %970 = vmatprep.subr.mxu0 0.0
        %971 = vmatpush1.xpose.msra.mxu0 0.0
        %972 = vmatprep.subr.mxu0 0.0
        %973 = vmatpush1.xpose.msra.mxu0 0.0
        %974 = vmatprep.subr.mxu0 0.0
        %975 = vmatpush1.xpose.msra.mxu0 0.0
        %976 = vmatprep.subr.mxu0 0.0
        %977 = vmatpush1.xpose.msra.mxu0 0.0
        %978 = vmatprep.subr.mxu0 0.0
        %979 = vmatpush1.xpose.msra.mxu0 0.0
        %980 = vmatprep.subr.mxu0 0.0
        %981 = vmatpush1.xpose.msra.mxu0 0.0
        %982 = vmatprep.subr.mxu0 0.0
        %983 = vmatpush1.xpose.msra.mxu0 0.0
        %984 = vmatprep.subr.mxu0 0.0
        %985 = vmatpush1.xpose.msra.mxu0 0.0
        %986 = vmatprep.subr.mxu0 0.0
        %987 = vmatpush1.xpose.msra.mxu0 0.0
        %988 = vmatprep.subr.mxu0 0.0
        %989 = vmatpush1.xpose.msra.mxu0 0.0
        %990 = vmatprep.subr.mxu0 0.0
        %991 = vmatpush1.xpose.msra.mxu0 0.0
        %992 = vmatprep.subr.mxu0 0.0
        %993 = vmatpush1.xpose.msra.mxu0 0.0
        %994 = vmatprep.subr.mxu0 0.0
        %995 = vmatpush1.xpose.msra.mxu0 0.0
        %996 = vmatprep.subr.mxu0 0.0
        %997 = vmatpush1.xpose.msra.mxu0 0.0
        %998 = vmatprep.subr.mxu0 0.0
        %999 = vmatpush1.xpose.msra.mxu0 0.0
        %1000 = vmatprep.subr.mxu0 0.0
        %1001 = vmatpush1.xpose.msra.mxu0 0.0
        %1002 = vmatprep.subr.mxu0 0.0
        %1003 = vmatpush1.xpose.msra.mxu0 0.0
        %1004 = vmatprep.subr.mxu0 0.0
        %1005 = vmatpush1.xpose.msra.mxu0 0.0
        %1006 = vmatprep.subr.mxu0 0.0
        %1007 = vmatpush1.xpose.msra.mxu0 0.0
        %1008 = vmatprep.subr.mxu0 0.0
        %1009 = vmatpush1.xpose.msra.mxu0 0.0
        %1010 = vmatprep.subr.mxu0 0.0
        %1011 = vmatpush1.xpose.msra.mxu0 0.0
        %1012 = vmatprep.subr.mxu0 0.0
        %1013 = vmatpush1.xpose.msra.mxu0 0.0
        %1014 = vmatprep.subr.mxu0 0.0
        %1015 = vmatpush1.xpose.msra.mxu0 0.0
        %1016 = vmatprep.subr.mxu0 0.0
        %1017 = vmatpush1.xpose.msra.mxu0 0.0
        %1018 = vmatprep.subr.mxu0 0.0
        %1019 = vmatpush1.xpose.msra.mxu0 0.0
        %1020 = vmatprep.subr.mxu0 0.0
        %1021 = vmatpush1.xpose.msra.mxu0 0.0
        %1022 = vmatprep.subr.mxu0 0.0
        %1023 = vmatpush1.xpose.msra.mxu0 0.0
        %1024 = vmatprep.subr.mxu0 0.0
        %1025 = vmatpush1.xpose.msra.mxu0 0.0
        %1026 = vmatprep.subr.mxu0 0.0
        %1027 = vmatpush1.xpose.msra.mxu0 0.0
        %1028 = vmatprep.mubr.f32.mxu0 0.0
        %1029 = vmatmul.mubr.f32.gmra.mrb[0].mxu0 %v786
        %v1030 = vpop.f32.mrb[0].mxu0
        %v1031 = vadd.f32 0.0, %v1030
        %v1032 = vpop.f32.mrb[0].mxu0
        %1033 = vdwg.mxu0
        %1034 = vmatprep.subr.mxu0 0.0
        %1035 = vmatpush1.xpose.msra.mxu0 %v814
        %1036 = vmatprep.subr.mxu0 0.0
        %1037 = vmatpush1.xpose.msra.mxu0 %v815
        %1038 = vmatprep.subr.mxu0 0.0
        %1039 = vmatpush1.xpose.msra.mxu0 0.0
        %1040 = vmatprep.subr.mxu0 0.0
        %1041 = vmatpush1.xpose.msra.mxu0 0.0
        %1042 = vmatprep.subr.mxu0 0.0
        %1043 = vmatpush1.xpose.msra.mxu0 0.0
        %1044 = vmatprep.subr.mxu0 0.0
        %1045 = vmatpush1.xpose.msra.mxu0 0.0
        %1046 = vmatprep.subr.mxu0 0.0
        %1047 = vmatpush1.xpose.msra.mxu0 0.0
        %1048 = vmatprep.subr.mxu0 0.0
        %1049 = vmatpush1.xpose.msra.mxu0 0.0
        %1050 = vmatprep.subr.mxu0 0.0
        %1051 = vmatpush1.xpose.msra.mxu0 0.0
        %1052 = vmatprep.subr.mxu0 0.0
        %1053 = vmatpush1.xpose.msra.mxu0 0.0
        %1054 = vmatprep.subr.mxu0 0.0
        %1055 = vmatpush1.xpose.msra.mxu0 0.0
        %1056 = vmatprep.subr.mxu0 0.0
        %1057 = vmatpush1.xpose.msra.mxu0 0.0
        %1058 = vmatprep.subr.mxu0 0.0
        %1059 = vmatpush1.xpose.msra.mxu0 0.0
        %1060 = vmatprep.subr.mxu0 0.0
        %1061 = vmatpush1.xpose.msra.mxu0 0.0
        %1062 = vmatprep.subr.mxu0 0.0
        %1063 = vmatpush1.xpose.msra.mxu0 0.0
        %1064 = vmatprep.subr.mxu0 0.0
        %1065 = vmatpush1.xpose.msra.mxu0 0.0
        %1066 = vmatprep.subr.mxu0 0.0
        %1067 = vmatpush1.xpose.msra.mxu0 0.0
        %1068 = vmatprep.subr.mxu0 0.0
        %1069 = vmatpush1.xpose.msra.mxu0 0.0
        %1070 = vmatprep.subr.mxu0 0.0
        %1071 = vmatpush1.xpose.msra.mxu0 0.0
        %1072 = vmatprep.subr.mxu0 0.0
        %1073 = vmatpush1.xpose.msra.mxu0 0.0
        %1074 = vmatprep.subr.mxu0 0.0
        %1075 = vmatpush1.xpose.msra.mxu0 0.0
        %1076 = vmatprep.subr.mxu0 0.0
        %1077 = vmatpush1.xpose.msra.mxu0 0.0
        %1078 = vmatprep.subr.mxu0 0.0
        %1079 = vmatpush1.xpose.msra.mxu0 0.0
        %1080 = vmatprep.subr.mxu0 0.0
        %1081 = vmatpush1.xpose.msra.mxu0 0.0
        %1082 = vmatprep.subr.mxu0 0.0
        %1083 = vmatpush1.xpose.msra.mxu0 0.0
        %1084 = vmatprep.subr.mxu0 0.0
        %1085 = vmatpush1.xpose.msra.mxu0 0.0
        %1086 = vmatprep.subr.mxu0 0.0
        %1087 = vmatpush1.xpose.msra.mxu0 0.0
        %1088 = vmatprep.subr.mxu0 0.0
        %1089 = vmatpush1.xpose.msra.mxu0 0.0
        %1090 = vmatprep.subr.mxu0 0.0
        %1091 = vmatpush1.xpose.msra.mxu0 0.0
        %1092 = vmatprep.subr.mxu0 0.0
        %1093 = vmatpush1.xpose.msra.mxu0 0.0
        %1094 = vmatprep.subr.mxu0 0.0
        %1095 = vmatpush1.xpose.msra.mxu0 0.0
        %1096 = vmatprep.subr.mxu0 0.0
        %1097 = vmatpush1.xpose.msra.mxu0 0.0
        %1098 = vmatprep.mubr.f32.mxu0 0.0
        %1099 = vmatmul.mubr.f32.gmra.mrb[0].mxu0 %v787
        %v1100 = vpop.f32.mrb[0].mxu0
        %v1101 = vadd.f32 0.0, %v1100
        %v1102 = vpop.f32.mrb[0].mxu0
        %1103 = vdwg.mxu0
        %1104 = vmatprep.subr.mxu0 0.0
        %1105 = vmatpush1.xpose.msra.mxu0 %v816
        %1106 = vmatprep.subr.mxu0 0.0
        %1107 = vmatpush1.xpose.msra.mxu0 %v817
        %1108 = vmatprep.subr.mxu0 0.0
        %1109 = vmatpush1.xpose.msra.mxu0 0.0
        %1110 = vmatprep.subr.mxu0 0.0
        %1111 = vmatpush1.xpose.msra.mxu0 0.0
        %1112 = vmatprep.subr.mxu0 0.0
        %1113 = vmatpush1.xpose.msra.mxu0 0.0
        %1114 = vmatprep.subr.mxu0 0.0
        %1115 = vmatpush1.xpose.msra.mxu0 0.0
        %1116 = vmatprep.subr.mxu0 0.0
        %1117 = vmatpush1.xpose.msra.mxu0 0.0
        %1118 = vmatprep.subr.mxu0 0.0
        %1119 = vmatpush1.xpose.msra.mxu0 0.0
        %1120 = vmatprep.subr.mxu0 0.0
        %1121 = vmatpush1.xpose.msra.mxu0 0.0
        %1122 = vmatprep.subr.mxu0 0.0
        %1123 = vmatpush1.xpose.msra.mxu0 0.0
        %1124 = vmatprep.subr.mxu0 0.0
        %1125 = vmatpush1.xpose.msra.mxu0 0.0
        %1126 = vmatprep.subr.mxu0 0.0
        %1127 = vmatpush1.xpose.msra.mxu0 0.0
        %1128 = vmatprep.subr.mxu0 0.0
        %1129 = vmatpush1.xpose.msra.mxu0 0.0
        %1130 = vmatprep.subr.mxu0 0.0
        %1131 = vmatpush1.xpose.msra.mxu0 0.0
        %1132 = vmatprep.subr.mxu0 0.0
        %1133 = vmatpush1.xpose.msra.mxu0 0.0
        %1134 = vmatprep.subr.mxu0 0.0
        %1135 = vmatpush1.xpose.msra.mxu0 0.0
        %1136 = vmatprep.subr.mxu0 0.0
        %1137 = vmatpush1.xpose.msra.mxu0 0.0
        %1138 = vmatprep.subr.mxu0 0.0
        %1139 = vmatpush1.xpose.msra.mxu0 0.0
        %1140 = vmatprep.subr.mxu0 0.0
        %1141 = vmatpush1.xpose.msra.mxu0 0.0
        %1142 = vmatprep.subr.mxu0 0.0
        %1143 = vmatpush1.xpose.msra.mxu0 0.0
        %1144 = vmatprep.subr.mxu0 0.0
        %1145 = vmatpush1.xpose.msra.mxu0 0.0
        %1146 = vmatprep.subr.mxu0 0.0
        %1147 = vmatpush1.xpose.msra.mxu0 0.0
        %1148 = vmatprep.subr.mxu0 0.0
        %1149 = vmatpush1.xpose.msra.mxu0 0.0
        %1150 = vmatprep.subr.mxu0 0.0
        %1151 = vmatpush1.xpose.msra.mxu0 0.0
        %1152 = vmatprep.subr.mxu0 0.0
        %1153 = vmatpush1.xpose.msra.mxu0 0.0
        %1154 = vmatprep.subr.mxu0 0.0
        %1155 = vmatpush1.xpose.msra.mxu0 0.0
        %1156 = vmatprep.subr.mxu0 0.0
        %1157 = vmatpush1.xpose.msra.mxu0 0.0
        %1158 = vmatprep.subr.mxu0 0.0
        %1159 = vmatpush1.xpose.msra.mxu0 0.0
        %1160 = vmatprep.subr.mxu0 0.0
        %1161 = vmatpush1.xpose.msra.mxu0 0.0
        %1162 = vmatprep.subr.mxu0 0.0
        %1163 = vmatpush1.xpose.msra.mxu0 0.0
        %1164 = vmatprep.subr.mxu0 0.0
        %1165 = vmatpush1.xpose.msra.mxu0 0.0
        %1166 = vmatprep.subr.mxu0 0.0
        %1167 = vmatpush1.xpose.msra.mxu0 0.0
        %1168 = vmatprep.mubr.f32.mxu0 0.0
        %1169 = vmatmul.mubr.f32.gmra.mrb[0].mxu0 %v788
        %v1170 = vpop.f32.mrb[0].mxu0
        %v1171 = vadd.f32 0.0, %v1170
        %v1172 = vpop.f32.mrb[0].mxu0
        %1173 = vdwg.mxu0
        %1174 = vmatprep.subr.mxu0 0.0
        %1175 = vmatpush1.xpose.msra.mxu0 %v818
        %1176 = vmatprep.subr.mxu0 0.0
        %1177 = vmatpush1.xpose.msra.mxu0 %v819
        %1178 = vmatprep.subr.mxu0 0.0
        %1179 = vmatpush1.xpose.msra.mxu0 0.0
        %1180 = vmatprep.subr.mxu0 0.0
        %1181 = vmatpush1.xpose.msra.mxu0 0.0
        %1182 = vmatprep.subr.mxu0 0.0
        %1183 = vmatpush1.xpose.msra.mxu0 0.0
        %1184 = vmatprep.subr.mxu0 0.0
        %1185 = vmatpush1.xpose.msra.mxu0 0.0
        %1186 = vmatprep.subr.mxu0 0.0
        %1187 = vmatpush1.xpose.msra.mxu0 0.0
        %1188 = vmatprep.subr.mxu0 0.0
        %1189 = vmatpush1.xpose.msra.mxu0 0.0
        %1190 = vmatprep.subr.mxu0 0.0
        %1191 = vmatpush1.xpose.msra.mxu0 0.0
        %1192 = vmatprep.subr.mxu0 0.0
        %1193 = vmatpush1.xpose.msra.mxu0 0.0
        %1194 = vmatprep.subr.mxu0 0.0
        %1195 = vmatpush1.xpose.msra.mxu0 0.0
        %1196 = vmatprep.subr.mxu0 0.0
        %1197 = vmatpush1.xpose.msra.mxu0 0.0
        %1198 = vmatprep.subr.mxu0 0.0
        %1199 = vmatpush1.xpose.msra.mxu0 0.0
        %1200 = vmatprep.subr.mxu0 0.0
        %1201 = vmatpush1.xpose.msra.mxu0 0.0
        %1202 = vmatprep.subr.mxu0 0.0
        %1203 = vmatpush1.xpose.msra.mxu0 0.0
        %1204 = vmatprep.subr.mxu0 0.0
        %1205 = vmatpush1.xpose.msra.mxu0 0.0
        %1206 = vmatprep.subr.mxu0 0.0
        %1207 = vmatpush1.xpose.msra.mxu0 0.0
        %1208 = vmatprep.subr.mxu0 0.0
        %1209 = vmatpush1.xpose.msra.mxu0 0.0
        %1210 = vmatprep.subr.mxu0 0.0
        %1211 = vmatpush1.xpose.msra.mxu0 0.0
        %1212 = vmatprep.subr.mxu0 0.0
        %1213 = vmatpush1.xpose.msra.mxu0 0.0
        %1214 = vmatprep.subr.mxu0 0.0
        %1215 = vmatpush1.xpose.msra.mxu0 0.0
        %1216 = vmatprep.subr.mxu0 0.0
        %1217 = vmatpush1.xpose.msra.mxu0 0.0
        %1218 = vmatprep.subr.mxu0 0.0
        %1219 = vmatpush1.xpose.msra.mxu0 0.0
        %1220 = vmatprep.subr.mxu0 0.0
        %1221 = vmatpush1.xpose.msra.mxu0 0.0
        %1222 = vmatprep.subr.mxu0 0.0
        %1223 = vmatpush1.xpose.msra.mxu0 0.0
        %1224 = vmatprep.subr.mxu0 0.0
        %1225 = vmatpush1.xpose.msra.mxu0 0.0
        %1226 = vmatprep.subr.mxu0 0.0
        %1227 = vmatpush1.xpose.msra.mxu0 0.0
        %1228 = vmatprep.subr.mxu0 0.0
        %1229 = vmatpush1.xpose.msra.mxu0 0.0
        %1230 = vmatprep.subr.mxu0 0.0
        %1231 = vmatpush1.xpose.msra.mxu0 0.0
        %1232 = vmatprep.subr.mxu0 0.0
        %1233 = vmatpush1.xpose.msra.mxu0 0.0
        %1234 = vmatprep.subr.mxu0 0.0
        %1235 = vmatpush1.xpose.msra.mxu0 0.0
        %1236 = vmatprep.subr.mxu0 0.0
        %1237 = vmatpush1.xpose.msra.mxu0 0.0
        %1238 = vmatprep.mubr.f32.mxu0 0.0
        %1239 = vmatmul.mubr.f32.gmra.mrb[0].mxu0 %v789
        %v1240 = vpop.f32.mrb[0].mxu0
        %v1241 = vadd.f32 0.0, %v1240
        %v1242 = vpop.f32.mrb[0].mxu0
        %1243 = vdwg.mxu0
        %1244 = vmatprep.subr.mxu0 0.0
        %1245 = vmatpush1.xpose.msra.mxu0 %v820
        %1246 = vmatprep.subr.mxu0 0.0
        %1247 = vmatpush1.xpose.msra.mxu0 %v821
        %1248 = vmatprep.subr.mxu0 0.0
        %1249 = vmatpush1.xpose.msra.mxu0 0.0
        %1250 = vmatprep.subr.mxu0 0.0
        %1251 = vmatpush1.xpose.msra.mxu0 0.0
        %1252 = vmatprep.subr.mxu0 0.0
        %1253 = vmatpush1.xpose.msra.mxu0 0.0
        %1254 = vmatprep.subr.mxu0 0.0
        %1255 = vmatpush1.xpose.msra.mxu0 0.0
        %1256 = vmatprep.subr.mxu0 0.0
        %1257 = vmatpush1.xpose.msra.mxu0 0.0
        %1258 = vmatprep.subr.mxu0 0.0
        %1259 = vmatpush1.xpose.msra.mxu0 0.0
        %1260 = vmatprep.subr.mxu0 0.0
        %1261 = vmatpush1.xpose.msra.mxu0 0.0
        %1262 = vmatprep.subr.mxu0 0.0
        %1263 = vmatpush1.xpose.msra.mxu0 0.0
        %1264 = vmatprep.subr.mxu0 0.0
        %1265 = vmatpush1.xpose.msra.mxu0 0.0
        %1266 = vmatprep.subr.mxu0 0.0
        %1267 = vmatpush1.xpose.msra.mxu0 0.0
        %1268 = vmatprep.subr.mxu0 0.0
        %1269 = vmatpush1.xpose.msra.mxu0 0.0
        %1270 = vmatprep.subr.mxu0 0.0
        %1271 = vmatpush1.xpose.msra.mxu0 0.0
        %1272 = vmatprep.subr.mxu0 0.0
        %1273 = vmatpush1.xpose.msra.mxu0 0.0
        %1274 = vmatprep.subr.mxu0 0.0
        %1275 = vmatpush1.xpose.msra.mxu0 0.0
        %1276 = vmatprep.subr.mxu0 0.0
        %1277 = vmatpush1.xpose.msra.mxu0 0.0
        %1278 = vmatprep.subr.mxu0 0.0
        %1279 = vmatpush1.xpose.msra.mxu0 0.0
        %1280 = vmatprep.subr.mxu0 0.0
        %1281 = vmatpush1.xpose.msra.mxu0 0.0
        %1282 = vmatprep.subr.mxu0 0.0
        %1283 = vmatpush1.xpose.msra.mxu0 0.0
        %1284 = vmatprep.subr.mxu0 0.0
        %1285 = vmatpush1.xpose.msra.mxu0 0.0
        %1286 = vmatprep.subr.mxu0 0.0
        %1287 = vmatpush1.xpose.msra.mxu0 0.0
        %1288 = vmatprep.subr.mxu0 0.0
        %1289 = vmatpush1.xpose.msra.mxu0 0.0
        %1290 = vmatprep.subr.mxu0 0.0
        %1291 = vmatpush1.xpose.msra.mxu0 0.0
        %1292 = vmatprep.subr.mxu0 0.0
        %1293 = vmatpush1.xpose.msra.mxu0 0.0
        %1294 = vmatprep.subr.mxu0 0.0
        %1295 = vmatpush1.xpose.msra.mxu0 0.0
        %1296 = vmatprep.subr.mxu0 0.0
        %1297 = vmatpush1.xpose.msra.mxu0 0.0
        %1298 = vmatprep.subr.mxu0 0.0
        %1299 = vmatpush1.xpose.msra.mxu0 0.0
        %1300 = vmatprep.subr.mxu0 0.0
        %1301 = vmatpush1.xpose.msra.mxu0 0.0
        %1302 = vmatprep.subr.mxu0 0.0
        %1303 = vmatpush1.xpose.msra.mxu0 0.0
        %1304 = vmatprep.subr.mxu0 0.0
        %1305 = vmatpush1.xpose.msra.mxu0 0.0
        %1306 = vmatprep.subr.mxu0 0.0
        %1307 = vmatpush1.xpose.msra.mxu0 0.0
        %1308 = vmatprep.mubr.f32.mxu0 0.0
        %1309 = vmatmul.mubr.f32.gmra.mrb[0].mxu0 %v790
        %v1310 = vpop.f32.mrb[0].mxu0
        %v1311 = vadd.f32 0.0, %v1310
        %v1312 = vpop.f32.mrb[0].mxu0
        %1313 = vdwg.mxu0
        %1314 = vmatprep.subr.mxu0 0.0
        %1315 = vmatpush1.xpose.msra.mxu0 %v822
        %1316 = vmatprep.subr.mxu0 0.0
        %1317 = vmatpush1.xpose.msra.mxu0 %v823
        %1318 = vmatprep.subr.mxu0 0.0
        %1319 = vmatpush1.xpose.msra.mxu0 0.0
        %1320 = vmatprep.subr.mxu0 0.0
        %1321 = vmatpush1.xpose.msra.mxu0 0.0
        %1322 = vmatprep.subr.mxu0 0.0
        %1323 = vmatpush1.xpose.msra.mxu0 0.0
        %1324 = vmatprep.subr.mxu0 0.0
        %1325 = vmatpush1.xpose.msra.mxu0 0.0
        %1326 = vmatprep.subr.mxu0 0.0
        %1327 = vmatpush1.xpose.msra.mxu0 0.0
        %1328 = vmatprep.subr.mxu0 0.0
        %1329 = vmatpush1.xpose.msra.mxu0 0.0
        %1330 = vmatprep.subr.mxu0 0.0
        %1331 = vmatpush1.xpose.msra.mxu0 0.0
        %1332 = vmatprep.subr.mxu0 0.0
        %1333 = vmatpush1.xpose.msra.mxu0 0.0
        %1334 = vmatprep.subr.mxu0 0.0
        %1335 = vmatpush1.xpose.msra.mxu0 0.0
        %1336 = vmatprep.subr.mxu0 0.0
        %1337 = vmatpush1.xpose.msra.mxu0 0.0
        %1338 = vmatprep.subr.mxu0 0.0
        %1339 = vmatpush1.xpose.msra.mxu0 0.0
        %1340 = vmatprep.subr.mxu0 0.0
        %1341 = vmatpush1.xpose.msra.mxu0 0.0
        %1342 = vmatprep.subr.mxu0 0.0
        %1343 = vmatpush1.xpose.msra.mxu0 0.0
        %1344 = vmatprep.subr.mxu0 0.0
        %1345 = vmatpush1.xpose.msra.mxu0 0.0
        %1346 = vmatprep.subr.mxu0 0.0
        %1347 = vmatpush1.xpose.msra.mxu0 0.0
        %1348 = vmatprep.subr.mxu0 0.0
        %1349 = vmatpush1.xpose.msra.mxu0 0.0
        %1350 = vmatprep.subr.mxu0 0.0
        %1351 = vmatpush1.xpose.msra.mxu0 0.0
        %1352 = vmatprep.subr.mxu0 0.0
        %1353 = vmatpush1.xpose.msra.mxu0 0.0
        %1354 = vmatprep.subr.mxu0 0.0
        %1355 = vmatpush1.xpose.msra.mxu0 0.0
        %1356 = vmatprep.subr.mxu0 0.0
        %1357 = vmatpush1.xpose.msra.mxu0 0.0
        %1358 = vmatprep.subr.mxu0 0.0
        %1359 = vmatpush1.xpose.msra.mxu0 0.0
        %1360 = vmatprep.subr.mxu0 0.0
        %1361 = vmatpush1.xpose.msra.mxu0 0.0
        %1362 = vmatprep.subr.mxu0 0.0
        %1363 = vmatpush1.xpose.msra.mxu0 0.0
        %1364 = vmatprep.subr.mxu0 0.0
        %1365 = vmatpush1.xpose.msra.mxu0 0.0
        %1366 = vmatprep.subr.mxu0 0.0
        %1367 = vmatpush1.xpose.msra.mxu0 0.0
        %1368 = vmatprep.subr.mxu0 0.0
        %1369 = vmatpush1.xpose.msra.mxu0 0.0
        %1370 = vmatprep.subr.mxu0 0.0
        %1371 = vmatpush1.xpose.msra.mxu0 0.0
        %1372 = vmatprep.subr.mxu0 0.0
        %1373 = vmatpush1.xpose.msra.mxu0 0.0
        %1374 = vmatprep.subr.mxu0 0.0
        %1375 = vmatpush1.xpose.msra.mxu0 0.0
        %1376 = vmatprep.subr.mxu0 0.0
        %1377 = vmatpush1.xpose.msra.mxu0 0.0
        %1378 = vmatprep.mubr.f32.mxu0 0.0
        %1379 = vmatmul.mubr.f32.gmra.mrb[0].mxu0 %v791
        %v1380 = vpop.f32.mrb[0].mxu0
        %v1381 = vadd.f32 0.0, %v1380
        %v1382 = vpop.f32.mrb[0].mxu0
        %1383 = vdwg.mxu0
        %v1384 = vcombine.low %v891, %v1031
        %v1386 = vunpack.c.l.s4 1983009808
        %v1387 = vunpack.c.0.s8 %v1386
        %v1388 = vlaneseq
        %v1389 = vshrl.u32 %v1388, 7
        %v1390 = vsub.s32 %v1387, %v1389
        %v1391 = vrot.slane %v1384, %v1390
        %v1392 = vcombine.low %v961, %v1101
        %v1394 = vunpack.c.l.s4 1983009808
        %v1395 = vunpack.c.0.s8 %v1394
        %v1396 = vlaneseq
        %v1397 = vshrl.u32 %v1396, 7
        %v1398 = vsub.s32 %v1395, %v1397
        %v1399 = vrot.slane %v1392, %v1398
        %v1400 = vcombine.low %v1171, %v1311
        %v1402 = vunpack.c.l.s4 1983009808
        %v1403 = vunpack.c.0.s8 %v1402
        %v1404 = vlaneseq
        %v1405 = vshrl.u32 %v1404, 7
        %v1406 = vsub.s32 %v1403, %v1405
        %v1407 = vrot.slane %v1400, %v1406
        %v1408 = vcombine.low %v1241, %v1381
        %v1410 = vunpack.c.l.s4 1983009808
        %v1411 = vunpack.c.0.s8 %v1410
        %v1412 = vlaneseq
        %v1413 = vshrl.u32 %v1412, 7
        %v1414 = vsub.s32 %v1411, %v1413
        %v1415 = vrot.slane %v1408, %v1414
        %v1416 = vcombine.low %v1391, %v1399
        %v1417 = vcombine.high %v1391, %v1399
        %v1419 = vunpack.c.l.s4 1934713408
        %v1420 = vunpack.c.0.s8 %v1419
        %v1421 = vlaneseq
        %v1422 = vshrl.u32 %v1421, 7
        %v1423 = vsub.s32 %v1420, %v1422
        %v1424 = vrot.slane %v1416, %v1423
        %v1426 = vunpack.c.l.s4 1934713408
        %v1427 = vunpack.c.0.s8 %v1426
        %v1428 = vlaneseq
        %v1429 = vshrl.u32 %v1428, 7
        %v1430 = vsub.s32 %v1427, %v1429
        %v1431 = vrot.slane %v1417, %v1430
        %v1432 = vcombine.low %v1407, %v1415
        %v1433 = vcombine.high %v1407, %v1415
        %v1435 = vunpack.c.l.s4 1934713408
        %v1436 = vunpack.c.0.s8 %v1435
        %v1437 = vlaneseq
        %v1438 = vshrl.u32 %v1437, 7
        %v1439 = vsub.s32 %v1436, %v1438
        %v1440 = vrot.slane %v1432, %v1439
        %v1442 = vunpack.c.l.s4 1934713408
        %v1443 = vunpack.c.0.s8 %v1442
        %v1444 = vlaneseq
        %v1445 = vshrl.u32 %v1444, 7
        %v1446 = vsub.s32 %v1443, %v1445
        %v1447 = vrot.slane %v1433, %v1446
        %v1448 = vcombine.low %v1424, %v1440
        %v1449 = vcombine.high %v1424, %v1440
        %v1450 = vcombine.low %v1431, %v1447
        %v1451 = vcombine.high %v1431, %v1447
        %v1452 = vld [vmem:[%s776] sm:$0x1]
        %v1453 = vsub.f32 1.0, %v1452
        %v1454 = vmul.f32 %v1453, 1e+15
        %vm1455 = vcmask 261120
        %v1457 = vsel %vm1455, %v780, 0
        %v1460 = vsel %vm1455, %v792, 0
        %v1463 = vsel %vm1455, %v793, 0
        %1465 = vmatprep.subr.mxu0 0.0
        %1466 = vmatpush1.xpose.msra.mxu0 %v1460
        %1467 = vmatprep.subr.mxu0 0.0
        %1468 = vmatpush1.xpose.msra.mxu0 %v1463
        %1469 = vmatprep.subr.mxu0 0.0
        %1470 = vmatpush1.xpose.msra.mxu0 0.0
        %1471 = vmatprep.subr.mxu0 0.0
        %1472 = vmatpush1.xpose.msra.mxu0 0.0
        %1473 = vmatprep.subr.mxu0 0.0
        %1474 = vmatpush1.xpose.msra.mxu0 0.0
        %1475 = vmatprep.subr.mxu0 0.0
        %1476 = vmatpush1.xpose.msra.mxu0 0.0
        %1477 = vmatprep.subr.mxu0 0.0
        %1478 = vmatpush1.xpose.msra.mxu0 0.0
        %1479 = vmatprep.subr.mxu0 0.0
        %1480 = vmatpush1.xpose.msra.mxu0 0.0
        %1481 = vmatprep.subr.mxu0 0.0
        %1482 = vmatpush1.xpose.msra.mxu0 0.0
        %1483 = vmatprep.subr.mxu0 0.0
        %1484 = vmatpush1.xpose.msra.mxu0 0.0
        %1485 = vmatprep.subr.mxu0 0.0
        %1486 = vmatpush1.xpose.msra.mxu0 0.0
        %1487 = vmatprep.subr.mxu0 0.0
        %1488 = vmatpush1.xpose.msra.mxu0 0.0
        %1489 = vmatprep.subr.mxu0 0.0
        %1490 = vmatpush1.xpose.msra.mxu0 0.0
        %1491 = vmatprep.subr.mxu0 0.0
        %1492 = vmatpush1.xpose.msra.mxu0 0.0
        %1493 = vmatprep.subr.mxu0 0.0
        %1494 = vmatpush1.xpose.msra.mxu0 0.0
        %1495 = vmatprep.subr.mxu0 0.0
        %1496 = vmatpush1.xpose.msra.mxu0 0.0
        %1497 = vmatprep.subr.mxu0 0.0
        %1498 = vmatpush1.xpose.msra.mxu0 0.0
        %1499 = vmatprep.subr.mxu0 0.0
        %1500 = vmatpush1.xpose.msra.mxu0 0.0
        %1501 = vmatprep.subr.mxu0 0.0
        %1502 = vmatpush1.xpose.msra.mxu0 0.0
        %1503 = vmatprep.subr.mxu0 0.0
        %1504 = vmatpush1.xpose.msra.mxu0 0.0
        %1505 = vmatprep.subr.mxu0 0.0
        %1506 = vmatpush1.xpose.msra.mxu0 0.0
        %1507 = vmatprep.subr.mxu0 0.0
        %1508 = vmatpush1.xpose.msra.mxu0 0.0
        %1509 = vmatprep.subr.mxu0 0.0
        %1510 = vmatpush1.xpose.msra.mxu0 0.0
        %1511 = vmatprep.subr.mxu0 0.0
        %1512 = vmatpush1.xpose.msra.mxu0 0.0
        %1513 = vmatprep.subr.mxu0 0.0
        %1514 = vmatpush1.xpose.msra.mxu0 0.0
        %1515 = vmatprep.subr.mxu0 0.0
        %1516 = vmatpush1.xpose.msra.mxu0 0.0
        %1517 = vmatprep.subr.mxu0 0.0
        %1518 = vmatpush1.xpose.msra.mxu0 0.0
        %1519 = vmatprep.subr.mxu0 0.0
        %1520 = vmatpush1.xpose.msra.mxu0 0.0
        %1521 = vmatprep.subr.mxu0 0.0
        %1522 = vmatpush1.xpose.msra.mxu0 0.0
        %1523 = vmatprep.subr.mxu0 0.0
        %1524 = vmatpush1.xpose.msra.mxu0 0.0
        %1525 = vmatprep.subr.mxu0 0.0
        %1526 = vmatpush1.xpose.msra.mxu0 0.0
        %1527 = vmatprep.subr.mxu0 0.0
        %1528 = vmatpush1.xpose.msra.mxu0 0.0
        %1529 = vmatprep.mubr.f32.mxu0 0.0
        %1530 = vmatmul.mubr.f32.gmra.mrb[0].mxu0 %v1457
        %v1531 = vpop.f32.mrb[0].mxu0
        %v1532 = vadd.f32 %v1448, %v1531
        %v1533 = vpop.f32.mrb[0].mxu0
        %1534 = vdwg.mxu0
        %v1536 = vsel %vm1455, %v781, 0
        %v1539 = vsel %vm1455, %v794, 0
        %v1542 = vsel %vm1455, %v795, 0
        %1544 = vmatprep.subr.mxu0 0.0
        %1545 = vmatpush1.xpose.msra.mxu0 %v1539
        %1546 = vmatprep.subr.mxu0 0.0
        %1547 = vmatpush1.xpose.msra.mxu0 %v1542
        %1548 = vmatprep.subr.mxu0 0.0
        %1549 = vmatpush1.xpose.msra.mxu0 0.0
        %1550 = vmatprep.subr.mxu0 0.0
        %1551 = vmatpush1.xpose.msra.mxu0 0.0
        %1552 = vmatprep.subr.mxu0 0.0
        %1553 = vmatpush1.xpose.msra.mxu0 0.0
        %1554 = vmatprep.subr.mxu0 0.0
        %1555 = vmatpush1.xpose.msra.mxu0 0.0
        %1556 = vmatprep.subr.mxu0 0.0
        %1557 = vmatpush1.xpose.msra.mxu0 0.0
        %1558 = vmatprep.subr.mxu0 0.0
        %1559 = vmatpush1.xpose.msra.mxu0 0.0
        %1560 = vmatprep.subr.mxu0 0.0
        %1561 = vmatpush1.xpose.msra.mxu0 0.0
        %1562 = vmatprep.subr.mxu0 0.0
        %1563 = vmatpush1.xpose.msra.mxu0 0.0
        %1564 = vmatprep.subr.mxu0 0.0
        %1565 = vmatpush1.xpose.msra.mxu0 0.0
        %1566 = vmatprep.subr.mxu0 0.0
        %1567 = vmatpush1.xpose.msra.mxu0 0.0
        %1568 = vmatprep.subr.mxu0 0.0
        %1569 = vmatpush1.xpose.msra.mxu0 0.0
        %1570 = vmatprep.subr.mxu0 0.0
        %1571 = vmatpush1.xpose.msra.mxu0 0.0
        %1572 = vmatprep.subr.mxu0 0.0
        %1573 = vmatpush1.xpose.msra.mxu0 0.0
        %1574 = vmatprep.subr.mxu0 0.0
        %1575 = vmatpush1.xpose.msra.mxu0 0.0
        %1576 = vmatprep.subr.mxu0 0.0
        %1577 = vmatpush1.xpose.msra.mxu0 0.0
        %1578 = vmatprep.subr.mxu0 0.0
        %1579 = vmatpush1.xpose.msra.mxu0 0.0
        %1580 = vmatprep.subr.mxu0 0.0
        %1581 = vmatpush1.xpose.msra.mxu0 0.0
        %1582 = vmatprep.subr.mxu0 0.0
        %1583 = vmatpush1.xpose.msra.mxu0 0.0
        %1584 = vmatprep.subr.mxu0 0.0
        %1585 = vmatpush1.xpose.msra.mxu0 0.0
        %1586 = vmatprep.subr.mxu0 0.0
        %1587 = vmatpush1.xpose.msra.mxu0 0.0
        %1588 = vmatprep.subr.mxu0 0.0
        %1589 = vmatpush1.xpose.msra.mxu0 0.0
        %1590 = vmatprep.subr.mxu0 0.0
        %1591 = vmatpush1.xpose.msra.mxu0 0.0
        %1592 = vmatprep.subr.mxu0 0.0
        %1593 = vmatpush1.xpose.msra.mxu0 0.0
        %1594 = vmatprep.subr.mxu0 0.0
        %1595 = vmatpush1.xpose.msra.mxu0 0.0
        %1596 = vmatprep.subr.mxu0 0.0
        %1597 = vmatpush1.xpose.msra.mxu0 0.0
        %1598 = vmatprep.subr.mxu0 0.0
        %1599 = vmatpush1.xpose.msra.mxu0 0.0
        %1600 = vmatprep.subr.mxu0 0.0
        %1601 = vmatpush1.xpose.msra.mxu0 0.0
        %1602 = vmatprep.subr.mxu0 0.0
        %1603 = vmatpush1.xpose.msra.mxu0 0.0
        %1604 = vmatprep.subr.mxu0 0.0
        %1605 = vmatpush1.xpose.msra.mxu0 0.0
        %1606 = vmatprep.subr.mxu0 0.0
        %1607 = vmatpush1.xpose.msra.mxu0 0.0
        %1608 = vmatprep.mubr.f32.mxu0 0.0
        %1609 = vmatmul.mubr.f32.gmra.mrb[0].mxu0 %v1536
        %v1610 = vpop.f32.mrb[0].mxu0
        %v1611 = vadd.f32 %v1449, %v1610
        %v1612 = vpop.f32.mrb[0].mxu0
        %1613 = vdwg.mxu0
        %v1615 = vsel %vm1455, %v782, 0
        %v1618 = vsel %vm1455, %v796, 0
        %v1621 = vsel %vm1455, %v797, 0
        %1623 = vmatprep.subr.mxu0 0.0
        %1624 = vmatpush1.xpose.msra.mxu0 %v1618
        %1625 = vmatprep.subr.mxu0 0.0
        %1626 = vmatpush1.xpose.msra.mxu0 %v1621
        %1627 = vmatprep.subr.mxu0 0.0
        %1628 = vmatpush1.xpose.msra.mxu0 0.0
        %1629 = vmatprep.subr.mxu0 0.0
        %1630 = vmatpush1.xpose.msra.mxu0 0.0
        %1631 = vmatprep.subr.mxu0 0.0
        %1632 = vmatpush1.xpose.msra.mxu0 0.0
        %1633 = vmatprep.subr.mxu0 0.0
        %1634 = vmatpush1.xpose.msra.mxu0 0.0
        %1635 = vmatprep.subr.mxu0 0.0
        %1636 = vmatpush1.xpose.msra.mxu0 0.0
        %1637 = vmatprep.subr.mxu0 0.0
        %1638 = vmatpush1.xpose.msra.mxu0 0.0
        %1639 = vmatprep.subr.mxu0 0.0
        %1640 = vmatpush1.xpose.msra.mxu0 0.0
        %1641 = vmatprep.subr.mxu0 0.0
        %1642 = vmatpush1.xpose.msra.mxu0 0.0
        %1643 = vmatprep.subr.mxu0 0.0
        %1644 = vmatpush1.xpose.msra.mxu0 0.0
        %1645 = vmatprep.subr.mxu0 0.0
        %1646 = vmatpush1.xpose.msra.mxu0 0.0
        %1647 = vmatprep.subr.mxu0 0.0
        %1648 = vmatpush1.xpose.msra.mxu0 0.0
        %1649 = vmatprep.subr.mxu0 0.0
        %1650 = vmatpush1.xpose.msra.mxu0 0.0
        %1651 = vmatprep.subr.mxu0 0.0
        %1652 = vmatpush1.xpose.msra.mxu0 0.0
        %1653 = vmatprep.subr.mxu0 0.0
        %1654 = vmatpush1.xpose.msra.mxu0 0.0
        %1655 = vmatprep.subr.mxu0 0.0
        %1656 = vmatpush1.xpose.msra.mxu0 0.0
        %1657 = vmatprep.subr.mxu0 0.0
        %1658 = vmatpush1.xpose.msra.mxu0 0.0
        %1659 = vmatprep.subr.mxu0 0.0
        %1660 = vmatpush1.xpose.msra.mxu0 0.0
        %1661 = vmatprep.subr.mxu0 0.0
        %1662 = vmatpush1.xpose.msra.mxu0 0.0
        %1663 = vmatprep.subr.mxu0 0.0
        %1664 = vmatpush1.xpose.msra.mxu0 0.0
        %1665 = vmatprep.subr.mxu0 0.0
        %1666 = vmatpush1.xpose.msra.mxu0 0.0
        %1667 = vmatprep.subr.mxu0 0.0
        %1668 = vmatpush1.xpose.msra.mxu0 0.0
        %1669 = vmatprep.subr.mxu0 0.0
        %1670 = vmatpush1.xpose.msra.mxu0 0.0
        %1671 = vmatprep.subr.mxu0 0.0
        %1672 = vmatpush1.xpose.msra.mxu0 0.0
        %1673 = vmatprep.subr.mxu0 0.0
        %1674 = vmatpush1.xpose.msra.mxu0 0.0
        %1675 = vmatprep.subr.mxu0 0.0
        %1676 = vmatpush1.xpose.msra.mxu0 0.0
        %1677 = vmatprep.subr.mxu0 0.0
        %1678 = vmatpush1.xpose.msra.mxu0 0.0
        %1679 = vmatprep.subr.mxu0 0.0
        %1680 = vmatpush1.xpose.msra.mxu0 0.0
        %1681 = vmatprep.subr.mxu0 0.0
        %1682 = vmatpush1.xpose.msra.mxu0 0.0
        %1683 = vmatprep.subr.mxu0 0.0
        %1684 = vmatpush1.xpose.msra.mxu0 0.0
        %1685 = vmatprep.subr.mxu0 0.0
        %1686 = vmatpush1.xpose.msra.mxu0 0.0
        %1687 = vmatprep.mubr.f32.mxu0 0.0
        %1688 = vmatmul.mubr.f32.gmra.mrb[0].mxu0 %v1615
        %v1689 = vpop.f32.mrb[0].mxu0
        %v1690 = vadd.f32 %v1450, %v1689
        %v1691 = vpop.f32.mrb[0].mxu0
        %1692 = vdwg.mxu0
        %v1694 = vsel %vm1455, %v783, 0
        %v1697 = vsel %vm1455, %v798, 0
        %v1700 = vsel %vm1455, %v799, 0
        %1702 = vmatprep.subr.mxu0 0.0
        %1703 = vmatpush1.xpose.msra.mxu0 %v1697
        %1704 = vmatprep.subr.mxu0 0.0
        %1705 = vmatpush1.xpose.msra.mxu0 %v1700
        %1706 = vmatprep.subr.mxu0 0.0
        %1707 = vmatpush1.xpose.msra.mxu0 0.0
        %1708 = vmatprep.subr.mxu0 0.0
        %1709 = vmatpush1.xpose.msra.mxu0 0.0
        %1710 = vmatprep.subr.mxu0 0.0
        %1711 = vmatpush1.xpose.msra.mxu0 0.0
        %1712 = vmatprep.subr.mxu0 0.0
        %1713 = vmatpush1.xpose.msra.mxu0 0.0
        %1714 = vmatprep.subr.mxu0 0.0
        %1715 = vmatpush1.xpose.msra.mxu0 0.0
        %1716 = vmatprep.subr.mxu0 0.0
        %1717 = vmatpush1.xpose.msra.mxu0 0.0
        %1718 = vmatprep.subr.mxu0 0.0
        %1719 = vmatpush1.xpose.msra.mxu0 0.0
        %1720 = vmatprep.subr.mxu0 0.0
        %1721 = vmatpush1.xpose.msra.mxu0 0.0
        %1722 = vmatprep.subr.mxu0 0.0
        %1723 = vmatpush1.xpose.msra.mxu0 0.0
        %1724 = vmatprep.subr.mxu0 0.0
        %1725 = vmatpush1.xpose.msra.mxu0 0.0
        %1726 = vmatprep.subr.mxu0 0.0
        %1727 = vmatpush1.xpose.msra.mxu0 0.0
        %1728 = vmatprep.subr.mxu0 0.0
        %1729 = vmatpush1.xpose.msra.mxu0 0.0
        %1730 = vmatprep.subr.mxu0 0.0
        %1731 = vmatpush1.xpose.msra.mxu0 0.0
        %1732 = vmatprep.subr.mxu0 0.0
        %1733 = vmatpush1.xpose.msra.mxu0 0.0
        %1734 = vmatprep.subr.mxu0 0.0
        %1735 = vmatpush1.xpose.msra.mxu0 0.0
        %1736 = vmatprep.subr.mxu0 0.0
        %1737 = vmatpush1.xpose.msra.mxu0 0.0
        %1738 = vmatprep.subr.mxu0 0.0
        %1739 = vmatpush1.xpose.msra.mxu0 0.0
        %1740 = vmatprep.subr.mxu0 0.0
        %1741 = vmatpush1.xpose.msra.mxu0 0.0
        %1742 = vmatprep.subr.mxu0 0.0
        %1743 = vmatpush1.xpose.msra.mxu0 0.0
        %1744 = vmatprep.subr.mxu0 0.0
        %1745 = vmatpush1.xpose.msra.mxu0 0.0
        %1746 = vmatprep.subr.mxu0 0.0
        %1747 = vmatpush1.xpose.msra.mxu0 0.0
        %1748 = vmatprep.subr.mxu0 0.0
        %1749 = vmatpush1.xpose.msra.mxu0 0.0
        %1750 = vmatprep.subr.mxu0 0.0
        %1751 = vmatpush1.xpose.msra.mxu0 0.0
        %1752 = vmatprep.subr.mxu0 0.0
        %1753 = vmatpush1.xpose.msra.mxu0 0.0
        %1754 = vmatprep.subr.mxu0 0.0
        %1755 = vmatpush1.xpose.msra.mxu0 0.0
        %1756 = vmatprep.subr.mxu0 0.0
        %1757 = vmatpush1.xpose.msra.mxu0 0.0
        %1758 = vmatprep.subr.mxu0 0.0
        %1759 = vmatpush1.xpose.msra.mxu0 0.0
        %1760 = vmatprep.subr.mxu0 0.0
        %1761 = vmatpush1.xpose.msra.mxu0 0.0
        %1762 = vmatprep.subr.mxu0 0.0
        %1763 = vmatpush1.xpose.msra.mxu0 0.0
        %1764 = vmatprep.subr.mxu0 0.0
        %1765 = vmatpush1.xpose.msra.mxu0 0.0
        %1766 = vmatprep.mubr.f32.mxu0 0.0
        %1767 = vmatmul.mubr.f32.gmra.mrb[0].mxu0 %v1694
        %v1768 = vpop.f32.mrb[0].mxu0
        %v1769 = vadd.f32 %v1451, %v1768
        %v1770 = vpop.f32.mrb[0].mxu0
        %1771 = vdwg.mxu0
        %v1772 = vmul.f32 %v1532, 0.17677669
        %v1773 = vmul.f32 %v1611, 0.17677669
        %v1774 = vmul.f32 %v1690, 0.17677669
        %v1775 = vmul.f32 %v1769, 0.17677669
        %v1777 = vlaneseq
        %v1778 = vshrl.u32 %v1777, 7
        %v1779 = vsub.s32 0, %v1778
        %v1780 = vrot.slane %v1454, %v1779
        %v1782 = vsub.f32 %v1772, %v1780
        %v1783 = vsub.f32 %v1773, %v1780
        %v1784 = vsub.f32 %v1774, %v1780
        %v1785 = vsub.f32 %v1775, %v1780
        %vm1786 = vcmask 130048
        %v1787 = vsel %vm1786, %v1782, -inf
        %1788 = vmax.xlane.f32.xlu0 %v1787
        %v1789 = vpop.xlane.xlu0 %1788
        %v1790 = vsel %vm1786, %v1783, -inf
        %1791 = vmax.xlane.f32.xlu0 %v1790
        %v1792 = vpop.xlane.xlu0 %1791
        %v1793 = vsel %vm1786, %v1784, -inf
        %1794 = vmax.xlane.f32.xlu0 %v1793
        %v1795 = vpop.xlane.xlu0 %1794
        %v1796 = vsel %vm1786, %v1785, -inf
        %1797 = vmax.xlane.f32.xlu0 %v1796
        %v1798 = vpop.xlane.xlu0 %1797
        %v1799 = vsub.f32 %v1782, %v1789
        %v1800 = vsub.f32 %v1783, %v1792
        %v1801 = vsub.f32 %v1784, %v1795
        %v1802 = vsub.f32 %v1785, %v1798
        %v1803 = vmul.f32 %v1799, 1.442695
        %v1804 = vpow.pop %v1803
        %v1805 = vmul.f32 %v1800, 1.442695
        %v1806 = vpow.pop %v1805
        %v1807 = vmul.f32 %v1801, 1.442695
        %v1808 = vpow.pop %v1807
        %v1809 = vmul.f32 %v1802, 1.442695
        %v1810 = vpow.pop %v1809
        %v1811 = vsel %vm1786, %v1804, 0.0
        %1812 = vadd.xlane.f32.xlu0 %v1811
        %v1813 = vpop.xlane.xlu0 %1812
        %v1814 = vsel %vm1786, %v1806, 0.0
        %1815 = vadd.xlane.f32.xlu0 %v1814
        %v1816 = vpop.xlane.xlu0 %1815
        %v1817 = vsel %vm1786, %v1808, 0.0
        %1818 = vadd.xlane.f32.xlu0 %v1817
        %v1819 = vpop.xlane.xlu0 %1818
        %v1820 = vsel %vm1786, %v1810, 0.0
        %1821 = vadd.xlane.f32.xlu0 %v1820
        %v1822 = vpop.xlane.xlu0 %1821
        %v1823 = vrcp.pop %v1813
        %v1824 = vrcp.pop %v1816
        %v1825 = vrcp.pop %v1819
        %v1826 = vrcp.pop %v1822
        %v1827 = vmul.f32 %v1804, %v1823
        %v1828 = vmul.f32 %v1806, %v1824
        %v1829 = vmul.f32 %v1808, %v1825
        %v1830 = vmul.f32 %v1810, %v1826
        %v1832 = vsel %vm1786, %v1827, 0
        %1834 = vmatprep.subr.mxu0 0.0
        %1835 = vmatpush1.msra.mxu0 %v800
        %1836 = vmatprep.subr.mxu0 0.0
        %1837 = vmatpush1.msra.mxu0 %v801
        %1838 = vmatprep.subr.mxu0 0.0
        %1839 = vmatpush1.msra.mxu0 0.0
        %1840 = vmatprep.subr.mxu0 0.0
        %1841 = vmatpush1.msra.mxu0 0.0
        %1842 = vmatprep.subr.mxu0 0.0
        %1843 = vmatpush1.msra.mxu0 0.0
        %1844 = vmatprep.subr.mxu0 0.0
        %1845 = vmatpush1.msra.mxu0 0.0
        %1846 = vmatprep.subr.mxu0 0.0
        %1847 = vmatpush1.msra.mxu0 0.0
        %1848 = vmatprep.subr.mxu0 0.0
        %1849 = vmatpush1.msra.mxu0 0.0
        %1850 = vmatprep.subr.mxu0 0.0
        %1851 = vmatpush1.msra.mxu0 0.0
        %1852 = vmatprep.subr.mxu0 0.0
        %1853 = vmatpush1.msra.mxu0 0.0
        %1854 = vmatprep.subr.mxu0 0.0
        %1855 = vmatpush1.msra.mxu0 0.0
        %1856 = vmatprep.subr.mxu0 0.0
        %1857 = vmatpush1.msra.mxu0 0.0
        %1858 = vmatprep.subr.mxu0 0.0
        %1859 = vmatpush1.msra.mxu0 0.0
        %1860 = vmatprep.subr.mxu0 0.0
        %1861 = vmatpush1.msra.mxu0 0.0
        %1862 = vmatprep.subr.mxu0 0.0
        %1863 = vmatpush1.msra.mxu0 0.0
        %1864 = vmatprep.subr.mxu0 0.0
        %1865 = vmatpush1.msra.mxu0 0.0
        %1866 = vmatprep.subr.mxu0 0.0
        %1867 = vmatpush1.msra.mxu0 0.0
        %1868 = vmatprep.subr.mxu0 0.0
        %1869 = vmatpush1.msra.mxu0 0.0
        %1870 = vmatprep.subr.mxu0 0.0
        %1871 = vmatpush1.msra.mxu0 0.0
        %1872 = vmatprep.subr.mxu0 0.0
        %1873 = vmatpush1.msra.mxu0 0.0
        %1874 = vmatprep.subr.mxu0 0.0
        %1875 = vmatpush1.msra.mxu0 0.0
        %1876 = vmatprep.subr.mxu0 0.0
        %1877 = vmatpush1.msra.mxu0 0.0
        %1878 = vmatprep.subr.mxu0 0.0
        %1879 = vmatpush1.msra.mxu0 0.0
        %1880 = vmatprep.subr.mxu0 0.0
        %1881 = vmatpush1.msra.mxu0 0.0
        %1882 = vmatprep.subr.mxu0 0.0
        %1883 = vmatpush1.msra.mxu0 0.0
        %1884 = vmatprep.subr.mxu0 0.0
        %1885 = vmatpush1.msra.mxu0 0.0
        %1886 = vmatprep.subr.mxu0 0.0
        %1887 = vmatpush1.msra.mxu0 0.0
        %1888 = vmatprep.subr.mxu0 0.0
        %1889 = vmatpush1.msra.mxu0 0.0
        %1890 = vmatprep.subr.mxu0 0.0
        %1891 = vmatpush1.msra.mxu0 0.0
        %1892 = vmatprep.subr.mxu0 0.0
        %1893 = vmatpush1.msra.mxu0 0.0
        %1894 = vmatprep.subr.mxu0 0.0
        %1895 = vmatpush1.msra.mxu0 0.0
        %1896 = vmatprep.subr.mxu0 0.0
        %1897 = vmatpush1.msra.mxu0 0.0
        %1898 = vmatprep.mubr.f32.mxu0 0.0
        %1899 = vmatmul.mubr.f32.gmra.mrb[0].mxu0 %v1832
        %v1900 = vpop.f32.mrb[0].mxu0
        %v1901 = vadd.f32 0.0, %v1900
        %v1902 = vpop.f32.mrb[0].mxu0
        %1903 = vdwg.mxu0
        %v1905 = vsel %vm1786, %v1828, 0
        %1907 = vmatprep.subr.mxu0 0.0
        %1908 = vmatpush1.msra.mxu0 %v802
        %1909 = vmatprep.subr.mxu0 0.0
        %1910 = vmatpush1.msra.mxu0 %v803
        %1911 = vmatprep.subr.mxu0 0.0
        %1912 = vmatpush1.msra.mxu0 0.0
        %1913 = vmatprep.subr.mxu0 0.0
        %1914 = vmatpush1.msra.mxu0 0.0
        %1915 = vmatprep.subr.mxu0 0.0
        %1916 = vmatpush1.msra.mxu0 0.0
        %1917 = vmatprep.subr.mxu0 0.0
        %1918 = vmatpush1.msra.mxu0 0.0
        %1919 = vmatprep.subr.mxu0 0.0
        %1920 = vmatpush1.msra.mxu0 0.0
        %1921 = vmatprep.subr.mxu0 0.0
        %1922 = vmatpush1.msra.mxu0 0.0
        %1923 = vmatprep.subr.mxu0 0.0
        %1924 = vmatpush1.msra.mxu0 0.0
        %1925 = vmatprep.subr.mxu0 0.0
        %1926 = vmatpush1.msra.mxu0 0.0
        %1927 = vmatprep.subr.mxu0 0.0
        %1928 = vmatpush1.msra.mxu0 0.0
        %1929 = vmatprep.subr.mxu0 0.0
        %1930 = vmatpush1.msra.mxu0 0.0
        %1931 = vmatprep.subr.mxu0 0.0
        %1932 = vmatpush1.msra.mxu0 0.0
        %1933 = vmatprep.subr.mxu0 0.0
        %1934 = vmatpush1.msra.mxu0 0.0
        %1935 = vmatprep.subr.mxu0 0.0
        %1936 = vmatpush1.msra.mxu0 0.0
        %1937 = vmatprep.subr.mxu0 0.0
        %1938 = vmatpush1.msra.mxu0 0.0
        %1939 = vmatprep.subr.mxu0 0.0
        %1940 = vmatpush1.msra.mxu0 0.0
        %1941 = vmatprep.subr.mxu0 0.0
        %1942 = vmatpush1.msra.mxu0 0.0
        %1943 = vmatprep.subr.mxu0 0.0
        %1944 = vmatpush1.msra.mxu0 0.0
        %1945 = vmatprep.subr.mxu0 0.0
        %1946 = vmatpush1.msra.mxu0 0.0
        %1947 = vmatprep.subr.mxu0 0.0
        %1948 = vmatpush1.msra.mxu0 0.0
        %1949 = vmatprep.subr.mxu0 0.0
        %1950 = vmatpush1.msra.mxu0 0.0
        %1951 = vmatprep.subr.mxu0 0.0
        %1952 = vmatpush1.msra.mxu0 0.0
        %1953 = vmatprep.subr.mxu0 0.0
        %1954 = vmatpush1.msra.mxu0 0.0
        %1955 = vmatprep.subr.mxu0 0.0
        %1956 = vmatpush1.msra.mxu0 0.0
        %1957 = vmatprep.subr.mxu0 0.0
        %1958 = vmatpush1.msra.mxu0 0.0
        %1959 = vmatprep.subr.mxu0 0.0
        %1960 = vmatpush1.msra.mxu0 0.0
        %1961 = vmatprep.subr.mxu0 0.0
        %1962 = vmatpush1.msra.mxu0 0.0
        %1963 = vmatprep.subr.mxu0 0.0
        %1964 = vmatpush1.msra.mxu0 0.0
        %1965 = vmatprep.subr.mxu0 0.0
        %1966 = vmatpush1.msra.mxu0 0.0
        %1967 = vmatprep.subr.mxu0 0.0
        %1968 = vmatpush1.msra.mxu0 0.0
        %1969 = vmatprep.subr.mxu0 0.0
        %1970 = vmatpush1.msra.mxu0 0.0
        %1971 = vmatprep.mubr.f32.mxu0 0.0
        %1972 = vmatmul.mubr.f32.gmra.mrb[0].mxu0 %v1905
        %v1973 = vpop.f32.mrb[0].mxu0
        %v1974 = vadd.f32 0.0, %v1973
        %v1975 = vpop.f32.mrb[0].mxu0
        %1976 = vdwg.mxu0
        %v1978 = vsel %vm1786, %v1829, 0
        %1980 = vmatprep.subr.mxu0 0.0
        %1981 = vmatpush1.msra.mxu0 %v804
        %1982 = vmatprep.subr.mxu0 0.0
        %1983 = vmatpush1.msra.mxu0 %v805
        %1984 = vmatprep.subr.mxu0 0.0
        %1985 = vmatpush1.msra.mxu0 0.0
        %1986 = vmatprep.subr.mxu0 0.0
        %1987 = vmatpush1.msra.mxu0 0.0
        %1988 = vmatprep.subr.mxu0 0.0
        %1989 = vmatpush1.msra.mxu0 0.0
        %1990 = vmatprep.subr.mxu0 0.0
        %1991 = vmatpush1.msra.mxu0 0.0
        %1992 = vmatprep.subr.mxu0 0.0
        %1993 = vmatpush1.msra.mxu0 0.0
        %1994 = vmatprep.subr.mxu0 0.0
        %1995 = vmatpush1.msra.mxu0 0.0
        %1996 = vmatprep.subr.mxu0 0.0
        %1997 = vmatpush1.msra.mxu0 0.0
        %1998 = vmatprep.subr.mxu0 0.0
        %1999 = vmatpush1.msra.mxu0 0.0
        %2000 = vmatprep.subr.mxu0 0.0
        %2001 = vmatpush1.msra.mxu0 0.0
        %2002 = vmatprep.subr.mxu0 0.0
        %2003 = vmatpush1.msra.mxu0 0.0
        %2004 = vmatprep.subr.mxu0 0.0
        %2005 = vmatpush1.msra.mxu0 0.0
        %2006 = vmatprep.subr.mxu0 0.0
        %2007 = vmatpush1.msra.mxu0 0.0
        %2008 = vmatprep.subr.mxu0 0.0
        %2009 = vmatpush1.msra.mxu0 0.0
        %2010 = vmatprep.subr.mxu0 0.0
        %2011 = vmatpush1.msra.mxu0 0.0
        %2012 = vmatprep.subr.mxu0 0.0
        %2013 = vmatpush1.msra.mxu0 0.0
        %2014 = vmatprep.subr.mxu0 0.0
        %2015 = vmatpush1.msra.mxu0 0.0
        %2016 = vmatprep.subr.mxu0 0.0
        %2017 = vmatpush1.msra.mxu0 0.0
        %2018 = vmatprep.subr.mxu0 0.0
        %2019 = vmatpush1.msra.mxu0 0.0
        %2020 = vmatprep.subr.mxu0 0.0
        %2021 = vmatpush1.msra.mxu0 0.0
        %2022 = vmatprep.subr.mxu0 0.0
        %2023 = vmatpush1.msra.mxu0 0.0
        %2024 = vmatprep.subr.mxu0 0.0
        %2025 = vmatpush1.msra.mxu0 0.0
        %2026 = vmatprep.subr.mxu0 0.0
        %2027 = vmatpush1.msra.mxu0 0.0
        %2028 = vmatprep.subr.mxu0 0.0
        %2029 = vmatpush1.msra.mxu0 0.0
        %2030 = vmatprep.subr.mxu0 0.0
        %2031 = vmatpush1.msra.mxu0 0.0
        %2032 = vmatprep.subr.mxu0 0.0
        %2033 = vmatpush1.msra.mxu0 0.0
        %2034 = vmatprep.subr.mxu0 0.0
        %2035 = vmatpush1.msra.mxu0 0.0
        %2036 = vmatprep.subr.mxu0 0.0
        %2037 = vmatpush1.msra.mxu0 0.0
        %2038 = vmatprep.subr.mxu0 0.0
        %2039 = vmatpush1.msra.mxu0 0.0
        %2040 = vmatprep.subr.mxu0 0.0
        %2041 = vmatpush1.msra.mxu0 0.0
        %2042 = vmatprep.subr.mxu0 0.0
        %2043 = vmatpush1.msra.mxu0 0.0
        %2044 = vmatprep.mubr.f32.mxu0 0.0
        %2045 = vmatmul.mubr.f32.gmra.mrb[0].mxu0 %v1978
        %v2046 = vpop.f32.mrb[0].mxu0
        %v2047 = vadd.f32 0.0, %v2046
        %v2048 = vpop.f32.mrb[0].mxu0
        %2049 = vdwg.mxu0
        %v2051 = vsel %vm1786, %v1830, 0
        %2053 = vmatprep.subr.mxu0 0.0
        %2054 = vmatpush1.msra.mxu0 %v806
        %2055 = vmatprep.subr.mxu0 0.0
        %2056 = vmatpush1.msra.mxu0 %v807
        %2057 = vmatprep.subr.mxu0 0.0
        %2058 = vmatpush1.msra.mxu0 0.0
        %2059 = vmatprep.subr.mxu0 0.0
        %2060 = vmatpush1.msra.mxu0 0.0
        %2061 = vmatprep.subr.mxu0 0.0
        %2062 = vmatpush1.msra.mxu0 0.0
        %2063 = vmatprep.subr.mxu0 0.0
        %2064 = vmatpush1.msra.mxu0 0.0
        %2065 = vmatprep.subr.mxu0 0.0
        %2066 = vmatpush1.msra.mxu0 0.0
        %2067 = vmatprep.subr.mxu0 0.0
        %2068 = vmatpush1.msra.mxu0 0.0
        %2069 = vmatprep.subr.mxu0 0.0
        %2070 = vmatpush1.msra.mxu0 0.0
        %2071 = vmatprep.subr.mxu0 0.0
        %2072 = vmatpush1.msra.mxu0 0.0
        %2073 = vmatprep.subr.mxu0 0.0
        %2074 = vmatpush1.msra.mxu0 0.0
        %2075 = vmatprep.subr.mxu0 0.0
        %2076 = vmatpush1.msra.mxu0 0.0
        %2077 = vmatprep.subr.mxu0 0.0
        %2078 = vmatpush1.msra.mxu0 0.0
        %2079 = vmatprep.subr.mxu0 0.0
        %2080 = vmatpush1.msra.mxu0 0.0
        %2081 = vmatprep.subr.mxu0 0.0
        %2082 = vmatpush1.msra.mxu0 0.0
        %2083 = vmatprep.subr.mxu0 0.0
        %2084 = vmatpush1.msra.mxu0 0.0
        %2085 = vmatprep.subr.mxu0 0.0
        %2086 = vmatpush1.msra.mxu0 0.0
        %2087 = vmatprep.subr.mxu0 0.0
        %2088 = vmatpush1.msra.mxu0 0.0
        %2089 = vmatprep.subr.mxu0 0.0
        %2090 = vmatpush1.msra.mxu0 0.0
        %2091 = vmatprep.subr.mxu0 0.0
        %2092 = vmatpush1.msra.mxu0 0.0
        %2093 = vmatprep.subr.mxu0 0.0
        %2094 = vmatpush1.msra.mxu0 0.0
        %2095 = vmatprep.subr.mxu0 0.0
        %2096 = vmatpush1.msra.mxu0 0.0
        %2097 = vmatprep.subr.mxu0 0.0
        %2098 = vmatpush1.msra.mxu0 0.0
        %2099 = vmatprep.subr.mxu0 0.0
        %2100 = vmatpush1.msra.mxu0 0.0
        %2101 = vmatprep.subr.mxu0 0.0
        %2102 = vmatpush1.msra.mxu0 0.0
        %2103 = vmatprep.subr.mxu0 0.0
        %2104 = vmatpush1.msra.mxu0 0.0
        %2105 = vmatprep.subr.mxu0 0.0
        %2106 = vmatpush1.msra.mxu0 0.0
        %2107 = vmatprep.subr.mxu0 0.0
        %2108 = vmatpush1.msra.mxu0 0.0
        %2109 = vmatprep.subr.mxu0 0.0
        %2110 = vmatpush1.msra.mxu0 0.0
        %2111 = vmatprep.subr.mxu0 0.0
        %2112 = vmatpush1.msra.mxu0 0.0
        %2113 = vmatprep.subr.mxu0 0.0
        %2114 = vmatpush1.msra.mxu0 0.0
        %2115 = vmatprep.subr.mxu0 0.0
        %2116 = vmatpush1.msra.mxu0 0.0
        %2117 = vmatprep.mubr.f32.mxu0 0.0
        %2118 = vmatmul.mubr.f32.gmra.mrb[0].mxu0 %v2051
        %v2119 = vpop.f32.mrb[0].mxu0
        %v2120 = vadd.f32 0.0, %v2119
        %v2121 = vpop.f32.mrb[0].mxu0
        %2122 = vdwg.mxu0
        %v2123 = vcombine.low %v1901, %v2047
        %v2124 = vcombine.high %v1901, %v2047
        %v2126 = vunpack.c.l.s4 1983009808
        %v2127 = vunpack.c.0.s8 %v2126
        %v2128 = vlaneseq
        %v2129 = vshrl.u32 %v2128, 7
        %v2130 = vsub.s32 %v2127, %v2129
        %v2131 = vrot.slane %v2123, %v2130
        %v2133 = vunpack.c.l.s4 1983009808
        %v2134 = vunpack.c.0.s8 %v2133
        %v2135 = vlaneseq
        %v2136 = vshrl.u32 %v2135, 7
        %v2137 = vsub.s32 %v2134, %v2136
        %v2138 = vrot.slane %v2124, %v2137
        %v2139 = vcombine.low %v1974, %v2120
        %v2140 = vcombine.high %v1974, %v2120
        %v2142 = vunpack.c.l.s4 1983009808
        %v2143 = vunpack.c.0.s8 %v2142
        %v2144 = vlaneseq
        %v2145 = vshrl.u32 %v2144, 7
        %v2146 = vsub.s32 %v2143, %v2145
        %v2147 = vrot.slane %v2139, %v2146
        %v2149 = vunpack.c.l.s4 1983009808
        %v2150 = vunpack.c.0.s8 %v2149
        %v2151 = vlaneseq
        %v2152 = vshrl.u32 %v2151, 7
        %v2153 = vsub.s32 %v2150, %v2152
        %v2154 = vrot.slane %v2140, %v2153
        %v2155 = vcombine.low %v2131, %v2147
        %v2156 = vcombine.high %v2131, %v2147
        %v2158 = vunpack.c.l.s4 1934713408
        %v2159 = vunpack.c.0.s8 %v2158
        %v2160 = vlaneseq
        %v2161 = vshrl.u32 %v2160, 7
        %v2162 = vsub.s32 %v2159, %v2161
        %v2163 = vrot.slane %v2155, %v2162
        %v2165 = vunpack.c.l.s4 1934713408
        %v2166 = vunpack.c.0.s8 %v2165
        %v2167 = vlaneseq
        %v2168 = vshrl.u32 %v2167, 7
        %v2169 = vsub.s32 %v2166, %v2168
        %v2170 = vrot.slane %v2156, %v2169
        %v2171 = vcombine.low %v2138, %v2154
        %v2172 = vcombine.high %v2138, %v2154
        %v2174 = vunpack.c.l.s4 1934713408
        %v2175 = vunpack.c.0.s8 %v2174
        %v2176 = vlaneseq
        %v2177 = vshrl.u32 %v2176, 7
        %v2178 = vsub.s32 %v2175, %v2177
        %v2179 = vrot.slane %v2171, %v2178
        %v2181 = vunpack.c.l.s4 1934713408
        %v2182 = vunpack.c.0.s8 %v2181
        %v2183 = vlaneseq
        %v2184 = vshrl.u32 %v2183, 7
        %v2185 = vsub.s32 %v2182, %v2184
        %v2186 = vrot.slane %v2172, %v2185
        %v2187 = vcombine.high %v2163, 0.0
        %v2188 = vcombine.high %v2170, 0.0
        %v2189 = vcombine.high %v2179, 0.0
        %v2190 = vcombine.high %v2186, 0.0
        %v2191 = vcombine.low %v2163, %v2170
        %v2193 = vunpack.c.l.s4 1983009808
        %v2194 = vunpack.c.0.s8 %v2193
        %v2195 = vlaneseq
        %v2196 = vshrl.u32 %v2195, 7
        %v2197 = vsub.s32 %v2194, %v2196
        %v2198 = vrot.slane %v2191, %v2197
        %v2199 = vcombine.low %v2187, %v2188
        %v2201 = vunpack.c.l.s4 1983009808
        %v2202 = vunpack.c.0.s8 %v2201
        %v2203 = vlaneseq
        %v2204 = vshrl.u32 %v2203, 7
        %v2205 = vsub.s32 %v2202, %v2204
        %v2206 = vrot.slane %v2199, %v2205
        %v2207 = vcombine.low %v2179, %v2186
        %v2209 = vunpack.c.l.s4 1983009808
        %v2210 = vunpack.c.0.s8 %v2209
        %v2211 = vlaneseq
        %v2212 = vshrl.u32 %v2211, 7
        %v2213 = vsub.s32 %v2210, %v2212
        %v2214 = vrot.slane %v2207, %v2213
        %v2215 = vcombine.low %v2189, %v2190
        %v2217 = vunpack.c.l.s4 1983009808
        %v2218 = vunpack.c.0.s8 %v2217
        %v2219 = vlaneseq
        %v2220 = vshrl.u32 %v2219, 7
        %v2221 = vsub.s32 %v2218, %v2220
        %v2222 = vrot.slane %v2215, %v2221
        %v2223 = vcombine.low %v2198, %v2206
        %v2224 = vcombine.high %v2198, %v2206
        %v2226 = vunpack.c.l.s4 1934713408
        %v2227 = vunpack.c.0.s8 %v2226
        %v2228 = vlaneseq
        %v2229 = vshrl.u32 %v2228, 7
        %v2230 = vsub.s32 %v2227, %v2229
        %v2231 = vrot.slane %v2223, %v2230
        %v2233 = vunpack.c.l.s4 1934713408
        %v2234 = vunpack.c.0.s8 %v2233
        %v2235 = vlaneseq
        %v2236 = vshrl.u32 %v2235, 7
        %v2237 = vsub.s32 %v2234, %v2236
        %v2238 = vrot.slane %v2224, %v2237
        %v2239 = vcombine.low %v2214, %v2222
        %v2240 = vcombine.high %v2214, %v2222
        %v2242 = vunpack.c.l.s4 1934713408
        %v2243 = vunpack.c.0.s8 %v2242
        %v2244 = vlaneseq
        %v2245 = vshrl.u32 %v2244, 7
        %v2246 = vsub.s32 %v2243, %v2245
        %v2247 = vrot.slane %v2239, %v2246
        %v2249 = vunpack.c.l.s4 1934713408
        %v2250 = vunpack.c.0.s8 %v2249
        %v2251 = vlaneseq
        %v2252 = vshrl.u32 %v2251, 7
        %v2253 = vsub.s32 %v2250, %v2252
        %v2254 = vrot.slane %v2240, %v2253
        %v2255 = vcombine.low %v2231, %v2247
        %v2256 = vcombine.high %v2231, %v2247
        %v2257 = vcombine.low %v2238, %v2254
        %v2258 = vcombine.high %v2238, %v2254
        %2260 = vrot.lane.b32.xlu0 %v2256, 32
        %v2261 = vpop.permute.xlu0 %2260
        %2264 = vrot.lane.b32.xlu0 %v2257, 64
        %v2265 = vpop.permute.xlu0 %2264
        %2268 = vrot.lane.b32.xlu0 %v2258, 96
        %v2269 = vpop.permute.xlu0 %2268
        %v2271 = vsel %vm1455, %v2255, %v2261
        %vm2272 = vcmask 523264
        %v2273 = vsel %vm2272, %v2271, %v2265
        %vm2274 = vcmask 785408
        %v2275 = vsel %vm2274, %v2273, %v2269
        %v2276 = vadd.f32 %v779, %v2275
        %v2277 = vld [vmem:[%s7] sm:$0x1]
        %v2278 = vld [vmem:[%s8] sm:$0x1]
        %2279 = vadd.xlane.f32.xlu0 %v2276
        %v2280 = vpop.xlane.xlu0 %2279
        %v2281 = vrcp.pop 128.0
        %v2282 = vmul.f32 %v2280, %v2281
        %v2283 = vsub.f32 %v2276, %v2282
        %v2284 = vmul.f32 %v2283, %v2283
        %2285 = vadd.xlane.f32.xlu0 %v2284
        %v2286 = vpop.xlane.xlu0 %2285
        %v2287 = vmul.f32 %v2286, %v2281
        %v2288 = vadd.f32 %v2287, 1e-06
        %v2289 = vrsqrt.pop %v2288
        %v2290 = vmul.f32 %v2283, %v2289
        %v2292 = vlaneseq
        %v2293 = vshrl.u32 %v2292, 7
        %v2294 = vsub.s32 0, %v2293
        %v2295 = vrot.slane %v2277, %v2294
        %v2297 = vmul.f32 %v2290, %v2295
        %v2299 = vlaneseq
        %v2300 = vshrl.u32 %v2299, 7
        %v2301 = vsub.s32 0, %v2300
        %v2302 = vrot.slane %v2278, %v2301
        %v2304 = vadd.f32 %v2297, %v2302
        %v2305 = vld [vmem:[#allocation13] sm:$0xff]
        %v2306 = vld [vmem:[#allocation13 + $0x8] sm:$0xff]
        %v2307 = vld [vmem:[#allocation13 + $0x10] sm:$0xff]
        %v2308 = vld [vmem:[#allocation13 + $0x18] sm:$0xff]
        %v2309 = vld [vmem:[#allocation13 + $0x20] sm:$0xff]
        %v2310 = vld [vmem:[#allocation13 + $0x28] sm:$0xff]
        %v2311 = vld [vmem:[#allocation13 + $0x30] sm:$0xff]
        %v2312 = vld [vmem:[#allocation13 + $0x38] sm:$0xff]
        %v2313 = vld [vmem:[#allocation13 + $0x40] sm:$0xff]
        %v2314 = vld [vmem:[#allocation13 + $0x48] sm:$0xff]
        %v2315 = vld [vmem:[#allocation13 + $0x50] sm:$0xff]
        %v2316 = vld [vmem:[#allocation13 + $0x58] sm:$0xff]
        %v2317 = vld [vmem:[#allocation13 + $0x60] sm:$0xff]
        %v2318 = vld [vmem:[#allocation13 + $0x68] sm:$0xff]
        %v2319 = vld [vmem:[#allocation13 + $0x70] sm:$0xff]
        %v2320 = vld [vmem:[#allocation13 + $0x78] sm:$0xff]
        %v2321 = vld [vmem:[#allocation13 + $0x80] sm:$0xff]
        %v2322 = vld [vmem:[#allocation13 + $0x88] sm:$0xff]
        %v2323 = vld [vmem:[#allocation13 + $0x90] sm:$0xff]
        %v2324 = vld [vmem:[#allocation13 + $0x98] sm:$0xff]
        %v2325 = vld [vmem:[#allocation13 + $0xa0] sm:$0xff]
        %v2326 = vld [vmem:[#allocation13 + $0xa8] sm:$0xff]
        %v2327 = vld [vmem:[#allocation13 + $0xb0] sm:$0xff]
        %v2328 = vld [vmem:[#allocation13 + $0xb8] sm:$0xff]
        %v2329 = vld [vmem:[#allocation13 + $0xc0] sm:$0xff]
        %v2330 = vld [vmem:[#allocation13 + $0xc8] sm:$0xff]
        %v2331 = vld [vmem:[#allocation13 + $0xd0] sm:$0xff]
        %v2332 = vld [vmem:[#allocation13 + $0xd8] sm:$0xff]
        %v2333 = vld [vmem:[#allocation13 + $0xe0] sm:$0xff]
        %v2334 = vld [vmem:[#allocation13 + $0xe8] sm:$0xff]
        %v2335 = vld [vmem:[#allocation13 + $0xf0] sm:$0xff]
        %v2336 = vld [vmem:[#allocation13 + $0xf8] sm:$0xff]
        %v2337 = vld [vmem:[#allocation13 + $0x100] sm:$0xff]
        %v2338 = vld [vmem:[#allocation13 + $0x108] sm:$0xff]
        %v2339 = vld [vmem:[#allocation13 + $0x110] sm:$0xff]
        %v2340 = vld [vmem:[#allocation13 + $0x118] sm:$0xff]
        %v2341 = vld [vmem:[#allocation13 + $0x120] sm:$0xff]
        %v2342 = vld [vmem:[#allocation13 + $0x128] sm:$0xff]
        %v2343 = vld [vmem:[#allocation13 + $0x130] sm:$0xff]
        %v2344 = vld [vmem:[#allocation13 + $0x138] sm:$0xff]
        %v2345 = vld [vmem:[#allocation13 + $0x140] sm:$0xff]
        %v2346 = vld [vmem:[#allocation13 + $0x148] sm:$0xff]
        %v2347 = vld [vmem:[#allocation13 + $0x150] sm:$0xff]
        %v2348 = vld [vmem:[#allocation13 + $0x158] sm:$0xff]
        %v2349 = vld [vmem:[#allocation13 + $0x160] sm:$0xff]
        %v2350 = vld [vmem:[#allocation13 + $0x168] sm:$0xff]
        %v2351 = vld [vmem:[#allocation13 + $0x170] sm:$0xff]
        %v2352 = vld [vmem:[#allocation13 + $0x178] sm:$0xff]
        %v2353 = vld [vmem:[#allocation13 + $0x180] sm:$0xff]
        %v2354 = vld [vmem:[#allocation13 + $0x188] sm:$0xff]
        %v2355 = vld [vmem:[#allocation13 + $0x190] sm:$0xff]
        %v2356 = vld [vmem:[#allocation13 + $0x198] sm:$0xff]
        %v2357 = vld [vmem:[#allocation13 + $0x1a0] sm:$0xff]
        %v2358 = vld [vmem:[#allocation13 + $0x1a8] sm:$0xff]
        %v2359 = vld [vmem:[#allocation13 + $0x1b0] sm:$0xff]
        %v2360 = vld [vmem:[#allocation13 + $0x1b8] sm:$0xff]
        %v2361 = vld [vmem:[#allocation13 + $0x1c0] sm:$0xff]
        %v2362 = vld [vmem:[#allocation13 + $0x1c8] sm:$0xff]
        %v2363 = vld [vmem:[#allocation13 + $0x1d0] sm:$0xff]
        %v2364 = vld [vmem:[#allocation13 + $0x1d8] sm:$0xff]
        %v2365 = vld [vmem:[#allocation13 + $0x1e0] sm:$0xff]
        %v2366 = vld [vmem:[#allocation13 + $0x1e8] sm:$0xff]
        %v2367 = vld [vmem:[#allocation13 + $0x1f0] sm:$0xff]
        %v2368 = vld [vmem:[#allocation13 + $0x1f8] sm:$0xff]
        %v2369 = vld [vmem:[#allocation13 + $0x200] sm:$0xff]
        %v2370 = vld [vmem:[#allocation13 + $0x208] sm:$0xff]
        %v2371 = vld [vmem:[#allocation13 + $0x210] sm:$0xff]
        %v2372 = vld [vmem:[#allocation13 + $0x218] sm:$0xff]
        %v2373 = vld [vmem:[#allocation13 + $0x220] sm:$0xff]
        %v2374 = vld [vmem:[#allocation13 + $0x228] sm:$0xff]
        %v2375 = vld [vmem:[#allocation13 + $0x230] sm:$0xff]
        %v2376 = vld [vmem:[#allocation13 + $0x238] sm:$0xff]
        %v2377 = vld [vmem:[#allocation13 + $0x240] sm:$0xff]
        %v2378 = vld [vmem:[#allocation13 + $0x248] sm:$0xff]
        %v2379 = vld [vmem:[#allocation13 + $0x250] sm:$0xff]
        %v2380 = vld [vmem:[#allocation13 + $0x258] sm:$0xff]
        %v2381 = vld [vmem:[#allocation13 + $0x260] sm:$0xff]
        %v2382 = vld [vmem:[#allocation13 + $0x268] sm:$0xff]
        %v2383 = vld [vmem:[#allocation13 + $0x270] sm:$0xff]
        %v2384 = vld [vmem:[#allocation13 + $0x278] sm:$0xff]
        %v2385 = vld [vmem:[#allocation13 + $0x280] sm:$0xff]
        %v2386 = vld [vmem:[#allocation13 + $0x288] sm:$0xff]
        %v2387 = vld [vmem:[#allocation13 + $0x290] sm:$0xff]
        %v2388 = vld [vmem:[#allocation13 + $0x298] sm:$0xff]
        %v2389 = vld [vmem:[#allocation13 + $0x2a0] sm:$0xff]
        %v2390 = vld [vmem:[#allocation13 + $0x2a8] sm:$0xff]
        %v2391 = vld [vmem:[#allocation13 + $0x2b0] sm:$0xff]
        %v2392 = vld [vmem:[#allocation13 + $0x2b8] sm:$0xff]
        %v2393 = vld [vmem:[#allocation13 + $0x2c0] sm:$0xff]
        %v2394 = vld [vmem:[#allocation13 + $0x2c8] sm:$0xff]
        %v2395 = vld [vmem:[#allocation13 + $0x2d0] sm:$0xff]
        %v2396 = vld [vmem:[#allocation13 + $0x2d8] sm:$0xff]
        %v2397 = vld [vmem:[#allocation13 + $0x2e0] sm:$0xff]
        %v2398 = vld [vmem:[#allocation13 + $0x2e8] sm:$0xff]
        %v2399 = vld [vmem:[#allocation13 + $0x2f0] sm:$0xff]
        %v2400 = vld [vmem:[#allocation13 + $0x2f8] sm:$0xff]
        %v2401 = vld [vmem:[#allocation13 + $0x300] sm:$0xff]
        %v2402 = vld [vmem:[#allocation13 + $0x308] sm:$0xff]
        %v2403 = vld [vmem:[#allocation13 + $0x310] sm:$0xff]
        %v2404 = vld [vmem:[#allocation13 + $0x318] sm:$0xff]
        %v2405 = vld [vmem:[#allocation13 + $0x320] sm:$0xff]
        %v2406 = vld [vmem:[#allocation13 + $0x328] sm:$0xff]
        %v2407 = vld [vmem:[#allocation13 + $0x330] sm:$0xff]
        %v2408 = vld [vmem:[#allocation13 + $0x338] sm:$0xff]
        %v2409 = vld [vmem:[#allocation13 + $0x340] sm:$0xff]
        %v2410 = vld [vmem:[#allocation13 + $0x348] sm:$0xff]
        %v2411 = vld [vmem:[#allocation13 + $0x350] sm:$0xff]
        %v2412 = vld [vmem:[#allocation13 + $0x358] sm:$0xff]
        %v2413 = vld [vmem:[#allocation13 + $0x360] sm:$0xff]
        %v2414 = vld [vmem:[#allocation13 + $0x368] sm:$0xff]
        %v2415 = vld [vmem:[#allocation13 + $0x370] sm:$0xff]
        %v2416 = vld [vmem:[#allocation13 + $0x378] sm:$0xff]
        %v2417 = vld [vmem:[#allocation13 + $0x380] sm:$0xff]
        %v2418 = vld [vmem:[#allocation13 + $0x388] sm:$0xff]
        %v2419 = vld [vmem:[#allocation13 + $0x390] sm:$0xff]
        %v2420 = vld [vmem:[#allocation13 + $0x398] sm:$0xff]
        %v2421 = vld [vmem:[#allocation13 + $0x3a0] sm:$0xff]
        %v2422 = vld [vmem:[#allocation13 + $0x3a8] sm:$0xff]
        %v2423 = vld [vmem:[#allocation13 + $0x3b0] sm:$0xff]
        %v2424 = vld [vmem:[#allocation13 + $0x3b8] sm:$0xff]
        %v2425 = vld [vmem:[#allocation13 + $0x3c0] sm:$0xff]
        %v2426 = vld [vmem:[#allocation13 + $0x3c8] sm:$0xff]
        %v2427 = vld [vmem:[#allocation13 + $0x3d0] sm:$0xff]
        %v2428 = vld [vmem:[#allocation13 + $0x3d8] sm:$0xff]
        %v2429 = vld [vmem:[#allocation13 + $0x3e0] sm:$0xff]
        %v2430 = vld [vmem:[#allocation13 + $0x3e8] sm:$0xff]
        %v2431 = vld [vmem:[#allocation13 + $0x3f0] sm:$0xff]
        %v2432 = vld [vmem:[#allocation13 + $0x3f8] sm:$0xff]
        %v2433 = vld [vmem:[%s10] sm:$0xff]
        %v2435 = vlaneseq
        %v2436 = vshrl.u32 %v2435, 7
        %v2437 = vsub.s32 0, %v2436
        %v2438 = vrot.slane %v2433, %v2437
        %v2439 = vlaneseq
        %v2440 = vshrl.u32 %v2439, 7
        %v2441 = vsub.s32 1, %v2440
        %v2442 = vrot.slane %v2433, %v2441
        %v2443 = vlaneseq
        %v2444 = vshrl.u32 %v2443, 7
        %v2445 = vsub.s32 2, %v2444
        %v2446 = vrot.slane %v2433, %v2445
        %v2447 = vlaneseq
        %v2448 = vshrl.u32 %v2447, 7
        %v2449 = vsub.s32 3, %v2448
        %v2450 = vrot.slane %v2433, %v2449
        %v2451 = vlaneseq
        %v2452 = vshrl.u32 %v2451, 7
        %v2453 = vsub.s32 4, %v2452
        %v2454 = vrot.slane %v2433, %v2453
        %v2455 = vlaneseq
        %v2456 = vshrl.u32 %v2455, 7
        %v2457 = vsub.s32 5, %v2456
        %v2458 = vrot.slane %v2433, %v2457
        %v2459 = vlaneseq
        %v2460 = vshrl.u32 %v2459, 7
        %v2461 = vsub.s32 6, %v2460
        %v2462 = vrot.slane %v2433, %v2461
        %v2463 = vlaneseq
        %v2464 = vshrl.u32 %v2463, 7
        %v2465 = vsub.s32 7, %v2464
        %v2466 = vrot.slane %v2433, %v2465
        %2475 = vmatprep.subr.mxu0 %v2306
        %2476 = vmatpush1.msra.mxu0 %v2305
        %2477 = vmatprep.subr.mxu0 %v2314
        %2478 = vmatpush1.msra.mxu0 %v2313
        %2479 = vmatprep.subr.mxu0 %v2322
        %2480 = vmatpush1.msra.mxu0 %v2321
        %2481 = vmatprep.subr.mxu0 %v2330
        %2482 = vmatpush1.msra.mxu0 %v2329
        %2483 = vmatprep.subr.mxu0 %v2338
        %2484 = vmatpush1.msra.mxu0 %v2337
        %2485 = vmatprep.subr.mxu0 %v2346
        %2486 = vmatpush1.msra.mxu0 %v2345
        %2487 = vmatprep.subr.mxu0 %v2354
        %2488 = vmatpush1.msra.mxu0 %v2353
        %2489 = vmatprep.subr.mxu0 %v2362
        %2490 = vmatpush1.msra.mxu0 %v2361
        %2491 = vmatprep.subr.mxu0 %v2370
        %2492 = vmatpush1.msra.mxu0 %v2369
        %2493 = vmatprep.subr.mxu0 %v2378
        %2494 = vmatpush1.msra.mxu0 %v2377
        %2495 = vmatprep.subr.mxu0 %v2386
        %2496 = vmatpush1.msra.mxu0 %v2385
        %2497 = vmatprep.subr.mxu0 %v2394
        %2498 = vmatpush1.msra.mxu0 %v2393
        %2499 = vmatprep.subr.mxu0 %v2402
        %2500 = vmatpush1.msra.mxu0 %v2401
        %2501 = vmatprep.subr.mxu0 %v2410
        %2502 = vmatpush1.msra.mxu0 %v2409
        %2503 = vmatprep.subr.mxu0 %v2418
        %2504 = vmatpush1.msra.mxu0 %v2417
        %2505 = vmatprep.subr.mxu0 %v2426
        %2506 = vmatpush1.msra.mxu0 %v2425
        %2507 = vmatprep.subr.mxu0 0.0
        %2508 = vmatpush1.msra.mxu0 0.0
        %2509 = vmatprep.subr.mxu0 0.0
        %2510 = vmatpush1.msra.mxu0 0.0
        %2511 = vmatprep.subr.mxu0 0.0
        %2512 = vmatpush1.msra.mxu0 0.0
        %2513 = vmatprep.subr.mxu0 0.0
        %2514 = vmatpush1.msra.mxu0 0.0
        %2515 = vmatprep.subr.mxu0 0.0
        %2516 = vmatpush1.msra.mxu0 0.0
        %2517 = vmatprep.subr.mxu0 0.0
        %2518 = vmatpush1.msra.mxu0 0.0
        %2519 = vmatprep.subr.mxu0 0.0
        %2520 = vmatpush1.msra.mxu0 0.0
        %2521 = vmatprep.subr.mxu0 0.0
        %2522 = vmatpush1.msra.mxu0 0.0
        %2523 = vmatprep.subr.mxu0 0.0
        %2524 = vmatpush1.msra.mxu0 0.0
        %2525 = vmatprep.subr.mxu0 0.0
        %2526 = vmatpush1.msra.mxu0 0.0
        %2527 = vmatprep.subr.mxu0 0.0
        %2528 = vmatpush1.msra.mxu0 0.0
        %2529 = vmatprep.subr.mxu0 0.0
        %2530 = vmatpush1.msra.mxu0 0.0
        %2531 = vmatprep.subr.mxu0 0.0
        %2532 = vmatpush1.msra.mxu0 0.0
        %2533 = vmatprep.subr.mxu0 0.0
        %2534 = vmatpush1.msra.mxu0 0.0
        %2535 = vmatprep.subr.mxu0 0.0
        %2536 = vmatpush1.msra.mxu0 0.0
        %2537 = vmatprep.subr.mxu0 0.0
        %2538 = vmatpush1.msra.mxu0 0.0
        %2539 = vmatprep.mubr.f32.mxu0 0.0
        %2540 = vmatmul.mubr.f32.gmra.mrb[0].mxu0 %v2304
        %v2541 = vpop.f32.mrb[0].mxu0
        %v2542 = vadd.f32 %v2438, %v2541
        %v2543 = vpop.f32.mrb[0].mxu0
        %v2544 = vadd.f32 %v2442, %v2543
        %2545 = vdwg.mxu0
        %2546 = vmatprep.subr.mxu0 %v2308
        %2547 = vmatpush1.msra.mxu0 %v2307
        %2548 = vmatprep.subr.mxu0 %v2316
        %2549 = vmatpush1.msra.mxu0 %v2315
        %2550 = vmatprep.subr.mxu0 %v2324
        %2551 = vmatpush1.msra.mxu0 %v2323
        %2552 = vmatprep.subr.mxu0 %v2332
        %2553 = vmatpush1.msra.mxu0 %v2331
        %2554 = vmatprep.subr.mxu0 %v2340
        %2555 = vmatpush1.msra.mxu0 %v2339
        %2556 = vmatprep.subr.mxu0 %v2348
        %2557 = vmatpush1.msra.mxu0 %v2347
        %2558 = vmatprep.subr.mxu0 %v2356
        %2559 = vmatpush1.msra.mxu0 %v2355
        %2560 = vmatprep.subr.mxu0 %v2364
        %2561 = vmatpush1.msra.mxu0 %v2363
        %2562 = vmatprep.subr.mxu0 %v2372
        %2563 = vmatpush1.msra.mxu0 %v2371
        %2564 = vmatprep.subr.mxu0 %v2380
        %2565 = vmatpush1.msra.mxu0 %v2379
        %2566 = vmatprep.subr.mxu0 %v2388
        %2567 = vmatpush1.msra.mxu0 %v2387
        %2568 = vmatprep.subr.mxu0 %v2396
        %2569 = vmatpush1.msra.mxu0 %v2395
        %2570 = vmatprep.subr.mxu0 %v2404
        %2571 = vmatpush1.msra.mxu0 %v2403
        %2572 = vmatprep.subr.mxu0 %v2412
        %2573 = vmatpush1.msra.mxu0 %v2411
        %2574 = vmatprep.subr.mxu0 %v2420
        %2575 = vmatpush1.msra.mxu0 %v2419
        %2576 = vmatprep.subr.mxu0 %v2428
        %2577 = vmatpush1.msra.mxu0 %v2427
        %2578 = vmatprep.subr.mxu0 0.0
        %2579 = vmatpush1.msra.mxu0 0.0
        %2580 = vmatprep.subr.mxu0 0.0
        %2581 = vmatpush1.msra.mxu0 0.0
        %2582 = vmatprep.subr.mxu0 0.0
        %2583 = vmatpush1.msra.mxu0 0.0
        %2584 = vmatprep.subr.mxu0 0.0
        %2585 = vmatpush1.msra.mxu0 0.0
        %2586 = vmatprep.subr.mxu0 0.0
        %2587 = vmatpush1.msra.mxu0 0.0
        %2588 = vmatprep.subr.mxu0 0.0
        %2589 = vmatpush1.msra.mxu0 0.0
        %2590 = vmatprep.subr.mxu0 0.0
        %2591 = vmatpush1.msra.mxu0 0.0
        %2592 = vmatprep.subr.mxu0 0.0
        %2593 = vmatpush1.msra.mxu0 0.0
        %2594 = vmatprep.subr.mxu0 0.0
        %2595 = vmatpush1.msra.mxu0 0.0
        %2596 = vmatprep.subr.mxu0 0.0
        %2597 = vmatpush1.msra.mxu0 0.0
        %2598 = vmatprep.subr.mxu0 0.0
        %2599 = vmatpush1.msra.mxu0 0.0
        %2600 = vmatprep.subr.mxu0 0.0
        %2601 = vmatpush1.msra.mxu0 0.0
        %2602 = vmatprep.subr.mxu0 0.0
        %2603 = vmatpush1.msra.mxu0 0.0
        %2604 = vmatprep.subr.mxu0 0.0
        %2605 = vmatpush1.msra.mxu0 0.0
        %2606 = vmatprep.subr.mxu0 0.0
        %2607 = vmatpush1.msra.mxu0 0.0
        %2608 = vmatprep.subr.mxu0 0.0
        %2609 = vmatpush1.msra.mxu0 0.0
        %2610 = vmatprep.mubr.f32.mxu0 0.0
        %2611 = vmatmul.mubr.f32.gmra.mrb[0].mxu0 %v2304
        %v2612 = vpop.f32.mrb[0].mxu0
        %v2613 = vadd.f32 %v2446, %v2612
        %v2614 = vpop.f32.mrb[0].mxu0
        %v2615 = vadd.f32 %v2450, %v2614
        %2616 = vdwg.mxu0
        %2617 = vmatprep.subr.mxu0 %v2310
        %2618 = vmatpush1.msra.mxu0 %v2309
        %2619 = vmatprep.subr.mxu0 %v2318
        %2620 = vmatpush1.msra.mxu0 %v2317
        %2621 = vmatprep.subr.mxu0 %v2326
        %2622 = vmatpush1.msra.mxu0 %v2325
        %2623 = vmatprep.subr.mxu0 %v2334
        %2624 = vmatpush1.msra.mxu0 %v2333
        %2625 = vmatprep.subr.mxu0 %v2342
        %2626 = vmatpush1.msra.mxu0 %v2341
        %2627 = vmatprep.subr.mxu0 %v2350
        %2628 = vmatpush1.msra.mxu0 %v2349
        %2629 = vmatprep.subr.mxu0 %v2358
        %2630 = vmatpush1.msra.mxu0 %v2357
        %2631 = vmatprep.subr.mxu0 %v2366
        %2632 = vmatpush1.msra.mxu0 %v2365
        %2633 = vmatprep.subr.mxu0 %v2374
        %2634 = vmatpush1.msra.mxu0 %v2373
        %2635 = vmatprep.subr.mxu0 %v2382
        %2636 = vmatpush1.msra.mxu0 %v2381
        %2637 = vmatprep.subr.mxu0 %v2390
        %2638 = vmatpush1.msra.mxu0 %v2389
        %2639 = vmatprep.subr.mxu0 %v2398
        %2640 = vmatpush1.msra.mxu0 %v2397
        %2641 = vmatprep.subr.mxu0 %v2406
        %2642 = vmatpush1.msra.mxu0 %v2405
        %2643 = vmatprep.subr.mxu0 %v2414
        %2644 = vmatpush1.msra.mxu0 %v2413
        %2645 = vmatprep.subr.mxu0 %v2422
        %2646 = vmatpush1.msra.mxu0 %v2421
        %2647 = vmatprep.subr.mxu0 %v2430
        %2648 = vmatpush1.msra.mxu0 %v2429
        %2649 = vmatprep.subr.mxu0 0.0
        %2650 = vmatpush1.msra.mxu0 0.0
        %2651 = vmatprep.subr.mxu0 0.0
        %2652 = vmatpush1.msra.mxu0 0.0
        %2653 = vmatprep.subr.mxu0 0.0
        %2654 = vmatpush1.msra.mxu0 0.0
        %2655 = vmatprep.subr.mxu0 0.0
        %2656 = vmatpush1.msra.mxu0 0.0
        %2657 = vmatprep.subr.mxu0 0.0
        %2658 = vmatpush1.msra.mxu0 0.0
        %2659 = vmatprep.subr.mxu0 0.0
        %2660 = vmatpush1.msra.mxu0 0.0
        %2661 = vmatprep.subr.mxu0 0.0
        %2662 = vmatpush1.msra.mxu0 0.0
        %2663 = vmatprep.subr.mxu0 0.0
        %2664 = vmatpush1.msra.mxu0 0.0
        %2665 = vmatprep.subr.mxu0 0.0
        %2666 = vmatpush1.msra.mxu0 0.0
        %2667 = vmatprep.subr.mxu0 0.0
        %2668 = vmatpush1.msra.mxu0 0.0
        %2669 = vmatprep.subr.mxu0 0.0
        %2670 = vmatpush1.msra.mxu0 0.0
        %2671 = vmatprep.subr.mxu0 0.0
        %2672 = vmatpush1.msra.mxu0 0.0
        %2673 = vmatprep.subr.mxu0 0.0
        %2674 = vmatpush1.msra.mxu0 0.0
        %2675 = vmatprep.subr.mxu0 0.0
        %2676 = vmatpush1.msra.mxu0 0.0
        %2677 = vmatprep.subr.mxu0 0.0
        %2678 = vmatpush1.msra.mxu0 0.0
        %2679 = vmatprep.subr.mxu0 0.0
        %2680 = vmatpush1.msra.mxu0 0.0
        %2681 = vmatprep.mubr.f32.mxu0 0.0
        %2682 = vmatmul.mubr.f32.gmra.mrb[0].mxu0 %v2304
        %v2683 = vpop.f32.mrb[0].mxu0
        %v2684 = vadd.f32 %v2454, %v2683
        %v2685 = vpop.f32.mrb[0].mxu0
        %v2686 = vadd.f32 %v2458, %v2685
        %2687 = vdwg.mxu0
        %2688 = vmatprep.subr.mxu0 %v2312
        %2689 = vmatpush1.msra.mxu0 %v2311
        %2690 = vmatprep.subr.mxu0 %v2320
        %2691 = vmatpush1.msra.mxu0 %v2319
        %2692 = vmatprep.subr.mxu0 %v2328
        %2693 = vmatpush1.msra.mxu0 %v2327
        %2694 = vmatprep.subr.mxu0 %v2336
        %2695 = vmatpush1.msra.mxu0 %v2335
        %2696 = vmatprep.subr.mxu0 %v2344
        %2697 = vmatpush1.msra.mxu0 %v2343
        %2698 = vmatprep.subr.mxu0 %v2352
        %2699 = vmatpush1.msra.mxu0 %v2351
        %2700 = vmatprep.subr.mxu0 %v2360
        %2701 = vmatpush1.msra.mxu0 %v2359
        %2702 = vmatprep.subr.mxu0 %v2368
        %2703 = vmatpush1.msra.mxu0 %v2367
        %2704 = vmatprep.subr.mxu0 %v2376
        %2705 = vmatpush1.msra.mxu0 %v2375
        %2706 = vmatprep.subr.mxu0 %v2384
        %2707 = vmatpush1.msra.mxu0 %v2383
        %2708 = vmatprep.subr.mxu0 %v2392
        %2709 = vmatpush1.msra.mxu0 %v2391
        %2710 = vmatprep.subr.mxu0 %v2400
        %2711 = vmatpush1.msra.mxu0 %v2399
        %2712 = vmatprep.subr.mxu0 %v2408
        %2713 = vmatpush1.msra.mxu0 %v2407
        %2714 = vmatprep.subr.mxu0 %v2416
        %2715 = vmatpush1.msra.mxu0 %v2415
        %2716 = vmatprep.subr.mxu0 %v2424
        %2717 = vmatpush1.msra.mxu0 %v2423
        %2718 = vmatprep.subr.mxu0 %v2432
        %2719 = vmatpush1.msra.mxu0 %v2431
        %2720 = vmatprep.subr.mxu0 0.0
        %2721 = vmatpush1.msra.mxu0 0.0
        %2722 = vmatprep.subr.mxu0 0.0
        %2723 = vmatpush1.msra.mxu0 0.0
        %2724 = vmatprep.subr.mxu0 0.0
        %2725 = vmatpush1.msra.mxu0 0.0
        %2726 = vmatprep.subr.mxu0 0.0
        %2727 = vmatpush1.msra.mxu0 0.0
        %2728 = vmatprep.subr.mxu0 0.0
        %2729 = vmatpush1.msra.mxu0 0.0
        %2730 = vmatprep.subr.mxu0 0.0
        %2731 = vmatpush1.msra.mxu0 0.0
        %2732 = vmatprep.subr.mxu0 0.0
        %2733 = vmatpush1.msra.mxu0 0.0
        %2734 = vmatprep.subr.mxu0 0.0
        %2735 = vmatpush1.msra.mxu0 0.0
        %2736 = vmatprep.subr.mxu0 0.0
        %2737 = vmatpush1.msra.mxu0 0.0
        %2738 = vmatprep.subr.mxu0 0.0
        %2739 = vmatpush1.msra.mxu0 0.0
        %2740 = vmatprep.subr.mxu0 0.0
        %2741 = vmatpush1.msra.mxu0 0.0
        %2742 = vmatprep.subr.mxu0 0.0
        %2743 = vmatpush1.msra.mxu0 0.0
        %2744 = vmatprep.subr.mxu0 0.0
        %2745 = vmatpush1.msra.mxu0 0.0
        %2746 = vmatprep.subr.mxu0 0.0
        %2747 = vmatpush1.msra.mxu0 0.0
        %2748 = vmatprep.subr.mxu0 0.0
        %2749 = vmatpush1.msra.mxu0 0.0
        %2750 = vmatprep.subr.mxu0 0.0
        %2751 = vmatpush1.msra.mxu0 0.0
        %2752 = vmatprep.mubr.f32.mxu0 0.0
        %2753 = vmatmul.mubr.f32.gmra.mrb[0].mxu0 %v2304
        %v2754 = vpop.f32.mrb[0].mxu0
        %v2755 = vadd.f32 %v2462, %v2754
        %v2756 = vpop.f32.mrb[0].mxu0
        %v2757 = vadd.f32 %v2466, %v2756
        %2758 = vdwg.mxu0
        %v2759 = vmul.f32 %v2542, 0.5
        %v2760 = vmul.f32 %v2544, 0.5
        %v2761 = vmul.f32 %v2613, 0.5
        %v2762 = vmul.f32 %v2615, 0.5
        %v2763 = vmul.f32 %v2684, 0.5
        %v2764 = vmul.f32 %v2686, 0.5
        %v2765 = vmul.f32 %v2755, 0.5
        %v2766 = vmul.f32 %v2757, 0.5
        %v2767 = vmul.f32 %v2542, %v2542
        %v2768 = vmul.f32 %v2544, %v2544
        %v2769 = vmul.f32 %v2613, %v2613
        %v2770 = vmul.f32 %v2615, %v2615
        %v2771 = vmul.f32 %v2684, %v2684
        %v2772 = vmul.f32 %v2686, %v2686
        %v2773 = vmul.f32 %v2755, %v2755
        %v2774 = vmul.f32 %v2757, %v2757
        %v2775 = vmul.f32 %v2767, %v2542
        %v2776 = vmul.f32 %v2768, %v2544
        %v2777 = vmul.f32 %v2769, %v2613
        %v2778 = vmul.f32 %v2770, %v2615
        %v2779 = vmul.f32 %v2771, %v2684
        %v2780 = vmul.f32 %v2772, %v2686
        %v2781 = vmul.f32 %v2773, %v2755
        %v2782 = vmul.f32 %v2774, %v2757
        %v2783 = vmul.f32 %v2775, 0.044715
        %v2784 = vmul.f32 %v2776, 0.044715
        %v2785 = vmul.f32 %v2777, 0.044715
        %v2786 = vmul.f32 %v2778, 0.044715
        %v2787 = vmul.f32 %v2779, 0.044715
        %v2788 = vmul.f32 %v2780, 0.044715
        %v2789 = vmul.f32 %v2781, 0.044715
        %v2790 = vmul.f32 %v2782, 0.044715
        %v2791 = vadd.f32 %v2542, %v2783
        %v2792 = vadd.f32 %v2544, %v2784
        %v2793 = vadd.f32 %v2613, %v2785
        %v2794 = vadd.f32 %v2615, %v2786
        %v2795 = vadd.f32 %v2684, %v2787
        %v2796 = vadd.f32 %v2686, %v2788
        %v2797 = vadd.f32 %v2755, %v2789
        %v2798 = vadd.f32 %v2757, %v2790
        %v2799 = vmul.f32 %v2791, 0.7978846
        %v2800 = vmul.f32 %v2792, 0.7978846
        %v2801 = vmul.f32 %v2793, 0.7978846
        %v2802 = vmul.f32 %v2794, 0.7978846
        %v2803 = vmul.f32 %v2795, 0.7978846
        %v2804 = vmul.f32 %v2796, 0.7978846
        %v2805 = vmul.f32 %v2797, 0.7978846
        %v2806 = vmul.f32 %v2798, 0.7978846
        %v2807 = vtanh.pop %v2799
        %v2808 = vtanh.pop %v2800
        %v2809 = vtanh.pop %v2801
        %v2810 = vtanh.pop %v2802
        %v2811 = vtanh.pop %v2803
        %v2812 = vtanh.pop %v2804
        %v2813 = vtanh.pop %v2805
        %v2814 = vtanh.pop %v2806
        %v2815 = vadd.f32 %v2807, 1.0
        %v2816 = vadd.f32 %v2808, 1.0
        %v2817 = vadd.f32 %v2809, 1.0
        %v2818 = vadd.f32 %v2810, 1.0
        %v2819 = vadd.f32 %v2811, 1.0
        %v2820 = vadd.f32 %v2812, 1.0
        %v2821 = vadd.f32 %v2813, 1.0
        %v2822 = vadd.f32 %v2814, 1.0
        %v2823 = vmul.f32 %v2759, %v2815
        %v2824 = vmul.f32 %v2760, %v2816
        %v2825 = vmul.f32 %v2761, %v2817
        %v2826 = vmul.f32 %v2762, %v2818
        %v2827 = vmul.f32 %v2763, %v2819
        %v2828 = vmul.f32 %v2764, %v2820
        %v2829 = vmul.f32 %v2765, %v2821
        %v2830 = vmul.f32 %v2766, %v2822
        %v2831 = vld [vmem:[#allocation14] sm:$0xff]
        %v2832 = vld [vmem:[#allocation14 + $0x8] sm:$0xff]
        %v2833 = vld [vmem:[#allocation14 + $0x10] sm:$0xff]
        %v2834 = vld [vmem:[#allocation14 + $0x18] sm:$0xff]
        %v2835 = vld [vmem:[#allocation14 + $0x20] sm:$0xff]
        %v2836 = vld [vmem:[#allocation14 + $0x28] sm:$0xff]
        %v2837 = vld [vmem:[#allocation14 + $0x30] sm:$0xff]
        %v2838 = vld [vmem:[#allocation14 + $0x38] sm:$0xff]
        %v2839 = vld [vmem:[#allocation14 + $0x40] sm:$0xff]
        %v2840 = vld [vmem:[#allocation14 + $0x48] sm:$0xff]
        %v2841 = vld [vmem:[#allocation14 + $0x50] sm:$0xff]
        %v2842 = vld [vmem:[#allocation14 + $0x58] sm:$0xff]
        %v2843 = vld [vmem:[#allocation14 + $0x60] sm:$0xff]
        %v2844 = vld [vmem:[#allocation14 + $0x68] sm:$0xff]
        %v2845 = vld [vmem:[#allocation14 + $0x70] sm:$0xff]
        %v2846 = vld [vmem:[#allocation14 + $0x78] sm:$0xff]
        %v2847 = vld [vmem:[#allocation14 + $0x80] sm:$0xff]
        %v2848 = vld [vmem:[#allocation14 + $0x88] sm:$0xff]
        %v2849 = vld [vmem:[#allocation14 + $0x90] sm:$0xff]
        %v2850 = vld [vmem:[#allocation14 + $0x98] sm:$0xff]
        %v2851 = vld [vmem:[#allocation14 + $0xa0] sm:$0xff]
        %v2852 = vld [vmem:[#allocation14 + $0xa8] sm:$0xff]
        %v2853 = vld [vmem:[#allocation14 + $0xb0] sm:$0xff]
        %v2854 = vld [vmem:[#allocation14 + $0xb8] sm:$0xff]
        %v2855 = vld [vmem:[#allocation14 + $0xc0] sm:$0xff]
        %v2856 = vld [vmem:[#allocation14 + $0xc8] sm:$0xff]
        %v2857 = vld [vmem:[#allocation14 + $0xd0] sm:$0xff]
        %v2858 = vld [vmem:[#allocation14 + $0xd8] sm:$0xff]
        %v2859 = vld [vmem:[#allocation14 + $0xe0] sm:$0xff]
        %v2860 = vld [vmem:[#allocation14 + $0xe8] sm:$0xff]
        %v2861 = vld [vmem:[#allocation14 + $0xf0] sm:$0xff]
        %v2862 = vld [vmem:[#allocation14 + $0xf8] sm:$0xff]
        %v2863 = vld [vmem:[#allocation14 + $0x100] sm:$0xff]
        %v2864 = vld [vmem:[#allocation14 + $0x108] sm:$0xff]
        %v2865 = vld [vmem:[#allocation14 + $0x110] sm:$0xff]
        %v2866 = vld [vmem:[#allocation14 + $0x118] sm:$0xff]
        %v2867 = vld [vmem:[#allocation14 + $0x120] sm:$0xff]
        %v2868 = vld [vmem:[#allocation14 + $0x128] sm:$0xff]
        %v2869 = vld [vmem:[#allocation14 + $0x130] sm:$0xff]
        %v2870 = vld [vmem:[#allocation14 + $0x138] sm:$0xff]
        %v2871 = vld [vmem:[#allocation14 + $0x140] sm:$0xff]
        %v2872 = vld [vmem:[#allocation14 + $0x148] sm:$0xff]
        %v2873 = vld [vmem:[#allocation14 + $0x150] sm:$0xff]
        %v2874 = vld [vmem:[#allocation14 + $0x158] sm:$0xff]
        %v2875 = vld [vmem:[#allocation14 + $0x160] sm:$0xff]
        %v2876 = vld [vmem:[#allocation14 + $0x168] sm:$0xff]
        %v2877 = vld [vmem:[#allocation14 + $0x170] sm:$0xff]
        %v2878 = vld [vmem:[#allocation14 + $0x178] sm:$0xff]
        %v2879 = vld [vmem:[#allocation14 + $0x180] sm:$0xff]
        %v2880 = vld [vmem:[#allocation14 + $0x188] sm:$0xff]
        %v2881 = vld [vmem:[#allocation14 + $0x190] sm:$0xff]
        %v2882 = vld [vmem:[#allocation14 + $0x198] sm:$0xff]
        %v2883 = vld [vmem:[#allocation14 + $0x1a0] sm:$0xff]
        %v2884 = vld [vmem:[#allocation14 + $0x1a8] sm:$0xff]
        %v2885 = vld [vmem:[#allocation14 + $0x1b0] sm:$0xff]
        %v2886 = vld [vmem:[#allocation14 + $0x1b8] sm:$0xff]
        %v2887 = vld [vmem:[#allocation14 + $0x1c0] sm:$0xff]
        %v2888 = vld [vmem:[#allocation14 + $0x1c8] sm:$0xff]
        %v2889 = vld [vmem:[#allocation14 + $0x1d0] sm:$0xff]
        %v2890 = vld [vmem:[#allocation14 + $0x1d8] sm:$0xff]
        %v2891 = vld [vmem:[#allocation14 + $0x1e0] sm:$0xff]
        %v2892 = vld [vmem:[#allocation14 + $0x1e8] sm:$0xff]
        %v2893 = vld [vmem:[#allocation14 + $0x1f0] sm:$0xff]
        %v2894 = vld [vmem:[#allocation14 + $0x1f8] sm:$0xff]
        %v2895 = vld [vmem:[#allocation14 + $0x200] sm:$0xff]
        %v2896 = vld [vmem:[#allocation14 + $0x208] sm:$0xff]
        %v2897 = vld [vmem:[#allocation14 + $0x210] sm:$0xff]
        %v2898 = vld [vmem:[#allocation14 + $0x218] sm:$0xff]
        %v2899 = vld [vmem:[#allocation14 + $0x220] sm:$0xff]
        %v2900 = vld [vmem:[#allocation14 + $0x228] sm:$0xff]
        %v2901 = vld [vmem:[#allocation14 + $0x230] sm:$0xff]
        %v2902 = vld [vmem:[#allocation14 + $0x238] sm:$0xff]
        %v2903 = vld [vmem:[#allocation14 + $0x240] sm:$0xff]
        %v2904 = vld [vmem:[#allocation14 + $0x248] sm:$0xff]
        %v2905 = vld [vmem:[#allocation14 + $0x250] sm:$0xff]
        %v2906 = vld [vmem:[#allocation14 + $0x258] sm:$0xff]
        %v2907 = vld [vmem:[#allocation14 + $0x260] sm:$0xff]
        %v2908 = vld [vmem:[#allocation14 + $0x268] sm:$0xff]
        %v2909 = vld [vmem:[#allocation14 + $0x270] sm:$0xff]
        %v2910 = vld [vmem:[#allocation14 + $0x278] sm:$0xff]
        %v2911 = vld [vmem:[#allocation14 + $0x280] sm:$0xff]
        %v2912 = vld [vmem:[#allocation14 + $0x288] sm:$0xff]
        %v2913 = vld [vmem:[#allocation14 + $0x290] sm:$0xff]
        %v2914 = vld [vmem:[#allocation14 + $0x298] sm:$0xff]
        %v2915 = vld [vmem:[#allocation14 + $0x2a0] sm:$0xff]
        %v2916 = vld [vmem:[#allocation14 + $0x2a8] sm:$0xff]
        %v2917 = vld [vmem:[#allocation14 + $0x2b0] sm:$0xff]
        %v2918 = vld [vmem:[#allocation14 + $0x2b8] sm:$0xff]
        %v2919 = vld [vmem:[#allocation14 + $0x2c0] sm:$0xff]
        %v2920 = vld [vmem:[#allocation14 + $0x2c8] sm:$0xff]
        %v2921 = vld [vmem:[#allocation14 + $0x2d0] sm:$0xff]
        %v2922 = vld [vmem:[#allocation14 + $0x2d8] sm:$0xff]
        %v2923 = vld [vmem:[#allocation14 + $0x2e0] sm:$0xff]
        %v2924 = vld [vmem:[#allocation14 + $0x2e8] sm:$0xff]
        %v2925 = vld [vmem:[#allocation14 + $0x2f0] sm:$0xff]
        %v2926 = vld [vmem:[#allocation14 + $0x2f8] sm:$0xff]
        %v2927 = vld [vmem:[#allocation14 + $0x300] sm:$0xff]
        %v2928 = vld [vmem:[#allocation14 + $0x308] sm:$0xff]
        %v2929 = vld [vmem:[#allocation14 + $0x310] sm:$0xff]
        %v2930 = vld [vmem:[#allocation14 + $0x318] sm:$0xff]
        %v2931 = vld [vmem:[#allocation14 + $0x320] sm:$0xff]
        %v2932 = vld [vmem:[#allocation14 + $0x328] sm:$0xff]
        %v2933 = vld [vmem:[#allocation14 + $0x330] sm:$0xff]
        %v2934 = vld [vmem:[#allocation14 + $0x338] sm:$0xff]
        %v2935 = vld [vmem:[#allocation14 + $0x340] sm:$0xff]
        %v2936 = vld [vmem:[#allocation14 + $0x348] sm:$0xff]
        %v2937 = vld [vmem:[#allocation14 + $0x350] sm:$0xff]
        %v2938 = vld [vmem:[#allocation14 + $0x358] sm:$0xff]
        %v2939 = vld [vmem:[#allocation14 + $0x360] sm:$0xff]
        %v2940 = vld [vmem:[#allocation14 + $0x368] sm:$0xff]
        %v2941 = vld [vmem:[#allocation14 + $0x370] sm:$0xff]
        %v2942 = vld [vmem:[#allocation14 + $0x378] sm:$0xff]
        %v2943 = vld [vmem:[#allocation14 + $0x380] sm:$0xff]
        %v2944 = vld [vmem:[#allocation14 + $0x388] sm:$0xff]
        %v2945 = vld [vmem:[#allocation14 + $0x390] sm:$0xff]
        %v2946 = vld [vmem:[#allocation14 + $0x398] sm:$0xff]
        %v2947 = vld [vmem:[#allocation14 + $0x3a0] sm:$0xff]
        %v2948 = vld [vmem:[#allocation14 + $0x3a8] sm:$0xff]
        %v2949 = vld [vmem:[#allocation14 + $0x3b0] sm:$0xff]
        %v2950 = vld [vmem:[#allocation14 + $0x3b8] sm:$0xff]
        %v2951 = vld [vmem:[#allocation14 + $0x3c0] sm:$0xff]
        %v2952 = vld [vmem:[#allocation14 + $0x3c8] sm:$0xff]
        %v2953 = vld [vmem:[#allocation14 + $0x3d0] sm:$0xff]
        %v2954 = vld [vmem:[#allocation14 + $0x3d8] sm:$0xff]
        %v2955 = vld [vmem:[#allocation14 + $0x3e0] sm:$0xff]
        %v2956 = vld [vmem:[#allocation14 + $0x3e8] sm:$0xff]
        %v2957 = vld [vmem:[#allocation14 + $0x3f0] sm:$0xff]
        %v2958 = vld [vmem:[#allocation14 + $0x3f8] sm:$0xff]
        %v2959 = vld [vmem:[%s12] sm:$0x1]
        %v2961 = vlaneseq
        %v2962 = vshrl.u32 %v2961, 7
        %v2963 = vsub.s32 0, %v2962
        %v2964 = vrot.slane %v2959, %v2963
        %2966 = vmatprep.subr.mxu0 0.0
        %2967 = vmatpush1.msra.mxu0 %v2831
        %2968 = vmatprep.subr.mxu0 0.0
        %2969 = vmatpush1.msra.mxu0 %v2832
        %2970 = vmatprep.subr.mxu0 0.0
        %2971 = vmatpush1.msra.mxu0 %v2833
        %2972 = vmatprep.subr.mxu0 0.0
        %2973 = vmatpush1.msra.mxu0 %v2834
        %2974 = vmatprep.subr.mxu0 0.0
        %2975 = vmatpush1.msra.mxu0 %v2835
        %2976 = vmatprep.subr.mxu0 0.0
        %2977 = vmatpush1.msra.mxu0 %v2836
        %2978 = vmatprep.subr.mxu0 0.0
        %2979 = vmatpush1.msra.mxu0 %v2837
        %2980 = vmatprep.subr.mxu0 0.0
        %2981 = vmatpush1.msra.mxu0 %v2838
        %2982 = vmatprep.subr.mxu0 0.0
        %2983 = vmatpush1.msra.mxu0 %v2839
        %2984 = vmatprep.subr.mxu0 0.0
        %2985 = vmatpush1.msra.mxu0 %v2840
        %2986 = vmatprep.subr.mxu0 0.0
        %2987 = vmatpush1.msra.mxu0 %v2841
        %2988 = vmatprep.subr.mxu0 0.0
        %2989 = vmatpush1.msra.mxu0 %v2842
        %2990 = vmatprep.subr.mxu0 0.0
        %2991 = vmatpush1.msra.mxu0 %v2843
        %2992 = vmatprep.subr.mxu0 0.0
        %2993 = vmatpush1.msra.mxu0 %v2844
        %2994 = vmatprep.subr.mxu0 0.0
        %2995 = vmatpush1.msra.mxu0 %v2845
        %2996 = vmatprep.subr.mxu0 0.0
        %2997 = vmatpush1.msra.mxu0 %v2846
        %2998 = vmatprep.subr.mxu0 0.0
        %2999 = vmatpush1.msra.mxu0 %v2847
        %3000 = vmatprep.subr.mxu0 0.0
        %3001 = vmatpush1.msra.mxu0 %v2848
        %3002 = vmatprep.subr.mxu0 0.0
        %3003 = vmatpush1.msra.mxu0 %v2849
        %3004 = vmatprep.subr.mxu0 0.0
        %3005 = vmatpush1.msra.mxu0 %v2850
        %3006 = vmatprep.subr.mxu0 0.0
        %3007 = vmatpush1.msra.mxu0 %v2851
        %3008 = vmatprep.subr.mxu0 0.0
        %3009 = vmatpush1.msra.mxu0 %v2852
        %3010 = vmatprep.subr.mxu0 0.0
        %3011 = vmatpush1.msra.mxu0 %v2853
        %3012 = vmatprep.subr.mxu0 0.0
        %3013 = vmatpush1.msra.mxu0 %v2854
        %3014 = vmatprep.subr.mxu0 0.0
        %3015 = vmatpush1.msra.mxu0 %v2855
        %3016 = vmatprep.subr.mxu0 0.0
        %3017 = vmatpush1.msra.mxu0 %v2856
        %3018 = vmatprep.subr.mxu0 0.0
        %3019 = vmatpush1.msra.mxu0 %v2857
        %3020 = vmatprep.subr.mxu0 0.0
        %3021 = vmatpush1.msra.mxu0 %v2858
        %3022 = vmatprep.subr.mxu0 0.0
        %3023 = vmatpush1.msra.mxu0 %v2859
        %3024 = vmatprep.subr.mxu0 0.0
        %3025 = vmatpush1.msra.mxu0 %v2860
        %3026 = vmatprep.subr.mxu0 0.0
        %3027 = vmatpush1.msra.mxu0 %v2861
        %3028 = vmatprep.subr.mxu0 0.0
        %3029 = vmatpush1.msra.mxu0 %v2862
        %3030 = vmatprep.mubr.f32.mxu0 %v2824
        %3031 = vmatmul.mubr.f32.gmra.mrb[0].mxu0 %v2823
        %v3032 = vpop.f32.mrb[0].mxu0
        %v3033 = vadd.f32 %v2964, %v3032
        %v3034 = vpop.f32.mrb[0].mxu0
        %3035 = vdwg.mxu0
        %3036 = vmatprep.subr.mxu0 0.0
        %3037 = vmatpush1.msra.mxu0 %v2863
        %3038 = vmatprep.subr.mxu0 0.0
        %3039 = vmatpush1.msra.mxu0 %v2864
        %3040 = vmatprep.subr.mxu0 0.0
        %3041 = vmatpush1.msra.mxu0 %v2865
        %3042 = vmatprep.subr.mxu0 0.0
        %3043 = vmatpush1.msra.mxu0 %v2866
        %3044 = vmatprep.subr.mxu0 0.0
        %3045 = vmatpush1.msra.mxu0 %v2867
        %3046 = vmatprep.subr.mxu0 0.0
        %3047 = vmatpush1.msra.mxu0 %v2868
        %3048 = vmatprep.subr.mxu0 0.0
        %3049 = vmatpush1.msra.mxu0 %v2869
        %3050 = vmatprep.subr.mxu0 0.0
        %3051 = vmatpush1.msra.mxu0 %v2870
        %3052 = vmatprep.subr.mxu0 0.0
        %3053 = vmatpush1.msra.mxu0 %v2871
        %3054 = vmatprep.subr.mxu0 0.0
        %3055 = vmatpush1.msra.mxu0 %v2872
        %3056 = vmatprep.subr.mxu0 0.0
        %3057 = vmatpush1.msra.mxu0 %v2873
        %3058 = vmatprep.subr.mxu0 0.0
        %3059 = vmatpush1.msra.mxu0 %v2874
        %3060 = vmatprep.subr.mxu0 0.0
        %3061 = vmatpush1.msra.mxu0 %v2875
        %3062 = vmatprep.subr.mxu0 0.0
        %3063 = vmatpush1.msra.mxu0 %v2876
        %3064 = vmatprep.subr.mxu0 0.0
        %3065 = vmatpush1.msra.mxu0 %v2877
        %3066 = vmatprep.subr.mxu0 0.0
        %3067 = vmatpush1.msra.mxu0 %v2878
        %3068 = vmatprep.subr.mxu0 0.0
        %3069 = vmatpush1.msra.mxu0 %v2879
        %3070 = vmatprep.subr.mxu0 0.0
        %3071 = vmatpush1.msra.mxu0 %v2880
        %3072 = vmatprep.subr.mxu0 0.0
        %3073 = vmatpush1.msra.mxu0 %v2881
        %3074 = vmatprep.subr.mxu0 0.0
        %3075 = vmatpush1.msra.mxu0 %v2882
        %3076 = vmatprep.subr.mxu0 0.0
        %3077 = vmatpush1.msra.mxu0 %v2883
        %3078 = vmatprep.subr.mxu0 0.0
        %3079 = vmatpush1.msra.mxu0 %v2884
        %3080 = vmatprep.subr.mxu0 0.0
        %3081 = vmatpush1.msra.mxu0 %v2885
        %3082 = vmatprep.subr.mxu0 0.0
        %3083 = vmatpush1.msra.mxu0 %v2886
        %3084 = vmatprep.subr.mxu0 0.0
        %3085 = vmatpush1.msra.mxu0 %v2887
        %3086 = vmatprep.subr.mxu0 0.0
        %3087 = vmatpush1.msra.mxu0 %v2888
        %3088 = vmatprep.subr.mxu0 0.0
        %3089 = vmatpush1.msra.mxu0 %v2889
        %3090 = vmatprep.subr.mxu0 0.0
        %3091 = vmatpush1.msra.mxu0 %v2890
        %3092 = vmatprep.subr.mxu0 0.0
        %3093 = vmatpush1.msra.mxu0 %v2891
        %3094 = vmatprep.subr.mxu0 0.0
        %3095 = vmatpush1.msra.mxu0 %v2892
        %3096 = vmatprep.subr.mxu0 0.0
        %3097 = vmatpush1.msra.mxu0 %v2893
        %3098 = vmatprep.subr.mxu0 0.0
        %3099 = vmatpush1.msra.mxu0 %v2894
        %3100 = vmatprep.mubr.f32.mxu0 %v2826
        %3101 = vmatmul.mubr.f32.gmra.mrb[0].mxu0 %v2825
        %v3102 = vpop.f32.mrb[0].mxu0
        %v3103 = vadd.f32 %v3033, %v3102
        %v3104 = vpop.f32.mrb[0].mxu0
        %3105 = vdwg.mxu0
        %3106 = vmatprep.subr.mxu0 0.0
        %3107 = vmatpush1.msra.mxu0 %v2895
        %3108 = vmatprep.subr.mxu0 0.0
        %3109 = vmatpush1.msra.mxu0 %v2896
        %3110 = vmatprep.subr.mxu0 0.0
        %3111 = vmatpush1.msra.mxu0 %v2897
        %3112 = vmatprep.subr.mxu0 0.0
        %3113 = vmatpush1.msra.mxu0 %v2898
        %3114 = vmatprep.subr.mxu0 0.0
        %3115 = vmatpush1.msra.mxu0 %v2899
        %3116 = vmatprep.subr.mxu0 0.0
        %3117 = vmatpush1.msra.mxu0 %v2900
        %3118 = vmatprep.subr.mxu0 0.0
        %3119 = vmatpush1.msra.mxu0 %v2901
        %3120 = vmatprep.subr.mxu0 0.0
        %3121 = vmatpush1.msra.mxu0 %v2902
        %3122 = vmatprep.subr.mxu0 0.0
        %3123 = vmatpush1.msra.mxu0 %v2903
        %3124 = vmatprep.subr.mxu0 0.0
        %3125 = vmatpush1.msra.mxu0 %v2904
        %3126 = vmatprep.subr.mxu0 0.0
        %3127 = vmatpush1.msra.mxu0 %v2905
        %3128 = vmatprep.subr.mxu0 0.0
        %3129 = vmatpush1.msra.mxu0 %v2906
        %3130 = vmatprep.subr.mxu0 0.0
        %3131 = vmatpush1.msra.mxu0 %v2907
        %3132 = vmatprep.subr.mxu0 0.0
        %3133 = vmatpush1.msra.mxu0 %v2908
        %3134 = vmatprep.subr.mxu0 0.0
        %3135 = vmatpush1.msra.mxu0 %v2909
        %3136 = vmatprep.subr.mxu0 0.0
        %3137 = vmatpush1.msra.mxu0 %v2910
        %3138 = vmatprep.subr.mxu0 0.0
        %3139 = vmatpush1.msra.mxu0 %v2911
        %3140 = vmatprep.subr.mxu0 0.0
        %3141 = vmatpush1.msra.mxu0 %v2912
        %3142 = vmatprep.subr.mxu0 0.0
        %3143 = vmatpush1.msra.mxu0 %v2913
        %3144 = vmatprep.subr.mxu0 0.0
        %3145 = vmatpush1.msra.mxu0 %v2914
        %3146 = vmatprep.subr.mxu0 0.0
        %3147 = vmatpush1.msra.mxu0 %v2915
        %3148 = vmatprep.subr.mxu0 0.0
        %3149 = vmatpush1.msra.mxu0 %v2916
        %3150 = vmatprep.subr.mxu0 0.0
        %3151 = vmatpush1.msra.mxu0 %v2917
        %3152 = vmatprep.subr.mxu0 0.0
        %3153 = vmatpush1.msra.mxu0 %v2918
        %3154 = vmatprep.subr.mxu0 0.0
        %3155 = vmatpush1.msra.mxu0 %v2919
        %3156 = vmatprep.subr.mxu0 0.0
        %3157 = vmatpush1.msra.mxu0 %v2920
        %3158 = vmatprep.subr.mxu0 0.0
        %3159 = vmatpush1.msra.mxu0 %v2921
        %3160 = vmatprep.subr.mxu0 0.0
        %3161 = vmatpush1.msra.mxu0 %v2922
        %3162 = vmatprep.subr.mxu0 0.0
        %3163 = vmatpush1.msra.mxu0 %v2923
        %3164 = vmatprep.subr.mxu0 0.0
        %3165 = vmatpush1.msra.mxu0 %v2924
        %3166 = vmatprep.subr.mxu0 0.0
        %3167 = vmatpush1.msra.mxu0 %v2925
        %3168 = vmatprep.subr.mxu0 0.0
        %3169 = vmatpush1.msra.mxu0 %v2926
        %3170 = vmatprep.mubr.f32.mxu0 %v2828
        %3171 = vmatmul.mubr.f32.gmra.mrb[0].mxu0 %v2827
        %v3172 = vpop.f32.mrb[0].mxu0
        %v3173 = vadd.f32 %v3103, %v3172
        %v3174 = vpop.f32.mrb[0].mxu0
        %3175 = vdwg.mxu0
        %3176 = vmatprep.subr.mxu0 0.0
        %3177 = vmatpush1.msra.mxu0 %v2927
        %3178 = vmatprep.subr.mxu0 0.0
        %3179 = vmatpush1.msra.mxu0 %v2928
        %3180 = vmatprep.subr.mxu0 0.0
        %3181 = vmatpush1.msra.mxu0 %v2929
        %3182 = vmatprep.subr.mxu0 0.0
        %3183 = vmatpush1.msra.mxu0 %v2930
        %3184 = vmatprep.subr.mxu0 0.0
        %3185 = vmatpush1.msra.mxu0 %v2931
        %3186 = vmatprep.subr.mxu0 0.0
        %3187 = vmatpush1.msra.mxu0 %v2932
        %3188 = vmatprep.subr.mxu0 0.0
        %3189 = vmatpush1.msra.mxu0 %v2933
        %3190 = vmatprep.subr.mxu0 0.0
        %3191 = vmatpush1.msra.mxu0 %v2934
        %3192 = vmatprep.subr.mxu0 0.0
        %3193 = vmatpush1.msra.mxu0 %v2935
        %3194 = vmatprep.subr.mxu0 0.0
        %3195 = vmatpush1.msra.mxu0 %v2936
        %3196 = vmatprep.subr.mxu0 0.0
        %3197 = vmatpush1.msra.mxu0 %v2937
        %3198 = vmatprep.subr.mxu0 0.0
        %3199 = vmatpush1.msra.mxu0 %v2938
        %3200 = vmatprep.subr.mxu0 0.0
        %3201 = vmatpush1.msra.mxu0 %v2939
        %3202 = vmatprep.subr.mxu0 0.0
        %3203 = vmatpush1.msra.mxu0 %v2940
        %3204 = vmatprep.subr.mxu0 0.0
        %3205 = vmatpush1.msra.mxu0 %v2941
        %3206 = vmatprep.subr.mxu0 0.0
        %3207 = vmatpush1.msra.mxu0 %v2942
        %3208 = vmatprep.subr.mxu0 0.0
        %3209 = vmatpush1.msra.mxu0 %v2943
        %3210 = vmatprep.subr.mxu0 0.0
        %3211 = vmatpush1.msra.mxu0 %v2944
        %3212 = vmatprep.subr.mxu0 0.0
        %3213 = vmatpush1.msra.mxu0 %v2945
        %3214 = vmatprep.subr.mxu0 0.0
        %3215 = vmatpush1.msra.mxu0 %v2946
        %3216 = vmatprep.subr.mxu0 0.0
        %3217 = vmatpush1.msra.mxu0 %v2947
        %3218 = vmatprep.subr.mxu0 0.0
        %3219 = vmatpush1.msra.mxu0 %v2948
        %3220 = vmatprep.subr.mxu0 0.0
        %3221 = vmatpush1.msra.mxu0 %v2949
        %3222 = vmatprep.subr.mxu0 0.0
        %3223 = vmatpush1.msra.mxu0 %v2950
        %3224 = vmatprep.subr.mxu0 0.0
        %3225 = vmatpush1.msra.mxu0 %v2951
        %3226 = vmatprep.subr.mxu0 0.0
        %3227 = vmatpush1.msra.mxu0 %v2952
        %3228 = vmatprep.subr.mxu0 0.0
        %3229 = vmatpush1.msra.mxu0 %v2953
        %3230 = vmatprep.subr.mxu0 0.0
        %3231 = vmatpush1.msra.mxu0 %v2954
        %3232 = vmatprep.subr.mxu0 0.0
        %3233 = vmatpush1.msra.mxu0 %v2955
        %3234 = vmatprep.subr.mxu0 0.0
        %3235 = vmatpush1.msra.mxu0 %v2956
        %3236 = vmatprep.subr.mxu0 0.0
        %3237 = vmatpush1.msra.mxu0 %v2957
        %3238 = vmatprep.subr.mxu0 0.0
        %3239 = vmatpush1.msra.mxu0 %v2958
        %3240 = vmatprep.mubr.f32.mxu0 %v2830
        %3241 = vmatmul.mubr.f32.gmra.mrb[0].mxu0 %v2829
        %v3242 = vpop.f32.mrb[0].mxu0
        %v3243 = vadd.f32 %v3173, %v3242
        %v3244 = vpop.f32.mrb[0].mxu0
        %3245 = vdwg.mxu0
        %v3246 = vadd.f32 %v2304, %v3243
        %v3247 = vld [vmem:[%s13] sm:$0x1]
        %v3248 = vld [vmem:[%s14] sm:$0x1]
        %3249 = vadd.xlane.f32.xlu0 %v3246
        %v3250 = vpop.xlane.xlu0 %3249
        %v3251 = vmul.f32 %v3250, %v2281
        %v3252 = vsub.f32 %v3246, %v3251
        %v3253 = vmul.f32 %v3252, %v3252
        %3254 = vadd.xlane.f32.xlu0 %v3253
        %v3255 = vpop.xlane.xlu0 %3254
        %v3256 = vmul.f32 %v3255, %v2281
        %v3257 = vadd.f32 %v3256, 1e-06
        %v3258 = vrsqrt.pop %v3257
        %v3259 = vmul.f32 %v3252, %v3258
        %v3261 = vlaneseq
        %v3262 = vshrl.u32 %v3261, 7
        %v3263 = vsub.s32 0, %v3262
        %v3264 = vrot.slane %v3247, %v3263
        %v3266 = vmul.f32 %v3259, %v3264
        %v3268 = vlaneseq
        %v3269 = vshrl.u32 %v3268, 7
        %v3270 = vsub.s32 0, %v3269
        %v3271 = vrot.slane %v3248, %v3270
        %v3273 = vadd.f32 %v3266, %v3271
        %3274 = vst [vmem:[%s773] sm:$0xff] %v3273
        %s3275 = sand.u32 %s422, 1
        %s3276 = scalar_lea.sflag [#allocation4], %s3275
        %s3277 = sand.u32 %s422, 1
        %s3278 = smul.addr %s3277, 8
        %s3279 = scalar_lea.vmem [#allocation16], %s3278
        // Predicated region
        $region113: #{tpu_custom_call.1} parent=79 // pred_check
          %p3280 = pneg %p432
        $region114: #{tpu_custom_call.1} parent=79 // pred_check_branch
          %3282 = sbr.rel (%p3280) target = $region116
        $region115: #{tpu_custom_call.1} parent=79 // pred_region
          %s3284 = ssub.s32 128, 128
          %3285 = vsyncadd %s3276, %s3284
          %s3286 = smul.addr %s46, 2
          %s3287 = sadd.s32 %s47, %s3286
          %s3288 = smul.addr %s3287, 128
          %s3289 = scalar_lea.hbm %s15, %s3288
          %s3291 = sshll.u32 %s3279, 4
          %s3292 = int_to_ptr.vmem [resolvable:$true] %s3291
          %3294 = dma.vmem_to_hbm [thread:$0]  %s3292, 128, %s3289, %s3276
        $region116: #{tpu_custom_call.1} parent=79 // pred_fallthru
          _
      $region80: #{tpu_custom_call.1} parent=5 // pred_fallthru
        _
      %p3295 = scmp.le.s32.totalorder 2, %s37
      // Predicated region
      $region117: #{tpu_custom_call.1} parent=5 // pred_check
        %p3296 = pneg %p3295
      $region118: #{tpu_custom_call.1} parent=5 // pred_check_branch
        %3298 = sbr.rel (%p3296) target = $region120
      $region119: #{tpu_custom_call.1} parent=5 // pred_region
        %s3299 = ssub.s32 %s37, 2
        // Predicated region
        $region121: #{tpu_custom_call.1} parent=119 // pred_check
          %p3300 = pneg %p438
        $region122: #{tpu_custom_call.1} parent=119 // pred_check_branch
          %3302 = sbr.rel (%p3300) target = $region124
        $region123: #{tpu_custom_call.1} parent=119 // pred_region
          %s3303 = sand.u32 %s423, 1
          %s3304 = scalar_lea.sflag [#allocation4], %s3303
          %s3305 = sand.u32 %s423, 1
          %s3306 = smul.addr %s3305, 8
          %s3307 = scalar_lea.vmem [#allocation16], %s3306
          %3308 = dma.done %s3304, 128
        $region124: #{tpu_custom_call.1} parent=119 // pred_fallthru
          _
      $region120: #{tpu_custom_call.1} parent=5 // pred_fallthru
        _
    $region6: #{tpu_custom_call.1} parent=1 // loop_footer
      %s41 = sadd.s32 1, %s37
    $region7: #{tpu_custom_call.1} parent=1 // loop_footer_branch
      %36 = sbr.rel target = $region3
    $region8: #{tpu_custom_call.1} parent=1 // loop_exit
      _
    %3309 = vsyncpa [#allocation3], 1
    %s3310 = scalar_lea.sflag [#allocation3], 1
    %3311 = vsyncpa %s3310, 1
    %3312 = vsyncpa [#allocation6], 1
    %s3313 = scalar_lea.sflag [#allocation6], 1
    %3314 = vsyncpa %s3313, 1
    %3315 = vsyncpa [#allocation9], 1
    %s3316 = scalar_lea.sflag [#allocation9], 1
    %3317 = vsyncpa %s3316, 1
    %3318 = vsyncpa [#allocation12], 1
    %s3319 = scalar_lea.sflag [#allocation12], 1
    %3320 = vsyncpa %s3319, 1
    %3321 = vsyncpa [#allocation15], 1
    %3322 = vsyncpa [#allocation4], 1
    %s3323 = scalar_lea.sflag [#allocation4], 1
    %3324 = vsyncpa %s3323, 1

// kernel: tpu_custom_call.1
$region0: #{tpu_custom_call.1}
  #allocation0 [shape = 'u32[]', space=smem, size = 0x4, offset = 0x4, fixed_abs, tag = 'smem constant byte address 0x4 - core index']
  #allocation1 [shape = 'u32[144,128]{1,0:T(1,128)}', space=vmem, size = 0x12000, scoped, tag = 'internal scratch']
  %s0 = inlined_call_operand.hbm [shape: f32[2,16,128], index: 0, kind: input, shape index: {}]
  %s1 = inlined_call_operand.vmem [shape: f32[2,1,16], index: 1, kind: input, shape index: {}]
  %s2 = inlined_call_operand.hbm [shape: f32[2,16,16,128], index: 2, kind: input, shape index: {}]
  %s3 = inlined_call_operand.hbm [shape: f32[2,4,16,32], index: 3, kind: input, shape index: {}]
  %s4 = inlined_call_operand.hbm [shape: f32[2,16,4,128], index: 4, kind: input, shape index: {}]
  %s5 = inlined_call_operand.hbm [shape: f32[2,4,16,32], index: 5, kind: input, shape index: {}]
  %s6 = inlined_call_operand.hbm [shape: f32[2,4,16,32], index: 6, kind: input, shape index: {}]
  %s7 = inlined_call_operand.vmem [shape: f32[1,128], index: 7, kind: input, shape index: {}]
  %s8 = inlined_call_operand.vmem [shape: f32[1,128], index: 8, kind: input, shape index: {}]
  %s9 = inlined_call_operand.hbm [shape: f32[128,1024], index: 9, kind: input, shape index: {}]
  %s10 = inlined_call_operand.vmem [shape: f32[1,1024], index: 10, kind: input, shape index: {}]
  %s11 = inlined_call_operand.hbm [shape: f32[1024,128], index: 11, kind: input, shape index: {}]
  %s12 = inlined_call_operand.vmem [shape: f32[1,128], index: 12, kind: input, shape index: {}]
  %s13 = inlined_call_operand.vmem [shape: f32[1,128], index: 13, kind: input, shape index: {}]
  %s14 = inlined_call_operand.vmem [shape: f32[1,128], index: 14, kind: input, shape index: {}]
  %s15 = inlined_call_operand.hbm [shape: f32[2,16,128], index: 15, kind: output, shape index: {}]
  %s16 = sld [smem:[#allocation0]]
  $region125: #{tpu_custom_call.1} parent=0
    _
  %s18 = ssub.s32 1, %s16
  %s19 = scalar_select 0, %s18, %s16
  $region1: #{tpu_custom_call.1} parent=0
    #allocation2 [shape = 'u8[8192]{0}', space=vmem, size = 0x2000, scoped, tag = 'input window, operand 0']
    #allocation3 [shape = 's32[2]{0}', space=sflag, size = 0x8, scoped, tag = 'scoped memory for tpu_custom_call.1']
    #allocation4 [shape = 's32[2]{0}', space=sflag, size = 0x8, scoped, tag = 'scoped memory for tpu_custom_call.1']
    #allocation5 [shape = 'u8[131072]{0}', space=vmem, size = 0x20000, scoped, tag = 'input window, operand 2']
    #allocation6 [shape = 's32[2]{0}', space=sflag, size = 0x8, scoped, tag = 'scoped memory for tpu_custom_call.1']
    #allocation7 [shape = 'u8[32768]{0}', space=vmem, size = 0x8000, scoped, tag = 'input window, operand 3']
    #allocation8 [shape = 'u8[32768]{0}', space=vmem, size = 0x8000, scoped, tag = 'input window, operand 4']
    #allocation9 [shape = 's32[2]{0}', space=sflag, size = 0x8, scoped, tag = 'scoped memory for tpu_custom_call.1']
    #allocation10 [shape = 'u8[65536]{0}', space=vmem, size = 0x10000, scoped, tag = 'input window, operand 5']
    #allocation11 [shape = 'u8[65536]{0}', space=vmem, size = 0x10000, scoped, tag = 'input window, operand 6']
    #allocation12 [shape = 's32[2]{0}', space=sflag, size = 0x8, scoped, tag = 'scoped memory for tpu_custom_call.1']
    #allocation13 [shape = 'u8[524288]{0}', space=vmem, size = 0x80000, scoped, tag = 'input window, operand 9, single buffered']
    #allocation14 [shape = 'u8[524288]{0}', space=vmem, size = 0x80000, scoped, tag = 'input window, operand 11, single buffered']
    #allocation15 [shape = 's32[1]{0}', space=sflag, size = 0x4, scoped, tag = 'scoped memory for tpu_custom_call.1']
    #allocation16 [shape = 'u8[8192]{0}', space=vmem, size = 0x2000, scoped, tag = 'output window, operand 0']
    %20 = vsyncpa [#allocation3], 0
    %s21 = scalar_lea.sflag [#allocation3], 1
    %22 = vsyncpa %s21, 0
    %23 = vsyncpa [#allocation6], 0
    %s24 = scalar_lea.sflag [#allocation6], 1
    %25 = vsyncpa %s24, 0
    %26 = vsyncpa [#allocation9], 0
    %s27 = scalar_lea.sflag [#allocation9], 1
    %28 = vsyncpa %s27, 0
    %29 = vsyncpa [#allocation12], 0
    %s30 = scalar_lea.sflag [#allocation12], 1
    %31 = vsyncpa %s30, 0
    %32 = vsyncpa [#allocation15], 0
    %33 = vsyncpa [#allocation4], 0
    %s34 = scalar_lea.sflag [#allocation4], 1
    %35 = vsyncpa %s34, 0
    loop: start=0, step=1, limit=6
    $region2: #{tpu_custom_call.1} parent=1 // loop_pre_header
      _
    $region3: #{tpu_custom_call.1} parent=1 // loop_header
      %s37 = sphi 0, %s41
      %p38 = scmp.ge.s32.totalorder %s37, 6
      %s44 = sphi 0, %s56
      %s45 = sphi 0, %s52
      %s46 = sphi 0, %s44
      %s47 = sphi 0, %s45
      %s48 = sphi 0, %s46
      %s49 = sphi 0, %s47
      %s61 = sphi 0, %s63
      %s64 = sphi 0, %s61
      %s65 = sphi 0, %s64
      %s81 = sphi 0, %s65
      %s87 = sphi 0, %s89
      %s90 = sphi 0, %s87
      %s91 = sphi 0, %s90
      %s107 = sphi 0, %s91
      %s115 = sphi 0, %s117
      %s118 = sphi 0, %s115
      %s119 = sphi 0, %s118
      %s135 = sphi 0, %s119
      %s143 = sphi 0, %s145
      %s146 = sphi 0, %s143
      %s147 = sphi 0, %s146
      %s163 = sphi 0, %s147
      %s171 = sphi 0, %s173
      %s174 = sphi 0, %s171
      %s175 = sphi 0, %s174
      %s191 = sphi 0, %s175
      %s197 = sphi 0, %s199
      %s200 = sphi 0, %s197
      %s201 = sphi 0, %s200
      %s217 = sphi 0, %s201
      %s223 = sphi 0, %s225
      %s226 = sphi 0, %s223
      %s227 = sphi 0, %s226
      %s243 = sphi 0, %s227
      %s247 = sphi 0, %s247
      %s249 = sphi 0, %s247
      %s250 = sphi 0, %s249
      %s264 = sphi 0, %s250
      %s268 = sphi 0, %s268
      %s270 = sphi 0, %s268
      %s271 = sphi 0, %s270
      %s285 = sphi 0, %s271
      %s289 = sphi 0, %s289
      %s291 = sphi 0, %s289
      %s292 = sphi 0, %s291
      %s306 = sphi 0, %s292
      %s310 = sphi 0, %s310
      %s312 = sphi 0, %s310
      %s313 = sphi 0, %s312
      %s327 = sphi 0, %s313
      %s331 = sphi 0, %s331
      %s333 = sphi 0, %s331
      %s334 = sphi 0, %s333
      %s348 = sphi 0, %s334
      %s352 = sphi 0, %s352
      %s354 = sphi 0, %s352
      %s355 = sphi 0, %s354
      %s369 = sphi 0, %s355
      %s373 = sphi 0, %s373
      %s375 = sphi 0, %s373
      %s376 = sphi 0, %s375
      %s390 = sphi 0, %s376
      %s394 = sphi 0, %s394
      %s396 = sphi 0, %s394
      %s397 = sphi 0, %s396
      %s411 = sphi 0, %s397
      %s419 = sphi 0, %s421
      %s422 = sphi 0, %s419
      %s423 = sphi 0, %s422
      %s439 = sphi 0, %s423
    $region4: #{tpu_custom_call.1} parent=1 // loop_header_branch
      %40 = sbr.rel (%p38) target = $region8
    $region5: #{tpu_custom_call.1} parent=1 // loop_body
      %s42 = ssub.s32 %s37, 1
      %s43 = ssub.s32 %s37, 2
      %s50 = sadd.s32 1, %s45
      %p51 = scmp.ge.s32.totalorder %s50, 2
      %s52 = scalar_select %p51, 0, %s50
      %s53 = sadd.s32 1, %s44
      %s54 = scalar_select %p51, %s53, %s44
      %p55 = scmp.ge.s32.totalorder %s54, 2
      %s56 = scalar_select %p55, 0, %s54
      %s57 = ssub.s32 %s44, %s56
      %s58 = ssub.s32 %s45, %s52
      %s59 = sor.u32 %s57, %s58
      %p60 = scmp.eq.s32.totalorder %s59, 0
      %s62 = sadd.s32 %s61, 1
      %s63 = scalar_select %p60, %s61, %s62
      %p66 = pneg %p60
      %p67 = scmp.eq.s32.totalorder %s37, 3
      %p68 = por %p66, %p67
      %p69 = scmp.ne.s32.totalorder %s61, %s64
      %p70 = scmp.eq.s32.totalorder %s37, 0
      %p71 = por %p69, %p70
      %p72 = scmp.ne.s32.totalorder %s61, %s64
      %p73 = scmp.eq.s32.totalorder %s42, 3
      %p74 = por %p72, %p73
      %p75 = scmp.ne.s32.totalorder %s64, %s65
      %p76 = scmp.eq.s32.totalorder %s42, 0
      %p77 = por %p75, %p76
      %p78 = scmp.ne.s32.totalorder %s64, %s65
      %p79 = scmp.eq.s32.totalorder %s43, 3
      %p80 = por %p78, %p79
      %p82 = scmp.ne.s32.totalorder %s65, %s81
      %p83 = scmp.eq.s32.totalorder %s43, 0
      %p84 = por %p82, %p83
      %s85 = ssub.s32 %s44, %s56
      %p86 = scmp.eq.s32.totalorder %s85, 0
      %s88 = sadd.s32 %s87, 1
      %s89 = scalar_select %p86, %s87, %s88
      %p92 = pneg %p86
      %p93 = scmp.eq.s32.totalorder %s37, 3
      %p94 = por %p92, %p93
      %p95 = scmp.ne.s32.totalorder %s87, %s90
      %p96 = scmp.eq.s32.totalorder %s37, 0
      %p97 = por %p95, %p96
      %p98 = scmp.ne.s32.totalorder %s87, %s90
      %p99 = scmp.eq.s32.totalorder %s42, 3
      %p100 = por %p98, %p99
      %p101 = scmp.ne.s32.totalorder %s90, %s91
      %p102 = scmp.eq.s32.totalorder %s42, 0
      %p103 = por %p101, %p102
      %p104 = scmp.ne.s32.totalorder %s90, %s91
      %p105 = scmp.eq.s32.totalorder %s43, 3
      %p106 = por %p104, %p105
      %p108 = scmp.ne.s32.totalorder %s91, %s107
      %p109 = scmp.eq.s32.totalorder %s43, 0
      %p110 = por %p108, %p109
      %s111 = ssub.s32 %s44, %s56
      %s112 = ssub.s32 %s45, %s52
      %s113 = sor.u32 %s111, %s112
      %p114 = scmp.eq.s32.totalorder %s113, 0
      %s116 = sadd.s32 %s115, 1
      %s117 = scalar_select %p114, %s115, %s116
      %p120 = pneg %p114
      %p121 = scmp.eq.s32.totalorder %s37, 3
      %p122 = por %p120, %p121
      %p123 = scmp.ne.s32.totalorder %s115, %s118
      %p124 = scmp.eq.s32.totalorder %s37, 0
      %p125 = por %p123, %p124
      %p126 = scmp.ne.s32.totalorder %s115, %s118
      %p127 = scmp.eq.s32.totalorder %s42, 3
      %p128 = por %p126, %p127
      %p129 = scmp.ne.s32.totalorder %s118, %s119
      %p130 = scmp.eq.s32.totalorder %s42, 0
      %p131 = por %p129, %p130
      %p132 = scmp.ne.s32.totalorder %s118, %s119
      %p133 = scmp.eq.s32.totalorder %s43, 3
      %p134 = por %p132, %p133
      %p136 = scmp.ne.s32.totalorder %s119, %s135
      %p137 = scmp.eq.s32.totalorder %s43, 0
      %p138 = por %p136, %p137
      %s139 = ssub.s32 %s44, %s56
      %s140 = ssub.s32 %s45, %s52
      %s141 = sor.u32 %s139, %s140
      %p142 = scmp.eq.s32.totalorder %s141, 0
      %s144 = sadd.s32 %s143, 1
      %s145 = scalar_select %p142, %s143, %s144
      %p148 = pneg %p142
      %p149 = scmp.eq.s32.totalorder %s37, 3
      %p150 = por %p148, %p149
      %p151 = scmp.ne.s32.totalorder %s143, %s146
      %p152 = scmp.eq.s32.totalorder %s37, 0
      %p153 = por %p151, %p152
      %p154 = scmp.ne.s32.totalorder %s143, %s146
      %p155 = scmp.eq.s32.totalorder %s42, 3
      %p156 = por %p154, %p155
      %p157 = scmp.ne.s32.totalorder %s146, %s147
      %p158 = scmp.eq.s32.totalorder %s42, 0
      %p159 = por %p157, %p158
      %p160 = scmp.ne.s32.totalorder %s146, %s147
      %p161 = scmp.eq.s32.totalorder %s43, 3
      %p162 = por %p160, %p161
      %p164 = scmp.ne.s32.totalorder %s147, %s163
      %p165 = scmp.eq.s32.totalorder %s43, 0
      %p166 = por %p164, %p165
      %s167 = ssub.s32 %s44, %s56
      %s168 = ssub.s32 %s45, %s52
      %s169 = sor.u32 %s167, %s168
      %p170 = scmp.eq.s32.totalorder %s169, 0
      %s172 = sadd.s32 %s171, 1
      %s173 = scalar_select %p170, %s171, %s172
      %p176 = pneg %p170
      %p177 = scmp.eq.s32.totalorder %s37, 3
      %p178 = por %p176, %p177
      %p179 = scmp.ne.s32.totalorder %s171, %s174
      %p180 = scmp.eq.s32.totalorder %s37, 0
      %p181 = por %p179, %p180
      %p182 = scmp.ne.s32.totalorder %s171, %s174
      %p183 = scmp.eq.s32.totalorder %s42, 3
      %p184 = por %p182, %p183
      %p185 = scmp.ne.s32.totalorder %s174, %s175
      %p186 = scmp.eq.s32.totalorder %s42, 0
      %p187 = por %p185, %p186
      %p188 = scmp.ne.s32.totalorder %s174, %s175
      %p189 = scmp.eq.s32.totalorder %s43, 3
      %p190 = por %p188, %p189
      %p192 = scmp.ne.s32.totalorder %s175, %s191
      %p193 = scmp.eq.s32.totalorder %s43, 0
      %p194 = por %p192, %p193
      %s195 = ssub.s32 %s44, %s56
      %p196 = scmp.eq.s32.totalorder %s195, 0
      %s198 = sadd.s32 %s197, 1
      %s199 = scalar_select %p196, %s197, %s198
      %p202 = pneg %p196
      %p203 = scmp.eq.s32.totalorder %s37, 3
      %p204 = por %p202, %p203
      %p205 = scmp.ne.s32.totalorder %s197, %s200
      %p206 = scmp.eq.s32.totalorder %s37, 0
      %p207 = por %p205, %p206
      %p208 = scmp.ne.s32.totalorder %s197, %s200
      %p209 = scmp.eq.s32.totalorder %s42, 3
      %p210 = por %p208, %p209
      %p211 = scmp.ne.s32.totalorder %s200, %s201
      %p212 = scmp.eq.s32.totalorder %s42, 0
      %p213 = por %p211, %p212
      %p214 = scmp.ne.s32.totalorder %s200, %s201
      %p215 = scmp.eq.s32.totalorder %s43, 3
      %p216 = por %p214, %p215
      %p218 = scmp.ne.s32.totalorder %s201, %s217
      %p219 = scmp.eq.s32.totalorder %s43, 0
      %p220 = por %p218, %p219
      %s221 = ssub.s32 %s44, %s56
      %p222 = scmp.eq.s32.totalorder %s221, 0
      %s224 = sadd.s32 %s223, 1
      %s225 = scalar_select %p222, %s223, %s224
      %p228 = pneg %p222
      %p229 = scmp.eq.s32.totalorder %s37, 3
      %p230 = por %p228, %p229
      %p231 = scmp.ne.s32.totalorder %s223, %s226
      %p232 = scmp.eq.s32.totalorder %s37, 0
      %p233 = por %p231, %p232
      %p234 = scmp.ne.s32.totalorder %s223, %s226
      %p235 = scmp.eq.s32.totalorder %s42, 3
      %p236 = por %p234, %p235
      %p237 = scmp.ne.s32.totalorder %s226, %s227
      %p238 = scmp.eq.s32.totalorder %s42, 0
      %p239 = por %p237, %p238
      %p240 = scmp.ne.s32.totalorder %s226, %s227
      %p241 = scmp.eq.s32.totalorder %s43, 3
      %p242 = por %p240, %p241
      %p244 = scmp.ne.s32.totalorder %s227, %s243
      %p245 = scmp.eq.s32.totalorder %s43, 0
      %p246 = por %p244, %p245
      %s248 = sadd.s32 %s247, 1
      %p251 = scmp.eq.s32.totalorder %s37, 3
      %p252 = scmp.ne.s32.totalorder %s247, %s249
      %p253 = scmp.eq.s32.totalorder %s37, 0
      %p254 = por %p252, %p253
      %p255 = scmp.ne.s32.totalorder %s247, %s249
      %p256 = scmp.eq.s32.totalorder %s42, 3
      %p257 = por %p255, %p256
      %p258 = scmp.ne.s32.totalorder %s249, %s250
      %p259 = scmp.eq.s32.totalorder %s42, 0
      %p260 = por %p258, %p259
      %p261 = scmp.ne.s32.totalorder %s249, %s250
      %p262 = scmp.eq.s32.totalorder %s43, 3
      %p263 = por %p261, %p262
      %p265 = scmp.ne.s32.totalorder %s250, %s264
      %p266 = scmp.eq.s32.totalorder %s43, 0
      %p267 = por %p265, %p266
      %s269 = sadd.s32 %s268, 1
      %p272 = scmp.eq.s32.totalorder %s37, 3
      %p273 = scmp.ne.s32.totalorder %s268, %s270
      %p274 = scmp.eq.s32.totalorder %s37, 0
      %p275 = por %p273, %p274
      %p276 = scmp.ne.s32.totalorder %s268, %s270
      %p277 = scmp.eq.s32.totalorder %s42, 3
      %p278 = por %p276, %p277
      %p279 = scmp.ne.s32.totalorder %s270, %s271
      %p280 = scmp.eq.s32.totalorder %s42, 0
      %p281 = por %p279, %p280
      %p282 = scmp.ne.s32.totalorder %s270, %s271
      %p283 = scmp.eq.s32.totalorder %s43, 3
      %p284 = por %p282, %p283
      %p286 = scmp.ne.s32.totalorder %s271, %s285
      %p287 = scmp.eq.s32.totalorder %s43, 0
      %p288 = por %p286, %p287
      %s290 = sadd.s32 %s289, 1
      %p293 = scmp.eq.s32.totalorder %s37, 3
      %p294 = scmp.ne.s32.totalorder %s289, %s291
      %p295 = scmp.eq.s32.totalorder %s37, 0
      %p296 = por %p294, %p295
      %p297 = scmp.ne.s32.totalorder %s289, %s291
      %p298 = scmp.eq.s32.totalorder %s42, 3
      %p299 = por %p297, %p298
      %p300 = scmp.ne.s32.totalorder %s291, %s292
      %p301 = scmp.eq.s32.totalorder %s42, 0
      %p302 = por %p300, %p301
      %p303 = scmp.ne.s32.totalorder %s291, %s292
      %p304 = scmp.eq.s32.totalorder %s43, 3
      %p305 = por %p303, %p304
      %p307 = scmp.ne.s32.totalorder %s292, %s306
      %p308 = scmp.eq.s32.totalorder %s43, 0
      %p309 = por %p307, %p308
      %s311 = sadd.s32 %s310, 1
      %p314 = scmp.eq.s32.totalorder %s37, 3
      %p315 = scmp.ne.s32.totalorder %s310, %s312
      %p316 = scmp.eq.s32.totalorder %s37, 0
      %p317 = por %p315, %p316
      %p318 = scmp.ne.s32.totalorder %s310, %s312
      %p319 = scmp.eq.s32.totalorder %s42, 3
      %p320 = por %p318, %p319
      %p321 = scmp.ne.s32.totalorder %s312, %s313
      %p322 = scmp.eq.s32.totalorder %s42, 0
      %p323 = por %p321, %p322
      %p324 = scmp.ne.s32.totalorder %s312, %s313
      %p325 = scmp.eq.s32.totalorder %s43, 3
      %p326 = por %p324, %p325
      %p328 = scmp.ne.s32.totalorder %s313, %s327
      %p329 = scmp.eq.s32.totalorder %s43, 0
      %p330 = por %p328, %p329
      %s332 = sadd.s32 %s331, 1
      %p335 = scmp.eq.s32.totalorder %s37, 3
      %p336 = scmp.ne.s32.totalorder %s331, %s333
      %p337 = scmp.eq.s32.totalorder %s37, 0
      %p338 = por %p336, %p337
      %p339 = scmp.ne.s32.totalorder %s331, %s333
      %p340 = scmp.eq.s32.totalorder %s42, 3
      %p341 = por %p339, %p340
      %p342 = scmp.ne.s32.totalorder %s333, %s334
      %p343 = scmp.eq.s32.totalorder %s42, 0
      %p344 = por %p342, %p343
      %p345 = scmp.ne.s32.totalorder %s333, %s334
      %p346 = scmp.eq.s32.totalorder %s43, 3
      %p347 = por %p345, %p346
      %p349 = scmp.ne.s32.totalorder %s334, %s348
      %p350 = scmp.eq.s32.totalorder %s43, 0
      %p351 = por %p349, %p350
      %s353 = sadd.s32 %s352, 1
      %p356 = scmp.eq.s32.totalorder %s37, 3
      %p357 = scmp.ne.s32.totalorder %s352, %s354
      %p358 = scmp.eq.s32.totalorder %s37, 0
      %p359 = por %p357, %p358
      %p360 = scmp.ne.s32.totalorder %s352, %s354
      %p361 = scmp.eq.s32.totalorder %s42, 3
      %p362 = por %p360, %p361
      %p363 = scmp.ne.s32.totalorder %s354, %s355
      %p364 = scmp.eq.s32.totalorder %s42, 0
      %p365 = por %p363, %p364
      %p366 = scmp.ne.s32.totalorder %s354, %s355
      %p367 = scmp.eq.s32.totalorder %s43, 3
      %p368 = por %p366, %p367
      %p370 = scmp.ne.s32.totalorder %s355, %s369
      %p371 = scmp.eq.s32.totalorder %s43, 0
      %p372 = por %p370, %p371
      %s374 = sadd.s32 %s373, 1
      %p377 = scmp.eq.s32.totalorder %s37, 3
      %p378 = scmp.ne.s32.totalorder %s373, %s375
      %p379 = scmp.eq.s32.totalorder %s37, 0
      %p380 = por %p378, %p379
      %p381 = scmp.ne.s32.totalorder %s373, %s375
      %p382 = scmp.eq.s32.totalorder %s42, 3
      %p383 = por %p381, %p382
      %p384 = scmp.ne.s32.totalorder %s375, %s376
      %p385 = scmp.eq.s32.totalorder %s42, 0
      %p386 = por %p384, %p385
      %p387 = scmp.ne.s32.totalorder %s375, %s376
      %p388 = scmp.eq.s32.totalorder %s43, 3
      %p389 = por %p387, %p388
      %p391 = scmp.ne.s32.totalorder %s376, %s390
      %p392 = scmp.eq.s32.totalorder %s43, 0
      %p393 = por %p391, %p392
      %s395 = sadd.s32 %s394, 1
      %p398 = scmp.eq.s32.totalorder %s37, 3
      %p399 = scmp.ne.s32.totalorder %s394, %s396
      %p400 = scmp.eq.s32.totalorder %s37, 0
      %p401 = por %p399, %p400
      %p402 = scmp.ne.s32.totalorder %s394, %s396
      %p403 = scmp.eq.s32.totalorder %s42, 3
      %p404 = por %p402, %p403
      %p405 = scmp.ne.s32.totalorder %s396, %s397
      %p406 = scmp.eq.s32.totalorder %s42, 0
      %p407 = por %p405, %p406
      %p408 = scmp.ne.s32.totalorder %s396, %s397
      %p409 = scmp.eq.s32.totalorder %s43, 3
      %p410 = por %p408, %p409
      %p412 = scmp.ne.s32.totalorder %s397, %s411
      %p413 = scmp.eq.s32.totalorder %s43, 0
      %p414 = por %p412, %p413
      %s415 = ssub.s32 %s44, %s56
      %s416 = ssub.s32 %s45, %s52
      %s417 = sor.u32 %s415, %s416
      %p418 = scmp.eq.s32.totalorder %s417, 0
      %s420 = sadd.s32 %s419, 1
      %s421 = scalar_select %p418, %s419, %s420
      %p424 = pneg %p418
      %p425 = scmp.eq.s32.totalorder %s37, 3
      %p426 = por %p424, %p425
      %p427 = scmp.ne.s32.totalorder %s419, %s422
      %p428 = scmp.eq.s32.totalorder %s37, 0
      %p429 = por %p427, %p428
      %p430 = scmp.ne.s32.totalorder %s419, %s422
      %p431 = scmp.eq.s32.totalorder %s42, 3
      %p432 = por %p430, %p431
      %p433 = scmp.ne.s32.totalorder %s422, %s423
      %p434 = scmp.eq.s32.totalorder %s42, 0
      %p435 = por %p433, %p434
      %p436 = scmp.ne.s32.totalorder %s422, %s423
      %p437 = scmp.eq.s32.totalorder %s43, 3
      %p438 = por %p436, %p437
      %p440 = scmp.ne.s32.totalorder %s423, %s439
      %p441 = scmp.eq.s32.totalorder %s43, 0
      %p442 = por %p440, %p441
      %p443 = scmp.le.s32.totalorder 1, %s37
      %p444 = scmp.lt.s32.totalorder %s37, 5
      %p445 = pnand %p443, %p444
      %p446 = pneg %p445
      // Predicated region
      $region9: #{tpu_custom_call.1} parent=5 // pred_check
        _
      $region10: #{tpu_custom_call.1} parent=5 // pred_check_branch
        %448 = sbr.rel (%p445) target = $region12
      $region11: #{tpu_custom_call.1} parent=5 // pred_region
        %s449 = ssub.s32 %s37, 1
        // Predicated region
        $region13: #{tpu_custom_call.1} parent=11 // pred_check
          %p450 = pneg %p260
        $region14: #{tpu_custom_call.1} parent=11 // pred_check_branch
          %452 = sbr.rel (%p450) target = $region16
        $region15: #{tpu_custom_call.1} parent=11 // pred_region
          _
        $region16: #{tpu_custom_call.1} parent=11 // pred_fallthru
          _
        // Predicated region
        $region17: #{tpu_custom_call.1} parent=11 // pred_check
          %p453 = pneg %p281
        $region18: #{tpu_custom_call.1} parent=11 // pred_check_branch
          %455 = sbr.rel (%p453) target = $region20
        $region19: #{tpu_custom_call.1} parent=11 // pred_region
          _
        $region20: #{tpu_custom_call.1} parent=11 // pred_fallthru
          _
        // Predicated region
        $region21: #{tpu_custom_call.1} parent=11 // pred_check
          %p456 = pneg %p302
        $region22: #{tpu_custom_call.1} parent=11 // pred_check_branch
          %458 = sbr.rel (%p456) target = $region24
        $region23: #{tpu_custom_call.1} parent=11 // pred_region
          %s460 = ssub.s32 16384, 16384
          %461 = vsyncadd [#allocation12], %s460
          %s462 = sshll.u32 [#allocation13], 4
          %s463 = int_to_ptr.vmem [resolvable:$true] %s462
          %468 = dma.hbm_to_vmem [thread:$0]  %s9, 16384, %s463, [#allocation12], 1024, 1024, 64
        $region24: #{tpu_custom_call.1} parent=11 // pred_fallthru
          _
        // Predicated region
        $region25: #{tpu_custom_call.1} parent=11 // pred_check
          %p469 = pneg %p323
        $region26: #{tpu_custom_call.1} parent=11 // pred_check_branch
          %471 = sbr.rel (%p469) target = $region28
        $region27: #{tpu_custom_call.1} parent=11 // pred_region
          _
        $region28: #{tpu_custom_call.1} parent=11 // pred_fallthru
          _
        // Predicated region
        $region29: #{tpu_custom_call.1} parent=11 // pred_check
          %p472 = pneg %p344
        $region30: #{tpu_custom_call.1} parent=11 // pred_check_branch
          %474 = sbr.rel (%p472) target = $region32
        $region31: #{tpu_custom_call.1} parent=11 // pred_region
          %s476 = ssub.s32 16384, 16384
          %477 = vsyncadd [#allocation15], %s476
          %s478 = sshll.u32 [#allocation14], 4
          %s479 = int_to_ptr.vmem [resolvable:$true] %s478
          %484 = dma.hbm_to_vmem [thread:$0]  %s11, 16384, %s479, [#allocation15], 128, 128, 8
        $region32: #{tpu_custom_call.1} parent=11 // pred_fallthru
          _
        // Predicated region
        $region33: #{tpu_custom_call.1} parent=11 // pred_check
          %p485 = pneg %p365
        $region34: #{tpu_custom_call.1} parent=11 // pred_check_branch
          %487 = sbr.rel (%p485) target = $region36
        $region35: #{tpu_custom_call.1} parent=11 // pred_region
          _
        $region36: #{tpu_custom_call.1} parent=11 // pred_fallthru
          _
        // Predicated region
        $region37: #{tpu_custom_call.1} parent=11 // pred_check
          %p488 = pneg %p386
        $region38: #{tpu_custom_call.1} parent=11 // pred_check_branch
          %490 = sbr.rel (%p488) target = $region40
        $region39: #{tpu_custom_call.1} parent=11 // pred_region
          _
        $region40: #{tpu_custom_call.1} parent=11 // pred_fallthru
          _
        // Predicated region
        $region41: #{tpu_custom_call.1} parent=11 // pred_check
          %p491 = pneg %p407
        $region42: #{tpu_custom_call.1} parent=11 // pred_check_branch
          %493 = sbr.rel (%p491) target = $region44
        $region43: #{tpu_custom_call.1} parent=11 // pred_region
          _
        $region44: #{tpu_custom_call.1} parent=11 // pred_fallthru
          _
      $region12: #{tpu_custom_call.1} parent=5 // pred_fallthru
        _
      %p494 = scmp.lt.s32.totalorder %s37, 4
      // Predicated region
      $region45: #{tpu_custom_call.1} parent=5 // pred_check
        %p495 = pneg %p494
      $region46: #{tpu_custom_call.1} parent=5 // pred_check_branch
        %497 = sbr.rel (%p495) target = $region48
      $region47: #{tpu_custom_call.1} parent=5 // pred_region
        // Predicated region
        $region49: #{tpu_custom_call.1} parent=47 // pred_check
          %p498 = pneg %p71
        $region50: #{tpu_custom_call.1} parent=47 // pred_check_branch
          %500 = sbr.rel (%p498) target = $region52
        $region51: #{tpu_custom_call.1} parent=47 // pred_region
          %s501 = sand.u32 %s61, 1
          %s502 = scalar_lea.sflag [#allocation3], %s501
          %s503 = sand.u32 %s61, 1
          %s504 = smul.addr %s503, 8
          %s505 = scalar_lea.vmem [#allocation2], %s504
          %s507 = ssub.s32 128, 128
          %508 = vsyncadd %s502, %s507
          %s509 = smul.addr %s44, 2
          %s510 = sadd.s32 %s45, %s509
          %s511 = smul.addr %s510, 128
          %s512 = scalar_lea.hbm %s0, %s511
          %s514 = sshll.u32 %s505, 4
          %s515 = int_to_ptr.vmem [resolvable:$true] %s514
          %517 = dma.hbm_to_vmem [thread:$0]  %s512, 128, %s515, %s502
        $region52: #{tpu_custom_call.1} parent=47 // pred_fallthru
          _
        // Predicated region
        $region53: #{tpu_custom_call.1} parent=47 // pred_check
          %p518 = pneg %p97
        $region54: #{tpu_custom_call.1} parent=47 // pred_check_branch
          %520 = sbr.rel (%p518) target = $region56
        $region55: #{tpu_custom_call.1} parent=47 // pred_region
          %p521 = scmp.lt.s32.totalorder %s44, 1
          %s522 = scalar_select %p521, %s44, 1
          %s523 = scalar_lea.vmem %s1, %s522
        $region56: #{tpu_custom_call.1} parent=47 // pred_fallthru
          _
        // Predicated region
        $region57: #{tpu_custom_call.1} parent=47 // pred_check
          %p524 = pneg %p125
        $region58: #{tpu_custom_call.1} parent=47 // pred_check_branch
          %526 = sbr.rel (%p524) target = $region60
        $region59: #{tpu_custom_call.1} parent=47 // pred_region
          %s527 = sand.u32 %s37, 1
          %s528 = scalar_lea.sflag [#allocation6], %s527
          %s529 = sand.u32 %s115, 1
          %s530 = smul.addr %s529, 128
          %s531 = scalar_lea.vmem [#allocation5], %s530
          %s532 = smul.u32 8, %s45
          %s534 = ssub.s32 2048, 2048
          %535 = vsyncadd %s528, %s534
          %s536 = smul.addr %s532, 2
          %s537 = smul.addr %s44, 32
          %s538 = sadd.s32 %s536, %s537
          %s539 = smul.addr %s538, 128
          %s540 = scalar_lea.hbm %s2, %s539
          %s541 = sshll.u32 %s531, 4
          %s542 = int_to_ptr.vmem [resolvable:$true] %s541
          %547 = dma.hbm_to_vmem [thread:$0]  %s540, 2048, %s542, %s528, 128, 128, 8
        $region60: #{tpu_custom_call.1} parent=47 // pred_fallthru
          _
        // Predicated region
        $region61: #{tpu_custom_call.1} parent=47 // pred_check
          %p548 = pneg %p153
        $region62: #{tpu_custom_call.1} parent=47 // pred_check_branch
          %550 = sbr.rel (%p548) target = $region64
        $region63: #{tpu_custom_call.1} parent=47 // pred_region
          %s551 = sand.u32 %s37, 1
          %s552 = scalar_lea.sflag [#allocation6], %s551
          %s553 = sand.u32 %s143, 1
          %s554 = smul.addr %s553, 32
          %s555 = scalar_lea.vmem [#allocation7], %s554
          %s557 = ssub.s32 512, 512
          %558 = vsyncadd %s552, %s557
          %s559 = smul.addr %s44, 8
          %s560 = sadd.s32 %s45, %s559
          %s561 = smul.addr %s560, 128
          %s562 = scalar_lea.hbm %s3, %s561
          %s563 = sshll.u32 %s555, 4
          %s564 = int_to_ptr.vmem [resolvable:$true] %s563
          %569 = dma.hbm_to_vmem [thread:$0]  %s562, 512, %s564, %s552, 256, 128, 8
        $region64: #{tpu_custom_call.1} parent=47 // pred_fallthru
          _
        // Predicated region
        $region65: #{tpu_custom_call.1} parent=47 // pred_check
          %p570 = pneg %p181
        $region66: #{tpu_custom_call.1} parent=47 // pred_check_branch
          %572 = sbr.rel (%p570) target = $region68
        $region67: #{tpu_custom_call.1} parent=47 // pred_region
          %s573 = sand.u32 %s37, 1
          %s574 = scalar_lea.sflag [#allocation9], %s573
          %s575 = sand.u32 %s171, 1
          %s576 = smul.addr %s575, 32
          %s577 = scalar_lea.vmem [#allocation8], %s576
          %s578 = smul.u32 8, %s45
          %s580 = ssub.s32 512, 512
          %581 = vsyncadd %s574, %s580
          %s582 = smul.addr %s44, 16
          %s583 = sadd.s32 %s578, %s582
          %s584 = smul.addr %s583, 64
          %s585 = scalar_lea.hbm %s4, %s584
          %s586 = sshll.u32 %s577, 4
          %s587 = int_to_ptr.vmem [resolvable:$true] %s586
          %592 = dma.hbm_to_vmem [thread:$0]  %s585, 512, %s587, %s574, 64, 64, 4
        $region68: #{tpu_custom_call.1} parent=47 // pred_fallthru
          _
        // Predicated region
        $region69: #{tpu_custom_call.1} parent=47 // pred_check
          %p593 = pneg %p207
        $region70: #{tpu_custom_call.1} parent=47 // pred_check_branch
          %595 = sbr.rel (%p593) target = $region72
        $region71: #{tpu_custom_call.1} parent=47 // pred_region
          %s596 = sand.u32 %s37, 1
          %s597 = scalar_lea.sflag [#allocation9], %s596
          %s598 = sand.u32 %s197, 1
          %s599 = smul.addr %s598, 64
          %s600 = scalar_lea.vmem [#allocation10], %s599
          %s602 = ssub.s32 1024, 1024
          %603 = vsyncadd %s597, %s602
          %s604 = smul.addr %s44, 8
          %s605 = smul.addr %s604, 128
          %s606 = scalar_lea.hbm %s5, %s605
          %s607 = sshll.u32 %s600, 4
          %s608 = int_to_ptr.vmem [resolvable:$true] %s607
          %613 = dma.hbm_to_vmem [thread:$0]  %s606, 1024, %s608, %s597, 128, 128, 8
        $region72: #{tpu_custom_call.1} parent=47 // pred_fallthru
          _
        // Predicated region
        $region73: #{tpu_custom_call.1} parent=47 // pred_check
          %p614 = pneg %p233
        $region74: #{tpu_custom_call.1} parent=47 // pred_check_branch
          %616 = sbr.rel (%p614) target = $region76
        $region75: #{tpu_custom_call.1} parent=47 // pred_region
          %s617 = sand.u32 %s37, 1
          %s618 = scalar_lea.sflag [#allocation12], %s617
          %s619 = sand.u32 %s223, 1
          %s620 = smul.addr %s619, 64
          %s621 = scalar_lea.vmem [#allocation11], %s620
          %s623 = ssub.s32 1024, 1024
          %624 = vsyncadd %s618, %s623
          %s625 = smul.addr %s44, 8
          %s626 = smul.addr %s625, 128
          %s627 = scalar_lea.hbm %s6, %s626
          %s628 = sshll.u32 %s621, 4
          %s629 = int_to_ptr.vmem [resolvable:$true] %s628
          %634 = dma.hbm_to_vmem [thread:$0]  %s627, 1024, %s629, %s618, 128, 128, 8
        $region76: #{tpu_custom_call.1} parent=47 // pred_fallthru
          _
      $region48: #{tpu_custom_call.1} parent=5 // pred_fallthru
        _
      %p635 = scmp.le.s32.totalorder 1, %s37
      %p636 = scmp.lt.s32.totalorder %s37, 5
      %p637 = pnand %p635, %p636
      %p638 = pneg %p637
      // Predicated region
      $region77: #{tpu_custom_call.1} parent=5 // pred_check
        _
      $region78: #{tpu_custom_call.1} parent=5 // pred_check_branch
        %640 = sbr.rel (%p637) target = $region80
      $region79: #{tpu_custom_call.1} parent=5 // pred_region
        %s641 = ssub.s32 %s37, 1
        %s642 = sand.u32 %s64, 1
        %s643 = scalar_lea.sflag [#allocation3], %s642
        %s644 = sand.u32 %s64, 1
        %s645 = smul.addr %s644, 8
        %s646 = scalar_lea.vmem [#allocation2], %s645
        // Predicated region
        $region81: #{tpu_custom_call.1} parent=79 // pred_check
          %p647 = pneg %p77
        $region82: #{tpu_custom_call.1} parent=79 // pred_check_branch
          %649 = sbr.rel (%p647) target = $region84
        $region83: #{tpu_custom_call.1} parent=79 // pred_region
          %650 = dma.done %s643, 128
        $region84: #{tpu_custom_call.1} parent=79 // pred_fallthru
          _
        %s651 = sand.u32 %s42, 1
        %s652 = scalar_lea.sflag [#allocation6], %s651
        %s653 = sand.u32 %s118, 1
        %s654 = smul.addr %s653, 128
        %s655 = scalar_lea.vmem [#allocation5], %s654
        // Predicated region
        $region85: #{tpu_custom_call.1} parent=79 // pred_check
          %p656 = pneg %p131
        $region86: #{tpu_custom_call.1} parent=79 // pred_check_branch
          %658 = sbr.rel (%p656) target = $region88
        $region87: #{tpu_custom_call.1} parent=79 // pred_region
          %659 = dma.done %s652, 2048
        $region88: #{tpu_custom_call.1} parent=79 // pred_fallthru
          _
        %s660 = sand.u32 %s42, 1
        %s661 = scalar_lea.sflag [#allocation6], %s660
        %s662 = sand.u32 %s146, 1
        %s663 = smul.addr %s662, 32
        %s664 = scalar_lea.vmem [#allocation7], %s663
        // Predicated region
        $region89: #{tpu_custom_call.1} parent=79 // pred_check
          %p665 = pneg %p159
        $region90: #{tpu_custom_call.1} parent=79 // pred_check_branch
          %667 = sbr.rel (%p665) target = $region92
        $region91: #{tpu_custom_call.1} parent=79 // pred_region
          %668 = dma.done %s661, 512
        $region92: #{tpu_custom_call.1} parent=79 // pred_fallthru
          _
        %s669 = sand.u32 %s42, 1
        %s670 = scalar_lea.sflag [#allocation9], %s669
        %s671 = sand.u32 %s174, 1
        %s672 = smul.addr %s671, 32
        %s673 = scalar_lea.vmem [#allocation8], %s672
        // Predicated region
        $region93: #{tpu_custom_call.1} parent=79 // pred_check
          %p674 = pneg %p187
        $region94: #{tpu_custom_call.1} parent=79 // pred_check_branch
          %676 = sbr.rel (%p674) target = $region96
        $region95: #{tpu_custom_call.1} parent=79 // pred_region
          %677 = dma.done %s670, 512
        $region96: #{tpu_custom_call.1} parent=79 // pred_fallthru
          _
        %s678 = sand.u32 %s42, 1
        %s679 = scalar_lea.sflag [#allocation9], %s678
        %s680 = sand.u32 %s200, 1
        %s681 = smul.addr %s680, 64
        %s682 = scalar_lea.vmem [#allocation10], %s681
        // Predicated region
        $region97: #{tpu_custom_call.1} parent=79 // pred_check
          %p683 = pneg %p213
        $region98: #{tpu_custom_call.1} parent=79 // pred_check_branch
          %685 = sbr.rel (%p683) target = $region100
        $region99: #{tpu_custom_call.1} parent=79 // pred_region
          %686 = dma.done %s679, 1024
        $region100: #{tpu_custom_call.1} parent=79 // pred_fallthru
          _
        %s687 = sand.u32 %s42, 1
        %s688 = scalar_lea.sflag [#allocation12], %s687
        %s689 = sand.u32 %s226, 1
        %s690 = smul.addr %s689, 64
        %s691 = scalar_lea.vmem [#allocation11], %s690
        // Predicated region
        $region101: #{tpu_custom_call.1} parent=79 // pred_check
          %p692 = pneg %p239
        $region102: #{tpu_custom_call.1} parent=79 // pred_check_branch
          %694 = sbr.rel (%p692) target = $region104
        $region103: #{tpu_custom_call.1} parent=79 // pred_region
          %695 = dma.done %s688, 1024
        $region104: #{tpu_custom_call.1} parent=79 // pred_fallthru
          _
        // Predicated region
        $region105: #{tpu_custom_call.1} parent=79 // pred_check
          %p696 = pneg %p302
        $region106: #{tpu_custom_call.1} parent=79 // pred_check_branch
          %698 = sbr.rel (%p696) target = $region108
        $region107: #{tpu_custom_call.1} parent=79 // pred_region
          %699 = dma.done [#allocation12], 16384
        $region108: #{tpu_custom_call.1} parent=79 // pred_fallthru
          _
        // Predicated region
        $region109: #{tpu_custom_call.1} parent=79 // pred_check
          %p700 = pneg %p344
        $region110: #{tpu_custom_call.1} parent=79 // pred_check_branch
          %702 = sbr.rel (%p700) target = $region112
        $region111: #{tpu_custom_call.1} parent=79 // pred_region
          %703 = dma.done [#allocation15], 16384
        $region112: #{tpu_custom_call.1} parent=79 // pred_fallthru
          _
        %s704 = sand.u32 %s64, 1
        %s705 = scalar_lea.sflag [#allocation3], %s704
        %s706 = sand.u32 %s64, 1
        %s707 = smul.addr %s706, 8
        %s708 = scalar_lea.vmem [#allocation2], %s707
        %p709 = pneg %p77
        %p710 = pneg %p74
        %p711 = scmp.lt.s32.totalorder %s46, 1
        %s712 = scalar_select %p711, %s46, 1
        %s713 = scalar_lea.vmem %s1, %s712
        %p714 = pneg %p103
        %p715 = pneg %p100
        %s716 = sand.u32 %s42, 1
        %s717 = scalar_lea.sflag [#allocation6], %s716
        %s718 = sand.u32 %s118, 1
        %s719 = smul.addr %s718, 128
        %s720 = scalar_lea.vmem [#allocation5], %s719
        %p721 = pneg %p131
        %p722 = pneg %p128
        %s723 = sand.u32 %s42, 1
        %s724 = scalar_lea.sflag [#allocation6], %s723
        %s725 = sand.u32 %s146, 1
        %s726 = smul.addr %s725, 32
        %s727 = scalar_lea.vmem [#allocation7], %s726
        %p728 = pneg %p159
        %p729 = pneg %p156
        %s730 = sand.u32 %s42, 1
        %s731 = scalar_lea.sflag [#allocation9], %s730
        %s732 = sand.u32 %s174, 1
        %s733 = smul.addr %s732, 32
        %s734 = scalar_lea.vmem [#allocation8], %s733
        %p735 = pneg %p187
        %p736 = pneg %p184
        %s737 = sand.u32 %s42, 1
        %s738 = scalar_lea.sflag [#allocation9], %s737
        %s739 = sand.u32 %s200, 1
        %s740 = smul.addr %s739, 64
        %s741 = scalar_lea.vmem [#allocation10], %s740
        %p742 = pneg %p213
        %p743 = pneg %p210
        %s744 = sand.u32 %s42, 1
        %s745 = scalar_lea.sflag [#allocation12], %s744
        %s746 = sand.u32 %s226, 1
        %s747 = smul.addr %s746, 64
        %s748 = scalar_lea.vmem [#allocation11], %s747
        %p749 = pneg %p239
        %p750 = pneg %p236
        %p751 = pneg %p260
        %p752 = pneg %p257
        %p753 = pneg %p281
        %p754 = pneg %p278
        %p755 = pneg %p302
        %p756 = pneg %p299
        %p757 = pneg %p323
        %p758 = pneg %p320
        %p759 = pneg %p344
        %p760 = pneg %p341
        %p761 = pneg %p365
        %p762 = pneg %p362
        %p763 = pneg %p386
        %p764 = pneg %p383
        %p765 = pneg %p407
        %p766 = pneg %p404
        %p767 = pneg %p435
        %p768 = pneg %p432
        %s769 = sand.u32 %s422, 1
        %s770 = scalar_lea.sflag [#allocation4], %s769
        %s771 = sand.u32 %s422, 1
        %s772 = smul.addr %s771, 8
        %s773 = scalar_lea.vmem [#allocation16], %s772
        %p774 = scmp.lt.s32.totalorder %s46, 1
        %s775 = scalar_select %p774, %s46, 1
        %s776 = scalar_lea.vmem %s1, %s775
        %s777 = smul.u32 8, %s47
        %s778 = smul.u32 8, %s47
        %v779 = vld [vmem:[%s646] sm:$0xff]
        %v780 = vld [vmem:[%s664] sm:$0xff]
        %v781 = vld [vmem:[%s664 + $0x8] sm:$0xff]
        %v782 = vld [vmem:[%s664 + $0x10] sm:$0xff]
        %v783 = vld [vmem:[%s664 + $0x18] sm:$0xff]
        %v784 = vld [vmem:[%s673] sm:$0xf]
        %v785 = vld [vmem:[%s673 + $0x4] sm:$0xf]
        %v786 = vld [vmem:[%s673 + $0x8] sm:$0xf]
        %v787 = vld [vmem:[%s673 + $0xc] sm:$0xf]
        %v788 = vld [vmem:[%s673 + $0x10] sm:$0xf]
        %v789 = vld [vmem:[%s673 + $0x14] sm:$0xf]
        %v790 = vld [vmem:[%s673 + $0x18] sm:$0xf]
        %v791 = vld [vmem:[%s673 + $0x1c] sm:$0xf]
        %v792 = vld [vmem:[%s682] sm:$0xff]
        %v793 = vld [vmem:[%s682 + $0x8] sm:$0xff]
        %v794 = vld [vmem:[%s682 + $0x10] sm:$0xff]
        %v795 = vld [vmem:[%s682 + $0x18] sm:$0xff]
        %v796 = vld [vmem:[%s682 + $0x20] sm:$0xff]
        %v797 = vld [vmem:[%s682 + $0x28] sm:$0xff]
        %v798 = vld [vmem:[%s682 + $0x30] sm:$0xff]
        %v799 = vld [vmem:[%s682 + $0x38] sm:$0xff]
        %v800 = vld [vmem:[%s691] sm:$0xff]
        %v801 = vld [vmem:[%s691 + $0x8] sm:$0xff]
        %v802 = vld [vmem:[%s691 + $0x10] sm:$0xff]
        %v803 = vld [vmem:[%s691 + $0x18] sm:$0xff]
        %v804 = vld [vmem:[%s691 + $0x20] sm:$0xff]
        %v805 = vld [vmem:[%s691 + $0x28] sm:$0xff]
        %v806 = vld [vmem:[%s691 + $0x30] sm:$0xff]
        %v807 = vld [vmem:[%s691 + $0x38] sm:$0xff]
        %v808 = vld [vmem:[%s655] sm:$0xff]
        %v809 = vld [vmem:[%s655 + $0x8] sm:$0xff]
        %v810 = vld [vmem:[%s655 + $0x10] sm:$0xff]
        %v811 = vld [vmem:[%s655 + $0x18] sm:$0xff]
        %v812 = vld [vmem:[%s655 + $0x20] sm:$0xff]
        %v813 = vld [vmem:[%s655 + $0x28] sm:$0xff]
        %v814 = vld [vmem:[%s655 + $0x30] sm:$0xff]
        %v815 = vld [vmem:[%s655 + $0x38] sm:$0xff]
        %v816 = vld [vmem:[%s655 + $0x40] sm:$0xff]
        %v817 = vld [vmem:[%s655 + $0x48] sm:$0xff]
        %v818 = vld [vmem:[%s655 + $0x50] sm:$0xff]
        %v819 = vld [vmem:[%s655 + $0x58] sm:$0xff]
        %v820 = vld [vmem:[%s655 + $0x60] sm:$0xff]
        %v821 = vld [vmem:[%s655 + $0x68] sm:$0xff]
        %v822 = vld [vmem:[%s655 + $0x70] sm:$0xff]
        %v823 = vld [vmem:[%s655 + $0x78] sm:$0xff]
        %824 = vmatprep.subr.mxu0 0.0
        %825 = vmatpush1.xpose.msra.mxu0 %v808
        %826 = vmatprep.subr.mxu0 0.0
        %827 = vmatpush1.xpose.msra.mxu0 %v809
        %828 = vmatprep.subr.mxu0 0.0
        %829 = vmatpush1.xpose.msra.mxu0 0.0
        %830 = vmatprep.subr.mxu0 0.0
        %831 = vmatpush1.xpose.msra.mxu0 0.0
        %832 = vmatprep.subr.mxu0 0.0
        %833 = vmatpush1.xpose.msra.mxu0 0.0
        %834 = vmatprep.subr.mxu0 0.0
        %835 = vmatpush1.xpose.msra.mxu0 0.0
        %836 = vmatprep.subr.mxu0 0.0
        %837 = vmatpush1.xpose.msra.mxu0 0.0
        %838 = vmatprep.subr.mxu0 0.0
        %839 = vmatpush1.xpose.msra.mxu0 0.0
        %840 = vmatprep.subr.mxu0 0.0
        %841 = vmatpush1.xpose.msra.mxu0 0.0
        %842 = vmatprep.subr.mxu0 0.0
        %843 = vmatpush1.xpose.msra.mxu0 0.0
        %844 = vmatprep.subr.mxu0 0.0
        %845 = vmatpush1.xpose.msra.mxu0 0.0
        %846 = vmatprep.subr.mxu0 0.0
        %847 = vmatpush1.xpose.msra.mxu0 0.0
        %848 = vmatprep.subr.mxu0 0.0
        %849 = vmatpush1.xpose.msra.mxu0 0.0
        %850 = vmatprep.subr.mxu0 0.0
        %851 = vmatpush1.xpose.msra.mxu0 0.0
        %852 = vmatprep.subr.mxu0 0.0
        %853 = vmatpush1.xpose.msra.mxu0 0.0
        %854 = vmatprep.subr.mxu0 0.0
        %855 = vmatpush1.xpose.msra.mxu0 0.0
        %856 = vmatprep.subr.mxu0 0.0
        %857 = vmatpush1.xpose.msra.mxu0 0.0
        %858 = vmatprep.subr.mxu0 0.0
        %859 = vmatpush1.xpose.msra.mxu0 0.0
        %860 = vmatprep.subr.mxu0 0.0
        %861 = vmatpush1.xpose.msra.mxu0 0.0
        %862 = vmatprep.subr.mxu0 0.0
        %863 = vmatpush1.xpose.msra.mxu0 0.0
        %864 = vmatprep.subr.mxu0 0.0
        %865 = vmatpush1.xpose.msra.mxu0 0.0
        %866 = vmatprep.subr.mxu0 0.0
        %867 = vmatpush1.xpose.msra.mxu0 0.0
        %868 = vmatprep.subr.mxu0 0.0
        %869 = vmatpush1.xpose.msra.mxu0 0.0
        %870 = vmatprep.subr.mxu0 0.0
        %871 = vmatpush1.xpose.msra.mxu0 0.0
        %872 = vmatprep.subr.mxu0 0.0
        %873 = vmatpush1.xpose.msra.mxu0 0.0
        %874 = vmatprep.subr.mxu0 0.0
        %875 = vmatpush1.xpose.msra.mxu0 0.0
        %876 = vmatprep.subr.mxu0 0.0
        %877 = vmatpush1.xpose.msra.mxu0 0.0
        %878 = vmatprep.subr.mxu0 0.0
        %879 = vmatpush1.xpose.msra.mxu0 0.0
        %880 = vmatprep.subr.mxu0 0.0
        %881 = vmatpush1.xpose.msra.mxu0 0.0
        %882 = vmatprep.subr.mxu0 0.0
        %883 = vmatpush1.xpose.msra.mxu0 0.0
        %884 = vmatprep.subr.mxu0 0.0
        %885 = vmatpush1.xpose.msra.mxu0 0.0
        %886 = vmatprep.subr.mxu0 0.0
        %887 = vmatpush1.xpose.msra.mxu0 0.0
        %888 = vmatprep.mubr.f32.mxu0 0.0
        %889 = vmatmul.mubr.f32.gmra.mrb[0].mxu0 %v784
        %v890 = vpop.f32.mrb[0].mxu0
        %v891 = vadd.f32 0.0, %v890
        %v892 = vpop.f32.mrb[0].mxu0
        %893 = vdwg.mxu0
        %894 = vmatprep.subr.mxu0 0.0
        %895 = vmatpush1.xpose.msra.mxu0 %v810
        %896 = vmatprep.subr.mxu0 0.0
        %897 = vmatpush1.xpose.msra.mxu0 %v811
        %898 = vmatprep.subr.mxu0 0.0
        %899 = vmatpush1.xpose.msra.mxu0 0.0
        %900 = vmatprep.subr.mxu0 0.0
        %901 = vmatpush1.xpose.msra.mxu0 0.0
        %902 = vmatprep.subr.mxu0 0.0
        %903 = vmatpush1.xpose.msra.mxu0 0.0
        %904 = vmatprep.subr.mxu0 0.0
        %905 = vmatpush1.xpose.msra.mxu0 0.0
        %906 = vmatprep.subr.mxu0 0.0
        %907 = vmatpush1.xpose.msra.mxu0 0.0
        %908 = vmatprep.subr.mxu0 0.0
        %909 = vmatpush1.xpose.msra.mxu0 0.0
        %910 = vmatprep.subr.mxu0 0.0
        %911 = vmatpush1.xpose.msra.mxu0 0.0
        %912 = vmatprep.subr.mxu0 0.0
        %913 = vmatpush1.xpose.msra.mxu0 0.0
        %914 = vmatprep.subr.mxu0 0.0
        %915 = vmatpush1.xpose.msra.mxu0 0.0
        %916 = vmatprep.subr.mxu0 0.0
        %917 = vmatpush1.xpose.msra.mxu0 0.0
        %918 = vmatprep.subr.mxu0 0.0
        %919 = vmatpush1.xpose.msra.mxu0 0.0
        %920 = vmatprep.subr.mxu0 0.0
        %921 = vmatpush1.xpose.msra.mxu0 0.0
        %922 = vmatprep.subr.mxu0 0.0
        %923 = vmatpush1.xpose.msra.mxu0 0.0
        %924 = vmatprep.subr.mxu0 0.0
        %925 = vmatpush1.xpose.msra.mxu0 0.0
        %926 = vmatprep.subr.mxu0 0.0
        %927 = vmatpush1.xpose.msra.mxu0 0.0
        %928 = vmatprep.subr.mxu0 0.0
        %929 = vmatpush1.xpose.msra.mxu0 0.0
        %930 = vmatprep.subr.mxu0 0.0
        %931 = vmatpush1.xpose.msra.mxu0 0.0
        %932 = vmatprep.subr.mxu0 0.0
        %933 = vmatpush1.xpose.msra.mxu0 0.0
        %934 = vmatprep.subr.mxu0 0.0
        %935 = vmatpush1.xpose.msra.mxu0 0.0
        %936 = vmatprep.subr.mxu0 0.0
        %937 = vmatpush1.xpose.msra.mxu0 0.0
        %938 = vmatprep.subr.mxu0 0.0
        %939 = vmatpush1.xpose.msra.mxu0 0.0
        %940 = vmatprep.subr.mxu0 0.0
        %941 = vmatpush1.xpose.msra.mxu0 0.0
        %942 = vmatprep.subr.mxu0 0.0
        %943 = vmatpush1.xpose.msra.mxu0 0.0
        %944 = vmatprep.subr.mxu0 0.0
        %945 = vmatpush1.xpose.msra.mxu0 0.0
        %946 = vmatprep.subr.mxu0 0.0
        %947 = vmatpush1.xpose.msra.mxu0 0.0
        %948 = vmatprep.subr.mxu0 0.0
        %949 = vmatpush1.xpose.msra.mxu0 0.0
        %950 = vmatprep.subr.mxu0 0.0
        %951 = vmatpush1.xpose.msra.mxu0 0.0
        %952 = vmatprep.subr.mxu0 0.0
        %953 = vmatpush1.xpose.msra.mxu0 0.0
        %954 = vmatprep.subr.mxu0 0.0
        %955 = vmatpush1.xpose.msra.mxu0 0.0
        %956 = vmatprep.subr.mxu0 0.0
        %957 = vmatpush1.xpose.msra.mxu0 0.0
        %958 = vmatprep.mubr.f32.mxu0 0.0
        %959 = vmatmul.mubr.f32.gmra.mrb[0].mxu0 %v785
        %v960 = vpop.f32.mrb[0].mxu0
        %v961 = vadd.f32 0.0, %v960
        %v962 = vpop.f32.mrb[0].mxu0
        %963 = vdwg.mxu0
        %964 = vmatprep.subr.mxu0 0.0
        %965 = vmatpush1.xpose.msra.mxu0 %v812
        %966 = vmatprep.subr.mxu0 0.0
        %967 = vmatpush1.xpose.msra.mxu0 %v813
        %968 = vmatprep.subr.mxu0 0.0
        %969 = vmatpush1.xpose.msra.mxu0 0.0
        %970 = vmatprep.subr.mxu0 0.0
        %971 = vmatpush1.xpose.msra.mxu0 0.0
        %972 = vmatprep.subr.mxu0 0.0
        %973 = vmatpush1.xpose.msra.mxu0 0.0
        %974 = vmatprep.subr.mxu0 0.0
        %975 = vmatpush1.xpose.msra.mxu0 0.0
        %976 = vmatprep.subr.mxu0 0.0
        %977 = vmatpush1.xpose.msra.mxu0 0.0
        %978 = vmatprep.subr.mxu0 0.0
        %979 = vmatpush1.xpose.msra.mxu0 0.0
        %980 = vmatprep.subr.mxu0 0.0
        %981 = vmatpush1.xpose.msra.mxu0 0.0
        %982 = vmatprep.subr.mxu0 0.0
        %983 = vmatpush1.xpose.msra.mxu0 0.0
        %984 = vmatprep.subr.mxu0 0.0
        %985 = vmatpush1.xpose.msra.mxu0 0.0
        %986 = vmatprep.subr.mxu0 0.0
        %987 = vmatpush1.xpose.msra.mxu0 0.0
        %988 = vmatprep.subr.mxu0 0.0
        %989 = vmatpush1.xpose.msra.mxu0 0.0
        %990 = vmatprep.subr.mxu0 0.0
        %991 = vmatpush1.xpose.msra.mxu0 0.0
        %992 = vmatprep.subr.mxu0 0.0
        %993 = vmatpush1.xpose.msra.mxu0 0.0
        %994 = vmatprep.subr.mxu0 0.0
        %995 = vmatpush1.xpose.msra.mxu0 0.0
        %996 = vmatprep.subr.mxu0 0.0
        %997 = vmatpush1.xpose.msra.mxu0 0.0
        %998 = vmatprep.subr.mxu0 0.0
        %999 = vmatpush1.xpose.msra.mxu0 0.0
        %1000 = vmatprep.subr.mxu0 0.0
        %1001 = vmatpush1.xpose.msra.mxu0 0.0
        %1002 = vmatprep.subr.mxu0 0.0
        %1003 = vmatpush1.xpose.msra.mxu0 0.0
        %1004 = vmatprep.subr.mxu0 0.0
        %1005 = vmatpush1.xpose.msra.mxu0 0.0
        %1006 = vmatprep.subr.mxu0 0.0
        %1007 = vmatpush1.xpose.msra.mxu0 0.0
        %1008 = vmatprep.subr.mxu0 0.0
        %1009 = vmatpush1.xpose.msra.mxu0 0.0
        %1010 = vmatprep.subr.mxu0 0.0
        %1011 = vmatpush1.xpose.msra.mxu0 0.0
        %1012 = vmatprep.subr.mxu0 0.0
        %1013 = vmatpush1.xpose.msra.mxu0 0.0
        %1014 = vmatprep.subr.mxu0 0.0
        %1015 = vmatpush1.xpose.msra.mxu0 0.0
        %1016 = vmatprep.subr.mxu0 0.0
        %1017 = vmatpush1.xpose.msra.mxu0 0.0
        %1018 = vmatprep.subr.mxu0 0.0
        %1019 = vmatpush1.xpose.msra.mxu0 0.0
        %1020 = vmatprep.subr.mxu0 0.0
        %1021 = vmatpush1.xpose.msra.mxu0 0.0
        %1022 = vmatprep.subr.mxu0 0.0
        %1023 = vmatpush1.xpose.msra.mxu0 0.0
        %1024 = vmatprep.subr.mxu0 0.0
        %1025 = vmatpush1.xpose.msra.mxu0 0.0
        %1026 = vmatprep.subr.mxu0 0.0
        %1027 = vmatpush1.xpose.msra.mxu0 0.0
        %1028 = vmatprep.mubr.f32.mxu0 0.0
        %1029 = vmatmul.mubr.f32.gmra.mrb[0].mxu0 %v786
        %v1030 = vpop.f32.mrb[0].mxu0
        %v1031 = vadd.f32 0.0, %v1030
        %v1032 = vpop.f32.mrb[0].mxu0
        %1033 = vdwg.mxu0
        %1034 = vmatprep.subr.mxu0 0.0
        %1035 = vmatpush1.xpose.msra.mxu0 %v814
        %1036 = vmatprep.subr.mxu0 0.0
        %1037 = vmatpush1.xpose.msra.mxu0 %v815
        %1038 = vmatprep.subr.mxu0 0.0
        %1039 = vmatpush1.xpose.msra.mxu0 0.0
        %1040 = vmatprep.subr.mxu0 0.0
        %1041 = vmatpush1.xpose.msra.mxu0 0.0
        %1042 = vmatprep.subr.mxu0 0.0
        %1043 = vmatpush1.xpose.msra.mxu0 0.0
        %1044 = vmatprep.subr.mxu0 0.0
        %1045 = vmatpush1.xpose.msra.mxu0 0.0
        %1046 = vmatprep.subr.mxu0 0.0
        %1047 = vmatpush1.xpose.msra.mxu0 0.0
        %1048 = vmatprep.subr.mxu0 0.0
        %1049 = vmatpush1.xpose.msra.mxu0 0.0
        %1050 = vmatprep.subr.mxu0 0.0
        %1051 = vmatpush1.xpose.msra.mxu0 0.0
        %1052 = vmatprep.subr.mxu0 0.0
        %1053 = vmatpush1.xpose.msra.mxu0 0.0
        %1054 = vmatprep.subr.mxu0 0.0
        %1055 = vmatpush1.xpose.msra.mxu0 0.0
        %1056 = vmatprep.subr.mxu0 0.0
        %1057 = vmatpush1.xpose.msra.mxu0 0.0
        %1058 = vmatprep.subr.mxu0 0.0
        %1059 = vmatpush1.xpose.msra.mxu0 0.0
        %1060 = vmatprep.subr.mxu0 0.0
        %1061 = vmatpush1.xpose.msra.mxu0 0.0
        %1062 = vmatprep.subr.mxu0 0.0
        %1063 = vmatpush1.xpose.msra.mxu0 0.0
        %1064 = vmatprep.subr.mxu0 0.0
        %1065 = vmatpush1.xpose.msra.mxu0 0.0
        %1066 = vmatprep.subr.mxu0 0.0
        %1067 = vmatpush1.xpose.msra.mxu0 0.0
        %1068 = vmatprep.subr.mxu0 0.0
        %1069 = vmatpush1.xpose.msra.mxu0 0.0
        %1070 = vmatprep.subr.mxu0 0.0
        %1071 = vmatpush1.xpose.msra.mxu0 0.0
        %1072 = vmatprep.subr.mxu0 0.0
        %1073 = vmatpush1.xpose.msra.mxu0 0.0
        %1074 = vmatprep.subr.mxu0 0.0
        %1075 = vmatpush1.xpose.msra.mxu0 0.0
        %1076 = vmatprep.subr.mxu0 0.0
        %1077 = vmatpush1.xpose.msra.mxu0 0.0
        %1078 = vmatprep.subr.mxu0 0.0
        %1079 = vmatpush1.xpose.msra.mxu0 0.0
        %1080 = vmatprep.subr.mxu0 0.0
        %1081 = vmatpush1.xpose.msra.mxu0 0.0
        %1082 = vmatprep.subr.mxu0 0.0
        %1083 = vmatpush1.xpose.msra.mxu0 0.0
        %1084 = vmatprep.subr.mxu0 0.0
        %1085 = vmatpush1.xpose.msra.mxu0 0.0
        %1086 = vmatprep.subr.mxu0 0.0
        %1087 = vmatpush1.xpose.msra.mxu0 0.0
        %1088 = vmatprep.subr.mxu0 0.0
        %1089 = vmatpush1.xpose.msra.mxu0 0.0
        %1090 = vmatprep.subr.mxu0 0.0
        %1091 = vmatpush1.xpose.msra.mxu0 0.0
        %1092 = vmatprep.subr.mxu0 0.0
        %1093 = vmatpush1.xpose.msra.mxu0 0.0
        %1094 = vmatprep.subr.mxu0 0.0
        %1095 = vmatpush1.xpose.msra.mxu0 0.0
        %1096 = vmatprep.subr.mxu0 0.0
        %1097 = vmatpush1.xpose.msra.mxu0 0.0
        %1098 = vmatprep.mubr.f32.mxu0 0.0
        %1099 = vmatmul.mubr.f32.gmra.mrb[0].mxu0 %v787
        %v1100 = vpop.f32.mrb[0].mxu0
        %v1101 = vadd.f32 0.0, %v1100
        %v1102 = vpop.f32.mrb[0].mxu0
        %1103 = vdwg.mxu0
        %1104 = vmatprep.subr.mxu0 0.0
        %1105 = vmatpush1.xpose.msra.mxu0 %v816
        %1106 = vmatprep.subr.mxu0 0.0
        %1107 = vmatpush1.xpose.msra.mxu0 %v817
        %1108 = vmatprep.subr.mxu0 0.0
        %1109 = vmatpush1.xpose.msra.mxu0 0.0
        %1110 = vmatprep.subr.mxu0 0.0
        %1111 = vmatpush1.xpose.msra.mxu0 0.0
        %1112 = vmatprep.subr.mxu0 0.0
        %1113 = vmatpush1.xpose.msra.mxu0 0.0
        %1114 = vmatprep.subr.mxu0 0.0
        %1115 = vmatpush1.xpose.msra.mxu0 0.0
        %1116 = vmatprep.subr.mxu0 0.0
        %1117 = vmatpush1.xpose.msra.mxu0 0.0
        %1118 = vmatprep.subr.mxu0 0.0
        %1119 = vmatpush1.xpose.msra.mxu0 0.0
        %1120 = vmatprep.subr.mxu0 0.0
        %1121 = vmatpush1.xpose.msra.mxu0 0.0
        %1122 = vmatprep.subr.mxu0 0.0
        %1123 = vmatpush1.xpose.msra.mxu0 0.0
        %1124 = vmatprep.subr.mxu0 0.0
        %1125 = vmatpush1.xpose.msra.mxu0 0.0
        %1126 = vmatprep.subr.mxu0 0.0
        %1127 = vmatpush1.xpose.msra.mxu0 0.0
        %1128 = vmatprep.subr.mxu0 0.0
        %1129 = vmatpush1.xpose.msra.mxu0 0.0
        %1130 = vmatprep.subr.mxu0 0.0
        %1131 = vmatpush1.xpose.msra.mxu0 0.0
        %1132 = vmatprep.subr.mxu0 0.0
        %1133 = vmatpush1.xpose.msra.mxu0 0.0
        %1134 = vmatprep.subr.mxu0 0.0
        %1135 = vmatpush1.xpose.msra.mxu0 0.0
        %1136 = vmatprep.subr.mxu0 0.0
        %1137 = vmatpush1.xpose.msra.mxu0 0.0
        %1138 = vmatprep.subr.mxu0 0.0
        %1139 = vmatpush1.xpose.msra.mxu0 0.0
        %1140 = vmatprep.subr.mxu0 0.0
        %1141 = vmatpush1.xpose.msra.mxu0 0.0
        %1142 = vmatprep.subr.mxu0 0.0
        %1143 = vmatpush1.xpose.msra.mxu0 0.0
        %1144 = vmatprep.subr.mxu0 0.0
        %1145 = vmatpush1.xpose.msra.mxu0 0.0
        %1146 = vmatprep.subr.mxu0 0.0
        %1147 = vmatpush1.xpose.msra.mxu0 0.0
        %1148 = vmatprep.subr.mxu0 0.0
        %1149 = vmatpush1.xpose.msra.mxu0 0.0
        %1150 = vmatprep.subr.mxu0 0.0
        %1151 = vmatpush1.xpose.msra.mxu0 0.0
        %1152 = vmatprep.subr.mxu0 0.0
        %1153 = vmatpush1.xpose.msra.mxu0 0.0
        %1154 = vmatprep.subr.mxu0 0.0
        %1155 = vmatpush1.xpose.msra.mxu0 0.0
        %1156 = vmatprep.subr.mxu0 0.0
        %1157 = vmatpush1.xpose.msra.mxu0 0.0
        %1158 = vmatprep.subr.mxu0 0.0
        %1159 = vmatpush1.xpose.msra.mxu0 0.0
        %1160 = vmatprep.subr.mxu0 0.0
        %1161 = vmatpush1.xpose.msra.mxu0 0.0
        %1162 = vmatprep.subr.mxu0 0.0
        %1163 = vmatpush1.xpose.msra.mxu0 0.0
        %1164 = vmatprep.subr.mxu0 0.0
        %1165 = vmatpush1.xpose.msra.mxu0 0.0
        %1166 = vmatprep.subr.mxu0 0.0
        %1167 = vmatpush1.xpose.msra.mxu0 0.0
        %1168 = vmatprep.mubr.f32.mxu0 0.0
        %1169 = vmatmul.mubr.f32.gmra.mrb[0].mxu0 %v788
        %v1170 = vpop.f32.mrb[0].mxu0
        %v1171 = vadd.f32 0.0, %v1170
        %v1172 = vpop.f32.mrb[0].mxu0
        %1173 = vdwg.mxu0
        %1174 = vmatprep.subr.mxu0 0.0
        %1175 = vmatpush1.xpose.msra.mxu0 %v818
        %1176 = vmatprep.subr.mxu0 0.0
        %1177 = vmatpush1.xpose.msra.mxu0 %v819
        %1178 = vmatprep.subr.mxu0 0.0
        %1179 = vmatpush1.xpose.msra.mxu0 0.0
        %1180 = vmatprep.subr.mxu0 0.0
        %1181 = vmatpush1.xpose.msra.mxu0 0.0
        %1182 = vmatprep.subr.mxu0 0.0
        %1183 = vmatpush1.xpose.msra.mxu0 0.0
        %1184 = vmatprep.subr.mxu0 0.0
        %1185 = vmatpush1.xpose.msra.mxu0 0.0
        %1186 = vmatprep.subr.mxu0 0.0
        %1187 = vmatpush1.xpose.msra.mxu0 0.0
        %1188 = vmatprep.subr.mxu0 0.0
        %1189 = vmatpush1.xpose.msra.mxu0 0.0
        %1190 = vmatprep.subr.mxu0 0.0
        %1191 = vmatpush1.xpose.msra.mxu0 0.0
        %1192 = vmatprep.subr.mxu0 0.0
        %1193 = vmatpush1.xpose.msra.mxu0 0.0
        %1194 = vmatprep.subr.mxu0 0.0
        %1195 = vmatpush1.xpose.msra.mxu0 0.0
        %1196 = vmatprep.subr.mxu0 0.0
        %1197 = vmatpush1.xpose.msra.mxu0 0.0
        %1198 = vmatprep.subr.mxu0 0.0
        %1199 = vmatpush1.xpose.msra.mxu0 0.0
        %1200 = vmatprep.subr.mxu0 0.0
        %1201 = vmatpush1.xpose.msra.mxu0 0.0
        %1202 = vmatprep.subr.mxu0 0.0
        %1203 = vmatpush1.xpose.msra.mxu0 0.0
        %1204 = vmatprep.subr.mxu0 0.0
        %1205 = vmatpush1.xpose.msra.mxu0 0.0
        %1206 = vmatprep.subr.mxu0 0.0
        %1207 = vmatpush1.xpose.msra.mxu0 0.0
        %1208 = vmatprep.subr.mxu0 0.0
        %1209 = vmatpush1.xpose.msra.mxu0 0.0
        %1210 = vmatprep.subr.mxu0 0.0
        %1211 = vmatpush1.xpose.msra.mxu0 0.0
        %1212 = vmatprep.subr.mxu0 0.0
        %1213 = vmatpush1.xpose.msra.mxu0 0.0
        %1214 = vmatprep.subr.mxu0 0.0
        %1215 = vmatpush1.xpose.msra.mxu0 0.0
        %1216 = vmatprep.subr.mxu0 0.0
        %1217 = vmatpush1.xpose.msra.mxu0 0.0
        %1218 = vmatprep.subr.mxu0 0.0
        %1219 = vmatpush1.xpose.msra.mxu0 0.0
        %1220 = vmatprep.subr.mxu0 0.0
        %1221 = vmatpush1.xpose.msra.mxu0 0.0
        %1222 = vmatprep.subr.mxu0 0.0
        %1223 = vmatpush1.xpose.msra.mxu0 0.0
        %1224 = vmatprep.subr.mxu0 0.0
        %1225 = vmatpush1.xpose.msra.mxu0 0.0
        %1226 = vmatprep.subr.mxu0 0.0
        %1227 = vmatpush1.xpose.msra.mxu0 0.0
        %1228 = vmatprep.subr.mxu0 0.0
        %1229 = vmatpush1.xpose.msra.mxu0 0.0
        %1230 = vmatprep.subr.mxu0 0.0
        %1231 = vmatpush1.xpose.msra.mxu0 0.0
        %1232 = vmatprep.subr.mxu0 0.0
        %1233 = vmatpush1.xpose.msra.mxu0 0.0
        %1234 = vmatprep.subr.mxu0 0.0
        %1235 = vmatpush1.xpose.msra.mxu0 0.0
        %1236 = vmatprep.subr.mxu0 0.0
        %1237 = vmatpush1.xpose.msra.mxu0 0.0
        %1238 = vmatprep.mubr.f32.mxu0 0.0
        %1239 = vmatmul.mubr.f32.gmra.mrb[0].mxu0 %v789
        %v1240 = vpop.f32.mrb[0].mxu0
        %v1241 = vadd.f32 0.0, %v1240
        %v1242 = vpop.f32.mrb[0].mxu0
        %1243 = vdwg.mxu0
        %1244 = vmatprep.subr.mxu0 0.0
        %1245 = vmatpush1.xpose.msra.mxu0 %v820
        %1246 = vmatprep.subr.mxu0 0.0
        %1247 = vmatpush1.xpose.msra.mxu0 %v821
        %1248 = vmatprep.subr.mxu0 0.0
        %1249 = vmatpush1.xpose.msra.mxu0 0.0
        %1250 = vmatprep.subr.mxu0 0.0
        %1251 = vmatpush1.xpose.msra.mxu0 0.0
        %1252 = vmatprep.subr.mxu0 0.0
        %1253 = vmatpush1.xpose.msra.mxu0 0.0
        %1254 = vmatprep.subr.mxu0 0.0
        %1255 = vmatpush1.xpose.msra.mxu0 0.0
        %1256 = vmatprep.subr.mxu0 0.0
        %1257 = vmatpush1.xpose.msra.mxu0 0.0
        %1258 = vmatprep.subr.mxu0 0.0
        %1259 = vmatpush1.xpose.msra.mxu0 0.0
        %1260 = vmatprep.subr.mxu0 0.0
        %1261 = vmatpush1.xpose.msra.mxu0 0.0
        %1262 = vmatprep.subr.mxu0 0.0
        %1263 = vmatpush1.xpose.msra.mxu0 0.0
        %1264 = vmatprep.subr.mxu0 0.0
        %1265 = vmatpush1.xpose.msra.mxu0 0.0
        %1266 = vmatprep.subr.mxu0 0.0
        %1267 = vmatpush1.xpose.msra.mxu0 0.0
        %1268 = vmatprep.subr.mxu0 0.0
        %1269 = vmatpush1.xpose.msra.mxu0 0.0
        %1270 = vmatprep.subr.mxu0 0.0
        %1271 = vmatpush1.xpose.msra.mxu0 0.0
        %1272 = vmatprep.subr.mxu0 0.0
        %1273 = vmatpush1.xpose.msra.mxu0 0.0
        %1274 = vmatprep.subr.mxu0 0.0
        %1275 = vmatpush1.xpose.msra.mxu0 0.0
        %1276 = vmatprep.subr.mxu0 0.0
        %1277 = vmatpush1.xpose.msra.mxu0 0.0
        %1278 = vmatprep.subr.mxu0 0.0
        %1279 = vmatpush1.xpose.msra.mxu0 0.0
        %1280 = vmatprep.subr.mxu0 0.0
        %1281 = vmatpush1.xpose.msra.mxu0 0.0
        %1282 = vmatprep.subr.mxu0 0.0
        %1283 = vmatpush1.xpose.msra.mxu0 0.0
        %1284 = vmatprep.subr.mxu0 0.0
        %1285 = vmatpush1.xpose.msra.mxu0 0.0
        %1286 = vmatprep.subr.mxu0 0.0
        %1287 = vmatpush1.xpose.msra.mxu0 0.0
        %1288 = vmatprep.subr.mxu0 0.0
        %1289 = vmatpush1.xpose.msra.mxu0 0.0
        %1290 = vmatprep.subr.mxu0 0.0
        %1291 = vmatpush1.xpose.msra.mxu0 0.0
        %1292 = vmatprep.subr.mxu0 0.0
        %1293 = vmatpush1.xpose.msra.mxu0 0.0
        %1294 = vmatprep.subr.mxu0 0.0
        %1295 = vmatpush1.xpose.msra.mxu0 0.0
        %1296 = vmatprep.subr.mxu0 0.0
        %1297 = vmatpush1.xpose.msra.mxu0 0.0
        %1298 = vmatprep.subr.mxu0 0.0
        %1299 = vmatpush1.xpose.msra.mxu0 0.0
        %1300 = vmatprep.subr.mxu0 0.0
        %1301 = vmatpush1.xpose.msra.mxu0 0.0
        %1302 = vmatprep.subr.mxu0 0.0
        %1303 = vmatpush1.xpose.msra.mxu0 0.0
        %1304 = vmatprep.subr.mxu0 0.0
        %1305 = vmatpush1.xpose.msra.mxu0 0.0
        %1306 = vmatprep.subr.mxu0 0.0
        %1307 = vmatpush1.xpose.msra.mxu0 0.0
        %1308 = vmatprep.mubr.f32.mxu0 0.0
        %1309 = vmatmul.mubr.f32.gmra.mrb[0].mxu0 %v790
        %v1310 = vpop.f32.mrb[0].mxu0
        %v1311 = vadd.f32 0.0, %v1310
        %v1312 = vpop.f32.mrb[0].mxu0
        %1313 = vdwg.mxu0
        %1314 = vmatprep.subr.mxu0 0.0
        %1315 = vmatpush1.xpose.msra.mxu0 %v822
        %1316 = vmatprep.subr.mxu0 0.0
        %1317 = vmatpush1.xpose.msra.mxu0 %v823
        %1318 = vmatprep.subr.mxu0 0.0
        %1319 = vmatpush1.xpose.msra.mxu0 0.0
        %1320 = vmatprep.subr.mxu0 0.0
        %1321 = vmatpush1.xpose.msra.mxu0 0.0
        %1322 = vmatprep.subr.mxu0 0.0
        %1323 = vmatpush1.xpose.msra.mxu0 0.0
        %1324 = vmatprep.subr.mxu0 0.0
        %1325 = vmatpush1.xpose.msra.mxu0 0.0
        %1326 = vmatprep.subr.mxu0 0.0
        %1327 = vmatpush1.xpose.msra.mxu0 0.0
        %1328 = vmatprep.subr.mxu0 0.0
        %1329 = vmatpush1.xpose.msra.mxu0 0.0
        %1330 = vmatprep.subr.mxu0 0.0
        %1331 = vmatpush1.xpose.msra.mxu0 0.0
        %1332 = vmatprep.subr.mxu0 0.0
        %1333 = vmatpush1.xpose.msra.mxu0 0.0
        %1334 = vmatprep.subr.mxu0 0.0
        %1335 = vmatpush1.xpose.msra.mxu0 0.0
        %1336 = vmatprep.subr.mxu0 0.0
        %1337 = vmatpush1.xpose.msra.mxu0 0.0
        %1338 = vmatprep.subr.mxu0 0.0
        %1339 = vmatpush1.xpose.msra.mxu0 0.0
        %1340 = vmatprep.subr.mxu0 0.0
        %1341 = vmatpush1.xpose.msra.mxu0 0.0
        %1342 = vmatprep.subr.mxu0 0.0
        %1343 = vmatpush1.xpose.msra.mxu0 0.0
        %1344 = vmatprep.subr.mxu0 0.0
        %1345 = vmatpush1.xpose.msra.mxu0 0.0
        %1346 = vmatprep.subr.mxu0 0.0
        %1347 = vmatpush1.xpose.msra.mxu0 0.0
        %1348 = vmatprep.subr.mxu0 0.0
        %1349 = vmatpush1.xpose.msra.mxu0 0.0
        %1350 = vmatprep.subr.mxu0 0.0
        %1351 = vmatpush1.xpose.msra.mxu0 0.0
        %1352 = vmatprep.subr.mxu0 0.0
        %1353 = vmatpush1.xpose.msra.mxu0 0.0
        %1354 = vmatprep.subr.mxu0 0.0
        %1355 = vmatpush1.xpose.msra.mxu0 0.0
        %1356 = vmatprep.subr.mxu0 0.0
        %1357 = vmatpush1.xpose.msra.mxu0 0.0
        %1358 = vmatprep.subr.mxu0 0.0
        %1359 = vmatpush1.xpose.msra.mxu0 0.0
        %1360 = vmatprep.subr.mxu0 0.0
        %1361 = vmatpush1.xpose.msra.mxu0 0.0
        %1362 = vmatprep.subr.mxu0 0.0
        %1363 = vmatpush1.xpose.msra.mxu0 0.0
        %1364 = vmatprep.subr.mxu0 0.0
        %1365 = vmatpush1.xpose.msra.mxu0 0.0
        %1366 = vmatprep.subr.mxu0 0.0
        %1367 = vmatpush1.xpose.msra.mxu0 0.0
        %1368 = vmatprep.subr.mxu0 0.0
        %1369 = vmatpush1.xpose.msra.mxu0 0.0
        %1370 = vmatprep.subr.mxu0 0.0
        %1371 = vmatpush1.xpose.msra.mxu0 0.0
        %1372 = vmatprep.subr.mxu0 0.0
        %1373 = vmatpush1.xpose.msra.mxu0 0.0
        %1374 = vmatprep.subr.mxu0 0.0
        %1375 = vmatpush1.xpose.msra.mxu0 0.0
        %1376 = vmatprep.subr.mxu0 0.0
        %1377 = vmatpush1.xpose.msra.mxu0 0.0
        %1378 = vmatprep.mubr.f32.mxu0 0.0
        %1379 = vmatmul.mubr.f32.gmra.mrb[0].mxu0 %v791
        %v1380 = vpop.f32.mrb[0].mxu0
        %v1381 = vadd.f32 0.0, %v1380
        %v1382 = vpop.f32.mrb[0].mxu0
        %1383 = vdwg.mxu0
        %v1384 = vcombine.low %v891, %v1031
        %v1386 = vunpack.c.l.s4 1983009808
        %v1387 = vunpack.c.0.s8 %v1386
        %v1388 = vlaneseq
        %v1389 = vshrl.u32 %v1388, 7
        %v1390 = vsub.s32 %v1387, %v1389
        %v1391 = vrot.slane %v1384, %v1390
        %v1392 = vcombine.low %v961, %v1101
        %v1394 = vunpack.c.l.s4 1983009808
        %v1395 = vunpack.c.0.s8 %v1394
        %v1396 = vlaneseq
        %v1397 = vshrl.u32 %v1396, 7
        %v1398 = vsub.s32 %v1395, %v1397
        %v1399 = vrot.slane %v1392, %v1398
        %v1400 = vcombine.low %v1171, %v1311
        %v1402 = vunpack.c.l.s4 1983009808
        %v1403 = vunpack.c.0.s8 %v1402
        %v1404 = vlaneseq
        %v1405 = vshrl.u32 %v1404, 7
        %v1406 = vsub.s32 %v1403, %v1405
        %v1407 = vrot.slane %v1400, %v1406
        %v1408 = vcombine.low %v1241, %v1381
        %v1410 = vunpack.c.l.s4 1983009808
        %v1411 = vunpack.c.0.s8 %v1410
        %v1412 = vlaneseq
        %v1413 = vshrl.u32 %v1412, 7
        %v1414 = vsub.s32 %v1411, %v1413
        %v1415 = vrot.slane %v1408, %v1414
        %v1416 = vcombine.low %v1391, %v1399
        %v1417 = vcombine.high %v1391, %v1399
        %v1419 = vunpack.c.l.s4 1934713408
        %v1420 = vunpack.c.0.s8 %v1419
        %v1421 = vlaneseq
        %v1422 = vshrl.u32 %v1421, 7
        %v1423 = vsub.s32 %v1420, %v1422
        %v1424 = vrot.slane %v1416, %v1423
        %v1426 = vunpack.c.l.s4 1934713408
        %v1427 = vunpack.c.0.s8 %v1426
        %v1428 = vlaneseq
        %v1429 = vshrl.u32 %v1428, 7
        %v1430 = vsub.s32 %v1427, %v1429
        %v1431 = vrot.slane %v1417, %v1430
        %v1432 = vcombine.low %v1407, %v1415
        %v1433 = vcombine.high %v1407, %v1415
        %v1435 = vunpack.c.l.s4 1934713408
        %v1436 = vunpack.c.0.s8 %v1435
        %v1437 = vlaneseq
        %v1438 = vshrl.u32 %v1437, 7
        %v1439 = vsub.s32 %v1436, %v1438
        %v1440 = vrot.slane %v1432, %v1439
        %v1442 = vunpack.c.l.s4 1934713408
        %v1443 = vunpack.c.0.s8 %v1442
        %v1444 = vlaneseq
        %v1445 = vshrl.u32 %v1444, 7
        %v1446 = vsub.s32 %v1443, %v1445
        %v1447 = vrot.slane %v1433, %v1446
        %v1448 = vcombine.low %v1424, %v1440
        %v1449 = vcombine.high %v1424, %v1440
        %v1450 = vcombine.low %v1431, %v1447
        %v1451 = vcombine.high %v1431, %v1447
        %v1452 = vld [vmem:[%s776] sm:$0x1]
        %v1453 = vsub.f32 1.0, %v1452
        %v1454 = vmul.f32 %v1453, 1e+15
        %vm1455 = vcmask 261120
        %v1457 = vsel %vm1455, %v780, 0
        %v1460 = vsel %vm1455, %v792, 0
        %v1463 = vsel %vm1455, %v793, 0
        %1465 = vmatprep.subr.mxu0 0.0
        %1466 = vmatpush1.xpose.msra.mxu0 %v1460
        %1467 = vmatprep.subr.mxu0 0.0
        %1468 = vmatpush1.xpose.msra.mxu0 %v1463
        %1469 = vmatprep.subr.mxu0 0.0
        %1470 = vmatpush1.xpose.msra.mxu0 0.0
        %1471 = vmatprep.subr.mxu0 0.0
        %1472 = vmatpush1.xpose.msra.mxu0 0.0
        %1473 = vmatprep.subr.mxu0 0.0
        %1474 = vmatpush1.xpose.msra.mxu0 0.0
        %1475 = vmatprep.subr.mxu0 0.0
        %1476 = vmatpush1.xpose.msra.mxu0 0.0
        %1477 = vmatprep.subr.mxu0 0.0
        %1478 = vmatpush1.xpose.msra.mxu0 0.0
        %1479 = vmatprep.subr.mxu0 0.0
        %1480 = vmatpush1.xpose.msra.mxu0 0.0
        %1481 = vmatprep.subr.mxu0 0.0
        %1482 = vmatpush1.xpose.msra.mxu0 0.0
        %1483 = vmatprep.subr.mxu0 0.0
        %1484 = vmatpush1.xpose.msra.mxu0 0.0
        %1485 = vmatprep.subr.mxu0 0.0
        %1486 = vmatpush1.xpose.msra.mxu0 0.0
        %1487 = vmatprep.subr.mxu0 0.0
        %1488 = vmatpush1.xpose.msra.mxu0 0.0
        %1489 = vmatprep.subr.mxu0 0.0
        %1490 = vmatpush1.xpose.msra.mxu0 0.0
        %1491 = vmatprep.subr.mxu0 0.0
        %1492 = vmatpush1.xpose.msra.mxu0 0.0
        %1493 = vmatprep.subr.mxu0 0.0
        %1494 = vmatpush1.xpose.msra.mxu0 0.0
        %1495 = vmatprep.subr.mxu0 0.0
        %1496 = vmatpush1.xpose.msra.mxu0 0.0
        %1497 = vmatprep.subr.mxu0 0.0
        %1498 = vmatpush1.xpose.msra.mxu0 0.0
        %1499 = vmatprep.subr.mxu0 0.0
        %1500 = vmatpush1.xpose.msra.mxu0 0.0
        %1501 = vmatprep.subr.mxu0 0.0
        %1502 = vmatpush1.xpose.msra.mxu0 0.0
        %1503 = vmatprep.subr.mxu0 0.0
        %1504 = vmatpush1.xpose.msra.mxu0 0.0
        %1505 = vmatprep.subr.mxu0 0.0
        %1506 = vmatpush1.xpose.msra.mxu0 0.0
        %1507 = vmatprep.subr.mxu0 0.0
        %1508 = vmatpush1.xpose.msra.mxu0 0.0
        %1509 = vmatprep.subr.mxu0 0.0
        %1510 = vmatpush1.xpose.msra.mxu0 0.0
        %1511 = vmatprep.subr.mxu0 0.0
        %1512 = vmatpush1.xpose.msra.mxu0 0.0
        %1513 = vmatprep.subr.mxu0 0.0
        %1514 = vmatpush1.xpose.msra.mxu0 0.0
        %1515 = vmatprep.subr.mxu0 0.0
        %1516 = vmatpush1.xpose.msra.mxu0 0.0
        %1517 = vmatprep.subr.mxu0 0.0
        %1518 = vmatpush1.xpose.msra.mxu0 0.0
        %1519 = vmatprep.subr.mxu0 0.0
        %1520 = vmatpush1.xpose.msra.mxu0 0.0
        %1521 = vmatprep.subr.mxu0 0.0
        %1522 = vmatpush1.xpose.msra.mxu0 0.0
        %1523 = vmatprep.subr.mxu0 0.0
        %1524 = vmatpush1.xpose.msra.mxu0 0.0
        %1525 = vmatprep.subr.mxu0 0.0
        %1526 = vmatpush1.xpose.msra.mxu0 0.0
        %1527 = vmatprep.subr.mxu0 0.0
        %1528 = vmatpush1.xpose.msra.mxu0 0.0
        %1529 = vmatprep.mubr.f32.mxu0 0.0
        %1530 = vmatmul.mubr.f32.gmra.mrb[0].mxu0 %v1457
        %v1531 = vpop.f32.mrb[0].mxu0
        %v1532 = vadd.f32 %v1448, %v1531
        %v1533 = vpop.f32.mrb[0].mxu0
        %1534 = vdwg.mxu0
        %v1536 = vsel %vm1455, %v781, 0
        %v1539 = vsel %vm1455, %v794, 0
        %v1542 = vsel %vm1455, %v795, 0
        %1544 = vmatprep.subr.mxu0 0.0
        %1545 = vmatpush1.xpose.msra.mxu0 %v1539
        %1546 = vmatprep.subr.mxu0 0.0
        %1547 = vmatpush1.xpose.msra.mxu0 %v1542
        %1548 = vmatprep.subr.mxu0 0.0
        %1549 = vmatpush1.xpose.msra.mxu0 0.0
        %1550 = vmatprep.subr.mxu0 0.0
        %1551 = vmatpush1.xpose.msra.mxu0 0.0
        %1552 = vmatprep.subr.mxu0 0.0
        %1553 = vmatpush1.xpose.msra.mxu0 0.0
        %1554 = vmatprep.subr.mxu0 0.0
        %1555 = vmatpush1.xpose.msra.mxu0 0.0
        %1556 = vmatprep.subr.mxu0 0.0
        %1557 = vmatpush1.xpose.msra.mxu0 0.0
        %1558 = vmatprep.subr.mxu0 0.0
        %1559 = vmatpush1.xpose.msra.mxu0 0.0
        %1560 = vmatprep.subr.mxu0 0.0
        %1561 = vmatpush1.xpose.msra.mxu0 0.0
        %1562 = vmatprep.subr.mxu0 0.0
        %1563 = vmatpush1.xpose.msra.mxu0 0.0
        %1564 = vmatprep.subr.mxu0 0.0
        %1565 = vmatpush1.xpose.msra.mxu0 0.0
        %1566 = vmatprep.subr.mxu0 0.0
        %1567 = vmatpush1.xpose.msra.mxu0 0.0
        %1568 = vmatprep.subr.mxu0 0.0
        %1569 = vmatpush1.xpose.msra.mxu0 0.0
        %1570 = vmatprep.subr.mxu0 0.0
        %1571 = vmatpush1.xpose.msra.mxu0 0.0
        %1572 = vmatprep.subr.mxu0 0.0
        %1573 = vmatpush1.xpose.msra.mxu0 0.0
        %1574 = vmatprep.subr.mxu0 0.0
        %1575 = vmatpush1.xpose.msra.mxu0 0.0
        %1576 = vmatprep.subr.mxu0 0.0
        %1577 = vmatpush1.xpose.msra.mxu0 0.0
        %1578 = vmatprep.subr.mxu0 0.0
        %1579 = vmatpush1.xpose.msra.mxu0 0.0
        %1580 = vmatprep.subr.mxu0 0.0
        %1581 = vmatpush1.xpose.msra.mxu0 0.0
        %1582 = vmatprep.subr.mxu0 0.0
        %1583 = vmatpush1.xpose.msra.mxu0 0.0
        %1584 = vmatprep.subr.mxu0 0.0
        %1585 = vmatpush1.xpose.msra.mxu0 0.0
        %1586 = vmatprep.subr.mxu0 0.0
        %1587 = vmatpush1.xpose.msra.mxu0 0.0
        %1588 = vmatprep.subr.mxu0 0.0
        %1589 = vmatpush1.xpose.msra.mxu0 0.0
        %1590 = vmatprep.subr.mxu0 0.0
        %1591 = vmatpush1.xpose.msra.mxu0 0.0
        %1592 = vmatprep.subr.mxu0 0.0
        %1593 = vmatpush1.xpose.msra.mxu0 0.0
        %1594 = vmatprep.subr.mxu0 0.0
        %1595 = vmatpush1.xpose.msra.mxu0 0.0
        %1596 = vmatprep.subr.mxu0 0.0
        %1597 = vmatpush1.xpose.msra.mxu0 0.0
        %1598 = vmatprep.subr.mxu0 0.0
        %1599 = vmatpush1.xpose.msra.mxu0 0.0
        %1600 = vmatprep.subr.mxu0 0.0
        %1601 = vmatpush1.xpose.msra.mxu0 0.0
        %1602 = vmatprep.subr.mxu0 0.0
        %1603 = vmatpush1.xpose.msra.mxu0 0.0
        %1604 = vmatprep.subr.mxu0 0.0
        %1605 = vmatpush1.xpose.msra.mxu0 0.0
        %1606 = vmatprep.subr.mxu0 0.0
        %1607 = vmatpush1.xpose.msra.mxu0 0.0
        %1608 = vmatprep.mubr.f32.mxu0 0.0
        %1609 = vmatmul.mubr.f32.gmra.mrb[0].mxu0 %v1536
        %v1610 = vpop.f32.mrb[0].mxu0
        %v1611 = vadd.f32 %v1449, %v1610
        %v1612 = vpop.f32.mrb[0].mxu0
        %1613 = vdwg.mxu0
        %v1615 = vsel %vm1455, %v782, 0
        %v1618 = vsel %vm1455, %v796, 0
        %v1621 = vsel %vm1455, %v797, 0
        %1623 = vmatprep.subr.mxu0 0.0
        %1624 = vmatpush1.xpose.msra.mxu0 %v1618
        %1625 = vmatprep.subr.mxu0 0.0
        %1626 = vmatpush1.xpose.msra.mxu0 %v1621
        %1627 = vmatprep.subr.mxu0 0.0
        %1628 = vmatpush1.xpose.msra.mxu0 0.0
        %1629 = vmatprep.subr.mxu0 0.0
        %1630 = vmatpush1.xpose.msra.mxu0 0.0
        %1631 = vmatprep.subr.mxu0 0.0
        %1632 = vmatpush1.xpose.msra.mxu0 0.0
        %1633 = vmatprep.subr.mxu0 0.0
        %1634 = vmatpush1.xpose.msra.mxu0 0.0
        %1635 = vmatprep.subr.mxu0 0.0
        %1636 = vmatpush1.xpose.msra.mxu0 0.0
        %1637 = vmatprep.subr.mxu0 0.0
        %1638 = vmatpush1.xpose.msra.mxu0 0.0
        %1639 = vmatprep.subr.mxu0 0.0
        %1640 = vmatpush1.xpose.msra.mxu0 0.0
        %1641 = vmatprep.subr.mxu0 0.0
        %1642 = vmatpush1.xpose.msra.mxu0 0.0
        %1643 = vmatprep.subr.mxu0 0.0
        %1644 = vmatpush1.xpose.msra.mxu0 0.0
        %1645 = vmatprep.subr.mxu0 0.0
        %1646 = vmatpush1.xpose.msra.mxu0 0.0
        %1647 = vmatprep.subr.mxu0 0.0
        %1648 = vmatpush1.xpose.msra.mxu0 0.0
        %1649 = vmatprep.subr.mxu0 0.0
        %1650 = vmatpush1.xpose.msra.mxu0 0.0
        %1651 = vmatprep.subr.mxu0 0.0
        %1652 = vmatpush1.xpose.msra.mxu0 0.0
        %1653 = vmatprep.subr.mxu0 0.0
        %1654 = vmatpush1.xpose.msra.mxu0 0.0
        %1655 = vmatprep.subr.mxu0 0.0
        %1656 = vmatpush1.xpose.msra.mxu0 0.0
        %1657 = vmatprep.subr.mxu0 0.0
        %1658 = vmatpush1.xpose.msra.mxu0 0.0
        %1659 = vmatprep.subr.mxu0 0.0
        %1660 = vmatpush1.xpose.msra.mxu0 0.0
        %1661 = vmatprep.subr.mxu0 0.0
        %1662 = vmatpush1.xpose.msra.mxu0 0.0
        %1663 = vmatprep.subr.mxu0 0.0
        %1664 = vmatpush1.xpose.msra.mxu0 0.0
        %1665 = vmatprep.subr.mxu0 0.0
        %1666 = vmatpush1.xpose.msra.mxu0 0.0
        %1667 = vmatprep.subr.mxu0 0.0
        %1668 = vmatpush1.xpose.msra.mxu0 0.0
        %1669 = vmatprep.subr.mxu0 0.0
        %1670 = vmatpush1.xpose.msra.mxu0 0.0
        %1671 = vmatprep.subr.mxu0 0.0
        %1672 = vmatpush1.xpose.msra.mxu0 0.0
        %1673 = vmatprep.subr.mxu0 0.0
        %1674 = vmatpush1.xpose.msra.mxu0 0.0
        %1675 = vmatprep.subr.mxu0 0.0
        %1676 = vmatpush1.xpose.msra.mxu0 0.0
        %1677 = vmatprep.subr.mxu0 0.0
        %1678 = vmatpush1.xpose.msra.mxu0 0.0
        %1679 = vmatprep.subr.mxu0 0.0
        %1680 = vmatpush1.xpose.msra.mxu0 0.0
        %1681 = vmatprep.subr.mxu0 0.0
        %1682 = vmatpush1.xpose.msra.mxu0 0.0
        %1683 = vmatprep.subr.mxu0 0.0
        %1684 = vmatpush1.xpose.msra.mxu0 0.0
        %1685 = vmatprep.subr.mxu0 0.0
        %1686 = vmatpush1.xpose.msra.mxu0 0.0
        %1687 = vmatprep.mubr.f32.mxu0 0.0
        %1688 = vmatmul.mubr.f32.gmra.mrb[0].mxu0 %v1615
        %v1689 = vpop.f32.mrb[0].mxu0
        %v1690 = vadd.f32 %v1450, %v1689
        %v1691 = vpop.f32.mrb[0].mxu0
        %1692 = vdwg.mxu0
        %v1694 = vsel %vm1455, %v783, 0
        %v1697 = vsel %vm1455, %v798, 0
        %v1700 = vsel %vm1455, %v799, 0
        %1702 = vmatprep.subr.mxu0 0.0
        %1703 = vmatpush1.xpose.msra.mxu0 %v1697
        %1704 = vmatprep.subr.mxu0 0.0
        %1705 = vmatpush1.xpose.msra.mxu0 %v1700
        %1706 = vmatprep.subr.mxu0 0.0
        %1707 = vmatpush1.xpose.msra.mxu0 0.0
        %1708 = vmatprep.subr.mxu0 0.0
        %1709 = vmatpush1.xpose.msra.mxu0 0.0
        %1710 = vmatprep.subr.mxu0 0.0
        %1711 = vmatpush1.xpose.msra.mxu0 0.0
        %1712 = vmatprep.subr.mxu0 0.0
        %1713 = vmatpush1.xpose.msra.mxu0 0.0
        %1714 = vmatprep.subr.mxu0 0.0
        %1715 = vmatpush1.xpose.msra.mxu0 0.0
        %1716 = vmatprep.subr.mxu0 0.0
        %1717 = vmatpush1.xpose.msra.mxu0 0.0
        %1718 = vmatprep.subr.mxu0 0.0
        %1719 = vmatpush1.xpose.msra.mxu0 0.0
        %1720 = vmatprep.subr.mxu0 0.0
        %1721 = vmatpush1.xpose.msra.mxu0 0.0
        %1722 = vmatprep.subr.mxu0 0.0
        %1723 = vmatpush1.xpose.msra.mxu0 0.0
        %1724 = vmatprep.subr.mxu0 0.0
        %1725 = vmatpush1.xpose.msra.mxu0 0.0
        %1726 = vmatprep.subr.mxu0 0.0
        %1727 = vmatpush1.xpose.msra.mxu0 0.0
        %1728 = vmatprep.subr.mxu0 0.0
        %1729 = vmatpush1.xpose.msra.mxu0 0.0
        %1730 = vmatprep.subr.mxu0 0.0
        %1731 = vmatpush1.xpose.msra.mxu0 0.0
        %1732 = vmatprep.subr.mxu0 0.0
        %1733 = vmatpush1.xpose.msra.mxu0 0.0
        %1734 = vmatprep.subr.mxu0 0.0
        %1735 = vmatpush1.xpose.msra.mxu0 0.0
        %1736 = vmatprep.subr.mxu0 0.0
        %1737 = vmatpush1.xpose.msra.mxu0 0.0
        %1738 = vmatprep.subr.mxu0 0.0
        %1739 = vmatpush1.xpose.msra.mxu0 0.0
        %1740 = vmatprep.subr.mxu0 0.0
        %1741 = vmatpush1.xpose.msra.mxu0 0.0
        %1742 = vmatprep.subr.mxu0 0.0
        %1743 = vmatpush1.xpose.msra.mxu0 0.0
        %1744 = vmatprep.subr.mxu0 0.0
        %1745 = vmatpush1.xpose.msra.mxu0 0.0
        %1746 = vmatprep.subr.mxu0 0.0
        %1747 = vmatpush1.xpose.msra.mxu0 0.0
        %1748 = vmatprep.subr.mxu0 0.0
        %1749 = vmatpush1.xpose.msra.mxu0 0.0
        %1750 = vmatprep.subr.mxu0 0.0
        %1751 = vmatpush1.xpose.msra.mxu0 0.0
        %1752 = vmatprep.subr.mxu0 0.0
        %1753 = vmatpush1.xpose.msra.mxu0 0.0
        %1754 = vmatprep.subr.mxu0 0.0
        %1755 = vmatpush1.xpose.msra.mxu0 0.0
        %1756 = vmatprep.subr.mxu0 0.0
        %1757 = vmatpush1.xpose.msra.mxu0 0.0
        %1758 = vmatprep.subr.mxu0 0.0
        %1759 = vmatpush1.xpose.msra.mxu0 0.0
        %1760 = vmatprep.subr.mxu0 0.0
        %1761 = vmatpush1.xpose.msra.mxu0 0.0
        %1762 = vmatprep.subr.mxu0 0.0
        %1763 = vmatpush1.xpose.msra.mxu0 0.0
        %1764 = vmatprep.subr.mxu0 0.0
        %1765 = vmatpush1.xpose.msra.mxu0 0.0
        %1766 = vmatprep.mubr.f32.mxu0 0.0
        %1767 = vmatmul.mubr.f32.gmra.mrb[0].mxu0 %v1694
        %v1768 = vpop.f32.mrb[0].mxu0
        %v1769 = vadd.f32 %v1451, %v1768
        %v1770 = vpop.f32.mrb[0].mxu0
        %1771 = vdwg.mxu0
        %v1772 = vmul.f32 %v1532, 0.17677669
        %v1773 = vmul.f32 %v1611, 0.17677669
        %v1774 = vmul.f32 %v1690, 0.17677669
        %v1775 = vmul.f32 %v1769, 0.17677669
        %v1777 = vlaneseq
        %v1778 = vshrl.u32 %v1777, 7
        %v1779 = vsub.s32 0, %v1778
        %v1780 = vrot.slane %v1454, %v1779
        %v1782 = vsub.f32 %v1772, %v1780
        %v1783 = vsub.f32 %v1773, %v1780
        %v1784 = vsub.f32 %v1774, %v1780
        %v1785 = vsub.f32 %v1775, %v1780
        %vm1786 = vcmask 130048
        %v1787 = vsel %vm1786, %v1782, -inf
        %1788 = vmax.xlane.f32.xlu0 %v1787
        %v1789 = vpop.xlane.xlu0 %1788
        %v1790 = vsel %vm1786, %v1783, -inf
        %1791 = vmax.xlane.f32.xlu0 %v1790
        %v1792 = vpop.xlane.xlu0 %1791
        %v1793 = vsel %vm1786, %v1784, -inf
        %1794 = vmax.xlane.f32.xlu0 %v1793
        %v1795 = vpop.xlane.xlu0 %1794
        %v1796 = vsel %vm1786, %v1785, -inf
        %1797 = vmax.xlane.f32.xlu0 %v1796
        %v1798 = vpop.xlane.xlu0 %1797
        %v1799 = vsub.f32 %v1782, %v1789
        %v1800 = vsub.f32 %v1783, %v1792
        %v1801 = vsub.f32 %v1784, %v1795
        %v1802 = vsub.f32 %v1785, %v1798
        %v1803 = vmul.f32 %v1799, 1.442695
        %v1804 = vpow.pop %v1803
        %v1805 = vmul.f32 %v1800, 1.442695
        %v1806 = vpow.pop %v1805
        %v1807 = vmul.f32 %v1801, 1.442695
        %v1808 = vpow.pop %v1807
        %v1809 = vmul.f32 %v1802, 1.442695
        %v1810 = vpow.pop %v1809
        %v1811 = vsel %vm1786, %v1804, 0.0
        %1812 = vadd.xlane.f32.xlu0 %v1811
        %v1813 = vpop.xlane.xlu0 %1812
        %v1814 = vsel %vm1786, %v1806, 0.0
        %1815 = vadd.xlane.f32.xlu0 %v1814
        %v1816 = vpop.xlane.xlu0 %1815
        %v1817 = vsel %vm1786, %v1808, 0.0
        %1818 = vadd.xlane.f32.xlu0 %v1817
        %v1819 = vpop.xlane.xlu0 %1818
        %v1820 = vsel %vm1786, %v1810, 0.0
        %1821 = vadd.xlane.f32.xlu0 %v1820
        %v1822 = vpop.xlane.xlu0 %1821
        %v1823 = vrcp.pop %v1813
        %v1824 = vrcp.pop %v1816
        %v1825 = vrcp.pop %v1819
        %v1826 = vrcp.pop %v1822
        %v1827 = vmul.f32 %v1804, %v1823
        %v1828 = vmul.f32 %v1806, %v1824
        %v1829 = vmul.f32 %v1808, %v1825
        %v1830 = vmul.f32 %v1810, %v1826
        %v1832 = vsel %vm1786, %v1827, 0
        %1834 = vmatprep.subr.mxu0 0.0
        %1835 = vmatpush1.msra.mxu0 %v800
        %1836 = vmatprep.subr.mxu0 0.0
        %1837 = vmatpush1.msra.mxu0 %v801
        %1838 = vmatprep.subr.mxu0 0.0
        %1839 = vmatpush1.msra.mxu0 0.0
        %1840 = vmatprep.subr.mxu0 0.0
        %1841 = vmatpush1.msra.mxu0 0.0
        %1842 = vmatprep.subr.mxu0 0.0
        %1843 = vmatpush1.msra.mxu0 0.0
        %1844 = vmatprep.subr.mxu0 0.0
        %1845 = vmatpush1.msra.mxu0 0.0
        %1846 = vmatprep.subr.mxu0 0.0
        %1847 = vmatpush1.msra.mxu0 0.0
        %1848 = vmatprep.subr.mxu0 0.0
        %1849 = vmatpush1.msra.mxu0 0.0
        %1850 = vmatprep.subr.mxu0 0.0
        %1851 = vmatpush1.msra.mxu0 0.0
        %1852 = vmatprep.subr.mxu0 0.0
        %1853 = vmatpush1.msra.mxu0 0.0
        %1854 = vmatprep.subr.mxu0 0.0
        %1855 = vmatpush1.msra.mxu0 0.0
        %1856 = vmatprep.subr.mxu0 0.0
        %1857 = vmatpush1.msra.mxu0 0.0
        %1858 = vmatprep.subr.mxu0 0.0
        %1859 = vmatpush1.msra.mxu0 0.0
        %1860 = vmatprep.subr.mxu0 0.0
        %1861 = vmatpush1.msra.mxu0 0.0
        %1862 = vmatprep.subr.mxu0 0.0
        %1863 = vmatpush1.msra.mxu0 0.0
        %1864 = vmatprep.subr.mxu0 0.0
        %1865 = vmatpush1.msra.mxu0 0.0
        %1866 = vmatprep.subr.mxu0 0.0
        %1867 = vmatpush1.msra.mxu0 0.0
        %1868 = vmatprep.subr.mxu0 0.0
        %1869 = vmatpush1.msra.mxu0 0.0
        %1870 = vmatprep.subr.mxu0 0.0
        %1871 = vmatpush1.msra.mxu0 0.0
        %1872 = vmatprep.subr.mxu0 0.0
        %1873 = vmatpush1.msra.mxu0 0.0
        %1874 = vmatprep.subr.mxu0 0.0
        %1875 = vmatpush1.msra.mxu0 0.0
        %1876 = vmatprep.subr.mxu0 0.0
        %1877 = vmatpush1.msra.mxu0 0.0
        %1878 = vmatprep.subr.mxu0 0.0
        %1879 = vmatpush1.msra.mxu0 0.0
        %1880 = vmatprep.subr.mxu0 0.0
        %1881 = vmatpush1.msra.mxu0 0.0
        %1882 = vmatprep.subr.mxu0 0.0
        %1883 = vmatpush1.msra.mxu0 0.0
        %1884 = vmatprep.subr.mxu0 0.0
        %1885 = vmatpush1.msra.mxu0 0.0
        %1886 = vmatprep.subr.mxu0 0.0
        %1887 = vmatpush1.msra.mxu0 0.0
        %1888 = vmatprep.subr.mxu0 0.0
        %1889 = vmatpush1.msra.mxu0 0.0
        %1890 = vmatprep.subr.mxu0 0.0
        %1891 = vmatpush1.msra.mxu0 0.0
        %1892 = vmatprep.subr.mxu0 0.0
        %1893 = vmatpush1.msra.mxu0 0.0
        %1894 = vmatprep.subr.mxu0 0.0
        %1895 = vmatpush1.msra.mxu0 0.0
        %1896 = vmatprep.subr.mxu0 0.0
        %1897 = vmatpush1.msra.mxu0 0.0
        %1898 = vmatprep.mubr.f32.mxu0 0.0
        %1899 = vmatmul.mubr.f32.gmra.mrb[0].mxu0 %v1832
        %v1900 = vpop.f32.mrb[0].mxu0
        %v1901 = vadd.f32 0.0, %v1900
        %v1902 = vpop.f32.mrb[0].mxu0
        %1903 = vdwg.mxu0
        %v1905 = vsel %vm1786, %v1828, 0
        %1907 = vmatprep.subr.mxu0 0.0
        %1908 = vmatpush1.msra.mxu0 %v802
        %1909 = vmatprep.subr.mxu0 0.0
        %1910 = vmatpush1.msra.mxu0 %v803
        %1911 = vmatprep.subr.mxu0 0.0
        %1912 = vmatpush1.msra.mxu0 0.0
        %1913 = vmatprep.subr.mxu0 0.0
        %1914 = vmatpush1.msra.mxu0 0.0
        %1915 = vmatprep.subr.mxu0 0.0
        %1916 = vmatpush1.msra.mxu0 0.0
        %1917 = vmatprep.subr.mxu0 0.0
        %1918 = vmatpush1.msra.mxu0 0.0
        %1919 = vmatprep.subr.mxu0 0.0
        %1920 = vmatpush1.msra.mxu0 0.0
        %1921 = vmatprep.subr.mxu0 0.0
        %1922 = vmatpush1.msra.mxu0 0.0
        %1923 = vmatprep.subr.mxu0 0.0
        %1924 = vmatpush1.msra.mxu0 0.0
        %1925 = vmatprep.subr.mxu0 0.0
        %1926 = vmatpush1.msra.mxu0 0.0
        %1927 = vmatprep.subr.mxu0 0.0
        %1928 = vmatpush1.msra.mxu0 0.0
        %1929 = vmatprep.subr.mxu0 0.0
        %1930 = vmatpush1.msra.mxu0 0.0
        %1931 = vmatprep.subr.mxu0 0.0
        %1932 = vmatpush1.msra.mxu0 0.0
        %1933 = vmatprep.subr.mxu0 0.0
        %1934 = vmatpush1.msra.mxu0 0.0
        %1935 = vmatprep.subr.mxu0 0.0
        %1936 = vmatpush1.msra.mxu0 0.0
        %1937 = vmatprep.subr.mxu0 0.0
        %1938 = vmatpush1.msra.mxu0 0.0
        %1939 = vmatprep.subr.mxu0 0.0
        %1940 = vmatpush1.msra.mxu0 0.0
        %1941 = vmatprep.subr.mxu0 0.0
        %1942 = vmatpush1.msra.mxu0 0.0
        %1943 = vmatprep.subr.mxu0 0.0
        %1944 = vmatpush1.msra.mxu0 0.0
        %1945 = vmatprep.subr.mxu0 0.0
        %1946 = vmatpush1.msra.mxu0 0.0
        %1947 = vmatprep.subr.mxu0 0.0
        %1948 = vmatpush1.msra.mxu0 0.0
        %1949 = vmatprep.subr.mxu0 0.0
        %1950 = vmatpush1.msra.mxu0 0.0
        %1951 = vmatprep.subr.mxu0 0.0
        %1952 = vmatpush1.msra.mxu0 0.0
        %1953 = vmatprep.subr.mxu0 0.0
        %1954 = vmatpush1.msra.mxu0 0.0
        %1955 = vmatprep.subr.mxu0 0.0
        %1956 = vmatpush1.msra.mxu0 0.0
        %1957 = vmatprep.subr.mxu0 0.0
        %1958 = vmatpush1.msra.mxu0 0.0
        %1959 = vmatprep.subr.mxu0 0.0
        %1960 = vmatpush1.msra.mxu0 0.0
        %1961 = vmatprep.subr.mxu0 0.0
        %1962 = vmatpush1.msra.mxu0 0.0
        %1963 = vmatprep.subr.mxu0 0.0
        %1964 = vmatpush1.msra.mxu0 0.0
        %1965 = vmatprep.subr.mxu0 0.0
        %1966 = vmatpush1.msra.mxu0 0.0
        %1967 = vmatprep.subr.mxu0 0.0
        %1968 = vmatpush1.msra.mxu0 0.0
        %1969 = vmatprep.subr.mxu0 0.0
        %1970 = vmatpush1.msra.mxu0 0.0
        %1971 = vmatprep.mubr.f32.mxu0 0.0
        %1972 = vmatmul.mubr.f32.gmra.mrb[0].mxu0 %v1905
        %v1973 = vpop.f32.mrb[0].mxu0
        %v1974 = vadd.f32 0.0, %v1973
        %v1975 = vpop.f32.mrb[0].mxu0
        %1976 = vdwg.mxu0
        %v1978 = vsel %vm1786, %v1829, 0
        %1980 = vmatprep.subr.mxu0 0.0
        %1981 = vmatpush1.msra.mxu0 %v804
        %1982 = vmatprep.subr.mxu0 0.0
        %1983 = vmatpush1.msra.mxu0 %v805
        %1984 = vmatprep.subr.mxu0 0.0
        %1985 = vmatpush1.msra.mxu0 0.0
        %1986 = vmatprep.subr.mxu0 0.0
        %1987 = vmatpush1.msra.mxu0 0.0
        %1988 = vmatprep.subr.mxu0 0.0
        %1989 = vmatpush1.msra.mxu0 0.0
        %1990 = vmatprep.subr.mxu0 0.0
        %1991 = vmatpush1.msra.mxu0 0.0
        %1992 = vmatprep.subr.mxu0 0.0
        %1993 = vmatpush1.msra.mxu0 0.0
        %1994 = vmatprep.subr.mxu0 0.0
        %1995 = vmatpush1.msra.mxu0 0.0
        %1996 = vmatprep.subr.mxu0 0.0
        %1997 = vmatpush1.msra.mxu0 0.0
        %1998 = vmatprep.subr.mxu0 0.0
        %1999 = vmatpush1.msra.mxu0 0.0
        %2000 = vmatprep.subr.mxu0 0.0
        %2001 = vmatpush1.msra.mxu0 0.0
        %2002 = vmatprep.subr.mxu0 0.0
        %2003 = vmatpush1.msra.mxu0 0.0
        %2004 = vmatprep.subr.mxu0 0.0
        %2005 = vmatpush1.msra.mxu0 0.0
        %2006 = vmatprep.subr.mxu0 0.0
        %2007 = vmatpush1.msra.mxu0 0.0
        %2008 = vmatprep.subr.mxu0 0.0
        %2009 = vmatpush1.msra.mxu0 0.0
        %2010 = vmatprep.subr.mxu0 0.0
        %2011 = vmatpush1.msra.mxu0 0.0
        %2012 = vmatprep.subr.mxu0 0.0
        %2013 = vmatpush1.msra.mxu0 0.0
        %2014 = vmatprep.subr.mxu0 0.0
        %2015 = vmatpush1.msra.mxu0 0.0
        %2016 = vmatprep.subr.mxu0 0.0
        %2017 = vmatpush1.msra.mxu0 0.0
        %2018 = vmatprep.subr.mxu0 0.0
        %2019 = vmatpush1.msra.mxu0 0.0
        %2020 = vmatprep.subr.mxu0 0.0
        %2021 = vmatpush1.msra.mxu0 0.0
        %2022 = vmatprep.subr.mxu0 0.0
        %2023 = vmatpush1.msra.mxu0 0.0
        %2024 = vmatprep.subr.mxu0 0.0
        %2025 = vmatpush1.msra.mxu0 0.0
        %2026 = vmatprep.subr.mxu0 0.0
        %2027 = vmatpush1.msra.mxu0 0.0
        %2028 = vmatprep.subr.mxu0 0.0
        %2029 = vmatpush1.msra.mxu0 0.0
        %2030 = vmatprep.subr.mxu0 0.0
        %2031 = vmatpush1.msra.mxu0 0.0
        %2032 = vmatprep.subr.mxu0 0.0
        %2033 = vmatpush1.msra.mxu0 0.0
        %2034 = vmatprep.subr.mxu0 0.0
        %2035 = vmatpush1.msra.mxu0 0.0
        %2036 = vmatprep.subr.mxu0 0.0
        %2037 = vmatpush1.msra.mxu0 0.0
        %2038 = vmatprep.subr.mxu0 0.0
        %2039 = vmatpush1.msra.mxu0 0.0
        %2040 = vmatprep.subr.mxu0 0.0
        %2041 = vmatpush1.msra.mxu0 0.0
        %2042 = vmatprep.subr.mxu0 0.0
        %2043 = vmatpush1.msra.mxu0 0.0
        %2044 = vmatprep.mubr.f32.mxu0 0.0
        %2045 = vmatmul.mubr.f32.gmra.mrb[0].mxu0 %v1978
        %v2046 = vpop.f32.mrb[0].mxu0
        %v2047 = vadd.f32 0.0, %v2046
        %v2048 = vpop.f32.mrb[0].mxu0
        %2049 = vdwg.mxu0
        %v2051 = vsel %vm1786, %v1830, 0
        %2053 = vmatprep.subr.mxu0 0.0
        %2054 = vmatpush1.msra.mxu0 %v806
        %2055 = vmatprep.subr.mxu0 0.0
        %2056 = vmatpush1.msra.mxu0 %v807
        %2057 = vmatprep.subr.mxu0 0.0
        %2058 = vmatpush1.msra.mxu0 0.0
        %2059 = vmatprep.subr.mxu0 0.0
        %2060 = vmatpush1.msra.mxu0 0.0
        %2061 = vmatprep.subr.mxu0 0.0
        %2062 = vmatpush1.msra.mxu0 0.0
        %2063 = vmatprep.subr.mxu0 0.0
        %2064 = vmatpush1.msra.mxu0 0.0
        %2065 = vmatprep.subr.mxu0 0.0
        %2066 = vmatpush1.msra.mxu0 0.0
        %2067 = vmatprep.subr.mxu0 0.0
        %2068 = vmatpush1.msra.mxu0 0.0
        %2069 = vmatprep.subr.mxu0 0.0
        %2070 = vmatpush1.msra.mxu0 0.0
        %2071 = vmatprep.subr.mxu0 0.0
        %2072 = vmatpush1.msra.mxu0 0.0
        %2073 = vmatprep.subr.mxu0 0.0
        %2074 = vmatpush1.msra.mxu0 0.0
        %2075 = vmatprep.subr.mxu0 0.0
        %2076 = vmatpush1.msra.mxu0 0.0
        %2077 = vmatprep.subr.mxu0 0.0
        %2078 = vmatpush1.msra.mxu0 0.0
        %2079 = vmatprep.subr.mxu0 0.0
        %2080 = vmatpush1.msra.mxu0 0.0
        %2081 = vmatprep.subr.mxu0 0.0
        %2082 = vmatpush1.msra.mxu0 0.0
        %2083 = vmatprep.subr.mxu0 0.0
        %2084 = vmatpush1.msra.mxu0 0.0
        %2085 = vmatprep.subr.mxu0 0.0
        %2086 = vmatpush1.msra.mxu0 0.0
        %2087 = vmatprep.subr.mxu0 0.0
        %2088 = vmatpush1.msra.mxu0 0.0
        %2089 = vmatprep.subr.mxu0 0.0
        %2090 = vmatpush1.msra.mxu0 0.0
        %2091 = vmatprep.subr.mxu0 0.0
        %2092 = vmatpush1.msra.mxu0 0.0
        %2093 = vmatprep.subr.mxu0 0.0
        %2094 = vmatpush1.msra.mxu0 0.0
        %2095 = vmatprep.subr.mxu0 0.0
        %2096 = vmatpush1.msra.mxu0 0.0
        %2097 = vmatprep.subr.mxu0 0.0
        %2098 = vmatpush1.msra.mxu0 0.0
        %2099 = vmatprep.subr.mxu0 0.0
        %2100 = vmatpush1.msra.mxu0 0.0
        %2101 = vmatprep.subr.mxu0 0.0
        %2102 = vmatpush1.msra.mxu0 0.0
        %2103 = vmatprep.subr.mxu0 0.0
        %2104 = vmatpush1.msra.mxu0 0.0
        %2105 = vmatprep.subr.mxu0 0.0
        %2106 = vmatpush1.msra.mxu0 0.0
        %2107 = vmatprep.subr.mxu0 0.0
        %2108 = vmatpush1.msra.mxu0 0.0
        %2109 = vmatprep.subr.mxu0 0.0
        %2110 = vmatpush1.msra.mxu0 0.0
        %2111 = vmatprep.subr.mxu0 0.0
        %2112 = vmatpush1.msra.mxu0 0.0
        %2113 = vmatprep.subr.mxu0 0.0
        %2114 = vmatpush1.msra.mxu0 0.0
        %2115 = vmatprep.subr.mxu0 0.0
        %2116 = vmatpush1.msra.mxu0 0.0
        %2117 = vmatprep.mubr.f32.mxu0 0.0
        %2118 = vmatmul.mubr.f32.gmra.mrb[0].mxu0 %v2051
        %v2119 = vpop.f32.mrb[0].mxu0
        %v2120 = vadd.f32 0.0, %v2119
        %v2121 = vpop.f32.mrb[0].mxu0
        %2122 = vdwg.mxu0
        %v2123 = vcombine.low %v1901, %v2047
        %v2124 = vcombine.high %v1901, %v2047
        %v2126 = vunpack.c.l.s4 1983009808
        %v2127 = vunpack.c.0.s8 %v2126
        %v2128 = vlaneseq
        %v2129 = vshrl.u32 %v2128, 7
        %v2130 = vsub.s32 %v2127, %v2129
        %v2131 = vrot.slane %v2123, %v2130
        %v2133 = vunpack.c.l.s4 1983009808
        %v2134 = vunpack.c.0.s8 %v2133
        %v2135 = vlaneseq
        %v2136 = vshrl.u32 %v2135, 7
        %v2137 = vsub.s32 %v2134, %v2136
        %v2138 = vrot.slane %v2124, %v2137
        %v2139 = vcombine.low %v1974, %v2120
        %v2140 = vcombine.high %v1974, %v2120
        %v2142 = vunpack.c.l.s4 1983009808
        %v2143 = vunpack.c.0.s8 %v2142
        %v2144 = vlaneseq
        %v2145 = vshrl.u32 %v2144, 7
        %v2146 = vsub.s32 %v2143, %v2145
        %v2147 = vrot.slane %v2139, %v2146
        %v2149 = vunpack.c.l.s4 1983009808
        %v2150 = vunpack.c.0.s8 %v2149
        %v2151 = vlaneseq
        %v2152 = vshrl.u32 %v2151, 7
        %v2153 = vsub.s32 %v2150, %v2152
        %v2154 = vrot.slane %v2140, %v2153
        %v2155 = vcombine.low %v2131, %v2147
        %v2156 = vcombine.high %v2131, %v2147
        %v2158 = vunpack.c.l.s4 1934713408
        %v2159 = vunpack.c.0.s8 %v2158
        %v2160 = vlaneseq
        %v2161 = vshrl.u32 %v2160, 7
        %v2162 = vsub.s32 %v2159, %v2161
        %v2163 = vrot.slane %v2155, %v2162
        %v2165 = vunpack.c.l.s4 1934713408
        %v2166 = vunpack.c.0.s8 %v2165
        %v2167 = vlaneseq
        %v2168 = vshrl.u32 %v2167, 7
        %v2169 = vsub.s32 %v2166, %v2168
        %v2170 = vrot.slane %v2156, %v2169
        %v2171 = vcombine.low %v2138, %v2154
        %v2172 = vcombine.high %v2138, %v2154
        %v2174 = vunpack.c.l.s4 1934713408
        %v2175 = vunpack.c.0.s8 %v2174
        %v2176 = vlaneseq
        %v2177 = vshrl.u32 %v2176, 7
        %v2178 = vsub.s32 %v2175, %v2177
        %v2179 = vrot.slane %v2171, %v2178
        %v2181 = vunpack.c.l.s4 1934713408
        %v2182 = vunpack.c.0.s8 %v2181
        %v2183 = vlaneseq
        %v2184 = vshrl.u32 %v2183, 7
        %v2185 = vsub.s32 %v2182, %v2184
        %v2186 = vrot.slane %v2172, %v2185
        %v2187 = vcombine.high %v2163, 0.0
        %v2188 = vcombine.high %v2170, 0.0
        %v2189 = vcombine.high %v2179, 0.0
        %v2190 = vcombine.high %v2186, 0.0
        %v2191 = vcombine.low %v2163, %v2170
        %v2193 = vunpack.c.l.s4 1983009808
        %v2194 = vunpack.c.0.s8 %v2193
        %v2195 = vlaneseq
        %v2196 = vshrl.u32 %v2195, 7
        %v2197 = vsub.s32 %v2194, %v2196
        %v2198 = vrot.slane %v2191, %v2197
        %v2199 = vcombine.low %v2187, %v2188
        %v2201 = vunpack.c.l.s4 1983009808
        %v2202 = vunpack.c.0.s8 %v2201
        %v2203 = vlaneseq
        %v2204 = vshrl.u32 %v2203, 7
        %v2205 = vsub.s32 %v2202, %v2204
        %v2206 = vrot.slane %v2199, %v2205
        %v2207 = vcombine.low %v2179, %v2186
        %v2209 = vunpack.c.l.s4 1983009808
        %v2210 = vunpack.c.0.s8 %v2209
        %v2211 = vlaneseq
        %v2212 = vshrl.u32 %v2211, 7
        %v2213 = vsub.s32 %v2210, %v2212
        %v2214 = vrot.slane %v2207, %v2213
        %v2215 = vcombine.low %v2189, %v2190
        %v2217 = vunpack.c.l.s4 1983009808
        %v2218 = vunpack.c.0.s8 %v2217
        %v2219 = vlaneseq
        %v2220 = vshrl.u32 %v2219, 7
        %v2221 = vsub.s32 %v2218, %v2220
        %v2222 = vrot.slane %v2215, %v2221
        %v2223 = vcombine.low %v2198, %v2206
        %v2224 = vcombine.high %v2198, %v2206
        %v2226 = vunpack.c.l.s4 1934713408
        %v2227 = vunpack.c.0.s8 %v2226
        %v2228 = vlaneseq
        %v2229 = vshrl.u32 %v2228, 7
        %v2230 = vsub.s32 %v2227, %v2229
        %v2231 = vrot.slane %v2223, %v2230
        %v2233 = vunpack.c.l.s4 1934713408
        %v2234 = vunpack.c.0.s8 %v2233
        %v2235 = vlaneseq
        %v2236 = vshrl.u32 %v2235, 7
        %v2237 = vsub.s32 %v2234, %v2236
        %v2238 = vrot.slane %v2224, %v2237
        %v2239 = vcombine.low %v2214, %v2222
        %v2240 = vcombine.high %v2214, %v2222
        %v2242 = vunpack.c.l.s4 1934713408
        %v2243 = vunpack.c.0.s8 %v2242
        %v2244 = vlaneseq
        %v2245 = vshrl.u32 %v2244, 7
        %v2246 = vsub.s32 %v2243, %v2245
        %v2247 = vrot.slane %v2239, %v2246
        %v2249 = vunpack.c.l.s4 1934713408
        %v2250 = vunpack.c.0.s8 %v2249
        %v2251 = vlaneseq
        %v2252 = vshrl.u32 %v2251, 7
        %v2253 = vsub.s32 %v2250, %v2252
        %v2254 = vrot.slane %v2240, %v2253
        %v2255 = vcombine.low %v2231, %v2247
        %v2256 = vcombine.high %v2231, %v2247
        %v2257 = vcombine.low %v2238, %v2254
        %v2258 = vcombine.high %v2238, %v2254
        %2260 = vrot.lane.b32.xlu0 %v2256, 32
        %v2261 = vpop.permute.xlu0 %2260
        %2264 = vrot.lane.b32.xlu0 %v2257, 64
        %v2265 = vpop.permute.xlu0 %2264
        %2268 = vrot.lane.b32.xlu0 %v2258, 96
        %v2269 = vpop.permute.xlu0 %2268
        %v2271 = vsel %vm1455, %v2255, %v2261
        %vm2272 = vcmask 523264
        %v2273 = vsel %vm2272, %v2271, %v2265
        %vm2274 = vcmask 785408
        %v2275 = vsel %vm2274, %v2273, %v2269
        %v2276 = vadd.f32 %v779, %v2275
        %v2277 = vld [vmem:[%s7] sm:$0x1]
        %v2278 = vld [vmem:[%s8] sm:$0x1]
        %2279 = vadd.xlane.f32.xlu0 %v2276
        %v2280 = vpop.xlane.xlu0 %2279
        %v2281 = vrcp.pop 128.0
        %v2282 = vmul.f32 %v2280, %v2281
        %v2283 = vsub.f32 %v2276, %v2282
        %v2284 = vmul.f32 %v2283, %v2283
        %2285 = vadd.xlane.f32.xlu0 %v2284
        %v2286 = vpop.xlane.xlu0 %2285
        %v2287 = vmul.f32 %v2286, %v2281
        %v2288 = vadd.f32 %v2287, 1e-06
        %v2289 = vrsqrt.pop %v2288
        %v2290 = vmul.f32 %v2283, %v2289
        %v2292 = vlaneseq
        %v2293 = vshrl.u32 %v2292, 7
        %v2294 = vsub.s32 0, %v2293
        %v2295 = vrot.slane %v2277, %v2294
        %v2297 = vmul.f32 %v2290, %v2295
        %v2299 = vlaneseq
        %v2300 = vshrl.u32 %v2299, 7
        %v2301 = vsub.s32 0, %v2300
        %v2302 = vrot.slane %v2278, %v2301
        %v2304 = vadd.f32 %v2297, %v2302
        %v2305 = vld [vmem:[#allocation13] sm:$0xff]
        %v2306 = vld [vmem:[#allocation13 + $0x8] sm:$0xff]
        %v2307 = vld [vmem:[#allocation13 + $0x10] sm:$0xff]
        %v2308 = vld [vmem:[#allocation13 + $0x18] sm:$0xff]
        %v2309 = vld [vmem:[#allocation13 + $0x20] sm:$0xff]
        %v2310 = vld [vmem:[#allocation13 + $0x28] sm:$0xff]
        %v2311 = vld [vmem:[#allocation13 + $0x30] sm:$0xff]
        %v2312 = vld [vmem:[#allocation13 + $0x38] sm:$0xff]
        %v2313 = vld [vmem:[#allocation13 + $0x40] sm:$0xff]
        %v2314 = vld [vmem:[#allocation13 + $0x48] sm:$0xff]
        %v2315 = vld [vmem:[#allocation13 + $0x50] sm:$0xff]
        %v2316 = vld [vmem:[#allocation13 + $0x58] sm:$0xff]
        %v2317 = vld [vmem:[#allocation13 + $0x60] sm:$0xff]
        %v2318 = vld [vmem:[#allocation13 + $0x68] sm:$0xff]
        %v2319 = vld [vmem:[#allocation13 + $0x70] sm:$0xff]
        %v2320 = vld [vmem:[#allocation13 + $0x78] sm:$0xff]
        %v2321 = vld [vmem:[#allocation13 + $0x80] sm:$0xff]
        %v2322 = vld [vmem:[#allocation13 + $0x88] sm:$0xff]
        %v2323 = vld [vmem:[#allocation13 + $0x90] sm:$0xff]
        %v2324 = vld [vmem:[#allocation13 + $0x98] sm:$0xff]
        %v2325 = vld [vmem:[#allocation13 + $0xa0] sm:$0xff]
        %v2326 = vld [vmem:[#allocation13 + $0xa8] sm:$0xff]
        %v2327 = vld [vmem:[#allocation13 + $0xb0] sm:$0xff]
        %v2328 = vld [vmem:[#allocation13 + $0xb8] sm:$0xff]
        %v2329 = vld [vmem:[#allocation13 + $0xc0] sm:$0xff]
        %v2330 = vld [vmem:[#allocation13 + $0xc8] sm:$0xff]
        %v2331 = vld [vmem:[#allocation13 + $0xd0] sm:$0xff]
        %v2332 = vld [vmem:[#allocation13 + $0xd8] sm:$0xff]
        %v2333 = vld [vmem:[#allocation13 + $0xe0] sm:$0xff]
        %v2334 = vld [vmem:[#allocation13 + $0xe8] sm:$0xff]
        %v2335 = vld [vmem:[#allocation13 + $0xf0] sm:$0xff]
        %v2336 = vld [vmem:[#allocation13 + $0xf8] sm:$0xff]
        %v2337 = vld [vmem:[#allocation13 + $0x100] sm:$0xff]
        %v2338 = vld [vmem:[#allocation13 + $0x108] sm:$0xff]
        %v2339 = vld [vmem:[#allocation13 + $0x110] sm:$0xff]
        %v2340 = vld [vmem:[#allocation13 + $0x118] sm:$0xff]
        %v2341 = vld [vmem:[#allocation13 + $0x120] sm:$0xff]
        %v2342 = vld [vmem:[#allocation13 + $0x128] sm:$0xff]
        %v2343 = vld [vmem:[#allocation13 + $0x130] sm:$0xff]
        %v2344 = vld [vmem:[#allocation13 + $0x138] sm:$0xff]
        %v2345 = vld [vmem:[#allocation13 + $0x140] sm:$0xff]
        %v2346 = vld [vmem:[#allocation13 + $0x148] sm:$0xff]
        %v2347 = vld [vmem:[#allocation13 + $0x150] sm:$0xff]
        %v2348 = vld [vmem:[#allocation13 + $0x158] sm:$0xff]
        %v2349 = vld [vmem:[#allocation13 + $0x160] sm:$0xff]
        %v2350 = vld [vmem:[#allocation13 + $0x168] sm:$0xff]
        %v2351 = vld [vmem:[#allocation13 + $0x170] sm:$0xff]
        %v2352 = vld [vmem:[#allocation13 + $0x178] sm:$0xff]
        %v2353 = vld [vmem:[#allocation13 + $0x180] sm:$0xff]
        %v2354 = vld [vmem:[#allocation13 + $0x188] sm:$0xff]
        %v2355 = vld [vmem:[#allocation13 + $0x190] sm:$0xff]
        %v2356 = vld [vmem:[#allocation13 + $0x198] sm:$0xff]
        %v2357 = vld [vmem:[#allocation13 + $0x1a0] sm:$0xff]
        %v2358 = vld [vmem:[#allocation13 + $0x1a8] sm:$0xff]
        %v2359 = vld [vmem:[#allocation13 + $0x1b0] sm:$0xff]
        %v2360 = vld [vmem:[#allocation13 + $0x1b8] sm:$0xff]
        %v2361 = vld [vmem:[#allocation13 + $0x1c0] sm:$0xff]
        %v2362 = vld [vmem:[#allocation13 + $0x1c8] sm:$0xff]
        %v2363 = vld [vmem:[#allocation13 + $0x1d0] sm:$0xff]
        %v2364 = vld [vmem:[#allocation13 + $0x1d8] sm:$0xff]
        %v2365 = vld [vmem:[#allocation13 + $0x1e0] sm:$0xff]
        %v2366 = vld [vmem:[#allocation13 + $0x1e8] sm:$0xff]
        %v2367 = vld [vmem:[#allocation13 + $0x1f0] sm:$0xff]
        %v2368 = vld [vmem:[#allocation13 + $0x1f8] sm:$0xff]
        %v2369 = vld [vmem:[#allocation13 + $0x200] sm:$0xff]
        %v2370 = vld [vmem:[#allocation13 + $0x208] sm:$0xff]
        %v2371 = vld [vmem:[#allocation13 + $0x210] sm:$0xff]
        %v2372 = vld [vmem:[#allocation13 + $0x218] sm:$0xff]
        %v2373 = vld [vmem:[#allocation13 + $0x220] sm:$0xff]
        %v2374 = vld [vmem:[#allocation13 + $0x228] sm:$0xff]
        %v2375 = vld [vmem:[#allocation13 + $0x230] sm:$0xff]
        %v2376 = vld [vmem:[#allocation13 + $0x238] sm:$0xff]
        %v2377 = vld [vmem:[#allocation13 + $0x240] sm:$0xff]
        %v2378 = vld [vmem:[#allocation13 + $0x248] sm:$0xff]
        %v2379 = vld [vmem:[#allocation13 + $0x250] sm:$0xff]
        %v2380 = vld [vmem:[#allocation13 + $0x258] sm:$0xff]
        %v2381 = vld [vmem:[#allocation13 + $0x260] sm:$0xff]
        %v2382 = vld [vmem:[#allocation13 + $0x268] sm:$0xff]
        %v2383 = vld [vmem:[#allocation13 + $0x270] sm:$0xff]
        %v2384 = vld [vmem:[#allocation13 + $0x278] sm:$0xff]
        %v2385 = vld [vmem:[#allocation13 + $0x280] sm:$0xff]
        %v2386 = vld [vmem:[#allocation13 + $0x288] sm:$0xff]
        %v2387 = vld [vmem:[#allocation13 + $0x290] sm:$0xff]
        %v2388 = vld [vmem:[#allocation13 + $0x298] sm:$0xff]
        %v2389 = vld [vmem:[#allocation13 + $0x2a0] sm:$0xff]
        %v2390 = vld [vmem:[#allocation13 + $0x2a8] sm:$0xff]
        %v2391 = vld [vmem:[#allocation13 + $0x2b0] sm:$0xff]
        %v2392 = vld [vmem:[#allocation13 + $0x2b8] sm:$0xff]
        %v2393 = vld [vmem:[#allocation13 + $0x2c0] sm:$0xff]
        %v2394 = vld [vmem:[#allocation13 + $0x2c8] sm:$0xff]
        %v2395 = vld [vmem:[#allocation13 + $0x2d0] sm:$0xff]
        %v2396 = vld [vmem:[#allocation13 + $0x2d8] sm:$0xff]
        %v2397 = vld [vmem:[#allocation13 + $0x2e0] sm:$0xff]
        %v2398 = vld [vmem:[#allocation13 + $0x2e8] sm:$0xff]
        %v2399 = vld [vmem:[#allocation13 + $0x2f0] sm:$0xff]
        %v2400 = vld [vmem:[#allocation13 + $0x2f8] sm:$0xff]
        %v2401 = vld [vmem:[#allocation13 + $0x300] sm:$0xff]
        %v2402 = vld [vmem:[#allocation13 + $0x308] sm:$0xff]
        %v2403 = vld [vmem:[#allocation13 + $0x310] sm:$0xff]
        %v2404 = vld [vmem:[#allocation13 + $0x318] sm:$0xff]
        %v2405 = vld [vmem:[#allocation13 + $0x320] sm:$0xff]
        %v2406 = vld [vmem:[#allocation13 + $0x328] sm:$0xff]
        %v2407 = vld [vmem:[#allocation13 + $0x330] sm:$0xff]
        %v2408 = vld [vmem:[#allocation13 + $0x338] sm:$0xff]
        %v2409 = vld [vmem:[#allocation13 + $0x340] sm:$0xff]
        %v2410 = vld [vmem:[#allocation13 + $0x348] sm:$0xff]
        %v2411 = vld [vmem:[#allocation13 + $0x350] sm:$0xff]
        %v2412 = vld [vmem:[#allocation13 + $0x358] sm:$0xff]
        %v2413 = vld [vmem:[#allocation13 + $0x360] sm:$0xff]
        %v2414 = vld [vmem:[#allocation13 + $0x368] sm:$0xff]
        %v2415 = vld [vmem:[#allocation13 + $0x370] sm:$0xff]
        %v2416 = vld [vmem:[#allocation13 + $0x378] sm:$0xff]
        %v2417 = vld [vmem:[#allocation13 + $0x380] sm:$0xff]
        %v2418 = vld [vmem:[#allocation13 + $0x388] sm:$0xff]
        %v2419 = vld [vmem:[#allocation13 + $0x390] sm:$0xff]
        %v2420 = vld [vmem:[#allocation13 + $0x398] sm:$0xff]
        %v2421 = vld [vmem:[#allocation13 + $0x3a0] sm:$0xff]
        %v2422 = vld [vmem:[#allocation13 + $0x3a8] sm:$0xff]
        %v2423 = vld [vmem:[#allocation13 + $0x3b0] sm:$0xff]
        %v2424 = vld [vmem:[#allocation13 + $0x3b8] sm:$0xff]
        %v2425 = vld [vmem:[#allocation13 + $0x3c0] sm:$0xff]
        %v2426 = vld [vmem:[#allocation13 + $0x3c8] sm:$0xff]
        %v2427 = vld [vmem:[#allocation13 + $0x3d0] sm:$0xff]
        %v2428 = vld [vmem:[#allocation13 + $0x3d8] sm:$0xff]
        %v2429 = vld [vmem:[#allocation13 + $0x3e0] sm:$0xff]
        %v2430 = vld [vmem:[#allocation13 + $0x3e8] sm:$0xff]
        %v2431 = vld [vmem:[#allocation13 + $0x3f0] sm:$0xff]
        %v2432 = vld [vmem:[#allocation13 + $0x3f8] sm:$0xff]
        %v2433 = vld [vmem:[%s10] sm:$0xff]
        %v2435 = vlaneseq
        %v2436 = vshrl.u32 %v2435, 7
        %v2437 = vsub.s32 0, %v2436
        %v2438 = vrot.slane %v2433, %v2437
        %v2439 = vlaneseq
        %v2440 = vshrl.u32 %v2439, 7
        %v2441 = vsub.s32 1, %v2440
        %v2442 = vrot.slane %v2433, %v2441
        %v2443 = vlaneseq
        %v2444 = vshrl.u32 %v2443, 7
        %v2445 = vsub.s32 2, %v2444
        %v2446 = vrot.slane %v2433, %v2445
        %v2447 = vlaneseq
        %v2448 = vshrl.u32 %v2447, 7
        %v2449 = vsub.s32 3, %v2448
        %v2450 = vrot.slane %v2433, %v2449
        %v2451 = vlaneseq
        %v2452 = vshrl.u32 %v2451, 7
        %v2453 = vsub.s32 4, %v2452
        %v2454 = vrot.slane %v2433, %v2453
        %v2455 = vlaneseq
        %v2456 = vshrl.u32 %v2455, 7
        %v2457 = vsub.s32 5, %v2456
        %v2458 = vrot.slane %v2433, %v2457
        %v2459 = vlaneseq
        %v2460 = vshrl.u32 %v2459, 7
        %v2461 = vsub.s32 6, %v2460
        %v2462 = vrot.slane %v2433, %v2461
        %v2463 = vlaneseq
        %v2464 = vshrl.u32 %v2463, 7
        %v2465 = vsub.s32 7, %v2464
        %v2466 = vrot.slane %v2433, %v2465
        %2475 = vmatprep.subr.mxu0 %v2306
        %2476 = vmatpush1.msra.mxu0 %v2305
        %2477 = vmatprep.subr.mxu0 %v2314
        %2478 = vmatpush1.msra.mxu0 %v2313
        %2479 = vmatprep.subr.mxu0 %v2322
        %2480 = vmatpush1.msra.mxu0 %v2321
        %2481 = vmatprep.subr.mxu0 %v2330
        %2482 = vmatpush1.msra.mxu0 %v2329
        %2483 = vmatprep.subr.mxu0 %v2338
        %2484 = vmatpush1.msra.mxu0 %v2337
        %2485 = vmatprep.subr.mxu0 %v2346
        %2486 = vmatpush1.msra.mxu0 %v2345
        %2487 = vmatprep.subr.mxu0 %v2354
        %2488 = vmatpush1.msra.mxu0 %v2353
        %2489 = vmatprep.subr.mxu0 %v2362
        %2490 = vmatpush1.msra.mxu0 %v2361
        %2491 = vmatprep.subr.mxu0 %v2370
        %2492 = vmatpush1.msra.mxu0 %v2369
        %2493 = vmatprep.subr.mxu0 %v2378
        %2494 = vmatpush1.msra.mxu0 %v2377
        %2495 = vmatprep.subr.mxu0 %v2386
        %2496 = vmatpush1.msra.mxu0 %v2385
        %2497 = vmatprep.subr.mxu0 %v2394
        %2498 = vmatpush1.msra.mxu0 %v2393
        %2499 = vmatprep.subr.mxu0 %v2402
        %2500 = vmatpush1.msra.mxu0 %v2401
        %2501 = vmatprep.subr.mxu0 %v2410
        %2502 = vmatpush1.msra.mxu0 %v2409
        %2503 = vmatprep.subr.mxu0 %v2418
        %2504 = vmatpush1.msra.mxu0 %v2417
        %2505 = vmatprep.subr.mxu0 %v2426
        %2506 = vmatpush1.msra.mxu0 %v2425
        %2507 = vmatprep.subr.mxu0 0.0
        %2508 = vmatpush1.msra.mxu0 0.0
        %2509 = vmatprep.subr.mxu0 0.0
        %2510 = vmatpush1.msra.mxu0 0.0
        %2511 = vmatprep.subr.mxu0 0.0
        %2512 = vmatpush1.msra.mxu0 0.0
        %2513 = vmatprep.subr.mxu0 0.0
        %2514 = vmatpush1.msra.mxu0 0.0
        %2515 = vmatprep.subr.mxu0 0.0
        %2516 = vmatpush1.msra.mxu0 0.0
        %2517 = vmatprep.subr.mxu0 0.0
        %2518 = vmatpush1.msra.mxu0 0.0
        %2519 = vmatprep.subr.mxu0 0.0
        %2520 = vmatpush1.msra.mxu0 0.0
        %2521 = vmatprep.subr.mxu0 0.0
        %2522 = vmatpush1.msra.mxu0 0.0
        %2523 = vmatprep.subr.mxu0 0.0
        %2524 = vmatpush1.msra.mxu0 0.0
        %2525 = vmatprep.subr.mxu0 0.0
        %2526 = vmatpush1.msra.mxu0 0.0
        %2527 = vmatprep.subr.mxu0 0.0
        %2528 = vmatpush1.msra.mxu0 0.0
        %2529 = vmatprep.subr.mxu0 0.0
        %2530 = vmatpush1.msra.mxu0 0.0
        %2531 = vmatprep.subr.mxu0 0.0
        %2532 = vmatpush1.msra.mxu0 0.0
        %2533 = vmatprep.subr.mxu0 0.0
        %2534 = vmatpush1.msra.mxu0 0.0
        %2535 = vmatprep.subr.mxu0 0.0
        %2536 = vmatpush1.msra.mxu0 0.0
        %2537 = vmatprep.subr.mxu0 0.0
        %2538 = vmatpush1.msra.mxu0 0.0
        %2539 = vmatprep.mubr.f32.mxu0 0.0
        %2540 = vmatmul.mubr.f32.gmra.mrb[0].mxu0 %v2304
        %v2541 = vpop.f32.mrb[0].mxu0
        %v2542 = vadd.f32 %v2438, %v2541
        %v2543 = vpop.f32.mrb[0].mxu0
        %v2544 = vadd.f32 %v2442, %v2543
        %2545 = vdwg.mxu0
        %2546 = vmatprep.subr.mxu0 %v2308
        %2547 = vmatpush1.msra.mxu0 %v2307
        %2548 = vmatprep.subr.mxu0 %v2316
        %2549 = vmatpush1.msra.mxu0 %v2315
        %2550 = vmatprep.subr.mxu0 %v2324
        %2551 = vmatpush1.msra.mxu0 %v2323
        %2552 = vmatprep.subr.mxu0 %v2332
        %2553 = vmatpush1.msra.mxu0 %v2331
        %2554 = vmatprep.subr.mxu0 %v2340
        %2555 = vmatpush1.msra.mxu0 %v2339
        %2556 = vmatprep.subr.mxu0 %v2348
        %2557 = vmatpush1.msra.mxu0 %v2347
        %2558 = vmatprep.subr.mxu0 %v2356
        %2559 = vmatpush1.msra.mxu0 %v2355
        %2560 = vmatprep.subr.mxu0 %v2364
        %2561 = vmatpush1.msra.mxu0 %v2363
        %2562 = vmatprep.subr.mxu0 %v2372
        %2563 = vmatpush1.msra.mxu0 %v2371
        %2564 = vmatprep.subr.mxu0 %v2380
        %2565 = vmatpush1.msra.mxu0 %v2379
        %2566 = vmatprep.subr.mxu0 %v2388
        %2567 = vmatpush1.msra.mxu0 %v2387
        %2568 = vmatprep.subr.mxu0 %v2396
        %2569 = vmatpush1.msra.mxu0 %v2395
        %2570 = vmatprep.subr.mxu0 %v2404
        %2571 = vmatpush1.msra.mxu0 %v2403
        %2572 = vmatprep.subr.mxu0 %v2412
        %2573 = vmatpush1.msra.mxu0 %v2411
        %2574 = vmatprep.subr.mxu0 %v2420
        %2575 = vmatpush1.msra.mxu0 %v2419
        %2576 = vmatprep.subr.mxu0 %v2428
        %2577 = vmatpush1.msra.mxu0 %v2427
        %2578 = vmatprep.subr.mxu0 0.0
        %2579 = vmatpush1.msra.mxu0 0.0
        %2580 = vmatprep.subr.mxu0 0.0
        %2581 = vmatpush1.msra.mxu0 0.0
        %2582 = vmatprep.subr.mxu0 0.0
        %2583 = vmatpush1.msra.mxu0 0.0
        %2584 = vmatprep.subr.mxu0 0.0
        %2585 = vmatpush1.msra.mxu0 0.0
        %2586 = vmatprep.subr.mxu0 0.0
        %2587 = vmatpush1.msra.mxu0 0.0
        %2588 = vmatprep.subr.mxu0 0.0
        %2589 = vmatpush1.msra.mxu0 0.0
        %2590 = vmatprep.subr.mxu0 0.0
        %2591 = vmatpush1.msra.mxu0 0.0
        %2592 = vmatprep.subr.mxu0 0.0
        %2593 = vmatpush1.msra.mxu0 0.0
        %2594 = vmatprep.subr.mxu0 0.0
        %2595 = vmatpush1.msra.mxu0 0.0
        %2596 = vmatprep.subr.mxu0 0.0
        %2597 = vmatpush1.msra.mxu0 0.0
        %2598 = vmatprep.subr.mxu0 0.0
        %2599 = vmatpush1.msra.mxu0 0.0
        %2600 = vmatprep.subr.mxu0 0.0
        %2601 = vmatpush1.msra.mxu0 0.0
        %2602 = vmatprep.subr.mxu0 0.0
        %2603 = vmatpush1.msra.mxu0 0.0
        %2604 = vmatprep.subr.mxu0 0.0
        %2605 = vmatpush1.msra.mxu0 0.0
        %2606 = vmatprep.subr.mxu0 0.0
        %2607 = vmatpush1.msra.mxu0 0.0
        %2608 = vmatprep.subr.mxu0 0.0
        %2609 = vmatpush1.msra.mxu0 0.0
        %2610 = vmatprep.mubr.f32.mxu0 0.0
        %2611 = vmatmul.mubr.f32.gmra.mrb[0].mxu0 %v2304
        %v2612 = vpop.f32.mrb[0].mxu0
        %v2613 = vadd.f32 %v2446, %v2612
        %v2614 = vpop.f32.mrb[0].mxu0
        %v2615 = vadd.f32 %v2450, %v2614
        %2616 = vdwg.mxu0
        %2617 = vmatprep.subr.mxu0 %v2310
        %2618 = vmatpush1.msra.mxu0 %v2309
        %2619 = vmatprep.subr.mxu0 %v2318
        %2620 = vmatpush1.msra.mxu0 %v2317
        %2621 = vmatprep.subr.mxu0 %v2326
        %2622 = vmatpush1.msra.mxu0 %v2325
        %2623 = vmatprep.subr.mxu0 %v2334
        %2624 = vmatpush1.msra.mxu0 %v2333
        %2625 = vmatprep.subr.mxu0 %v2342
        %2626 = vmatpush1.msra.mxu0 %v2341
        %2627 = vmatprep.subr.mxu0 %v2350
        %2628 = vmatpush1.msra.mxu0 %v2349
        %2629 = vmatprep.subr.mxu0 %v2358
        %2630 = vmatpush1.msra.mxu0 %v2357
        %2631 = vmatprep.subr.mxu0 %v2366
        %2632 = vmatpush1.msra.mxu0 %v2365
        %2633 = vmatprep.subr.mxu0 %v2374
        %2634 = vmatpush1.msra.mxu0 %v2373
        %2635 = vmatprep.subr.mxu0 %v2382
        %2636 = vmatpush1.msra.mxu0 %v2381
        %2637 = vmatprep.subr.mxu0 %v2390
        %2638 = vmatpush1.msra.mxu0 %v2389
        %2639 = vmatprep.subr.mxu0 %v2398
        %2640 = vmatpush1.msra.mxu0 %v2397
        %2641 = vmatprep.subr.mxu0 %v2406
        %2642 = vmatpush1.msra.mxu0 %v2405
        %2643 = vmatprep.subr.mxu0 %v2414
        %2644 = vmatpush1.msra.mxu0 %v2413
        %2645 = vmatprep.subr.mxu0 %v2422
        %2646 = vmatpush1.msra.mxu0 %v2421
        %2647 = vmatprep.subr.mxu0 %v2430
        %2648 = vmatpush1.msra.mxu0 %v2429
        %2649 = vmatprep.subr.mxu0 0.0
        %2650 = vmatpush1.msra.mxu0 0.0
        %2651 = vmatprep.subr.mxu0 0.0
        %2652 = vmatpush1.msra.mxu0 0.0
        %2653 = vmatprep.subr.mxu0 0.0
        %2654 = vmatpush1.msra.mxu0 0.0
        %2655 = vmatprep.subr.mxu0 0.0
        %2656 = vmatpush1.msra.mxu0 0.0
        %2657 = vmatprep.subr.mxu0 0.0
        %2658 = vmatpush1.msra.mxu0 0.0
        %2659 = vmatprep.subr.mxu0 0.0
        %2660 = vmatpush1.msra.mxu0 0.0
        %2661 = vmatprep.subr.mxu0 0.0
        %2662 = vmatpush1.msra.mxu0 0.0
        %2663 = vmatprep.subr.mxu0 0.0
        %2664 = vmatpush1.msra.mxu0 0.0
        %2665 = vmatprep.subr.mxu0 0.0
        %2666 = vmatpush1.msra.mxu0 0.0
        %2667 = vmatprep.subr.mxu0 0.0
        %2668 = vmatpush1.msra.mxu0 0.0
        %2669 = vmatprep.subr.mxu0 0.0
        %2670 = vmatpush1.msra.mxu0 0.0
        %2671 = vmatprep.subr.mxu0 0.0
        %2672 = vmatpush1.msra.mxu0 0.0
        %2673 = vmatprep.subr.mxu0 0.0
        %2674 = vmatpush1.msra.mxu0 0.0
        %2675 = vmatprep.subr.mxu0 0.0
        %2676 = vmatpush1.msra.mxu0 0.0
        %2677 = vmatprep.subr.mxu0 0.0
        %2678 = vmatpush1.msra.mxu0 0.0
        %2679 = vmatprep.subr.mxu0 0.0
        %2680 = vmatpush1.msra.mxu0 0.0
        %2681 = vmatprep.mubr.f32.mxu0 0.0
        %2682 = vmatmul.mubr.f32.gmra.mrb[0].mxu0 %v2304
        %v2683 = vpop.f32.mrb[0].mxu0
        %v2684 = vadd.f32 %v2454, %v2683
        %v2685 = vpop.f32.mrb[0].mxu0
        %v2686 = vadd.f32 %v2458, %v2685
        %2687 = vdwg.mxu0
        %2688 = vmatprep.subr.mxu0 %v2312
        %2689 = vmatpush1.msra.mxu0 %v2311
        %2690 = vmatprep.subr.mxu0 %v2320
        %2691 = vmatpush1.msra.mxu0 %v2319
        %2692 = vmatprep.subr.mxu0 %v2328
        %2693 = vmatpush1.msra.mxu0 %v2327
        %2694 = vmatprep.subr.mxu0 %v2336
        %2695 = vmatpush1.msra.mxu0 %v2335
        %2696 = vmatprep.subr.mxu0 %v2344
        %2697 = vmatpush1.msra.mxu0 %v2343
        %2698 = vmatprep.subr.mxu0 %v2352
        %2699 = vmatpush1.msra.mxu0 %v2351
        %2700 = vmatprep.subr.mxu0 %v2360
        %2701 = vmatpush1.msra.mxu0 %v2359
        %2702 = vmatprep.subr.mxu0 %v2368
        %2703 = vmatpush1.msra.mxu0 %v2367
        %2704 = vmatprep.subr.mxu0 %v2376
        %2705 = vmatpush1.msra.mxu0 %v2375
        %2706 = vmatprep.subr.mxu0 %v2384
        %2707 = vmatpush1.msra.mxu0 %v2383
        %2708 = vmatprep.subr.mxu0 %v2392
        %2709 = vmatpush1.msra.mxu0 %v2391
        %2710 = vmatprep.subr.mxu0 %v2400
        %2711 = vmatpush1.msra.mxu0 %v2399
        %2712 = vmatprep.subr.mxu0 %v2408
        %2713 = vmatpush1.msra.mxu0 %v2407
        %2714 = vmatprep.subr.mxu0 %v2416
        %2715 = vmatpush1.msra.mxu0 %v2415
        %2716 = vmatprep.subr.mxu0 %v2424
        %2717 = vmatpush1.msra.mxu0 %v2423
        %2718 = vmatprep.subr.mxu0 %v2432
        %2719 = vmatpush1.msra.mxu0 %v2431
        %2720 = vmatprep.subr.mxu0 0.0
        %2721 = vmatpush1.msra.mxu0 0.0
        %2722 = vmatprep.subr.mxu0 0.0
        %2723 = vmatpush1.msra.mxu0 0.0
        %2724 = vmatprep.subr.mxu0 0.0
        %2725 = vmatpush1.msra.mxu0 0.0
        %2726 = vmatprep.subr.mxu0 0.0
        %2727 = vmatpush1.msra.mxu0 0.0
        %2728 = vmatprep.subr.mxu0 0.0
        %2729 = vmatpush1.msra.mxu0 0.0
        %2730 = vmatprep.subr.mxu0 0.0
        %2731 = vmatpush1.msra.mxu0 0.0
        %2732 = vmatprep.subr.mxu0 0.0
        %2733 = vmatpush1.msra.mxu0 0.0
        %2734 = vmatprep.subr.mxu0 0.0
        %2735 = vmatpush1.msra.mxu0 0.0
        %2736 = vmatprep.subr.mxu0 0.0
        %2737 = vmatpush1.msra.mxu0 0.0
        %2738 = vmatprep.subr.mxu0 0.0
        %2739 = vmatpush1.msra.mxu0 0.0
        %2740 = vmatprep.subr.mxu0 0.0
        %2741 = vmatpush1.msra.mxu0 0.0
        %2742 = vmatprep.subr.mxu0 0.0
        %2743 = vmatpush1.msra.mxu0 0.0
        %2744 = vmatprep.subr.mxu0 0.0
        %2745 = vmatpush1.msra.mxu0 0.0
        %2746 = vmatprep.subr.mxu0 0.0
        %2747 = vmatpush1.msra.mxu0 0.0
        %2748 = vmatprep.subr.mxu0 0.0
        %2749 = vmatpush1.msra.mxu0 0.0
        %2750 = vmatprep.subr.mxu0 0.0
        %2751 = vmatpush1.msra.mxu0 0.0
        %2752 = vmatprep.mubr.f32.mxu0 0.0
        %2753 = vmatmul.mubr.f32.gmra.mrb[0].mxu0 %v2304
        %v2754 = vpop.f32.mrb[0].mxu0
        %v2755 = vadd.f32 %v2462, %v2754
        %v2756 = vpop.f32.mrb[0].mxu0
        %v2757 = vadd.f32 %v2466, %v2756
        %2758 = vdwg.mxu0
        %v2759 = vmul.f32 %v2542, 0.5
        %v2760 = vmul.f32 %v2544, 0.5
        %v2761 = vmul.f32 %v2613, 0.5
        %v2762 = vmul.f32 %v2615, 0.5
        %v2763 = vmul.f32 %v2684, 0.5
        %v2764 = vmul.f32 %v2686, 0.5
        %v2765 = vmul.f32 %v2755, 0.5
        %v2766 = vmul.f32 %v2757, 0.5
        %v2767 = vmul.f32 %v2542, %v2542
        %v2768 = vmul.f32 %v2544, %v2544
        %v2769 = vmul.f32 %v2613, %v2613
        %v2770 = vmul.f32 %v2615, %v2615
        %v2771 = vmul.f32 %v2684, %v2684
        %v2772 = vmul.f32 %v2686, %v2686
        %v2773 = vmul.f32 %v2755, %v2755
        %v2774 = vmul.f32 %v2757, %v2757
        %v2775 = vmul.f32 %v2767, %v2542
        %v2776 = vmul.f32 %v2768, %v2544
        %v2777 = vmul.f32 %v2769, %v2613
        %v2778 = vmul.f32 %v2770, %v2615
        %v2779 = vmul.f32 %v2771, %v2684
        %v2780 = vmul.f32 %v2772, %v2686
        %v2781 = vmul.f32 %v2773, %v2755
        %v2782 = vmul.f32 %v2774, %v2757
        %v2783 = vmul.f32 %v2775, 0.044715
        %v2784 = vmul.f32 %v2776, 0.044715
        %v2785 = vmul.f32 %v2777, 0.044715
        %v2786 = vmul.f32 %v2778, 0.044715
        %v2787 = vmul.f32 %v2779, 0.044715
        %v2788 = vmul.f32 %v2780, 0.044715
        %v2789 = vmul.f32 %v2781, 0.044715
        %v2790 = vmul.f32 %v2782, 0.044715
        %v2791 = vadd.f32 %v2542, %v2783
        %v2792 = vadd.f32 %v2544, %v2784
        %v2793 = vadd.f32 %v2613, %v2785
        %v2794 = vadd.f32 %v2615, %v2786
        %v2795 = vadd.f32 %v2684, %v2787
        %v2796 = vadd.f32 %v2686, %v2788
        %v2797 = vadd.f32 %v2755, %v2789
        %v2798 = vadd.f32 %v2757, %v2790
        %v2799 = vmul.f32 %v2791, 0.7978846
        %v2800 = vmul.f32 %v2792, 0.7978846
        %v2801 = vmul.f32 %v2793, 0.7978846
        %v2802 = vmul.f32 %v2794, 0.7978846
        %v2803 = vmul.f32 %v2795, 0.7978846
        %v2804 = vmul.f32 %v2796, 0.7978846
        %v2805 = vmul.f32 %v2797, 0.7978846
        %v2806 = vmul.f32 %v2798, 0.7978846
        %v2807 = vtanh.pop %v2799
        %v2808 = vtanh.pop %v2800
        %v2809 = vtanh.pop %v2801
        %v2810 = vtanh.pop %v2802
        %v2811 = vtanh.pop %v2803
        %v2812 = vtanh.pop %v2804
        %v2813 = vtanh.pop %v2805
        %v2814 = vtanh.pop %v2806
        %v2815 = vadd.f32 %v2807, 1.0
        %v2816 = vadd.f32 %v2808, 1.0
        %v2817 = vadd.f32 %v2809, 1.0
        %v2818 = vadd.f32 %v2810, 1.0
        %v2819 = vadd.f32 %v2811, 1.0
        %v2820 = vadd.f32 %v2812, 1.0
        %v2821 = vadd.f32 %v2813, 1.0
        %v2822 = vadd.f32 %v2814, 1.0
        %v2823 = vmul.f32 %v2759, %v2815
        %v2824 = vmul.f32 %v2760, %v2816
        %v2825 = vmul.f32 %v2761, %v2817
        %v2826 = vmul.f32 %v2762, %v2818
        %v2827 = vmul.f32 %v2763, %v2819
        %v2828 = vmul.f32 %v2764, %v2820
        %v2829 = vmul.f32 %v2765, %v2821
        %v2830 = vmul.f32 %v2766, %v2822
        %v2831 = vld [vmem:[#allocation14] sm:$0xff]
        %v2832 = vld [vmem:[#allocation14 + $0x8] sm:$0xff]
        %v2833 = vld [vmem:[#allocation14 + $0x10] sm:$0xff]
        %v2834 = vld [vmem:[#allocation14 + $0x18] sm:$0xff]
        %v2835 = vld [vmem:[#allocation14 + $0x20] sm:$0xff]
        %v2836 = vld [vmem:[#allocation14 + $0x28] sm:$0xff]
        %v2837 = vld [vmem:[#allocation14 + $0x30] sm:$0xff]
        %v2838 = vld [vmem:[#allocation14 + $0x38] sm:$0xff]
        %v2839 = vld [vmem:[#allocation14 + $0x40] sm:$0xff]
        %v2840 = vld [vmem:[#allocation14 + $0x48] sm:$0xff]
        %v2841 = vld [vmem:[#allocation14 + $0x50] sm:$0xff]
        %v2842 = vld [vmem:[#allocation14 + $0x58] sm:$0xff]
        %v2843 = vld [vmem:[#allocation14 + $0x60] sm:$0xff]
        %v2844 = vld [vmem:[#allocation14 + $0x68] sm:$0xff]
        %v2845 = vld [vmem:[#allocation14 + $0x70] sm:$0xff]
        %v2846 = vld [vmem:[#allocation14 + $0x78] sm:$0xff]
        %v2847 = vld [vmem:[#allocation14 + $0x80] sm:$0xff]
        %v2848 = vld [vmem:[#allocation14 + $0x88] sm:$0xff]
        %v2849 = vld [vmem:[#allocation14 + $0x90] sm:$0xff]
        %v2850 = vld [vmem:[#allocation14 + $0x98] sm:$0xff]
        %v2851 = vld [vmem:[#allocation14 + $0xa0] sm:$0xff]
        %v2852 = vld [vmem:[#allocation14 + $0xa8] sm:$0xff]
        %v2853 = vld [vmem:[#allocation14 + $0xb0] sm:$0xff]
        %v2854 = vld [vmem:[#allocation14 + $0xb8] sm:$0xff]
        %v2855 = vld [vmem:[#allocation14 + $0xc0] sm:$0xff]
        %v2856 = vld [vmem:[#allocation14 + $0xc8] sm:$0xff]
        %v2857 = vld [vmem:[#allocation14 + $0xd0] sm:$0xff]
        %v2858 = vld [vmem:[#allocation14 + $0xd8] sm:$0xff]
        %v2859 = vld [vmem:[#allocation14 + $0xe0] sm:$0xff]
        %v2860 = vld [vmem:[#allocation14 + $0xe8] sm:$0xff]
        %v2861 = vld [vmem:[#allocation14 + $0xf0] sm:$0xff]
        %v2862 = vld [vmem:[#allocation14 + $0xf8] sm:$0xff]
        %v2863 = vld [vmem:[#allocation14 + $0x100] sm:$0xff]
        %v2864 = vld [vmem:[#allocation14 + $0x108] sm:$0xff]
        %v2865 = vld [vmem:[#allocation14 + $0x110] sm:$0xff]
        %v2866 = vld [vmem:[#allocation14 + $0x118] sm:$0xff]
        %v2867 = vld [vmem:[#allocation14 + $0x120] sm:$0xff]
        %v2868 = vld [vmem:[#allocation14 + $0x128] sm:$0xff]
        %v2869 = vld [vmem:[#allocation14 + $0x130] sm:$0xff]
        %v2870 = vld [vmem:[#allocation14 + $0x138] sm:$0xff]
        %v2871 = vld [vmem:[#allocation14 + $0x140] sm:$0xff]
        %v2872 = vld [vmem:[#allocation14 + $0x148] sm:$0xff]
        %v2873 = vld [vmem:[#allocation14 + $0x150] sm:$0xff]
        %v2874 = vld [vmem:[#allocation14 + $0x158] sm:$0xff]
        %v2875 = vld [vmem:[#allocation14 + $0x160] sm:$0xff]
        %v2876 = vld [vmem:[#allocation14 + $0x168] sm:$0xff]
        %v2877 = vld [vmem:[#allocation14 + $0x170] sm:$0xff]
        %v2878 = vld [vmem:[#allocation14 + $0x178] sm:$0xff]
        %v2879 = vld [vmem:[#allocation14 + $0x180] sm:$0xff]
        %v2880 = vld [vmem:[#allocation14 + $0x188] sm:$0xff]
        %v2881 = vld [vmem:[#allocation14 + $0x190] sm:$0xff]
        %v2882 = vld [vmem:[#allocation14 + $0x198] sm:$0xff]
        %v2883 = vld [vmem:[#allocation14 + $0x1a0] sm:$0xff]
        %v2884 = vld [vmem:[#allocation14 + $0x1a8] sm:$0xff]
        %v2885 = vld [vmem:[#allocation14 + $0x1b0] sm:$0xff]
        %v2886 = vld [vmem:[#allocation14 + $0x1b8] sm:$0xff]
        %v2887 = vld [vmem:[#allocation14 + $0x1c0] sm:$0xff]
        %v2888 = vld [vmem:[#allocation14 + $0x1c8] sm:$0xff]
        %v2889 = vld [vmem:[#allocation14 + $0x1d0] sm:$0xff]
        %v2890 = vld [vmem:[#allocation14 + $0x1d8] sm:$0xff]
        %v2891 = vld [vmem:[#allocation14 + $0x1e0] sm:$0xff]
        %v2892 = vld [vmem:[#allocation14 + $0x1e8] sm:$0xff]
        %v2893 = vld [vmem:[#allocation14 + $0x1f0] sm:$0xff]
        %v2894 = vld [vmem:[#allocation14 + $0x1f8] sm:$0xff]
        %v2895 = vld [vmem:[#allocation14 + $0x200] sm:$0xff]
        %v2896 = vld [vmem:[#allocation14 + $0x208] sm:$0xff]
        %v2897 = vld [vmem:[#allocation14 + $0x210] sm:$0xff]
        %v2898 = vld [vmem:[#allocation14 + $0x218] sm:$0xff]
        %v2899 = vld [vmem:[#allocation14 + $0x220] sm:$0xff]
        %v2900 = vld [vmem:[#allocation14 + $0x228] sm:$0xff]
        %v2901 = vld [vmem:[#allocation14 + $0x230] sm:$0xff]
        %v2902 = vld [vmem:[#allocation14 + $0x238] sm:$0xff]
        %v2903 = vld [vmem:[#allocation14 + $0x240] sm:$0xff]
        %v2904 = vld [vmem:[#allocation14 + $0x248] sm:$0xff]
        %v2905 = vld [vmem:[#allocation14 + $0x250] sm:$0xff]
        %v2906 = vld [vmem:[#allocation14 + $0x258] sm:$0xff]
        %v2907 = vld [vmem:[#allocation14 + $0x260] sm:$0xff]
        %v2908 = vld [vmem:[#allocation14 + $0x268] sm:$0xff]
        %v2909 = vld [vmem:[#allocation14 + $0x270] sm:$0xff]
        %v2910 = vld [vmem:[#allocation14 + $0x278] sm:$0xff]
        %v2911 = vld [vmem:[#allocation14 + $0x280] sm:$0xff]
        %v2912 = vld [vmem:[#allocation14 + $0x288] sm:$0xff]
        %v2913 = vld [vmem:[#allocation14 + $0x290] sm:$0xff]
        %v2914 = vld [vmem:[#allocation14 + $0x298] sm:$0xff]
        %v2915 = vld [vmem:[#allocation14 + $0x2a0] sm:$0xff]
        %v2916 = vld [vmem:[#allocation14 + $0x2a8] sm:$0xff]
        %v2917 = vld [vmem:[#allocation14 + $0x2b0] sm:$0xff]
        %v2918 = vld [vmem:[#allocation14 + $0x2b8] sm:$0xff]
        %v2919 = vld [vmem:[#allocation14 + $0x2c0] sm:$0xff]
        %v2920 = vld [vmem:[#allocation14 + $0x2c8] sm:$0xff]
        %v2921 = vld [vmem:[#allocation14 + $0x2d0] sm:$0xff]
        %v2922 = vld [vmem:[#allocation14 + $0x2d8] sm:$0xff]
        %v2923 = vld [vmem:[#allocation14 + $0x2e0] sm:$0xff]
        %v2924 = vld [vmem:[#allocation14 + $0x2e8] sm:$0xff]
        %v2925 = vld [vmem:[#allocation14 + $0x2f0] sm:$0xff]
        %v2926 = vld [vmem:[#allocation14 + $0x2f8] sm:$0xff]
        %v2927 = vld [vmem:[#allocation14 + $0x300] sm:$0xff]
        %v2928 = vld [vmem:[#allocation14 + $0x308] sm:$0xff]
        %v2929 = vld [vmem:[#allocation14 + $0x310] sm:$0xff]
        %v2930 = vld [vmem:[#allocation14 + $0x318] sm:$0xff]
        %v2931 = vld [vmem:[#allocation14 + $0x320] sm:$0xff]
        %v2932 = vld [vmem:[#allocation14 + $0x328] sm:$0xff]
        %v2933 = vld [vmem:[#allocation14 + $0x330] sm:$0xff]
        %v2934 = vld [vmem:[#allocation14 + $0x338] sm:$0xff]
        %v2935 = vld [vmem:[#allocation14 + $0x340] sm:$0xff]
        %v2936 = vld [vmem:[#allocation14 + $0x348] sm:$0xff]
        %v2937 = vld [vmem:[#allocation14 + $0x350] sm:$0xff]
        %v2938 = vld [vmem:[#allocation14 + $0x358] sm:$0xff]
        %v2939 = vld [vmem:[#allocation14 + $0x360] sm:$0xff]
        %v2940 = vld [vmem:[#allocation14 + $0x368] sm:$0xff]
        %v2941 = vld [vmem:[#allocation14 + $0x370] sm:$0xff]
        %v2942 = vld [vmem:[#allocation14 + $0x378] sm:$0xff]
        %v2943 = vld [vmem:[#allocation14 + $0x380] sm:$0xff]
        %v2944 = vld [vmem:[#allocation14 + $0x388] sm:$0xff]
        %v2945 = vld [vmem:[#allocation14 + $0x390] sm:$0xff]
        %v2946 = vld [vmem:[#allocation14 + $0x398] sm:$0xff]
        %v2947 = vld [vmem:[#allocation14 + $0x3a0] sm:$0xff]
        %v2948 = vld [vmem:[#allocation14 + $0x3a8] sm:$0xff]
        %v2949 = vld [vmem:[#allocation14 + $0x3b0] sm:$0xff]
        %v2950 = vld [vmem:[#allocation14 + $0x3b8] sm:$0xff]
        %v2951 = vld [vmem:[#allocation14 + $0x3c0] sm:$0xff]
        %v2952 = vld [vmem:[#allocation14 + $0x3c8] sm:$0xff]
        %v2953 = vld [vmem:[#allocation14 + $0x3d0] sm:$0xff]
        %v2954 = vld [vmem:[#allocation14 + $0x3d8] sm:$0xff]
        %v2955 = vld [vmem:[#allocation14 + $0x3e0] sm:$0xff]
        %v2956 = vld [vmem:[#allocation14 + $0x3e8] sm:$0xff]
        %v2957 = vld [vmem:[#allocation14 + $0x3f0] sm:$0xff]
        %v2958 = vld [vmem:[#allocation14 + $0x3f8] sm:$0xff]
        %v2959 = vld [vmem:[%s12] sm:$0x1]
        %v2961 = vlaneseq
        %v2962 = vshrl.u32 %v2961, 7
        %v2963 = vsub.s32 0, %v2962
        %v2964 = vrot.slane %v2959, %v2963
        %2966 = vmatprep.subr.mxu0 0.0
        %2967 = vmatpush1.msra.mxu0 %v2831
        %2968 = vmatprep.subr.mxu0 0.0
        %2969 = vmatpush1.msra.mxu0 %v2832
        %2970 = vmatprep.subr.mxu0 0.0
        %2971 = vmatpush1.msra.mxu0 %v2833
        %2972 = vmatprep.subr.mxu0 0.0
        %2973 = vmatpush1.msra.mxu0 %v2834
        %2974 = vmatprep.subr.mxu0 0.0
        %2975 = vmatpush1.msra.mxu0 %v2835
        %2976 = vmatprep.subr.mxu0 0.0
        %2977 = vmatpush1.msra.mxu0 %v2836
        %2978 = vmatprep.subr.mxu0 0.0
        %2979 = vmatpush1.msra.mxu0 %v2837
        %2980 = vmatprep.subr.mxu0 0.0
        %2981 = vmatpush1.msra.mxu0 %v2838
        %2982 = vmatprep.subr.mxu0 0.0
        %2983 = vmatpush1.msra.mxu0 %v2839
        %2984 = vmatprep.subr.mxu0 0.0
        %2985 = vmatpush1.msra.mxu0 %v2840
        %2986 = vmatprep.subr.mxu0 0.0
        %2987 = vmatpush1.msra.mxu0 %v2841
        %2988 = vmatprep.subr.mxu0 0.0
        %2989 = vmatpush1.msra.mxu0 %v2842
        %2990 = vmatprep.subr.mxu0 0.0
        %2991 = vmatpush1.msra.mxu0 %v2843
        %2992 = vmatprep.subr.mxu0 0.0
        %2993 = vmatpush1.msra.mxu0 %v2844
        %2994 = vmatprep.subr.mxu0 0.0
        %2995 = vmatpush1.msra.mxu0 %v2845
        %2996 = vmatprep.subr.mxu0 0.0
        %2997 = vmatpush1.msra.mxu0 %v2846
        %2998 = vmatprep.subr.mxu0 0.0
        %2999 = vmatpush1.msra.mxu0 %v2847
        %3000 = vmatprep.subr.mxu0 0.0
        %3001 = vmatpush1.msra.mxu0 %v2848
        %3002 = vmatprep.subr.mxu0 0.0
        %3003 = vmatpush1.msra.mxu0 %v2849
        %3004 = vmatprep.subr.mxu0 0.0
        %3005 = vmatpush1.msra.mxu0 %v2850
        %3006 = vmatprep.subr.mxu0 0.0
        %3007 = vmatpush1.msra.mxu0 %v2851
        %3008 = vmatprep.subr.mxu0 0.0
        %3009 = vmatpush1.msra.mxu0 %v2852
        %3010 = vmatprep.subr.mxu0 0.0
        %3011 = vmatpush1.msra.mxu0 %v2853
        %3012 = vmatprep.subr.mxu0 0.0
        %3013 = vmatpush1.msra.mxu0 %v2854
        %3014 = vmatprep.subr.mxu0 0.0
        %3015 = vmatpush1.msra.mxu0 %v2855
        %3016 = vmatprep.subr.mxu0 0.0
        %3017 = vmatpush1.msra.mxu0 %v2856
        %3018 = vmatprep.subr.mxu0 0.0
        %3019 = vmatpush1.msra.mxu0 %v2857
        %3020 = vmatprep.subr.mxu0 0.0
        %3021 = vmatpush1.msra.mxu0 %v2858
        %3022 = vmatprep.subr.mxu0 0.0
        %3023 = vmatpush1.msra.mxu0 %v2859
        %3024 = vmatprep.subr.mxu0 0.0
        %3025 = vmatpush1.msra.mxu0 %v2860
        %3026 = vmatprep.subr.mxu0 0.0
        %3027 = vmatpush1.msra.mxu0 %v2861
        %3028 = vmatprep.subr.mxu0 0.0
        %3029 = vmatpush1.msra.mxu0 %v2862
        %3030 = vmatprep.mubr.f32.mxu0 %v2824
        %3031 = vmatmul.mubr.f32.gmra.mrb[0].mxu0 %v2823
        %v3032 = vpop.f32.mrb[0].mxu0
        %v3033 = vadd.f32 %v2964, %v3032
        %v3034 = vpop.f32.mrb[0].mxu0
        %3035 = vdwg.mxu0
        %3036 = vmatprep.subr.mxu0 0.0
        %3037 = vmatpush1.msra.mxu0 %v2863
        %3038 = vmatprep.subr.mxu0 0.0
        %3039 = vmatpush1.msra.mxu0 %v2864
        %3040 = vmatprep.subr.mxu0 0.0
        %3041 = vmatpush1.msra.mxu0 %v2865
        %3042 = vmatprep.subr.mxu0 0.0
        %3043 = vmatpush1.msra.mxu0 %v2866
        %3044 = vmatprep.subr.mxu0 0.0
        %3045 = vmatpush1.msra.mxu0 %v2867
        %3046 = vmatprep.subr.mxu0 0.0
        %3047 = vmatpush1.msra.mxu0 %v2868
        %3048 = vmatprep.subr.mxu0 0.0
        %3049 = vmatpush1.msra.mxu0 %v2869
        %3050 = vmatprep.subr.mxu0 0.0
        %3051 = vmatpush1.msra.mxu0 %v2870
        %3052 = vmatprep.subr.mxu0 0.0
        %3053 = vmatpush1.msra.mxu0 %v2871
        %3054 = vmatprep.subr.mxu0 0.0
        %3055 = vmatpush1.msra.mxu0 %v2872
        %3056 = vmatprep.subr.mxu0 0.0
        %3057 = vmatpush1.msra.mxu0 %v2873
        %3058 = vmatprep.subr.mxu0 0.0
        %3059 = vmatpush1.msra.mxu0 %v2874
        %3060 = vmatprep.subr.mxu0 0.0
        %3061 = vmatpush1.msra.mxu0 %v2875
        %3062 = vmatprep.subr.mxu0 0.0
        %3063 = vmatpush1.msra.mxu0 %v2876
        %3064 = vmatprep.subr.mxu0 0.0
        %3065 = vmatpush1.msra.mxu0 %v2877
        %3066 = vmatprep.subr.mxu0 0.0
        %3067 = vmatpush1.msra.mxu0 %v2878
        %3068 = vmatprep.subr.mxu0 0.0
        %3069 = vmatpush1.msra.mxu0 %v2879
        %3070 = vmatprep.subr.mxu0 0.0
        %3071 = vmatpush1.msra.mxu0 %v2880
        %3072 = vmatprep.subr.mxu0 0.0
        %3073 = vmatpush1.msra.mxu0 %v2881
        %3074 = vmatprep.subr.mxu0 0.0
        %3075 = vmatpush1.msra.mxu0 %v2882
        %3076 = vmatprep.subr.mxu0 0.0
        %3077 = vmatpush1.msra.mxu0 %v2883
        %3078 = vmatprep.subr.mxu0 0.0
        %3079 = vmatpush1.msra.mxu0 %v2884
        %3080 = vmatprep.subr.mxu0 0.0
        %3081 = vmatpush1.msra.mxu0 %v2885
        %3082 = vmatprep.subr.mxu0 0.0
        %3083 = vmatpush1.msra.mxu0 %v2886
        %3084 = vmatprep.subr.mxu0 0.0
        %3085 = vmatpush1.msra.mxu0 %v2887
        %3086 = vmatprep.subr.mxu0 0.0
        %3087 = vmatpush1.msra.mxu0 %v2888
        %3088 = vmatprep.subr.mxu0 0.0
        %3089 = vmatpush1.msra.mxu0 %v2889
        %3090 = vmatprep.subr.mxu0 0.0
        %3091 = vmatpush1.msra.mxu0 %v2890
        %3092 = vmatprep.subr.mxu0 0.0
        %3093 = vmatpush1.msra.mxu0 %v2891
        %3094 = vmatprep.subr.mxu0 0.0
        %3095 = vmatpush1.msra.mxu0 %v2892
        %3096 = vmatprep.subr.mxu0 0.0
        %3097 = vmatpush1.msra.mxu0 %v2893
        %3098 = vmatprep.subr.mxu0 0.0
        %3099 = vmatpush1.msra.mxu0 %v2894
        %3100 = vmatprep.mubr.f32.mxu0 %v2826
        %3101 = vmatmul.mubr.f32.gmra.mrb[0].mxu0 %v2825
        %v3102 = vpop.f32.mrb[0].mxu0
        %v3103 = vadd.f32 %v3033, %v3102
        %v3104 = vpop.f32.mrb[0].mxu0
        %3105 = vdwg.mxu0
        %3106 = vmatprep.subr.mxu0 0.0
        %3107 = vmatpush1.msra.mxu0 %v2895
        %3108 = vmatprep.subr.mxu0 0.0
        %3109 = vmatpush1.msra.mxu0 %v2896
        %3110 = vmatprep.subr.mxu0 0.0
        %3111 = vmatpush1.msra.mxu0 %v2897
        %3112 = vmatprep.subr.mxu0 0.0
        %3113 = vmatpush1.msra.mxu0 %v2898
        %3114 = vmatprep.subr.mxu0 0.0
        %3115 = vmatpush1.msra.mxu0 %v2899
        %3116 = vmatprep.subr.mxu0 0.0
        %3117 = vmatpush1.msra.mxu0 %v2900
        %3118 = vmatprep.subr.mxu0 0.0
        %3119 = vmatpush1.msra.mxu0 %v2901
        %3120 = vmatprep.subr.mxu0 0.0
        %3121 = vmatpush1.msra.mxu0 %v2902
        %3122 = vmatprep.subr.mxu0 0.0
        %3123 = vmatpush1.msra.mxu0 %v2903
        %3124 = vmatprep.subr.mxu0 0.0
        %3125 = vmatpush1.msra.mxu0 %v2904
        %3126 = vmatprep.subr.mxu0 0.0
        %3127 = vmatpush1.msra.mxu0 %v2905
        %3128 = vmatprep.subr.mxu0 0.0
        %3129 = vmatpush1.msra.mxu0 %v2906
        %3130 = vmatprep.subr.mxu0 0.0
        %3131 = vmatpush1.msra.mxu0 %v2907
        %3132 = vmatprep.subr.mxu0 0.0
        %3133 = vmatpush1.msra.mxu0 %v2908
        %3134 = vmatprep.subr.mxu0 0.0
        %3135 = vmatpush1.msra.mxu0 %v2909
        %3136 = vmatprep.subr.mxu0 0.0
        %3137 = vmatpush1.msra.mxu0 %v2910
        %3138 = vmatprep.subr.mxu0 0.0
        %3139 = vmatpush1.msra.mxu0 %v2911
        %3140 = vmatprep.subr.mxu0 0.0
        %3141 = vmatpush1.msra.mxu0 %v2912
        %3142 = vmatprep.subr.mxu0 0.0
        %3143 = vmatpush1.msra.mxu0 %v2913
        %3144 = vmatprep.subr.mxu0 0.0
        %3145 = vmatpush1.msra.mxu0 %v2914
        %3146 = vmatprep.subr.mxu0 0.0
        %3147 = vmatpush1.msra.mxu0 %v2915
        %3148 = vmatprep.subr.mxu0 0.0
        %3149 = vmatpush1.msra.mxu0 %v2916
        %3150 = vmatprep.subr.mxu0 0.0
        %3151 = vmatpush1.msra.mxu0 %v2917
        %3152 = vmatprep.subr.mxu0 0.0
        %3153 = vmatpush1.msra.mxu0 %v2918
        %3154 = vmatprep.subr.mxu0 0.0
        %3155 = vmatpush1.msra.mxu0 %v2919
        %3156 = vmatprep.subr.mxu0 0.0
        %3157 = vmatpush1.msra.mxu0 %v2920
        %3158 = vmatprep.subr.mxu0 0.0
        %3159 = vmatpush1.msra.mxu0 %v2921
        %3160 = vmatprep.subr.mxu0 0.0
        %3161 = vmatpush1.msra.mxu0 %v2922
        %3162 = vmatprep.subr.mxu0 0.0
        %3163 = vmatpush1.msra.mxu0 %v2923
        %3164 = vmatprep.subr.mxu0 0.0
        %3165 = vmatpush1.msra.mxu0 %v2924
        %3166 = vmatprep.subr.mxu0 0.0
        %3167 = vmatpush1.msra.mxu0 %v2925
        %3168 = vmatprep.subr.mxu0 0.0
        %3169 = vmatpush1.msra.mxu0 %v2926
        %3170 = vmatprep.mubr.f32.mxu0 %v2828
        %3171 = vmatmul.mubr.f32.gmra.mrb[0].mxu0 %v2827
        %v3172 = vpop.f32.mrb[0].mxu0
        %v3173 = vadd.f32 %v3103, %v3172
        %v3174 = vpop.f32.mrb[0].mxu0
        %3175 = vdwg.mxu0
        %3176 = vmatprep.subr.mxu0 0.0
        %3177 = vmatpush1.msra.mxu0 %v2927
        %3178 = vmatprep.subr.mxu0 0.0
        %3179 = vmatpush1.msra.mxu0 %v2928
        %3180 = vmatprep.subr.mxu0 0.0
        %3181 = vmatpush1.msra.mxu0 %v2929
        %3182 = vmatprep.subr.mxu0 0.0
        %3183 = vmatpush1.msra.mxu0 %v2930
        %3184 = vmatprep.subr.mxu0 0.0
        %3185 = vmatpush1.msra.mxu0 %v2931
        %3186 = vmatprep.subr.mxu0 0.0
        %3187 = vmatpush1.msra.mxu0 %v2932
        %3188 = vmatprep.subr.mxu0 0.0
        %3189 = vmatpush1.msra.mxu0 %v2933
        %3190 = vmatprep.subr.mxu0 0.0
        %3191 = vmatpush1.msra.mxu0 %v2934
        %3192 = vmatprep.subr.mxu0 0.0
        %3193 = vmatpush1.msra.mxu0 %v2935
        %3194 = vmatprep.subr.mxu0 0.0
        %3195 = vmatpush1.msra.mxu0 %v2936
        %3196 = vmatprep.subr.mxu0 0.0
        %3197 = vmatpush1.msra.mxu0 %v2937
        %3198 = vmatprep.subr.mxu0 0.0
        %3199 = vmatpush1.msra.mxu0 %v2938
        %3200 = vmatprep.subr.mxu0 0.0
        %3201 = vmatpush1.msra.mxu0 %v2939
        %3202 = vmatprep.subr.mxu0 0.0
        %3203 = vmatpush1.msra.mxu0 %v2940
        %3204 = vmatprep.subr.mxu0 0.0
        %3205 = vmatpush1.msra.mxu0 %v2941
        %3206 = vmatprep.subr.mxu0 0.0
        %3207 = vmatpush1.msra.mxu0 %v2942
        %3208 = vmatprep.subr.mxu0 0.0
        %3209 = vmatpush1.msra.mxu0 %v2943
        %3210 = vmatprep.subr.mxu0 0.0
        %3211 = vmatpush1.msra.mxu0 %v2944
        %3212 = vmatprep.subr.mxu0 0.0
        %3213 = vmatpush1.msra.mxu0 %v2945
        %3214 = vmatprep.subr.mxu0 0.0
        %3215 = vmatpush1.msra.mxu0 %v2946
        %3216 = vmatprep.subr.mxu0 0.0
        %3217 = vmatpush1.msra.mxu0 %v2947
        %3218 = vmatprep.subr.mxu0 0.0
        %3219 = vmatpush1.msra.mxu0 %v2948
        %3220 = vmatprep.subr.mxu0 0.0
        %3221 = vmatpush1.msra.mxu0 %v2949
        %3222 = vmatprep.subr.mxu0 0.0
        %3223 = vmatpush1.msra.mxu0 %v2950
        %3224 = vmatprep.subr.mxu0 0.0
        %3225 = vmatpush1.msra.mxu0 %v2951
        %3226 = vmatprep.subr.mxu0 0.0
        %3227 = vmatpush1.msra.mxu0 %v2952
        %3228 = vmatprep.subr.mxu0 0.0
        %3229 = vmatpush1.msra.mxu0 %v2953
        %3230 = vmatprep.subr.mxu0 0.0
        %3231 = vmatpush1.msra.mxu0 %v2954
        %3232 = vmatprep.subr.mxu0 0.0
        %3233 = vmatpush1.msra.mxu0 %v2955
        %3234 = vmatprep.subr.mxu0 0.0
        %3235 = vmatpush1.msra.mxu0 %v2956
        %3236 = vmatprep.subr.mxu0 0.0
        %3237 = vmatpush1.msra.mxu0 %v2957
        %3238 = vmatprep.subr.mxu0 0.0
        %3239 = vmatpush1.msra.mxu0 %v2958
        %3240 = vmatprep.mubr.f32.mxu0 %v2830
        %3241 = vmatmul.mubr.f32.gmra.mrb[0].mxu0 %v2829
        %v3242 = vpop.f32.mrb[0].mxu0
        %v3243 = vadd.f32 %v3173, %v3242
        %v3244 = vpop.f32.mrb[0].mxu0
        %3245 = vdwg.mxu0
        %v3246 = vadd.f32 %v2304, %v3243
        %v3247 = vld [vmem:[%s13] sm:$0x1]
        %v3248 = vld [vmem:[%s14] sm:$0x1]
        %3249 = vadd.xlane.f32.xlu0 %v3246
        %v3250 = vpop.xlane.xlu0 %3249
        %v3251 = vmul.f32 %v3250, %v2281
        %v3252 = vsub.f32 %v3246, %v3251
        %v3253 = vmul.f32 %v3252, %v3252
        %3254 = vadd.xlane.f32.xlu0 %v3253
        %v3255 = vpop.xlane.xlu0 %3254
        %v3256 = vmul.f32 %v3255, %v2281
        %v3257 = vadd.f32 %v3256, 1e-06
        %v3258 = vrsqrt.pop %v3257
        %v3259 = vmul.f32 %v3252, %v3258
        %v3261 = vlaneseq
        %v3262 = vshrl.u32 %v3261, 7
        %v3263 = vsub.s32 0, %v3262
        %v3264 = vrot.slane %v3247, %v3263
        %v3266 = vmul.f32 %v3259, %v3264
        %v3268 = vlaneseq
        %v3269 = vshrl.u32 %v3268, 7
        %v3270 = vsub.s32 0, %v3269
        %v3271 = vrot.slane %v3248, %v3270
        %v3273 = vadd.f32 %v3266, %v3271
        %3274 = vst [vmem:[%s773] sm:$0xff] %v3273
        %s3275 = sand.u32 %s422, 1
        %s3276 = scalar_lea.sflag [#allocation4], %s3275
        %s3277 = sand.u32 %s422, 1
        %s3278 = smul.addr %s3277, 8
        %s3279 = scalar_lea.vmem [#allocation16], %s3278
        // Predicated region
        $region113: #{tpu_custom_call.1} parent=79 // pred_check
          %p3280 = pneg %p432
        $region114: #{tpu_custom_call.1} parent=79 // pred_check_branch
          %3282 = sbr.rel (%p3280) target = $region116
        $region115: #{tpu_custom_call.1} parent=79 // pred_region
          %s3284 = ssub.s32 128, 128
          %3285 = vsyncadd %s3276, %s3284
          %s3286 = smul.addr %s46, 2
          %s3287 = sadd.s32 %s47, %s3286
          %s3288 = smul.addr %s3287, 128
          %s3289 = scalar_lea.hbm %s15, %s3288
          %s3291 = sshll.u32 %s3279, 4
          %s3292 = int_to_ptr.vmem [resolvable:$true] %s3291
          %3294 = dma.vmem_to_hbm [thread:$0]  %s3292, 128, %s3289, %s3276
        $region116: #{tpu_custom_call.1} parent=79 // pred_fallthru
          _
      $region80: #{tpu_custom_call.1} parent=5 // pred_fallthru
        _
      %p3295 = scmp.le.s32.totalorder 2, %s37
      // Predicated region
      $region117: #{tpu_custom_call.1} parent=5 // pred_check
        %p3296 = pneg %p3295
      $region118: #{tpu_custom_call.1} parent=5 // pred_check_branch
        %3298 = sbr.rel (%p3296) target = $region120
      $region119: #{tpu_custom_call.1} parent=5 // pred_region
        %s3299 = ssub.s32 %s37, 2
        // Predicated region
        $region121: #{tpu_custom_call.1} parent=119 // pred_check
          %p3300 = pneg %p438
        $region122: #{tpu_custom_call.1} parent=119 // pred_check_branch
          %3302 = sbr.rel (%p3300) target = $region124
        $region123: #{tpu_custom_call.1} parent=119 // pred_region
          %s3303 = sand.u32 %s423, 1
          %s3304 = scalar_lea.sflag [#allocation4], %s3303
          %s3305 = sand.u32 %s423, 1
          %s3306 = smul.addr %s3305, 8
          %s3307 = scalar_lea.vmem [#allocation16], %s3306
          %3308 = dma.done %s3304, 128
        $region124: #{tpu_custom_call.1} parent=119 // pred_fallthru
          _
      $region120: #{tpu_custom_call.1} parent=5 // pred_fallthru
        _
    $region6: #{tpu_custom_call.1} parent=1 // loop_footer
      %s41 = sadd.s32 1, %s37
    $region7: #{tpu_custom_call.1} parent=1 // loop_footer_branch
      %36 = sbr.rel target = $region3
    $region8: #{tpu_custom_call.1} parent=1 // loop_exit
      _
    %3309 = vsyncpa [#allocation3], 1
    %s3310 = scalar_lea.sflag [#allocation3], 1
    %3311 = vsyncpa %s3310, 1
    %3312 = vsyncpa [#allocation6], 1
    %s3313 = scalar_lea.sflag [#allocation6], 1
    %3314 = vsyncpa %s3313, 1
    %3315 = vsyncpa [#allocation9], 1
    %s3316 = scalar_lea.sflag [#allocation9], 1
    %3317 = vsyncpa %s3316, 1
    %3318 = vsyncpa [#allocation12], 1
    %s3319 = scalar_lea.sflag [#allocation12], 1
    %3320 = vsyncpa %s3319, 1
    %3321 = vsyncpa [#allocation15], 1
    %3322 = vsyncpa [#allocation4], 1
    %s3323 = scalar_lea.sflag [#allocation4], 1
    %3324 = vsyncpa %s3323, 1

</llo_original>
